<compile_context>
chip_gen: v7x
topology: tpu7x:2x2x1
jax: 0.10.0
libtpu: 0.0.40
codegen_flags: <defaults>
</compile_context>

<pallas_src>
import jax
import jax.numpy as jnp
from jax import lax
from jax.experimental import pallas as pl
from jax.experimental.pallas import tpu as pltpu

# ---------------- small BERT/DPR-style config ----------------
VOCAB = 100
HIDDEN = 32
NUM_HEADS = 4
HEAD_DIM = HIDDEN // NUM_HEADS
INTERMEDIATE = 64
NUM_LAYERS = 2
MAX_POS = 32
TYPE_VOCAB = 2
LN_EPS = 1e-12
B = 2
S = 8
MASK_BIAS = -1e9  # additive bias for padded key positions

PRECISION = lax.Precision.HIGHEST  # explicit at dot sites (no global config)

# TODO(synk): at real DPR sizes (H=768, 12 layers) use bf16 matmul operands
# (f32 accumulation) and re-derive the VMEM budget for v7x's 64 MiB; at these
# toy shapes f32 weights fit trivially and keep verification exact.


def _dot(a, b):
    return jnp.dot(a, b, preferred_element_type=jnp.float32, precision=PRECISION)


def _layer_norm(x, g, b):
    mean = jnp.mean(x, axis=-1, keepdims=True)
    var = jnp.mean(jnp.square(x - mean), axis=-1, keepdims=True)
    return (x - mean) * lax.rsqrt(var + LN_EPS) * g + b


def _gelu(x):
    # TODO(synk): HF BERT/DPR uses the exact erf-based GELU; erf has no
    # guaranteed Mosaic lowering, so the tanh approximation is used here
    # (same approximation in kernel and reference).
    return jax.nn.gelu(x, approximate=True)


# ---------------- fused Pallas kernel (one batch element, one layer per step) ----------------
def fused_encoder_kernel(emb_ref, bias_ref, emb_g_ref, emb_b_ref,
                         wqkv_ref, bqkv_ref, wo_ref, bo_ref,
                         ln1g_ref, ln1b_ref, w1_ref, b1_ref,
                         w2_ref, b2_ref, ln2g_ref, ln2b_ref,
                         o_ref, x_ref):
    l = pl.program_id(1)

    @pl.when(l == 0)
    def _init():
        # embedding LayerNorm for this batch element
        x_ref[...] = _layer_norm(emb_ref[0].astype(jnp.float32),
                                 emb_g_ref[...], emb_b_ref[...])

    x = x_ref[...]                      # (S, H) activations carried across layers
    bias = bias_ref[0]                  # (1, S): 0 for valid keys, MASK_BIAS for padding

    # fused QKV projection: one (S,H) @ (H,3H) matmul + one bias add
    # (1/sqrt(HEAD_DIM) already folded into the Q columns at pack time)
    qkv = _dot(x, wqkv_ref[0]) + bqkv_ref[0]            # (S, 3H)
    q = qkv[:, 0 * HIDDEN:1 * HIDDEN]
    k = qkv[:, 1 * HIDDEN:2 * HIDDEN]
    v = qkv[:, 2 * HIDDEN:3 * HIDDEN]

    wo = wo_ref[0]                                      # (H, H)
    attn_out = jnp.zeros((x.shape[0], HIDDEN), jnp.float32)
    for h in range(NUM_HEADS):                          # static unroll over heads
        lo = h * HEAD_DIM
        qh = q[:, lo:lo + HEAD_DIM]
        kh = k[:, lo:lo + HEAD_DIM]
        vh = v[:, lo:lo + HEAD_DIM]
        # contract HEAD_DIM directly (no explicit kh.T transpose)
        s = lax.dot_general(qh, kh, (((1,), (1,)), ((), ())),
                            preferred_element_type=jnp.float32,
                            precision=PRECISION) + bias
        s = s - jnp.max(s, axis=-1, keepdims=True)
        p = jnp.exp(s)
        p = p * pl.reciprocal(jnp.sum(p, axis=-1, keepdims=True), approx=True)
        # fold this head's context straight into the output projection
        # (stays in vregs: no ctx scratch, no narrow masked stores)
        attn_out = attn_out + _dot(_dot(p, vh), wo[lo:lo + HEAD_DIM, :])

    attn_out = attn_out + bo_ref[0]
    h1 = _layer_norm(x + attn_out, ln1g_ref[0], ln1b_ref[0])

    ff = _gelu(_dot(h1, w1_ref[0]) + b1_ref[0])
    ff_out = _dot(ff, w2_ref[0]) + b2_ref[0]
    x_new = _layer_norm(h1 + ff_out, ln2g_ref[0], ln2b_ref[0])
    x_ref[...] = x_new

    @pl.when(l == pl.num_programs(1) - 1)
    def _finalize():
        # DPR pooler_output (projection_dim == 0): CLS token only
        o_ref[0] = x_new[0:1, :].astype(o_ref.dtype)


# ---------------- parameters (deterministic synthetic init) ----------------
def init_params(key):
    def dense(k, fi, fo):
        return 0.02 * jax.random.normal(k, (fi, fo), jnp.float32)

    keys = jax.random.split(key, 3 + NUM_LAYERS)
    params = {
        "word_emb": 0.02 * jax.random.normal(keys[0], (VOCAB, HIDDEN), jnp.float32),
        "pos_emb": 0.02 * jax.random.normal(keys[1], (MAX_POS, HIDDEN), jnp.float32),
        "type_emb": 0.02 * jax.random.normal(keys[2], (TYPE_VOCAB, HIDDEN), jnp.float32),
        "emb_ln_g": jnp.ones((HIDDEN,), jnp.float32),
        "emb_ln_b": jnp.zeros((HIDDEN,), jnp.float32),
        "layers": [],
    }
    for l in range(NUM_LAYERS):
        lk = jax.random.split(keys[3 + l], 6)
        params["layers"].append({
            "wq": dense(lk[0], HIDDEN, HIDDEN), "bq": jnp.zeros((HIDDEN,), jnp.float32),
            "wk": dense(lk[1], HIDDEN, HIDDEN), "bk": jnp.zeros((HIDDEN,), jnp.float32),
            "wv": dense(lk[2], HIDDEN, HIDDEN), "bv": jnp.zeros((HIDDEN,), jnp.float32),
            "wo": dense(lk[3], HIDDEN, HIDDEN), "bo": jnp.zeros((HIDDEN,), jnp.float32),
            "ln1_g": jnp.ones((HIDDEN,), jnp.float32), "ln1_b": jnp.zeros((HIDDEN,), jnp.float32),
            "w1": dense(lk[4], HIDDEN, INTERMEDIATE), "b1": jnp.zeros((INTERMEDIATE,), jnp.float32),
            "w2": dense(lk[5], INTERMEDIATE, HIDDEN), "b2": jnp.zeros((HIDDEN,), jnp.float32),
            "ln2_g": jnp.ones((HIDDEN,), jnp.float32), "ln2_b": jnp.zeros((HIDDEN,), jnp.float32),
        })
    return params


def pack_params(params):
    """Stack per-layer weights on [L, ...]; pack QKV (Q pre-scaled); 1-D -> (1, dim) rows."""
    layers = params["layers"]
    scale = 1.0 / (HEAD_DIM ** 0.5)
    stack = lambda name: jnp.stack([lp[name] for lp in layers])          # (L, in, out)
    row = lambda name: jnp.stack([lp[name][None, :] for lp in layers])   # (L, 1, dim)
    # fold 1/sqrt(HEAD_DIM) into the Q columns (weight and bias) once, on host
    wqkv = jnp.stack([jnp.concatenate([lp["wq"] * scale, lp["wk"], lp["wv"]], axis=1)
                      for lp in layers])                                 # (L, H, 3H)
    bqkv = jnp.stack([jnp.concatenate([lp["bq"] * scale, lp["bk"], lp["bv"]])[None, :]
                      for lp in layers])                                 # (L, 1, 3H)
    return {
        "wqkv": wqkv, "bqkv": bqkv,
        "wo": stack("wo"), "bo": row("bo"),
        "ln1_g": row("ln1_g"), "ln1_b": row("ln1_b"),
        "w1": stack("w1"), "b1": row("b1"),
        "w2": stack("w2"), "b2": row("b2"),
        "ln2_g": row("ln2_g"), "ln2_b": row("ln2_b"),
    }


def _cost_estimate(b, s):
    per_layer = (2 * s * HIDDEN * 3 * HIDDEN          # fused QKV
                 + 2 * s * s * HIDDEN                 # scores
                 + 2 * s * s * HIDDEN                 # P @ V
                 + 2 * s * HIDDEN * HIDDEN            # per-head ctx @ Wo
                 + 2 * s * HIDDEN * INTERMEDIATE      # FFN up
                 + 2 * s * INTERMEDIATE * HIDDEN)     # FFN down
    flops = b * NUM_LAYERS * per_layer
    transcendentals = b * NUM_LAYERS * (NUM_HEADS * s * s + s * INTERMEDIATE)
    weight_bytes = 4 * NUM_LAYERS * (HIDDEN * 3 * HIDDEN + 3 * HIDDEN
                                     + HIDDEN * HIDDEN + HIDDEN
                                     + HIDDEN * INTERMEDIATE + INTERMEDIATE
                                     + INTERMEDIATE * HIDDEN + HIDDEN
                                     + 4 * HIDDEN)
    bytes_accessed = 4 * (b * s * HIDDEN + b * s + b * HIDDEN) + b * weight_bytes
    return pl.CostEstimate(flops=flops, transcendentals=transcendentals,
                           bytes_accessed=bytes_accessed)


# ---------------- forward (embedding gathers in plain JAX, rest in Pallas) ----------------
def dpr_context_encoder(params, input_ids, attention_mask):
    b, s = input_ids.shape
    pos_ids = jnp.arange(s)
    emb = (params["word_emb"][input_ids]
           + params["pos_emb"][pos_ids][None, :, :]
           + params["type_emb"][0][None, None, :]).astype(jnp.float32)   # (B,S,H), token_type_ids=0

    # per-batch additive key mask (no dense (B*S,B*S) bias)
    mask_bias = ((1.0 - attention_mask.astype(jnp.float32)) * MASK_BIAS)[:, None, :]  # (B,1,S)

    packed = pack_params(params)

    batch_map = lambda bb, ll: (bb, 0, 0)
    layer_map = lambda bb, ll: (ll, 0, 0)
    const_map = lambda bb, ll: (0, 0)

    in_specs = [
        pl.BlockSpec((1, s, HIDDEN), batch_map),                    # emb
        pl.BlockSpec((1, 1, s), batch_map),                         # mask bias
        pl.BlockSpec((1, HIDDEN), const_map),                       # emb_ln_g
        pl.BlockSpec((1, HIDDEN), const_map),                       # emb_ln_b
        pl.BlockSpec((1, HIDDEN, 3 * HIDDEN), layer_map),           # wqkv
        pl.BlockSpec((1, 1, 3 * HIDDEN), layer_map),                # bqkv
        pl.BlockSpec((1, HIDDEN, HIDDEN), layer_map),               # wo
        pl.BlockSpec((1, 1, HIDDEN), layer_map),                    # bo
        pl.BlockSpec((1, 1, HIDDEN), layer_map),                    # ln1_g
        pl.BlockSpec((1, 1, HIDDEN), layer_map),                    # ln1_b
        pl.BlockSpec((1, HIDDEN, INTERMEDIATE), layer_map),         # w1
        pl.BlockSpec((1, 1, INTERMEDIATE), layer_map),              # b1
        pl.BlockSpec((1, INTERMEDIATE, HIDDEN), layer_map),         # w2
        pl.BlockSpec((1, 1, HIDDEN), layer_map),                    # b2
        pl.BlockSpec((1, 1, HIDDEN), layer_map),                    # ln2_g
        pl.BlockSpec((1, 1, HIDDEN), layer_map),                    # ln2_b
    ]
    out_specs = pl.BlockSpec((1, 1, HIDDEN), batch_map)             # CLS row only

    out = pl.pallas_call(
        fused_encoder_kernel,
        out_shape=jax.ShapeDtypeStruct((b, 1, HIDDEN), jnp.float32),
        grid_spec=pltpu.PrefetchScalarGridSpec(
            num_scalar_prefetch=0,
            grid=(b, NUM_LAYERS),
            in_specs=in_specs,
            out_specs=out_specs,
            scratch_shapes=[pltpu.VMEM((s, HIDDEN), jnp.float32)],  # layer-carried activations
        ),
        compiler_params=pltpu.CompilerParams(
            dimension_semantics=("parallel", "arbitrary"),
            vmem_limit_bytes=64 << 20),
        cost_estimate=_cost_estimate(b, s),
    )(emb, mask_bias,
      params["emb_ln_g"].reshape(1, HIDDEN), params["emb_ln_b"].reshape(1, HIDDEN),
      packed["wqkv"], packed["bqkv"], packed["wo"], packed["bo"],
      packed["ln1_g"], packed["ln1_b"], packed["w1"], packed["b1"],
      packed["w2"], packed["b2"], packed["ln2_g"], packed["ln2_b"])

    return out.reshape(b, HIDDEN)


# ---------------- pure-JAX reference (same math) for verification ----------------
def dpr_context_encoder_ref(params, input_ids, attention_mask):
    b, s = input_ids.shape
    pos_ids = jnp.arange(s)
    x = (params["word_emb"][input_ids]
         + params["pos_emb"][pos_ids][None, :, :]
         + params["type_emb"][0][None, None, :]).astype(jnp.float32)
    x = _layer_norm(x, params["emb_ln_g"], params["emb_ln_b"])
    bias = ((1.0 - attention_mask.astype(jnp.float32)) * MASK_BIAS)[:, None, None, :]
    dot = lambda a, w: jnp.dot(a, w, precision=PRECISION)
    for p in params["layers"]:
        q = (dot(x, p["wq"]) + p["bq"]).reshape(b, s, NUM_HEADS, HEAD_DIM).transpose(0, 2, 1, 3)
        k = (dot(x, p["wk"]) + p["bk"]).reshape(b, s, NUM_HEADS, HEAD_DIM).transpose(0, 2, 1, 3)
        v = (dot(x, p["wv"]) + p["bv"]).reshape(b, s, NUM_HEADS, HEAD_DIM).transpose(0, 2, 1, 3)
        scores = jnp.einsum("bhqd,bhkd->bhqk", q, k, precision=PRECISION) / (HEAD_DIM ** 0.5) + bias
        attn = jax.nn.softmax(scores, axis=-1)
        ctx = jnp.einsum("bhqk,bhkd->bhqd", attn, v,
                         precision=PRECISION).transpose(0, 2, 1, 3).reshape(b, s, HIDDEN)
        h1 = _layer_norm(x + dot(ctx, p["wo"]) + p["bo"], p["ln1_g"], p["ln1_b"])
        ff = dot(_gelu(dot(h1, p["w1"]) + p["b1"]), p["w2"]) + p["b2"]
        x = _layer_norm(h1 + ff, p["ln2_g"], p["ln2_b"])
    return x[:, 0, :]


if __name__ == "__main__":
    key = jax.random.PRNGKey(0)
    pkey, ikey = jax.random.split(key)
    params = init_params(pkey)

    input_ids = jax.random.randint(ikey, (B, S), 0, VOCAB, dtype=jnp.int32)
    attention_mask = jnp.array([[1, 1, 1, 1, 1, 1, 1, 1],
                                [1, 1, 1, 1, 1, 1, 0, 0]], dtype=jnp.int32)

    pooled = dpr_context_encoder(params, input_ids, attention_mask)
    pooled = jax.block_until_ready(pooled)

    ref = dpr_context_encoder_ref(params, input_ids, attention_mask)
    ref = jax.block_until_ready(ref)

    assert pooled.shape == (B, HIDDEN)
    assert jnp.allclose(pooled, ref, rtol=1e-3, atol=1e-3), (
        f"max err {jnp.max(jnp.abs(pooled - ref))}")
    print("KERNEL_OK")
</pallas_src>

<mosaic_0001>
module attributes {stable_mosaic.version = 11 : i64} {
  func.func @fused_encoder_kernel(%arg0: i32, %arg1: i32, %arg2: memref<1x8x32xf32, #tpu.memory_space<vmem>>, %arg3: memref<1x1x8xf32, #tpu.memory_space<vmem>>, %arg4: memref<1x32xf32, #tpu.memory_space<vmem>>, %arg5: memref<1x32xf32, #tpu.memory_space<vmem>>, %arg6: memref<1x32x96xf32, #tpu.memory_space<vmem>>, %arg7: memref<1x1x96xf32, #tpu.memory_space<vmem>>, %arg8: memref<1x32x32xf32, #tpu.memory_space<vmem>>, %arg9: memref<1x1x32xf32, #tpu.memory_space<vmem>>, %arg10: memref<1x1x32xf32, #tpu.memory_space<vmem>>, %arg11: memref<1x1x32xf32, #tpu.memory_space<vmem>>, %arg12: memref<1x32x64xf32, #tpu.memory_space<vmem>>, %arg13: memref<1x1x64xf32, #tpu.memory_space<vmem>>, %arg14: memref<1x64x32xf32, #tpu.memory_space<vmem>>, %arg15: memref<1x1x32xf32, #tpu.memory_space<vmem>>, %arg16: memref<1x1x32xf32, #tpu.memory_space<vmem>>, %arg17: memref<1x1x32xf32, #tpu.memory_space<vmem>>, %arg18: memref<1x1x32xf32, #tpu.memory_space<vmem>>, %arg19: memref<8x32xf32, #tpu.memory_space<vmem>>) attributes {dimension_semantics = [#tpu.dimension_semantics<parallel>, #tpu.dimension_semantics<arbitrary>], iteration_bounds = array<i64: 2, 2>, scalar_prefetch = 0 : i64, scratch_operands = 1 : i64, tpu.core_type = #tpu.core_type<tc>, window_params = [{transform_indices = @transform_0, window_bounds = array<i64: 1, 8, 32>}, {transform_indices = @transform_1, window_bounds = array<i64: 1, 1, 8>}, {pipeline_mode = #tpu.pipeline_mode<synchronous>, transform_indices = @transform_2, window_bounds = array<i64: 1, 32>}, {pipeline_mode = #tpu.pipeline_mode<synchronous>, transform_indices = @transform_3, window_bounds = array<i64: 1, 32>}, {transform_indices = @transform_4, window_bounds = array<i64: 1, 32, 96>}, {transform_indices = @transform_5, window_bounds = array<i64: 1, 1, 96>}, {transform_indices = @transform_6, window_bounds = array<i64: 1, 32, 32>}, {transform_indices = @transform_7, window_bounds = array<i64: 1, 1, 32>}, {transform_indices = @transform_8, window_bounds = array<i64: 1, 1, 32>}, {transform_indices = @transform_9, window_bounds = array<i64: 1, 1, 32>}, {transform_indices = @transform_10, window_bounds = array<i64: 1, 32, 64>}, {transform_indices = @transform_11, window_bounds = array<i64: 1, 1, 64>}, {transform_indices = @transform_12, window_bounds = array<i64: 1, 64, 32>}, {transform_indices = @transform_13, window_bounds = array<i64: 1, 1, 32>}, {transform_indices = @transform_14, window_bounds = array<i64: 1, 1, 32>}, {transform_indices = @transform_15, window_bounds = array<i64: 1, 1, 32>}, {transform_indices = @transform_16, window_bounds = array<i64: 1, 1, 32>}]} {
    %c0_i32 = arith.constant 0 : i32
    %0 = arith.cmpi eq, %arg1, %c0_i32 : i32
    %1 = arith.extui %0 : i1 to i32
    %c0_i32_0 = arith.constant 0 : i32
    %2 = arith.cmpi ne, %1, %c0_i32_0 : i32
    scf.if %2 {
      %c0_81 = arith.constant 0 : index
      %c0_82 = arith.constant 0 : index
      %c0_83 = arith.constant 0 : index
      %188 = vector.load %arg2[%c0_81, %c0_82, %c0_83] : memref<1x8x32xf32, #tpu.memory_space<vmem>>, vector<1x8x32xf32>
      %189 = vector.shape_cast %188 : vector<1x8x32xf32> to vector<8x32xf32>
      %c0_84 = arith.constant 0 : index
      %c0_85 = arith.constant 0 : index
      %190 = vector.load %arg4[%c0_84, %c0_85] : memref<1x32xf32, #tpu.memory_space<vmem>>, vector<1x32xf32>
      %c0_86 = arith.constant 0 : index
      %c0_87 = arith.constant 0 : index
      %191 = vector.load %arg5[%c0_86, %c0_87] : memref<1x32xf32, #tpu.memory_space<vmem>>, vector<1x32xf32>
      %cst_88 = arith.constant dense<0.000000e+00> : vector<8xf32>
      %192 = vector.multi_reduction <add>, %189, %cst_88 [1] : vector<8x32xf32> to vector<8xf32>
      %193 = vector.shape_cast %192 : vector<8xf32> to vector<8x1xf32>
      %cst_89 = arith.constant 3.200000e+01 : f32
      %194 = vector.broadcast %cst_89 : f32 to vector<8x1xf32>
      %195 = arith.divf %193, %194 : vector<8x1xf32>
      %196 = vector.broadcast %195 : vector<8x1xf32> to vector<8x32xf32>
      %197 = arith.subf %189, %196 : vector<8x32xf32>
      %198 = arith.mulf %197, %197 : vector<8x32xf32>
      %cst_90 = arith.constant dense<0.000000e+00> : vector<8xf32>
      %199 = vector.multi_reduction <add>, %198, %cst_90 [1] : vector<8x32xf32> to vector<8xf32>
      %200 = vector.shape_cast %199 : vector<8xf32> to vector<8x1xf32>
      %cst_91 = arith.constant 3.200000e+01 : f32
      %201 = vector.broadcast %cst_91 : f32 to vector<8x1xf32>
      %202 = arith.divf %200, %201 : vector<8x1xf32>
      %203 = vector.broadcast %195 : vector<8x1xf32> to vector<8x32xf32>
      %204 = arith.subf %189, %203 : vector<8x32xf32>
      %cst_92 = arith.constant 9.99999996E-13 : f32
      %205 = vector.broadcast %cst_92 : f32 to vector<8x1xf32>
      %206 = arith.addf %202, %205 : vector<8x1xf32>
      %207 = math.rsqrt %206 : vector<8x1xf32>
      %208 = vector.broadcast %207 : vector<8x1xf32> to vector<8x32xf32>
      %209 = arith.mulf %204, %208 : vector<8x32xf32>
      %210 = vector.broadcast %190 : vector<1x32xf32> to vector<8x32xf32>
      %211 = arith.mulf %209, %210 : vector<8x32xf32>
      %212 = vector.broadcast %191 : vector<1x32xf32> to vector<8x32xf32>
      %213 = arith.addf %211, %212 : vector<8x32xf32>
      %c0_93 = arith.constant 0 : index
      %c0_94 = arith.constant 0 : index
      %214 = vector.load %arg19[%c0_93, %c0_94] : memref<8x32xf32, #tpu.memory_space<vmem>>, vector<8x32xf32>
      tpu.vector_store %arg19[%c0_93, %c0_94], %213 {strides = array<i32>} : memref<8x32xf32, #tpu.memory_space<vmem>>, vector<8x32xf32>,
    } else {
    }
    %c0 = arith.constant 0 : index
    %c0_1 = arith.constant 0 : index
    %3 = vector.load %arg19[%c0, %c0_1] : memref<8x32xf32, #tpu.memory_space<vmem>>, vector<8x32xf32>
    %c0_2 = arith.constant 0 : index
    %c0_3 = arith.constant 0 : index
    %c0_4 = arith.constant 0 : index
    %4 = vector.load %arg3[%c0_2, %c0_3, %c0_4] : memref<1x1x8xf32, #tpu.memory_space<vmem>>, vector<1x1x8xf32>
    %5 = vector.shape_cast %4 : vector<1x1x8xf32> to vector<1x8xf32>
    %c0_5 = arith.constant 0 : index
    %c0_6 = arith.constant 0 : index
    %c0_7 = arith.constant 0 : index
    %6 = vector.load %arg6[%c0_5, %c0_6, %c0_7] : memref<1x32x96xf32, #tpu.memory_space<vmem>>, vector<1x32x96xf32>
    %7 = vector.shape_cast %6 : vector<1x32x96xf32> to vector<32x96xf32>
    %cst = arith.constant dense<0.000000e+00> : vector<8x96xf32>
    %8 = tpu.matmul %3, %7, %cst {dimension_numbers = #tpu.dot_dimension_numbers<[1], [0], [0], [1], [0, 0, 1, 1], [], []>, precision = #tpu.contract_precision<fp32>} : vector<8x32xf32>, vector<32x96xf32>, vector<8x96xf32> -> vector<8x96xf32>
    %c0_8 = arith.constant 0 : index
    %c0_9 = arith.constant 0 : index
    %c0_10 = arith.constant 0 : index
    %9 = vector.load %arg7[%c0_8, %c0_9, %c0_10] : memref<1x1x96xf32, #tpu.memory_space<vmem>>, vector<1x1x96xf32>
    %10 = vector.shape_cast %9 : vector<1x1x96xf32> to vector<1x96xf32>
    %11 = vector.broadcast %10 : vector<1x96xf32> to vector<8x96xf32>
    %12 = arith.addf %8, %11 : vector<8x96xf32>
    %13 = vector.extract_strided_slice %12 {offsets = [0, 0], sizes = [8, 32], strides = [1, 1]} : vector<8x96xf32> to vector<8x32xf32>
    %14 = vector.extract_strided_slice %12 {offsets = [0, 32], sizes = [8, 32], strides = [1, 1]} : vector<8x96xf32> to vector<8x32xf32>
    %15 = vector.extract_strided_slice %12 {offsets = [0, 64], sizes = [8, 32], strides = [1, 1]} : vector<8x96xf32> to vector<8x32xf32>
    %c0_11 = arith.constant 0 : index
    %c0_12 = arith.constant 0 : index
    %c0_13 = arith.constant 0 : index
    %16 = vector.load %arg8[%c0_11, %c0_12, %c0_13] : memref<1x32x32xf32, #tpu.memory_space<vmem>>, vector<1x32x32xf32>
    %17 = vector.shape_cast %16 : vector<1x32x32xf32> to vector<32x32xf32>
    %cst_14 = arith.constant 0.000000e+00 : f32
    %18 = vector.broadcast %cst_14 : f32 to vector<8x32xf32>
    %19 = vector.extract_strided_slice %13 {offsets = [0, 0], sizes = [8, 8], strides = [1, 1]} : vector<8x32xf32> to vector<8x8xf32>
    %20 = vector.extract_strided_slice %14 {offsets = [0, 0], sizes = [8, 8], strides = [1, 1]} : vector<8x32xf32> to vector<8x8xf32>
    %21 = vector.extract_strided_slice %15 {offsets = [0, 0], sizes = [8, 8], strides = [1, 1]} : vector<8x32xf32> to vector<8x8xf32>
    %cst_15 = arith.constant dense<0.000000e+00> : vector<8x8xf32>
    %22 = tpu.matmul %19, %20, %cst_15 {dimension_numbers = #tpu.dot_dimension_numbers<[1], [1], [0], [0], [0, 0, 1, 0], [], []>, precision = #tpu.contract_precision<fp32>} : vector<8x8xf32>, vector<8x8xf32>, vector<8x8xf32> -> vector<8x8xf32>
    %23 = vector.broadcast %5 : vector<1x8xf32> to vector<8x8xf32>
    %24 = arith.addf %22, %23 : vector<8x8xf32>
    %cst_16 = arith.constant dense<0xFF800000> : vector<8xf32>
    %25 = vector.multi_reduction <maximumf>, %24, %cst_16 [1] : vector<8x8xf32> to vector<8xf32>
    %26 = vector.shape_cast %25 : vector<8xf32> to vector<8x1xf32>
    %27 = vector.broadcast %26 : vector<8x1xf32> to vector<8x8xf32>
    %28 = arith.subf %24, %27 : vector<8x8xf32>
    %29 = math.exp %28 : vector<8x8xf32>
    %cst_17 = arith.constant dense<0.000000e+00> : vector<8xf32>
    %30 = vector.multi_reduction <add>, %29, %cst_17 [1] : vector<8x8xf32> to vector<8xf32>
    %31 = vector.shape_cast %30 : vector<8xf32> to vector<8x1xf32>
    %32 = tpu.reciprocal %31 {approx = true} : vector<8x1xf32> -> vector<8x1xf32>
    %33 = vector.broadcast %32 : vector<8x1xf32> to vector<8x8xf32>
    %34 = arith.mulf %29, %33 : vector<8x8xf32>
    %cst_18 = arith.constant dense<0.000000e+00> : vector<8x8xf32>
    %35 = tpu.matmul %34, %21, %cst_18 {dimension_numbers = #tpu.dot_dimension_numbers<[1], [0], [0], [1], [0, 0, 1, 1], [], []>, precision = #tpu.contract_precision<fp32>} : vector<8x8xf32>, vector<8x8xf32>, vector<8x8xf32> -> vector<8x8xf32>
    %36 = vector.extract_strided_slice %17 {offsets = [0, 0], sizes = [8, 32], strides = [1, 1]} : vector<32x32xf32> to vector<8x32xf32>
    %cst_19 = arith.constant dense<0.000000e+00> : vector<8x32xf32>
    %37 = tpu.matmul %35, %36, %cst_19 {dimension_numbers = #tpu.dot_dimension_numbers<[1], [0], [0], [1], [0, 0, 1, 1], [], []>, precision = #tpu.contract_precision<fp32>} : vector<8x8xf32>, vector<8x32xf32>, vector<8x32xf32> -> vector<8x32xf32>
    %38 = arith.addf %18, %37 : vector<8x32xf32>
    %39 = vector.extract_strided_slice %13 {offsets = [0, 8], sizes = [8, 8], strides = [1, 1]} : vector<8x32xf32> to vector<8x8xf32>
    %40 = vector.extract_strided_slice %14 {offsets = [0, 8], sizes = [8, 8], strides = [1, 1]} : vector<8x32xf32> to vector<8x8xf32>
    %41 = vector.extract_strided_slice %15 {offsets = [0, 8], sizes = [8, 8], strides = [1, 1]} : vector<8x32xf32> to vector<8x8xf32>
    %cst_20 = arith.constant dense<0.000000e+00> : vector<8x8xf32>
    %42 = tpu.matmul %39, %40, %cst_20 {dimension_numbers = #tpu.dot_dimension_numbers<[1], [1], [0], [0], [0, 0, 1, 0], [], []>, precision = #tpu.contract_precision<fp32>} : vector<8x8xf32>, vector<8x8xf32>, vector<8x8xf32> -> vector<8x8xf32>
    %43 = vector.broadcast %5 : vector<1x8xf32> to vector<8x8xf32>
    %44 = arith.addf %42, %43 : vector<8x8xf32>
    %cst_21 = arith.constant dense<0xFF800000> : vector<8xf32>
    %45 = vector.multi_reduction <maximumf>, %44, %cst_21 [1] : vector<8x8xf32> to vector<8xf32>
    %46 = vector.shape_cast %45 : vector<8xf32> to vector<8x1xf32>
    %47 = vector.broadcast %46 : vector<8x1xf32> to vector<8x8xf32>
    %48 = arith.subf %44, %47 : vector<8x8xf32>
    %49 = math.exp %48 : vector<8x8xf32>
    %cst_22 = arith.constant dense<0.000000e+00> : vector<8xf32>
    %50 = vector.multi_reduction <add>, %49, %cst_22 [1] : vector<8x8xf32> to vector<8xf32>
    %51 = vector.shape_cast %50 : vector<8xf32> to vector<8x1xf32>
    %52 = tpu.reciprocal %51 {approx = true} : vector<8x1xf32> -> vector<8x1xf32>
    %53 = vector.broadcast %52 : vector<8x1xf32> to vector<8x8xf32>
    %54 = arith.mulf %49, %53 : vector<8x8xf32>
    %cst_23 = arith.constant dense<0.000000e+00> : vector<8x8xf32>
    %55 = tpu.matmul %54, %41, %cst_23 {dimension_numbers = #tpu.dot_dimension_numbers<[1], [0], [0], [1], [0, 0, 1, 1], [], []>, precision = #tpu.contract_precision<fp32>} : vector<8x8xf32>, vector<8x8xf32>, vector<8x8xf32> -> vector<8x8xf32>
    %56 = vector.extract_strided_slice %17 {offsets = [8, 0], sizes = [8, 32], strides = [1, 1]} : vector<32x32xf32> to vector<8x32xf32>
    %cst_24 = arith.constant dense<0.000000e+00> : vector<8x32xf32>
    %57 = tpu.matmul %55, %56, %cst_24 {dimension_numbers = #tpu.dot_dimension_numbers<[1], [0], [0], [1], [0, 0, 1, 1], [], []>, precision = #tpu.contract_precision<fp32>} : vector<8x8xf32>, vector<8x32xf32>, vector<8x32xf32> -> vector<8x32xf32>
    %58 = arith.addf %38, %57 : vector<8x32xf32>
    %59 = vector.extract_strided_slice %13 {offsets = [0, 16], sizes = [8, 8], strides = [1, 1]} : vector<8x32xf32> to vector<8x8xf32>
    %60 = vector.extract_strided_slice %14 {offsets = [0, 16], sizes = [8, 8], strides = [1, 1]} : vector<8x32xf32> to vector<8x8xf32>
    %61 = vector.extract_strided_slice %15 {offsets = [0, 16], sizes = [8, 8], strides = [1, 1]} : vector<8x32xf32> to vector<8x8xf32>
    %cst_25 = arith.constant dense<0.000000e+00> : vector<8x8xf32>
    %62 = tpu.matmul %59, %60, %cst_25 {dimension_numbers = #tpu.dot_dimension_numbers<[1], [1], [0], [0], [0, 0, 1, 0], [], []>, precision = #tpu.contract_precision<fp32>} : vector<8x8xf32>, vector<8x8xf32>, vector<8x8xf32> -> vector<8x8xf32>
    %63 = vector.broadcast %5 : vector<1x8xf32> to vector<8x8xf32>
    %64 = arith.addf %62, %63 : vector<8x8xf32>
    %cst_26 = arith.constant dense<0xFF800000> : vector<8xf32>
    %65 = vector.multi_reduction <maximumf>, %64, %cst_26 [1] : vector<8x8xf32> to vector<8xf32>
    %66 = vector.shape_cast %65 : vector<8xf32> to vector<8x1xf32>
    %67 = vector.broadcast %66 : vector<8x1xf32> to vector<8x8xf32>
    %68 = arith.subf %64, %67 : vector<8x8xf32>
    %69 = math.exp %68 : vector<8x8xf32>
    %cst_27 = arith.constant dense<0.000000e+00> : vector<8xf32>
    %70 = vector.multi_reduction <add>, %69, %cst_27 [1] : vector<8x8xf32> to vector<8xf32>
    %71 = vector.shape_cast %70 : vector<8xf32> to vector<8x1xf32>
    %72 = tpu.reciprocal %71 {approx = true} : vector<8x1xf32> -> vector<8x1xf32>
    %73 = vector.broadcast %72 : vector<8x1xf32> to vector<8x8xf32>
    %74 = arith.mulf %69, %73 : vector<8x8xf32>
    %cst_28 = arith.constant dense<0.000000e+00> : vector<8x8xf32>
    %75 = tpu.matmul %74, %61, %cst_28 {dimension_numbers = #tpu.dot_dimension_numbers<[1], [0], [0], [1], [0, 0, 1, 1], [], []>, precision = #tpu.contract_precision<fp32>} : vector<8x8xf32>, vector<8x8xf32>, vector<8x8xf32> -> vector<8x8xf32>
    %76 = vector.extract_strided_slice %17 {offsets = [16, 0], sizes = [8, 32], strides = [1, 1]} : vector<32x32xf32> to vector<8x32xf32>
    %cst_29 = arith.constant dense<0.000000e+00> : vector<8x32xf32>
    %77 = tpu.matmul %75, %76, %cst_29 {dimension_numbers = #tpu.dot_dimension_numbers<[1], [0], [0], [1], [0, 0, 1, 1], [], []>, precision = #tpu.contract_precision<fp32>} : vector<8x8xf32>, vector<8x32xf32>, vector<8x32xf32> -> vector<8x32xf32>
    %78 = arith.addf %58, %77 : vector<8x32xf32>
    %79 = vector.extract_strided_slice %13 {offsets = [0, 24], sizes = [8, 8], strides = [1, 1]} : vector<8x32xf32> to vector<8x8xf32>
    %80 = vector.extract_strided_slice %14 {offsets = [0, 24], sizes = [8, 8], strides = [1, 1]} : vector<8x32xf32> to vector<8x8xf32>
    %81 = vector.extract_strided_slice %15 {offsets = [0, 24], sizes = [8, 8], strides = [1, 1]} : vector<8x32xf32> to vector<8x8xf32>
    %cst_30 = arith.constant dense<0.000000e+00> : vector<8x8xf32>
    %82 = tpu.matmul %79, %80, %cst_30 {dimension_numbers = #tpu.dot_dimension_numbers<[1], [1], [0], [0], [0, 0, 1, 0], [], []>, precision = #tpu.contract_precision<fp32>} : vector<8x8xf32>, vector<8x8xf32>, vector<8x8xf32> -> vector<8x8xf32>
    %83 = vector.broadcast %5 : vector<1x8xf32> to vector<8x8xf32>
    %84 = arith.addf %82, %83 : vector<8x8xf32>
    %cst_31 = arith.constant dense<0xFF800000> : vector<8xf32>
    %85 = vector.multi_reduction <maximumf>, %84, %cst_31 [1] : vector<8x8xf32> to vector<8xf32>
    %86 = vector.shape_cast %85 : vector<8xf32> to vector<8x1xf32>
    %87 = vector.broadcast %86 : vector<8x1xf32> to vector<8x8xf32>
    %88 = arith.subf %84, %87 : vector<8x8xf32>
    %89 = math.exp %88 : vector<8x8xf32>
    %cst_32 = arith.constant dense<0.000000e+00> : vector<8xf32>
    %90 = vector.multi_reduction <add>, %89, %cst_32 [1] : vector<8x8xf32> to vector<8xf32>
    %91 = vector.shape_cast %90 : vector<8xf32> to vector<8x1xf32>
    %92 = tpu.reciprocal %91 {approx = true} : vector<8x1xf32> -> vector<8x1xf32>
    %93 = vector.broadcast %92 : vector<8x1xf32> to vector<8x8xf32>
    %94 = arith.mulf %89, %93 : vector<8x8xf32>
    %cst_33 = arith.constant dense<0.000000e+00> : vector<8x8xf32>
    %95 = tpu.matmul %94, %81, %cst_33 {dimension_numbers = #tpu.dot_dimension_numbers<[1], [0], [0], [1], [0, 0, 1, 1], [], []>, precision = #tpu.contract_precision<fp32>} : vector<8x8xf32>, vector<8x8xf32>, vector<8x8xf32> -> vector<8x8xf32>
    %96 = vector.extract_strided_slice %17 {offsets = [24, 0], sizes = [8, 32], strides = [1, 1]} : vector<32x32xf32> to vector<8x32xf32>
    %cst_34 = arith.constant dense<0.000000e+00> : vector<8x32xf32>
    %97 = tpu.matmul %95, %96, %cst_34 {dimension_numbers = #tpu.dot_dimension_numbers<[1], [0], [0], [1], [0, 0, 1, 1], [], []>, precision = #tpu.contract_precision<fp32>} : vector<8x8xf32>, vector<8x32xf32>, vector<8x32xf32> -> vector<8x32xf32>
    %98 = arith.addf %78, %97 : vector<8x32xf32>
    %c0_35 = arith.constant 0 : index
    %c0_36 = arith.constant 0 : index
    %c0_37 = arith.constant 0 : index
    %99 = vector.load %arg9[%c0_35, %c0_36, %c0_37] : memref<1x1x32xf32, #tpu.memory_space<vmem>>, vector<1x1x32xf32>
    %100 = vector.shape_cast %99 : vector<1x1x32xf32> to vector<1x32xf32>
    %101 = vector.broadcast %100 : vector<1x32xf32> to vector<8x32xf32>
    %102 = arith.addf %98, %101 : vector<8x32xf32>
    %103 = arith.addf %3, %102 : vector<8x32xf32>
    %c0_38 = arith.constant 0 : index
    %c0_39 = arith.constant 0 : index
    %c0_40 = arith.constant 0 : index
    %104 = vector.load %arg10[%c0_38, %c0_39, %c0_40] : memref<1x1x32xf32, #tpu.memory_space<vmem>>, vector<1x1x32xf32>
    %105 = vector.shape_cast %104 : vector<1x1x32xf32> to vector<1x32xf32>
    %c0_41 = arith.constant 0 : index
    %c0_42 = arith.constant 0 : index
    %c0_43 = arith.constant 0 : index
    %106 = vector.load %arg11[%c0_41, %c0_42, %c0_43] : memref<1x1x32xf32, #tpu.memory_space<vmem>>, vector<1x1x32xf32>
    %107 = vector.shape_cast %106 : vector<1x1x32xf32> to vector<1x32xf32>
    %cst_44 = arith.constant dense<0.000000e+00> : vector<8xf32>
    %108 = vector.multi_reduction <add>, %103, %cst_44 [1] : vector<8x32xf32> to vector<8xf32>
    %109 = vector.shape_cast %108 : vector<8xf32> to vector<8x1xf32>
    %cst_45 = arith.constant 3.200000e+01 : f32
    %110 = vector.broadcast %cst_45 : f32 to vector<8x1xf32>
    %111 = arith.divf %109, %110 : vector<8x1xf32>
    %112 = vector.broadcast %111 : vector<8x1xf32> to vector<8x32xf32>
    %113 = arith.subf %103, %112 : vector<8x32xf32>
    %114 = arith.mulf %113, %113 : vector<8x32xf32>
    %cst_46 = arith.constant dense<0.000000e+00> : vector<8xf32>
    %115 = vector.multi_reduction <add>, %114, %cst_46 [1] : vector<8x32xf32> to vector<8xf32>
    %116 = vector.shape_cast %115 : vector<8xf32> to vector<8x1xf32>
    %cst_47 = arith.constant 3.200000e+01 : f32
    %117 = vector.broadcast %cst_47 : f32 to vector<8x1xf32>
    %118 = arith.divf %116, %117 : vector<8x1xf32>
    %119 = vector.broadcast %111 : vector<8x1xf32> to vector<8x32xf32>
    %120 = arith.subf %103, %119 : vector<8x32xf32>
    %cst_48 = arith.constant 9.99999996E-13 : f32
    %121 = vector.broadcast %cst_48 : f32 to vector<8x1xf32>
    %122 = arith.addf %118, %121 : vector<8x1xf32>
    %123 = math.rsqrt %122 : vector<8x1xf32>
    %124 = vector.broadcast %123 : vector<8x1xf32> to vector<8x32xf32>
    %125 = arith.mulf %120, %124 : vector<8x32xf32>
    %126 = vector.broadcast %105 : vector<1x32xf32> to vector<8x32xf32>
    %127 = arith.mulf %125, %126 : vector<8x32xf32>
    %128 = vector.broadcast %107 : vector<1x32xf32> to vector<8x32xf32>
    %129 = arith.addf %127, %128 : vector<8x32xf32>
    %c0_49 = arith.constant 0 : index
    %c0_50 = arith.constant 0 : index
    %c0_51 = arith.constant 0 : index
    %130 = vector.load %arg12[%c0_49, %c0_50, %c0_51] : memref<1x32x64xf32, #tpu.memory_space<vmem>>, vector<1x32x64xf32>
    %131 = vector.shape_cast %130 : vector<1x32x64xf32> to vector<32x64xf32>
    %cst_52 = arith.constant dense<0.000000e+00> : vector<8x64xf32>
    %132 = tpu.matmul %129, %131, %cst_52 {dimension_numbers = #tpu.dot_dimension_numbers<[1], [0], [0], [1], [0, 0, 1, 1], [], []>, precision = #tpu.contract_precision<fp32>} : vector<8x32xf32>, vector<32x64xf32>, vector<8x64xf32> -> vector<8x64xf32>
    %c0_53 = arith.constant 0 : index
    %c0_54 = arith.constant 0 : index
    %c0_55 = arith.constant 0 : index
    %133 = vector.load %arg13[%c0_53, %c0_54, %c0_55] : memref<1x1x64xf32, #tpu.memory_space<vmem>>, vector<1x1x64xf32>
    %134 = vector.shape_cast %133 : vector<1x1x64xf32> to vector<1x64xf32>
    %135 = vector.broadcast %134 : vector<1x64xf32> to vector<8x64xf32>
    %136 = arith.addf %132, %135 : vector<8x64xf32>
    %137 = arith.mulf %136, %136 : vector<8x64xf32>
    %138 = arith.mulf %136, %137 : vector<8x64xf32>
    %cst_56 = arith.constant 4.471500e-02 : f32
    %139 = vector.broadcast %cst_56 : f32 to vector<8x64xf32>
    %140 = arith.mulf %139, %138 : vector<8x64xf32>
    %141 = arith.addf %136, %140 : vector<8x64xf32>
    %cst_57 = arith.constant 0.797884583 : f32
    %142 = vector.broadcast %cst_57 : f32 to vector<8x64xf32>
    %143 = arith.mulf %142, %141 : vector<8x64xf32>
    %144 = math.tanh %143 : vector<8x64xf32>
    %cst_58 = arith.constant 1.000000e+00 : f32
    %145 = vector.broadcast %cst_58 : f32 to vector<8x64xf32>
    %146 = arith.addf %145, %144 : vector<8x64xf32>
    %cst_59 = arith.constant 5.000000e-01 : f32
    %147 = vector.broadcast %cst_59 : f32 to vector<8x64xf32>
    %148 = arith.mulf %147, %146 : vector<8x64xf32>
    %149 = arith.mulf %136, %148 : vector<8x64xf32>
    %c0_60 = arith.constant 0 : index
    %c0_61 = arith.constant 0 : index
    %c0_62 = arith.constant 0 : index
    %150 = vector.load %arg14[%c0_60, %c0_61, %c0_62] : memref<1x64x32xf32, #tpu.memory_space<vmem>>, vector<1x64x32xf32>
    %151 = vector.shape_cast %150 : vector<1x64x32xf32> to vector<64x32xf32>
    %cst_63 = arith.constant dense<0.000000e+00> : vector<8x32xf32>
    %152 = tpu.matmul %149, %151, %cst_63 {dimension_numbers = #tpu.dot_dimension_numbers<[1], [0], [0], [1], [0, 0, 1, 1], [], []>, precision = #tpu.contract_precision<fp32>} : vector<8x64xf32>, vector<64x32xf32>, vector<8x32xf32> -> vector<8x32xf32>
    %c0_64 = arith.constant 0 : index
    %c0_65 = arith.constant 0 : index
    %c0_66 = arith.constant 0 : index
    %153 = vector.load %arg15[%c0_64, %c0_65, %c0_66] : memref<1x1x32xf32, #tpu.memory_space<vmem>>, vector<1x1x32xf32>
    %154 = vector.shape_cast %153 : vector<1x1x32xf32> to vector<1x32xf32>
    %155 = vector.broadcast %154 : vector<1x32xf32> to vector<8x32xf32>
    %156 = arith.addf %152, %155 : vector<8x32xf32>
    %157 = arith.addf %129, %156 : vector<8x32xf32>
    %c0_67 = arith.constant 0 : index
    %c0_68 = arith.constant 0 : index
    %c0_69 = arith.constant 0 : index
    %158 = vector.load %arg16[%c0_67, %c0_68, %c0_69] : memref<1x1x32xf32, #tpu.memory_space<vmem>>, vector<1x1x32xf32>
    %159 = vector.shape_cast %158 : vector<1x1x32xf32> to vector<1x32xf32>
    %c0_70 = arith.constant 0 : index
    %c0_71 = arith.constant 0 : index
    %c0_72 = arith.constant 0 : index
    %160 = vector.load %arg17[%c0_70, %c0_71, %c0_72] : memref<1x1x32xf32, #tpu.memory_space<vmem>>, vector<1x1x32xf32>
    %161 = vector.shape_cast %160 : vector<1x1x32xf32> to vector<1x32xf32>
    %cst_73 = arith.constant dense<0.000000e+00> : vector<8xf32>
    %162 = vector.multi_reduction <add>, %157, %cst_73 [1] : vector<8x32xf32> to vector<8xf32>
    %163 = vector.shape_cast %162 : vector<8xf32> to vector<8x1xf32>
    %cst_74 = arith.constant 3.200000e+01 : f32
    %164 = vector.broadcast %cst_74 : f32 to vector<8x1xf32>
    %165 = arith.divf %163, %164 : vector<8x1xf32>
    %166 = vector.broadcast %165 : vector<8x1xf32> to vector<8x32xf32>
    %167 = arith.subf %157, %166 : vector<8x32xf32>
    %168 = arith.mulf %167, %167 : vector<8x32xf32>
    %cst_75 = arith.constant dense<0.000000e+00> : vector<8xf32>
    %169 = vector.multi_reduction <add>, %168, %cst_75 [1] : vector<8x32xf32> to vector<8xf32>
    %170 = vector.shape_cast %169 : vector<8xf32> to vector<8x1xf32>
    %cst_76 = arith.constant 3.200000e+01 : f32
    %171 = vector.broadcast %cst_76 : f32 to vector<8x1xf32>
    %172 = arith.divf %170, %171 : vector<8x1xf32>
    %173 = vector.broadcast %165 : vector<8x1xf32> to vector<8x32xf32>
    %174 = arith.subf %157, %173 : vector<8x32xf32>
    %cst_77 = arith.constant 9.99999996E-13 : f32
    %175 = vector.broadcast %cst_77 : f32 to vector<8x1xf32>
    %176 = arith.addf %172, %175 : vector<8x1xf32>
    %177 = math.rsqrt %176 : vector<8x1xf32>
    %178 = vector.broadcast %177 : vector<8x1xf32> to vector<8x32xf32>
    %179 = arith.mulf %174, %178 : vector<8x32xf32>
    %180 = vector.broadcast %159 : vector<1x32xf32> to vector<8x32xf32>
    %181 = arith.mulf %179, %180 : vector<8x32xf32>
    %182 = vector.broadcast %161 : vector<1x32xf32> to vector<8x32xf32>
    %183 = arith.addf %181, %182 : vector<8x32xf32>
    %c0_78 = arith.constant 0 : index
    %c0_79 = arith.constant 0 : index
    %184 = vector.load %arg19[%c0_78, %c0_79] : memref<8x32xf32, #tpu.memory_space<vmem>>, vector<8x32xf32>
    tpu.vector_store %arg19[%c0_78, %c0_79], %183 {strides = array<i32>} : memref<8x32xf32, #tpu.memory_space<vmem>>, vector<8x32xf32>,
    %c1_i32 = arith.constant 1 : i32
    %185 = arith.cmpi eq, %arg1, %c1_i32 : i32
    %186 = arith.extui %185 : i1 to i32
    %c0_i32_80 = arith.constant 0 : i32
    %187 = arith.cmpi ne, %186, %c0_i32_80 : i32
    scf.if %187 {
      %188 = vector.extract_strided_slice %183 {offsets = [0, 0], sizes = [1, 32], strides = [1, 1]} : vector<8x32xf32> to vector<1x32xf32>
      %c0_81 = arith.constant 0 : index
      %c0_82 = arith.constant 0 : index
      %c0_83 = arith.constant 0 : index
      %189 = vector.load %arg18[%c0_81, %c0_82, %c0_83] : memref<1x1x32xf32, #tpu.memory_space<vmem>>, vector<1x1x32xf32>
      %190 = vector.shape_cast %189 : vector<1x1x32xf32> to vector<1x32xf32>
      %191 = vector.shape_cast %188 : vector<1x32xf32> to vector<1x1x32xf32>
      tpu.vector_store %arg18[%c0_81, %c0_82, %c0_83], %191 {strides = array<i32>} : memref<1x1x32xf32, #tpu.memory_space<vmem>>, vector<1x1x32xf32>,
    } else {
    }
    return
  }
  func.func @transform_0(%arg0: i32, %arg1: i32) -> (i32, i32, i32) {
    %c0_i32 = arith.constant 0 : i32
    %c0_i32_0 = arith.constant 0 : i32
    %c0_i32_1 = arith.constant 0 : i32
    return %arg0, %c0_i32, %c0_i32_0 : i32, i32, i32
  }
  func.func @transform_1(%arg0: i32, %arg1: i32) -> (i32, i32, i32) {
    %c0_i32 = arith.constant 0 : i32
    %c0_i32_0 = arith.constant 0 : i32
    %c0_i32_1 = arith.constant 0 : i32
    return %arg0, %c0_i32, %c0_i32_0 : i32, i32, i32
  }
  func.func @transform_2(%arg0: i32, %arg1: i32) -> (i32, i32) {
    %c0_i32 = arith.constant 0 : i32
    %c0_i32_0 = arith.constant 0 : i32
    %c0_i32_1 = arith.constant 0 : i32
    return %c0_i32, %c0_i32_0 : i32, i32
  }
  func.func @transform_3(%arg0: i32, %arg1: i32) -> (i32, i32) {
    %c0_i32 = arith.constant 0 : i32
    %c0_i32_0 = arith.constant 0 : i32
    %c0_i32_1 = arith.constant 0 : i32
    return %c0_i32, %c0_i32_0 : i32, i32
  }
  func.func @transform_4(%arg0: i32, %arg1: i32) -> (i32, i32, i32) {
    %c0_i32 = arith.constant 0 : i32
    %c0_i32_0 = arith.constant 0 : i32
    %c0_i32_1 = arith.constant 0 : i32
    return %arg1, %c0_i32, %c0_i32_0 : i32, i32, i32
  }
  func.func @transform_5(%arg0: i32, %arg1: i32) -> (i32, i32, i32) {
    %c0_i32 = arith.constant 0 : i32
    %c0_i32_0 = arith.constant 0 : i32
    %c0_i32_1 = arith.constant 0 : i32
    return %arg1, %c0_i32, %c0_i32_0 : i32, i32, i32
  }
  func.func @transform_6(%arg0: i32, %arg1: i32) -> (i32, i32, i32) {
    %c0_i32 = arith.constant 0 : i32
    %c0_i32_0 = arith.constant 0 : i32
    %c0_i32_1 = arith.constant 0 : i32
    return %arg1, %c0_i32, %c0_i32_0 : i32, i32, i32
  }
  func.func @transform_7(%arg0: i32, %arg1: i32) -> (i32, i32, i32) {
    %c0_i32 = arith.constant 0 : i32
    %c0_i32_0 = arith.constant 0 : i32
    %c0_i32_1 = arith.constant 0 : i32
    return %arg1, %c0_i32, %c0_i32_0 : i32, i32, i32
  }
  func.func @transform_8(%arg0: i32, %arg1: i32) -> (i32, i32, i32) {
    %c0_i32 = arith.constant 0 : i32
    %c0_i32_0 = arith.constant 0 : i32
    %c0_i32_1 = arith.constant 0 : i32
    return %arg1, %c0_i32, %c0_i32_0 : i32, i32, i32
  }
  func.func @transform_9(%arg0: i32, %arg1: i32) -> (i32, i32, i32) {
    %c0_i32 = arith.constant 0 : i32
    %c0_i32_0 = arith.constant 0 : i32
    %c0_i32_1 = arith.constant 0 : i32
    return %arg1, %c0_i32, %c0_i32_0 : i32, i32, i32
  }
  func.func @transform_10(%arg0: i32, %arg1: i32) -> (i32, i32, i32) {
    %c0_i32 = arith.constant 0 : i32
    %c0_i32_0 = arith.constant 0 : i32
    %c0_i32_1 = arith.constant 0 : i32
    return %arg1, %c0_i32, %c0_i32_0 : i32, i32, i32
  }
  func.func @transform_11(%arg0: i32, %arg1: i32) -> (i32, i32, i32) {
    %c0_i32 = arith.constant 0 : i32
    %c0_i32_0 = arith.constant 0 : i32
    %c0_i32_1 = arith.constant 0 : i32
    return %arg1, %c0_i32, %c0_i32_0 : i32, i32, i32
  }
  func.func @transform_12(%arg0: i32, %arg1: i32) -> (i32, i32, i32) {
    %c0_i32 = arith.constant 0 : i32
    %c0_i32_0 = arith.constant 0 : i32
    %c0_i32_1 = arith.constant 0 : i32
    return %arg1, %c0_i32, %c0_i32_0 : i32, i32, i32
  }
  func.func @transform_13(%arg0: i32, %arg1: i32) -> (i32, i32, i32) {
    %c0_i32 = arith.constant 0 : i32
    %c0_i32_0 = arith.constant 0 : i32
    %c0_i32_1 = arith.constant 0 : i32
    return %arg1, %c0_i32, %c0_i32_0 : i32, i32, i32
  }
  func.func @transform_14(%arg0: i32, %arg1: i32) -> (i32, i32, i32) {
    %c0_i32 = arith.constant 0 : i32
    %c0_i32_0 = arith.constant 0 : i32
    %c0_i32_1 = arith.constant 0 : i32
    return %arg1, %c0_i32, %c0_i32_0 : i32, i32, i32
  }
  func.func @transform_15(%arg0: i32, %arg1: i32) -> (i32, i32, i32) {
    %c0_i32 = arith.constant 0 : i32
    %c0_i32_0 = arith.constant 0 : i32
    %c0_i32_1 = arith.constant 0 : i32
    return %arg1, %c0_i32, %c0_i32_0 : i32, i32, i32
  }
  func.func @transform_16(%arg0: i32, %arg1: i32) -> (i32, i32, i32) {
    %c0_i32 = arith.constant 0 : i32
    %c0_i32_0 = arith.constant 0 : i32
    %c0_i32_1 = arith.constant 0 : i32
    return %arg0, %c0_i32, %c0_i32_0 : i32, i32, i32
  }
}

</mosaic_0001>

<llo_original>
// kernel: tpu_custom_call.1
$region0: #{tpu_custom_call.1}
  #allocation0 [shape = 'u32[]', space=smem, size = 0x4, offset = 0x4, fixed_abs, tag = 'smem constant byte address 0x4 - core index']
  #allocation1 [shape = 'u32[144,128]{1,0:T(1,128)}', space=vmem, size = 0x12000, scoped, tag = 'internal scratch']
  #allocation2 [shape = 'f32[8,32]{1,0:T(8,128)}', space=vmem, size = 0x1000, scoped, tag = 'scratch operand']
  %s0 = inlined_call_operand.hbm [shape: f32[2,8,32], index: 0, kind: input, shape index: {}]
  %s1 = inlined_call_operand.hbm [shape: f32[2,1,8], index: 1, kind: input, shape index: {}]
  %s2 = inlined_call_operand.hbm [shape: f32[1,32], index: 2, kind: input, shape index: {}]
  %s3 = inlined_call_operand.hbm [shape: f32[1,32], index: 3, kind: input, shape index: {}]
  %s4 = inlined_call_operand.hbm [shape: f32[2,32,96], index: 4, kind: input, shape index: {}]
  %s5 = inlined_call_operand.hbm [shape: f32[2,1,96], index: 5, kind: input, shape index: {}]
  %s6 = inlined_call_operand.hbm [shape: f32[2,32,32], index: 6, kind: input, shape index: {}]
  %s7 = inlined_call_operand.hbm [shape: f32[2,1,32], index: 7, kind: input, shape index: {}]
  %s8 = inlined_call_operand.hbm [shape: f32[2,1,32], index: 8, kind: input, shape index: {}]
  %s9 = inlined_call_operand.hbm [shape: f32[2,1,32], index: 9, kind: input, shape index: {}]
  %s10 = inlined_call_operand.hbm [shape: f32[2,32,64], index: 10, kind: input, shape index: {}]
  %s11 = inlined_call_operand.hbm [shape: f32[2,1,64], index: 11, kind: input, shape index: {}]
  %s12 = inlined_call_operand.hbm [shape: f32[2,64,32], index: 12, kind: input, shape index: {}]
  %s13 = inlined_call_operand.hbm [shape: f32[2,1,32], index: 13, kind: input, shape index: {}]
  %s14 = inlined_call_operand.hbm [shape: f32[2,1,32], index: 14, kind: input, shape index: {}]
  %s15 = inlined_call_operand.hbm [shape: f32[2,1,32], index: 15, kind: input, shape index: {}]
  %s16 = inlined_call_operand.hbm [shape: f32[2,1,32], index: 16, kind: output, shape index: {}]
  %s17 = sld [smem:[#allocation0]]
  $region169: #{tpu_custom_call.1} parent=0
    _
  %s19 = ssub.s32 1, %s17
  %s20 = scalar_select 0, %s19, %s17
  $region1: #{tpu_custom_call.1} parent=0
    #allocation3 [shape = 'u8[8192]{0}', space=vmem, size = 0x2000, scoped, tag = 'input window, operand 0']
    #allocation4 [shape = 's32[2]{0}', space=sflag, size = 0x8, scoped, tag = 'scoped memory for tpu_custom_call.1']
    #allocation5 [shape = 's32[2]{0}', space=sflag, size = 0x8, scoped, tag = 'scoped memory for tpu_custom_call.1']
    #allocation6 [shape = 'u8[1024]{0}', space=vmem, size = 0x400, scoped, tag = 'input window, operand 1']
    #allocation7 [shape = 's32[2]{0}', space=sflag, size = 0x8, scoped, tag = 'scoped memory for tpu_custom_call.1']
    #allocation8 [shape = 'u8[512]{0}', space=vmem, size = 0x400, scoped, tag = 'input window, operand 2, single buffered']
    #allocation9 [shape = 'u8[512]{0}', space=vmem, size = 0x400, scoped, tag = 'input window, operand 3, single buffered']
    #allocation10 [shape = 's32[1]{0}', space=sflag, size = 0x4, scoped, tag = 'scoped memory for tpu_custom_call.1']
    #allocation11 [shape = 'u8[32768]{0}', space=vmem, size = 0x8000, scoped, tag = 'input window, operand 4']
    #allocation12 [shape = 'u8[1024]{0}', space=vmem, size = 0x400, scoped, tag = 'input window, operand 5']
    #allocation13 [shape = 'u8[32768]{0}', space=vmem, size = 0x8000, scoped, tag = 'input window, operand 6']
    #allocation14 [shape = 'u8[1024]{0}', space=vmem, size = 0x400, scoped, tag = 'input window, operand 7']
    #allocation15 [shape = 'u8[1024]{0}', space=vmem, size = 0x400, scoped, tag = 'input window, operand 8']
    #allocation16 [shape = 'u8[1024]{0}', space=vmem, size = 0x400, scoped, tag = 'input window, operand 9']
    #allocation17 [shape = 'u8[32768]{0}', space=vmem, size = 0x8000, scoped, tag = 'input window, operand 10']
    #allocation18 [shape = 'u8[1024]{0}', space=vmem, size = 0x400, scoped, tag = 'input window, operand 11']
    #allocation19 [shape = 'u8[65536]{0}', space=vmem, size = 0x10000, scoped, tag = 'input window, operand 12']
    #allocation20 [shape = 'u8[1024]{0}', space=vmem, size = 0x400, scoped, tag = 'input window, operand 13']
    #allocation21 [shape = 'u8[1024]{0}', space=vmem, size = 0x400, scoped, tag = 'input window, operand 14']
    #allocation22 [shape = 'u8[1024]{0}', space=vmem, size = 0x400, scoped, tag = 'input window, operand 15']
    #allocation23 [shape = 'u8[1024]{0}', space=vmem, size = 0x400, scoped, tag = 'output window, operand 0']
    %21 = vsyncpa [#allocation4], 0
    %s22 = scalar_lea.sflag [#allocation4], 1
    %23 = vsyncpa %s22, 0
    %24 = vsyncpa [#allocation7], 0
    %s25 = scalar_lea.sflag [#allocation7], 1
    %26 = vsyncpa %s25, 0
    %27 = vsyncpa [#allocation10], 0
    %28 = vsyncpa [#allocation5], 0
    %s29 = scalar_lea.sflag [#allocation5], 1
    %30 = vsyncpa %s29, 0
    loop: start=0, step=1, limit=6
    $region2: #{tpu_custom_call.1} parent=1 // loop_pre_header
      _
    $region3: #{tpu_custom_call.1} parent=1 // loop_header
      %s32 = sphi 0, %s36
      %p33 = scmp.ge.s32.totalorder %s32, 6
      %s39 = sphi 0, %s51
      %s40 = sphi 0, %s47
      %s41 = sphi 0, %s39
      %s42 = sphi 0, %s40
      %s43 = sphi 0, %s41
      %s44 = sphi 0, %s42
      %s54 = sphi 0, %s56
      %s57 = sphi 0, %s54
      %s58 = sphi 0, %s57
      %s74 = sphi 0, %s58
      %s80 = sphi 0, %s82
      %s83 = sphi 0, %s80
      %s84 = sphi 0, %s83
      %s100 = sphi 0, %s84
      %s104 = sphi 0, %s104
      %s106 = sphi 0, %s104
      %s107 = sphi 0, %s106
      %s121 = sphi 0, %s107
      %s125 = sphi 0, %s125
      %s127 = sphi 0, %s125
      %s128 = sphi 0, %s127
      %s142 = sphi 0, %s128
      %s148 = sphi 0, %s150
      %s151 = sphi 0, %s148
      %s152 = sphi 0, %s151
      %s168 = sphi 0, %s152
      %s174 = sphi 0, %s176
      %s177 = sphi 0, %s174
      %s178 = sphi 0, %s177
      %s194 = sphi 0, %s178
      %s200 = sphi 0, %s202
      %s203 = sphi 0, %s200
      %s204 = sphi 0, %s203
      %s220 = sphi 0, %s204
      %s226 = sphi 0, %s228
      %s229 = sphi 0, %s226
      %s230 = sphi 0, %s229
      %s246 = sphi 0, %s230
      %s252 = sphi 0, %s254
      %s255 = sphi 0, %s252
      %s256 = sphi 0, %s255
      %s272 = sphi 0, %s256
      %s278 = sphi 0, %s280
      %s281 = sphi 0, %s278
      %s282 = sphi 0, %s281
      %s298 = sphi 0, %s282
      %s304 = sphi 0, %s306
      %s307 = sphi 0, %s304
      %s308 = sphi 0, %s307
      %s324 = sphi 0, %s308
      %s330 = sphi 0, %s332
      %s333 = sphi 0, %s330
      %s334 = sphi 0, %s333
      %s350 = sphi 0, %s334
      %s356 = sphi 0, %s358
      %s359 = sphi 0, %s356
      %s360 = sphi 0, %s359
      %s376 = sphi 0, %s360
      %s382 = sphi 0, %s384
      %s385 = sphi 0, %s382
      %s386 = sphi 0, %s385
      %s402 = sphi 0, %s386
      %s408 = sphi 0, %s410
      %s411 = sphi 0, %s408
      %s412 = sphi 0, %s411
      %s428 = sphi 0, %s412
      %s434 = sphi 0, %s436
      %s437 = sphi 0, %s434
      %s438 = sphi 0, %s437
      %s454 = sphi 0, %s438
      %s460 = sphi 0, %s462
      %s463 = sphi 0, %s460
      %s464 = sphi 0, %s463
      %s480 = sphi 0, %s464
    $region4: #{tpu_custom_call.1} parent=1 // loop_header_branch
      %35 = sbr.rel (%p33) target = $region8
    $region5: #{tpu_custom_call.1} parent=1 // loop_body
      %s37 = ssub.s32 %s32, 1
      %s38 = ssub.s32 %s32, 2
      %s45 = sadd.s32 1, %s40
      %p46 = scmp.ge.s32.totalorder %s45, 2
      %s47 = scalar_select %p46, 0, %s45
      %s48 = sadd.s32 1, %s39
      %s49 = scalar_select %p46, %s48, %s39
      %p50 = scmp.ge.s32.totalorder %s49, 2
      %s51 = scalar_select %p50, 0, %s49
      %s52 = ssub.s32 %s39, %s51
      %p53 = scmp.eq.s32.totalorder %s52, 0
      %s55 = sadd.s32 %s54, 1
      %s56 = scalar_select %p53, %s54, %s55
      %p59 = pneg %p53
      %p60 = scmp.eq.s32.totalorder %s32, 3
      %p61 = por %p59, %p60
      %p62 = scmp.ne.s32.totalorder %s54, %s57
      %p63 = scmp.eq.s32.totalorder %s32, 0
      %p64 = por %p62, %p63
      %p65 = scmp.ne.s32.totalorder %s54, %s57
      %p66 = scmp.eq.s32.totalorder %s37, 3
      %p67 = por %p65, %p66
      %p68 = scmp.ne.s32.totalorder %s57, %s58
      %p69 = scmp.eq.s32.totalorder %s37, 0
      %p70 = por %p68, %p69
      %p71 = scmp.ne.s32.totalorder %s57, %s58
      %p72 = scmp.eq.s32.totalorder %s38, 3
      %p73 = por %p71, %p72
      %p75 = scmp.ne.s32.totalorder %s58, %s74
      %p76 = scmp.eq.s32.totalorder %s38, 0
      %p77 = por %p75, %p76
      %s78 = ssub.s32 %s39, %s51
      %p79 = scmp.eq.s32.totalorder %s78, 0
      %s81 = sadd.s32 %s80, 1
      %s82 = scalar_select %p79, %s80, %s81
      %p85 = pneg %p79
      %p86 = scmp.eq.s32.totalorder %s32, 3
      %p87 = por %p85, %p86
      %p88 = scmp.ne.s32.totalorder %s80, %s83
      %p89 = scmp.eq.s32.totalorder %s32, 0
      %p90 = por %p88, %p89
      %p91 = scmp.ne.s32.totalorder %s80, %s83
      %p92 = scmp.eq.s32.totalorder %s37, 3
      %p93 = por %p91, %p92
      %p94 = scmp.ne.s32.totalorder %s83, %s84
      %p95 = scmp.eq.s32.totalorder %s37, 0
      %p96 = por %p94, %p95
      %p97 = scmp.ne.s32.totalorder %s83, %s84
      %p98 = scmp.eq.s32.totalorder %s38, 3
      %p99 = por %p97, %p98
      %p101 = scmp.ne.s32.totalorder %s84, %s100
      %p102 = scmp.eq.s32.totalorder %s38, 0
      %p103 = por %p101, %p102
      %s105 = sadd.s32 %s104, 1
      %p108 = scmp.eq.s32.totalorder %s32, 3
      %p109 = scmp.ne.s32.totalorder %s104, %s106
      %p110 = scmp.eq.s32.totalorder %s32, 0
      %p111 = por %p109, %p110
      %p112 = scmp.ne.s32.totalorder %s104, %s106
      %p113 = scmp.eq.s32.totalorder %s37, 3
      %p114 = por %p112, %p113
      %p115 = scmp.ne.s32.totalorder %s106, %s107
      %p116 = scmp.eq.s32.totalorder %s37, 0
      %p117 = por %p115, %p116
      %p118 = scmp.ne.s32.totalorder %s106, %s107
      %p119 = scmp.eq.s32.totalorder %s38, 3
      %p120 = por %p118, %p119
      %p122 = scmp.ne.s32.totalorder %s107, %s121
      %p123 = scmp.eq.s32.totalorder %s38, 0
      %p124 = por %p122, %p123
      %s126 = sadd.s32 %s125, 1
      %p129 = scmp.eq.s32.totalorder %s32, 3
      %p130 = scmp.ne.s32.totalorder %s125, %s127
      %p131 = scmp.eq.s32.totalorder %s32, 0
      %p132 = por %p130, %p131
      %p133 = scmp.ne.s32.totalorder %s125, %s127
      %p134 = scmp.eq.s32.totalorder %s37, 3
      %p135 = por %p133, %p134
      %p136 = scmp.ne.s32.totalorder %s127, %s128
      %p137 = scmp.eq.s32.totalorder %s37, 0
      %p138 = por %p136, %p137
      %p139 = scmp.ne.s32.totalorder %s127, %s128
      %p140 = scmp.eq.s32.totalorder %s38, 3
      %p141 = por %p139, %p140
      %p143 = scmp.ne.s32.totalorder %s128, %s142
      %p144 = scmp.eq.s32.totalorder %s38, 0
      %p145 = por %p143, %p144
      %s146 = ssub.s32 %s40, %s47
      %p147 = scmp.eq.s32.totalorder %s146, 0
      %s149 = sadd.s32 %s148, 1
      %s150 = scalar_select %p147, %s148, %s149
      %p153 = pneg %p147
      %p154 = scmp.eq.s32.totalorder %s32, 3
      %p155 = por %p153, %p154
      %p156 = scmp.ne.s32.totalorder %s148, %s151
      %p157 = scmp.eq.s32.totalorder %s32, 0
      %p158 = por %p156, %p157
      %p159 = scmp.ne.s32.totalorder %s148, %s151
      %p160 = scmp.eq.s32.totalorder %s37, 3
      %p161 = por %p159, %p160
      %p162 = scmp.ne.s32.totalorder %s151, %s152
      %p163 = scmp.eq.s32.totalorder %s37, 0
      %p164 = por %p162, %p163
      %p165 = scmp.ne.s32.totalorder %s151, %s152
      %p166 = scmp.eq.s32.totalorder %s38, 3
      %p167 = por %p165, %p166
      %p169 = scmp.ne.s32.totalorder %s152, %s168
      %p170 = scmp.eq.s32.totalorder %s38, 0
      %p171 = por %p169, %p170
      %s172 = ssub.s32 %s40, %s47
      %p173 = scmp.eq.s32.totalorder %s172, 0
      %s175 = sadd.s32 %s174, 1
      %s176 = scalar_select %p173, %s174, %s175
      %p179 = pneg %p173
      %p180 = scmp.eq.s32.totalorder %s32, 3
      %p181 = por %p179, %p180
      %p182 = scmp.ne.s32.totalorder %s174, %s177
      %p183 = scmp.eq.s32.totalorder %s32, 0
      %p184 = por %p182, %p183
      %p185 = scmp.ne.s32.totalorder %s174, %s177
      %p186 = scmp.eq.s32.totalorder %s37, 3
      %p187 = por %p185, %p186
      %p188 = scmp.ne.s32.totalorder %s177, %s178
      %p189 = scmp.eq.s32.totalorder %s37, 0
      %p190 = por %p188, %p189
      %p191 = scmp.ne.s32.totalorder %s177, %s178
      %p192 = scmp.eq.s32.totalorder %s38, 3
      %p193 = por %p191, %p192
      %p195 = scmp.ne.s32.totalorder %s178, %s194
      %p196 = scmp.eq.s32.totalorder %s38, 0
      %p197 = por %p195, %p196
      %s198 = ssub.s32 %s40, %s47
      %p199 = scmp.eq.s32.totalorder %s198, 0
      %s201 = sadd.s32 %s200, 1
      %s202 = scalar_select %p199, %s200, %s201
      %p205 = pneg %p199
      %p206 = scmp.eq.s32.totalorder %s32, 3
      %p207 = por %p205, %p206
      %p208 = scmp.ne.s32.totalorder %s200, %s203
      %p209 = scmp.eq.s32.totalorder %s32, 0
      %p210 = por %p208, %p209
      %p211 = scmp.ne.s32.totalorder %s200, %s203
      %p212 = scmp.eq.s32.totalorder %s37, 3
      %p213 = por %p211, %p212
      %p214 = scmp.ne.s32.totalorder %s203, %s204
      %p215 = scmp.eq.s32.totalorder %s37, 0
      %p216 = por %p214, %p215
      %p217 = scmp.ne.s32.totalorder %s203, %s204
      %p218 = scmp.eq.s32.totalorder %s38, 3
      %p219 = por %p217, %p218
      %p221 = scmp.ne.s32.totalorder %s204, %s220
      %p222 = scmp.eq.s32.totalorder %s38, 0
      %p223 = por %p221, %p222
      %s224 = ssub.s32 %s40, %s47
      %p225 = scmp.eq.s32.totalorder %s224, 0
      %s227 = sadd.s32 %s226, 1
      %s228 = scalar_select %p225, %s226, %s227
      %p231 = pneg %p225
      %p232 = scmp.eq.s32.totalorder %s32, 3
      %p233 = por %p231, %p232
      %p234 = scmp.ne.s32.totalorder %s226, %s229
      %p235 = scmp.eq.s32.totalorder %s32, 0
      %p236 = por %p234, %p235
      %p237 = scmp.ne.s32.totalorder %s226, %s229
      %p238 = scmp.eq.s32.totalorder %s37, 3
      %p239 = por %p237, %p238
      %p240 = scmp.ne.s32.totalorder %s229, %s230
      %p241 = scmp.eq.s32.totalorder %s37, 0
      %p242 = por %p240, %p241
      %p243 = scmp.ne.s32.totalorder %s229, %s230
      %p244 = scmp.eq.s32.totalorder %s38, 3
      %p245 = por %p243, %p244
      %p247 = scmp.ne.s32.totalorder %s230, %s246
      %p248 = scmp.eq.s32.totalorder %s38, 0
      %p249 = por %p247, %p248
      %s250 = ssub.s32 %s40, %s47
      %p251 = scmp.eq.s32.totalorder %s250, 0
      %s253 = sadd.s32 %s252, 1
      %s254 = scalar_select %p251, %s252, %s253
      %p257 = pneg %p251
      %p258 = scmp.eq.s32.totalorder %s32, 3
      %p259 = por %p257, %p258
      %p260 = scmp.ne.s32.totalorder %s252, %s255
      %p261 = scmp.eq.s32.totalorder %s32, 0
      %p262 = por %p260, %p261
      %p263 = scmp.ne.s32.totalorder %s252, %s255
      %p264 = scmp.eq.s32.totalorder %s37, 3
      %p265 = por %p263, %p264
      %p266 = scmp.ne.s32.totalorder %s255, %s256
      %p267 = scmp.eq.s32.totalorder %s37, 0
      %p268 = por %p266, %p267
      %p269 = scmp.ne.s32.totalorder %s255, %s256
      %p270 = scmp.eq.s32.totalorder %s38, 3
      %p271 = por %p269, %p270
      %p273 = scmp.ne.s32.totalorder %s256, %s272
      %p274 = scmp.eq.s32.totalorder %s38, 0
      %p275 = por %p273, %p274
      %s276 = ssub.s32 %s40, %s47
      %p277 = scmp.eq.s32.totalorder %s276, 0
      %s279 = sadd.s32 %s278, 1
      %s280 = scalar_select %p277, %s278, %s279
      %p283 = pneg %p277
      %p284 = scmp.eq.s32.totalorder %s32, 3
      %p285 = por %p283, %p284
      %p286 = scmp.ne.s32.totalorder %s278, %s281
      %p287 = scmp.eq.s32.totalorder %s32, 0
      %p288 = por %p286, %p287
      %p289 = scmp.ne.s32.totalorder %s278, %s281
      %p290 = scmp.eq.s32.totalorder %s37, 3
      %p291 = por %p289, %p290
      %p292 = scmp.ne.s32.totalorder %s281, %s282
      %p293 = scmp.eq.s32.totalorder %s37, 0
      %p294 = por %p292, %p293
      %p295 = scmp.ne.s32.totalorder %s281, %s282
      %p296 = scmp.eq.s32.totalorder %s38, 3
      %p297 = por %p295, %p296
      %p299 = scmp.ne.s32.totalorder %s282, %s298
      %p300 = scmp.eq.s32.totalorder %s38, 0
      %p301 = por %p299, %p300
      %s302 = ssub.s32 %s40, %s47
      %p303 = scmp.eq.s32.totalorder %s302, 0
      %s305 = sadd.s32 %s304, 1
      %s306 = scalar_select %p303, %s304, %s305
      %p309 = pneg %p303
      %p310 = scmp.eq.s32.totalorder %s32, 3
      %p311 = por %p309, %p310
      %p312 = scmp.ne.s32.totalorder %s304, %s307
      %p313 = scmp.eq.s32.totalorder %s32, 0
      %p314 = por %p312, %p313
      %p315 = scmp.ne.s32.totalorder %s304, %s307
      %p316 = scmp.eq.s32.totalorder %s37, 3
      %p317 = por %p315, %p316
      %p318 = scmp.ne.s32.totalorder %s307, %s308
      %p319 = scmp.eq.s32.totalorder %s37, 0
      %p320 = por %p318, %p319
      %p321 = scmp.ne.s32.totalorder %s307, %s308
      %p322 = scmp.eq.s32.totalorder %s38, 3
      %p323 = por %p321, %p322
      %p325 = scmp.ne.s32.totalorder %s308, %s324
      %p326 = scmp.eq.s32.totalorder %s38, 0
      %p327 = por %p325, %p326
      %s328 = ssub.s32 %s40, %s47
      %p329 = scmp.eq.s32.totalorder %s328, 0
      %s331 = sadd.s32 %s330, 1
      %s332 = scalar_select %p329, %s330, %s331
      %p335 = pneg %p329
      %p336 = scmp.eq.s32.totalorder %s32, 3
      %p337 = por %p335, %p336
      %p338 = scmp.ne.s32.totalorder %s330, %s333
      %p339 = scmp.eq.s32.totalorder %s32, 0
      %p340 = por %p338, %p339
      %p341 = scmp.ne.s32.totalorder %s330, %s333
      %p342 = scmp.eq.s32.totalorder %s37, 3
      %p343 = por %p341, %p342
      %p344 = scmp.ne.s32.totalorder %s333, %s334
      %p345 = scmp.eq.s32.totalorder %s37, 0
      %p346 = por %p344, %p345
      %p347 = scmp.ne.s32.totalorder %s333, %s334
      %p348 = scmp.eq.s32.totalorder %s38, 3
      %p349 = por %p347, %p348
      %p351 = scmp.ne.s32.totalorder %s334, %s350
      %p352 = scmp.eq.s32.totalorder %s38, 0
      %p353 = por %p351, %p352
      %s354 = ssub.s32 %s40, %s47
      %p355 = scmp.eq.s32.totalorder %s354, 0
      %s357 = sadd.s32 %s356, 1
      %s358 = scalar_select %p355, %s356, %s357
      %p361 = pneg %p355
      %p362 = scmp.eq.s32.totalorder %s32, 3
      %p363 = por %p361, %p362
      %p364 = scmp.ne.s32.totalorder %s356, %s359
      %p365 = scmp.eq.s32.totalorder %s32, 0
      %p366 = por %p364, %p365
      %p367 = scmp.ne.s32.totalorder %s356, %s359
      %p368 = scmp.eq.s32.totalorder %s37, 3
      %p369 = por %p367, %p368
      %p370 = scmp.ne.s32.totalorder %s359, %s360
      %p371 = scmp.eq.s32.totalorder %s37, 0
      %p372 = por %p370, %p371
      %p373 = scmp.ne.s32.totalorder %s359, %s360
      %p374 = scmp.eq.s32.totalorder %s38, 3
      %p375 = por %p373, %p374
      %p377 = scmp.ne.s32.totalorder %s360, %s376
      %p378 = scmp.eq.s32.totalorder %s38, 0
      %p379 = por %p377, %p378
      %s380 = ssub.s32 %s40, %s47
      %p381 = scmp.eq.s32.totalorder %s380, 0
      %s383 = sadd.s32 %s382, 1
      %s384 = scalar_select %p381, %s382, %s383
      %p387 = pneg %p381
      %p388 = scmp.eq.s32.totalorder %s32, 3
      %p389 = por %p387, %p388
      %p390 = scmp.ne.s32.totalorder %s382, %s385
      %p391 = scmp.eq.s32.totalorder %s32, 0
      %p392 = por %p390, %p391
      %p393 = scmp.ne.s32.totalorder %s382, %s385
      %p394 = scmp.eq.s32.totalorder %s37, 3
      %p395 = por %p393, %p394
      %p396 = scmp.ne.s32.totalorder %s385, %s386
      %p397 = scmp.eq.s32.totalorder %s37, 0
      %p398 = por %p396, %p397
      %p399 = scmp.ne.s32.totalorder %s385, %s386
      %p400 = scmp.eq.s32.totalorder %s38, 3
      %p401 = por %p399, %p400
      %p403 = scmp.ne.s32.totalorder %s386, %s402
      %p404 = scmp.eq.s32.totalorder %s38, 0
      %p405 = por %p403, %p404
      %s406 = ssub.s32 %s40, %s47
      %p407 = scmp.eq.s32.totalorder %s406, 0
      %s409 = sadd.s32 %s408, 1
      %s410 = scalar_select %p407, %s408, %s409
      %p413 = pneg %p407
      %p414 = scmp.eq.s32.totalorder %s32, 3
      %p415 = por %p413, %p414
      %p416 = scmp.ne.s32.totalorder %s408, %s411
      %p417 = scmp.eq.s32.totalorder %s32, 0
      %p418 = por %p416, %p417
      %p419 = scmp.ne.s32.totalorder %s408, %s411
      %p420 = scmp.eq.s32.totalorder %s37, 3
      %p421 = por %p419, %p420
      %p422 = scmp.ne.s32.totalorder %s411, %s412
      %p423 = scmp.eq.s32.totalorder %s37, 0
      %p424 = por %p422, %p423
      %p425 = scmp.ne.s32.totalorder %s411, %s412
      %p426 = scmp.eq.s32.totalorder %s38, 3
      %p427 = por %p425, %p426
      %p429 = scmp.ne.s32.totalorder %s412, %s428
      %p430 = scmp.eq.s32.totalorder %s38, 0
      %p431 = por %p429, %p430
      %s432 = ssub.s32 %s40, %s47
      %p433 = scmp.eq.s32.totalorder %s432, 0
      %s435 = sadd.s32 %s434, 1
      %s436 = scalar_select %p433, %s434, %s435
      %p439 = pneg %p433
      %p440 = scmp.eq.s32.totalorder %s32, 3
      %p441 = por %p439, %p440
      %p442 = scmp.ne.s32.totalorder %s434, %s437
      %p443 = scmp.eq.s32.totalorder %s32, 0
      %p444 = por %p442, %p443
      %p445 = scmp.ne.s32.totalorder %s434, %s437
      %p446 = scmp.eq.s32.totalorder %s37, 3
      %p447 = por %p445, %p446
      %p448 = scmp.ne.s32.totalorder %s437, %s438
      %p449 = scmp.eq.s32.totalorder %s37, 0
      %p450 = por %p448, %p449
      %p451 = scmp.ne.s32.totalorder %s437, %s438
      %p452 = scmp.eq.s32.totalorder %s38, 3
      %p453 = por %p451, %p452
      %p455 = scmp.ne.s32.totalorder %s438, %s454
      %p456 = scmp.eq.s32.totalorder %s38, 0
      %p457 = por %p455, %p456
      %s458 = ssub.s32 %s39, %s51
      %p459 = scmp.eq.s32.totalorder %s458, 0
      %s461 = sadd.s32 %s460, 1
      %s462 = scalar_select %p459, %s460, %s461
      %p465 = pneg %p459
      %p466 = scmp.eq.s32.totalorder %s32, 3
      %p467 = por %p465, %p466
      %p468 = scmp.ne.s32.totalorder %s460, %s463
      %p469 = scmp.eq.s32.totalorder %s32, 0
      %p470 = por %p468, %p469
      %p471 = scmp.ne.s32.totalorder %s460, %s463
      %p472 = scmp.eq.s32.totalorder %s37, 3
      %p473 = por %p471, %p472
      %p474 = scmp.ne.s32.totalorder %s463, %s464
      %p475 = scmp.eq.s32.totalorder %s37, 0
      %p476 = por %p474, %p475
      %p477 = scmp.ne.s32.totalorder %s463, %s464
      %p478 = scmp.eq.s32.totalorder %s38, 3
      %p479 = por %p477, %p478
      %p481 = scmp.ne.s32.totalorder %s464, %s480
      %p482 = scmp.eq.s32.totalorder %s38, 0
      %p483 = por %p481, %p482
      %p484 = scmp.le.s32.totalorder 1, %s32
      %p485 = scmp.lt.s32.totalorder %s32, 5
      %p486 = pnand %p484, %p485
      %p487 = pneg %p486
      // Predicated region
      $region9: #{tpu_custom_call.1} parent=5 // pred_check
        _
      $region10: #{tpu_custom_call.1} parent=5 // pred_check_branch
        %489 = sbr.rel (%p486) target = $region12
      $region11: #{tpu_custom_call.1} parent=5 // pred_region
        %s490 = ssub.s32 %s32, 1
        // Predicated region
        $region13: #{tpu_custom_call.1} parent=11 // pred_check
          %p491 = pneg %p117
        $region14: #{tpu_custom_call.1} parent=11 // pred_check_branch
          %493 = sbr.rel (%p491) target = $region16
        $region15: #{tpu_custom_call.1} parent=11 // pred_region
          %s495 = ssub.s32 16, 16
          %496 = vsyncadd [#allocation7], %s495
          %s498 = sshll.u32 [#allocation8], 4
          %s499 = int_to_ptr.vmem [resolvable:$true] %s498
          %501 = dma.hbm_to_vmem [thread:$0]  %s2, 16, %s499, [#allocation7]
        $region16: #{tpu_custom_call.1} parent=11 // pred_fallthru
          _
        // Predicated region
        $region17: #{tpu_custom_call.1} parent=11 // pred_check
          %p502 = pneg %p138
        $region18: #{tpu_custom_call.1} parent=11 // pred_check_branch
          %504 = sbr.rel (%p502) target = $region20
        $region19: #{tpu_custom_call.1} parent=11 // pred_region
          %s506 = ssub.s32 16, 16
          %507 = vsyncadd [#allocation10], %s506
          %s509 = sshll.u32 [#allocation9], 4
          %s510 = int_to_ptr.vmem [resolvable:$true] %s509
          %512 = dma.hbm_to_vmem [thread:$0]  %s3, 16, %s510, [#allocation10]
        $region20: #{tpu_custom_call.1} parent=11 // pred_fallthru
          _
      $region12: #{tpu_custom_call.1} parent=5 // pred_fallthru
        _
      %p513 = scmp.lt.s32.totalorder %s32, 4
      // Predicated region
      $region21: #{tpu_custom_call.1} parent=5 // pred_check
        %p514 = pneg %p513
      $region22: #{tpu_custom_call.1} parent=5 // pred_check_branch
        %516 = sbr.rel (%p514) target = $region24
      $region23: #{tpu_custom_call.1} parent=5 // pred_region
        // Predicated region
        $region25: #{tpu_custom_call.1} parent=23 // pred_check
          %p517 = pneg %p64
        $region26: #{tpu_custom_call.1} parent=23 // pred_check_branch
          %519 = sbr.rel (%p517) target = $region28
        $region27: #{tpu_custom_call.1} parent=23 // pred_region
          %s520 = sand.u32 %s32, 1
          %s521 = scalar_lea.sflag [#allocation4], %s520
          %s522 = sand.u32 %s54, 1
          %s523 = smul.addr %s522, 8
          %s524 = scalar_lea.vmem [#allocation3], %s523
          %s526 = ssub.s32 128, 128
          %527 = vsyncadd %s521, %s526
          %s528 = smul.addr %s39, 128
          %s529 = scalar_lea.hbm %s0, %s528
          %s531 = sshll.u32 %s524, 4
          %s532 = int_to_ptr.vmem [resolvable:$true] %s531
          %534 = dma.hbm_to_vmem [thread:$0]  %s529, 128, %s532, %s521
        $region28: #{tpu_custom_call.1} parent=23 // pred_fallthru
          _
        // Predicated region
        $region29: #{tpu_custom_call.1} parent=23 // pred_check
          %p535 = pneg %p90
        $region30: #{tpu_custom_call.1} parent=23 // pred_check_branch
          %537 = sbr.rel (%p535) target = $region32
        $region31: #{tpu_custom_call.1} parent=23 // pred_region
          %s538 = sand.u32 %s32, 1
          %s539 = scalar_lea.sflag [#allocation7], %s538
          %s540 = sand.u32 %s80, 1
          %s541 = scalar_lea.vmem [#allocation6], %s540
          %s543 = ssub.s32 16, 16
          %544 = vsyncadd %s539, %s543
          %s545 = smul.addr %s39, 16
          %s546 = scalar_lea.hbm %s1, %s545
          %s548 = sshll.u32 %s541, 4
          %s549 = int_to_ptr.vmem [resolvable:$true] %s548
          %551 = dma.hbm_to_vmem [thread:$0]  %s546, 16, %s549, %s539
        $region32: #{tpu_custom_call.1} parent=23 // pred_fallthru
          _
        // Predicated region
        $region33: #{tpu_custom_call.1} parent=23 // pred_check
          %p552 = pneg %p158
        $region34: #{tpu_custom_call.1} parent=23 // pred_check_branch
          %554 = sbr.rel (%p552) target = $region36
        $region35: #{tpu_custom_call.1} parent=23 // pred_region
          %s555 = sand.u32 %s32, 1
          %s556 = scalar_lea.sflag [#allocation4], %s555
          %s557 = sand.u32 %s148, 1
          %s558 = smul.addr %s557, 32
          %s559 = scalar_lea.vmem [#allocation11], %s558
          %s561 = ssub.s32 512, 512
          %562 = vsyncadd %s556, %s561
          %s563 = smul.addr %s40, 4
          %s564 = smul.addr %s563, 128
          %s565 = scalar_lea.hbm %s4, %s564
          %s566 = sshll.u32 %s559, 4
          %s567 = int_to_ptr.vmem [resolvable:$true] %s566
          %572 = dma.hbm_to_vmem [thread:$0]  %s565, 512, %s567, %s556, 128, 128, 8
        $region36: #{tpu_custom_call.1} parent=23 // pred_fallthru
          _
        // Predicated region
        $region37: #{tpu_custom_call.1} parent=23 // pred_check
          %p573 = pneg %p184
        $region38: #{tpu_custom_call.1} parent=23 // pred_check_branch
          %575 = sbr.rel (%p573) target = $region40
        $region39: #{tpu_custom_call.1} parent=23 // pred_region
          %s576 = sand.u32 %s32, 1
          %s577 = scalar_lea.sflag [#allocation7], %s576
          %s578 = sand.u32 %s174, 1
          %s579 = scalar_lea.vmem [#allocation12], %s578
          %s581 = ssub.s32 16, 16
          %582 = vsyncadd %s577, %s581
          %s583 = smul.addr %s40, 16
          %s584 = scalar_lea.hbm %s5, %s583
          %s586 = sshll.u32 %s579, 4
          %s587 = int_to_ptr.vmem [resolvable:$true] %s586
          %589 = dma.hbm_to_vmem [thread:$0]  %s584, 16, %s587, %s577
        $region40: #{tpu_custom_call.1} parent=23 // pred_fallthru
          _
        // Predicated region
        $region41: #{tpu_custom_call.1} parent=23 // pred_check
          %p590 = pneg %p210
        $region42: #{tpu_custom_call.1} parent=23 // pred_check_branch
          %592 = sbr.rel (%p590) target = $region44
        $region43: #{tpu_custom_call.1} parent=23 // pred_region
          %s593 = sand.u32 %s32, 1
          %s594 = scalar_lea.sflag [#allocation4], %s593
          %s595 = sand.u32 %s200, 1
          %s596 = smul.addr %s595, 32
          %s597 = scalar_lea.vmem [#allocation13], %s596
          %s599 = ssub.s32 512, 512
          %600 = vsyncadd %s594, %s599
          %s601 = smul.addr %s40, 4
          %s602 = smul.addr %s601, 128
          %s603 = scalar_lea.hbm %s6, %s602
          %s604 = sshll.u32 %s597, 4
          %s605 = int_to_ptr.vmem [resolvable:$true] %s604
          %610 = dma.hbm_to_vmem [thread:$0]  %s603, 512, %s605, %s594, 128, 128, 8
        $region44: #{tpu_custom_call.1} parent=23 // pred_fallthru
          _
        // Predicated region
        $region45: #{tpu_custom_call.1} parent=23 // pred_check
          %p611 = pneg %p236
        $region46: #{tpu_custom_call.1} parent=23 // pred_check_branch
          %613 = sbr.rel (%p611) target = $region48
        $region47: #{tpu_custom_call.1} parent=23 // pred_region
          %s614 = sand.u32 %s32, 1
          %s615 = scalar_lea.sflag [#allocation7], %s614
          %s616 = sand.u32 %s226, 1
          %s617 = scalar_lea.vmem [#allocation14], %s616
          %s619 = ssub.s32 16, 16
          %620 = vsyncadd %s615, %s619
          %s621 = smul.addr %s40, 16
          %s622 = scalar_lea.hbm %s7, %s621
          %s624 = sshll.u32 %s617, 4
          %s625 = int_to_ptr.vmem [resolvable:$true] %s624
          %627 = dma.hbm_to_vmem [thread:$0]  %s622, 16, %s625, %s615
        $region48: #{tpu_custom_call.1} parent=23 // pred_fallthru
          _
        // Predicated region
        $region49: #{tpu_custom_call.1} parent=23 // pred_check
          %p628 = pneg %p262
        $region50: #{tpu_custom_call.1} parent=23 // pred_check_branch
          %630 = sbr.rel (%p628) target = $region52
        $region51: #{tpu_custom_call.1} parent=23 // pred_region
          %s631 = sand.u32 %s32, 1
          %s632 = scalar_lea.sflag [#allocation4], %s631
          %s633 = sand.u32 %s252, 1
          %s634 = scalar_lea.vmem [#allocation15], %s633
          %s636 = ssub.s32 16, 16
          %637 = vsyncadd %s632, %s636
          %s638 = smul.addr %s40, 16
          %s639 = scalar_lea.hbm %s8, %s638
          %s641 = sshll.u32 %s634, 4
          %s642 = int_to_ptr.vmem [resolvable:$true] %s641
          %644 = dma.hbm_to_vmem [thread:$0]  %s639, 16, %s642, %s632
        $region52: #{tpu_custom_call.1} parent=23 // pred_fallthru
          _
        // Predicated region
        $region53: #{tpu_custom_call.1} parent=23 // pred_check
          %p645 = pneg %p288
        $region54: #{tpu_custom_call.1} parent=23 // pred_check_branch
          %647 = sbr.rel (%p645) target = $region56
        $region55: #{tpu_custom_call.1} parent=23 // pred_region
          %s648 = sand.u32 %s32, 1
          %s649 = scalar_lea.sflag [#allocation7], %s648
          %s650 = sand.u32 %s278, 1
          %s651 = scalar_lea.vmem [#allocation16], %s650
          %s653 = ssub.s32 16, 16
          %654 = vsyncadd %s649, %s653
          %s655 = smul.addr %s40, 16
          %s656 = scalar_lea.hbm %s9, %s655
          %s658 = sshll.u32 %s651, 4
          %s659 = int_to_ptr.vmem [resolvable:$true] %s658
          %661 = dma.hbm_to_vmem [thread:$0]  %s656, 16, %s659, %s649
        $region56: #{tpu_custom_call.1} parent=23 // pred_fallthru
          _
        // Predicated region
        $region57: #{tpu_custom_call.1} parent=23 // pred_check
          %p662 = pneg %p314
        $region58: #{tpu_custom_call.1} parent=23 // pred_check_branch
          %664 = sbr.rel (%p662) target = $region60
        $region59: #{tpu_custom_call.1} parent=23 // pred_region
          %s665 = sand.u32 %s32, 1
          %s666 = scalar_lea.sflag [#allocation4], %s665
          %s667 = sand.u32 %s304, 1
          %s668 = smul.addr %s667, 32
          %s669 = scalar_lea.vmem [#allocation17], %s668
          %s671 = ssub.s32 512, 512
          %672 = vsyncadd %s666, %s671
          %s673 = smul.addr %s40, 4
          %s674 = smul.addr %s673, 128
          %s675 = scalar_lea.hbm %s10, %s674
          %s676 = sshll.u32 %s669, 4
          %s677 = int_to_ptr.vmem [resolvable:$true] %s676
          %682 = dma.hbm_to_vmem [thread:$0]  %s675, 512, %s677, %s666, 128, 128, 8
        $region60: #{tpu_custom_call.1} parent=23 // pred_fallthru
          _
        // Predicated region
        $region61: #{tpu_custom_call.1} parent=23 // pred_check
          %p683 = pneg %p340
        $region62: #{tpu_custom_call.1} parent=23 // pred_check_branch
          %685 = sbr.rel (%p683) target = $region64
        $region63: #{tpu_custom_call.1} parent=23 // pred_region
          %s686 = sand.u32 %s32, 1
          %s687 = scalar_lea.sflag [#allocation7], %s686
          %s688 = sand.u32 %s330, 1
          %s689 = scalar_lea.vmem [#allocation18], %s688
          %s691 = ssub.s32 16, 16
          %692 = vsyncadd %s687, %s691
          %s693 = smul.addr %s40, 16
          %s694 = scalar_lea.hbm %s11, %s693
          %s696 = sshll.u32 %s689, 4
          %s697 = int_to_ptr.vmem [resolvable:$true] %s696
          %699 = dma.hbm_to_vmem [thread:$0]  %s694, 16, %s697, %s687
        $region64: #{tpu_custom_call.1} parent=23 // pred_fallthru
          _
        // Predicated region
        $region65: #{tpu_custom_call.1} parent=23 // pred_check
          %p700 = pneg %p366
        $region66: #{tpu_custom_call.1} parent=23 // pred_check_branch
          %702 = sbr.rel (%p700) target = $region68
        $region67: #{tpu_custom_call.1} parent=23 // pred_region
          %s703 = sand.u32 %s32, 1
          %s704 = scalar_lea.sflag [#allocation4], %s703
          %s705 = sand.u32 %s356, 1
          %s706 = smul.addr %s705, 64
          %s707 = scalar_lea.vmem [#allocation19], %s706
          %s709 = ssub.s32 1024, 1024
          %710 = vsyncadd %s704, %s709
          %s711 = smul.addr %s40, 8
          %s712 = smul.addr %s711, 128
          %s713 = scalar_lea.hbm %s12, %s712
          %s714 = sshll.u32 %s707, 4
          %s715 = int_to_ptr.vmem [resolvable:$true] %s714
          %720 = dma.hbm_to_vmem [thread:$0]  %s713, 1024, %s715, %s704, 128, 128, 8
        $region68: #{tpu_custom_call.1} parent=23 // pred_fallthru
          _
        // Predicated region
        $region69: #{tpu_custom_call.1} parent=23 // pred_check
          %p721 = pneg %p392
        $region70: #{tpu_custom_call.1} parent=23 // pred_check_branch
          %723 = sbr.rel (%p721) target = $region72
        $region71: #{tpu_custom_call.1} parent=23 // pred_region
          %s724 = sand.u32 %s32, 1
          %s725 = scalar_lea.sflag [#allocation7], %s724
          %s726 = sand.u32 %s382, 1
          %s727 = scalar_lea.vmem [#allocation20], %s726
          %s729 = ssub.s32 16, 16
          %730 = vsyncadd %s725, %s729
          %s731 = smul.addr %s40, 16
          %s732 = scalar_lea.hbm %s13, %s731
          %s734 = sshll.u32 %s727, 4
          %s735 = int_to_ptr.vmem [resolvable:$true] %s734
          %737 = dma.hbm_to_vmem [thread:$0]  %s732, 16, %s735, %s725
        $region72: #{tpu_custom_call.1} parent=23 // pred_fallthru
          _
        // Predicated region
        $region73: #{tpu_custom_call.1} parent=23 // pred_check
          %p738 = pneg %p418
        $region74: #{tpu_custom_call.1} parent=23 // pred_check_branch
          %740 = sbr.rel (%p738) target = $region76
        $region75: #{tpu_custom_call.1} parent=23 // pred_region
          %s741 = sand.u32 %s32, 1
          %s742 = scalar_lea.sflag [#allocation4], %s741
          %s743 = sand.u32 %s408, 1
          %s744 = scalar_lea.vmem [#allocation21], %s743
          %s746 = ssub.s32 16, 16
          %747 = vsyncadd %s742, %s746
          %s748 = smul.addr %s40, 16
          %s749 = scalar_lea.hbm %s14, %s748
          %s751 = sshll.u32 %s744, 4
          %s752 = int_to_ptr.vmem [resolvable:$true] %s751
          %754 = dma.hbm_to_vmem [thread:$0]  %s749, 16, %s752, %s742
        $region76: #{tpu_custom_call.1} parent=23 // pred_fallthru
          _
        // Predicated region
        $region77: #{tpu_custom_call.1} parent=23 // pred_check
          %p755 = pneg %p444
        $region78: #{tpu_custom_call.1} parent=23 // pred_check_branch
          %757 = sbr.rel (%p755) target = $region80
        $region79: #{tpu_custom_call.1} parent=23 // pred_region
          %s758 = sand.u32 %s32, 1
          %s759 = scalar_lea.sflag [#allocation7], %s758
          %s760 = sand.u32 %s434, 1
          %s761 = scalar_lea.vmem [#allocation22], %s760
          %s763 = ssub.s32 16, 16
          %764 = vsyncadd %s759, %s763
          %s765 = smul.addr %s40, 16
          %s766 = scalar_lea.hbm %s15, %s765
          %s768 = sshll.u32 %s761, 4
          %s769 = int_to_ptr.vmem [resolvable:$true] %s768
          %771 = dma.hbm_to_vmem [thread:$0]  %s766, 16, %s769, %s759
        $region80: #{tpu_custom_call.1} parent=23 // pred_fallthru
          _
      $region24: #{tpu_custom_call.1} parent=5 // pred_fallthru
        _
      %p772 = scmp.le.s32.totalorder 1, %s32
      %p773 = scmp.lt.s32.totalorder %s32, 5
      %p774 = pnand %p772, %p773
      %p775 = pneg %p774
      // Predicated region
      $region81: #{tpu_custom_call.1} parent=5 // pred_check
        _
      $region82: #{tpu_custom_call.1} parent=5 // pred_check_branch
        %777 = sbr.rel (%p774) target = $region84
      $region83: #{tpu_custom_call.1} parent=5 // pred_region
        %s778 = ssub.s32 %s32, 1
        %s779 = sand.u32 %s37, 1
        %s780 = scalar_lea.sflag [#allocation4], %s779
        %s781 = sand.u32 %s57, 1
        %s782 = smul.addr %s781, 8
        %s783 = scalar_lea.vmem [#allocation3], %s782
        // Predicated region
        $region85: #{tpu_custom_call.1} parent=83 // pred_check
          %p784 = pneg %p70
        $region86: #{tpu_custom_call.1} parent=83 // pred_check_branch
          %786 = sbr.rel (%p784) target = $region88
        $region87: #{tpu_custom_call.1} parent=83 // pred_region
          %787 = dma.done %s780, 128
        $region88: #{tpu_custom_call.1} parent=83 // pred_fallthru
          _
        %s788 = sand.u32 %s37, 1
        %s789 = scalar_lea.sflag [#allocation7], %s788
        %s790 = sand.u32 %s83, 1
        %s791 = scalar_lea.vmem [#allocation6], %s790
        // Predicated region
        $region89: #{tpu_custom_call.1} parent=83 // pred_check
          %p792 = pneg %p96
        $region90: #{tpu_custom_call.1} parent=83 // pred_check_branch
          %794 = sbr.rel (%p792) target = $region92
        $region91: #{tpu_custom_call.1} parent=83 // pred_region
          %795 = dma.done %s789, 16
        $region92: #{tpu_custom_call.1} parent=83 // pred_fallthru
          _
        // Predicated region
        $region93: #{tpu_custom_call.1} parent=83 // pred_check
          %p796 = pneg %p117
        $region94: #{tpu_custom_call.1} parent=83 // pred_check_branch
          %798 = sbr.rel (%p796) target = $region96
        $region95: #{tpu_custom_call.1} parent=83 // pred_region
          %799 = dma.done [#allocation7], 16
        $region96: #{tpu_custom_call.1} parent=83 // pred_fallthru
          _
        // Predicated region
        $region97: #{tpu_custom_call.1} parent=83 // pred_check
          %p800 = pneg %p138
        $region98: #{tpu_custom_call.1} parent=83 // pred_check_branch
          %802 = sbr.rel (%p800) target = $region100
        $region99: #{tpu_custom_call.1} parent=83 // pred_region
          %803 = dma.done [#allocation10], 16
        $region100: #{tpu_custom_call.1} parent=83 // pred_fallthru
          _
        %s804 = sand.u32 %s37, 1
        %s805 = scalar_lea.sflag [#allocation4], %s804
        %s806 = sand.u32 %s151, 1
        %s807 = smul.addr %s806, 32
        %s808 = scalar_lea.vmem [#allocation11], %s807
        // Predicated region
        $region101: #{tpu_custom_call.1} parent=83 // pred_check
          %p809 = pneg %p164
        $region102: #{tpu_custom_call.1} parent=83 // pred_check_branch
          %811 = sbr.rel (%p809) target = $region104
        $region103: #{tpu_custom_call.1} parent=83 // pred_region
          %812 = dma.done %s805, 512
        $region104: #{tpu_custom_call.1} parent=83 // pred_fallthru
          _
        %s813 = sand.u32 %s37, 1
        %s814 = scalar_lea.sflag [#allocation7], %s813
        %s815 = sand.u32 %s177, 1
        %s816 = scalar_lea.vmem [#allocation12], %s815
        // Predicated region
        $region105: #{tpu_custom_call.1} parent=83 // pred_check
          %p817 = pneg %p190
        $region106: #{tpu_custom_call.1} parent=83 // pred_check_branch
          %819 = sbr.rel (%p817) target = $region108
        $region107: #{tpu_custom_call.1} parent=83 // pred_region
          %820 = dma.done %s814, 16
        $region108: #{tpu_custom_call.1} parent=83 // pred_fallthru
          _
        %s821 = sand.u32 %s37, 1
        %s822 = scalar_lea.sflag [#allocation4], %s821
        %s823 = sand.u32 %s203, 1
        %s824 = smul.addr %s823, 32
        %s825 = scalar_lea.vmem [#allocation13], %s824
        // Predicated region
        $region109: #{tpu_custom_call.1} parent=83 // pred_check
          %p826 = pneg %p216
        $region110: #{tpu_custom_call.1} parent=83 // pred_check_branch
          %828 = sbr.rel (%p826) target = $region112
        $region111: #{tpu_custom_call.1} parent=83 // pred_region
          %829 = dma.done %s822, 512
        $region112: #{tpu_custom_call.1} parent=83 // pred_fallthru
          _
        %s830 = sand.u32 %s37, 1
        %s831 = scalar_lea.sflag [#allocation7], %s830
        %s832 = sand.u32 %s229, 1
        %s833 = scalar_lea.vmem [#allocation14], %s832
        // Predicated region
        $region113: #{tpu_custom_call.1} parent=83 // pred_check
          %p834 = pneg %p242
        $region114: #{tpu_custom_call.1} parent=83 // pred_check_branch
          %836 = sbr.rel (%p834) target = $region116
        $region115: #{tpu_custom_call.1} parent=83 // pred_region
          %837 = dma.done %s831, 16
        $region116: #{tpu_custom_call.1} parent=83 // pred_fallthru
          _
        %s838 = sand.u32 %s37, 1
        %s839 = scalar_lea.sflag [#allocation4], %s838
        %s840 = sand.u32 %s255, 1
        %s841 = scalar_lea.vmem [#allocation15], %s840
        // Predicated region
        $region117: #{tpu_custom_call.1} parent=83 // pred_check
          %p842 = pneg %p268
        $region118: #{tpu_custom_call.1} parent=83 // pred_check_branch
          %844 = sbr.rel (%p842) target = $region120
        $region119: #{tpu_custom_call.1} parent=83 // pred_region
          %845 = dma.done %s839, 16
        $region120: #{tpu_custom_call.1} parent=83 // pred_fallthru
          _
        %s846 = sand.u32 %s37, 1
        %s847 = scalar_lea.sflag [#allocation7], %s846
        %s848 = sand.u32 %s281, 1
        %s849 = scalar_lea.vmem [#allocation16], %s848
        // Predicated region
        $region121: #{tpu_custom_call.1} parent=83 // pred_check
          %p850 = pneg %p294
        $region122: #{tpu_custom_call.1} parent=83 // pred_check_branch
          %852 = sbr.rel (%p850) target = $region124
        $region123: #{tpu_custom_call.1} parent=83 // pred_region
          %853 = dma.done %s847, 16
        $region124: #{tpu_custom_call.1} parent=83 // pred_fallthru
          _
        %s854 = sand.u32 %s37, 1
        %s855 = scalar_lea.sflag [#allocation4], %s854
        %s856 = sand.u32 %s307, 1
        %s857 = smul.addr %s856, 32
        %s858 = scalar_lea.vmem [#allocation17], %s857
        // Predicated region
        $region125: #{tpu_custom_call.1} parent=83 // pred_check
          %p859 = pneg %p320
        $region126: #{tpu_custom_call.1} parent=83 // pred_check_branch
          %861 = sbr.rel (%p859) target = $region128
        $region127: #{tpu_custom_call.1} parent=83 // pred_region
          %862 = dma.done %s855, 512
        $region128: #{tpu_custom_call.1} parent=83 // pred_fallthru
          _
        %s863 = sand.u32 %s37, 1
        %s864 = scalar_lea.sflag [#allocation7], %s863
        %s865 = sand.u32 %s333, 1
        %s866 = scalar_lea.vmem [#allocation18], %s865
        // Predicated region
        $region129: #{tpu_custom_call.1} parent=83 // pred_check
          %p867 = pneg %p346
        $region130: #{tpu_custom_call.1} parent=83 // pred_check_branch
          %869 = sbr.rel (%p867) target = $region132
        $region131: #{tpu_custom_call.1} parent=83 // pred_region
          %870 = dma.done %s864, 16
        $region132: #{tpu_custom_call.1} parent=83 // pred_fallthru
          _
        %s871 = sand.u32 %s37, 1
        %s872 = scalar_lea.sflag [#allocation4], %s871
        %s873 = sand.u32 %s359, 1
        %s874 = smul.addr %s873, 64
        %s875 = scalar_lea.vmem [#allocation19], %s874
        // Predicated region
        $region133: #{tpu_custom_call.1} parent=83 // pred_check
          %p876 = pneg %p372
        $region134: #{tpu_custom_call.1} parent=83 // pred_check_branch
          %878 = sbr.rel (%p876) target = $region136
        $region135: #{tpu_custom_call.1} parent=83 // pred_region
          %879 = dma.done %s872, 1024
        $region136: #{tpu_custom_call.1} parent=83 // pred_fallthru
          _
        %s880 = sand.u32 %s37, 1
        %s881 = scalar_lea.sflag [#allocation7], %s880
        %s882 = sand.u32 %s385, 1
        %s883 = scalar_lea.vmem [#allocation20], %s882
        // Predicated region
        $region137: #{tpu_custom_call.1} parent=83 // pred_check
          %p884 = pneg %p398
        $region138: #{tpu_custom_call.1} parent=83 // pred_check_branch
          %886 = sbr.rel (%p884) target = $region140
        $region139: #{tpu_custom_call.1} parent=83 // pred_region
          %887 = dma.done %s881, 16
        $region140: #{tpu_custom_call.1} parent=83 // pred_fallthru
          _
        %s888 = sand.u32 %s37, 1
        %s889 = scalar_lea.sflag [#allocation4], %s888
        %s890 = sand.u32 %s411, 1
        %s891 = scalar_lea.vmem [#allocation21], %s890
        // Predicated region
        $region141: #{tpu_custom_call.1} parent=83 // pred_check
          %p892 = pneg %p424
        $region142: #{tpu_custom_call.1} parent=83 // pred_check_branch
          %894 = sbr.rel (%p892) target = $region144
        $region143: #{tpu_custom_call.1} parent=83 // pred_region
          %895 = dma.done %s889, 16
        $region144: #{tpu_custom_call.1} parent=83 // pred_fallthru
          _
        %s896 = sand.u32 %s37, 1
        %s897 = scalar_lea.sflag [#allocation7], %s896
        %s898 = sand.u32 %s437, 1
        %s899 = scalar_lea.vmem [#allocation22], %s898
        // Predicated region
        $region145: #{tpu_custom_call.1} parent=83 // pred_check
          %p900 = pneg %p450
        $region146: #{tpu_custom_call.1} parent=83 // pred_check_branch
          %902 = sbr.rel (%p900) target = $region148
        $region147: #{tpu_custom_call.1} parent=83 // pred_region
          %903 = dma.done %s897, 16
        $region148: #{tpu_custom_call.1} parent=83 // pred_fallthru
          _
        %s904 = sand.u32 %s37, 1
        %s905 = scalar_lea.sflag [#allocation4], %s904
        %s906 = sand.u32 %s57, 1
        %s907 = smul.addr %s906, 8
        %s908 = scalar_lea.vmem [#allocation3], %s907
        %p909 = pneg %p70
        %p910 = pneg %p67
        %s911 = sand.u32 %s37, 1
        %s912 = scalar_lea.sflag [#allocation7], %s911
        %s913 = sand.u32 %s83, 1
        %s914 = scalar_lea.vmem [#allocation6], %s913
        %p915 = pneg %p96
        %p916 = pneg %p93
        %p917 = pneg %p117
        %p918 = pneg %p114
        %p919 = pneg %p138
        %p920 = pneg %p135
        %s921 = sand.u32 %s37, 1
        %s922 = scalar_lea.sflag [#allocation4], %s921
        %s923 = sand.u32 %s151, 1
        %s924 = smul.addr %s923, 32
        %s925 = scalar_lea.vmem [#allocation11], %s924
        %p926 = pneg %p164
        %p927 = pneg %p161
        %s928 = sand.u32 %s37, 1
        %s929 = scalar_lea.sflag [#allocation7], %s928
        %s930 = sand.u32 %s177, 1
        %s931 = scalar_lea.vmem [#allocation12], %s930
        %p932 = pneg %p190
        %p933 = pneg %p187
        %s934 = sand.u32 %s37, 1
        %s935 = scalar_lea.sflag [#allocation4], %s934
        %s936 = sand.u32 %s203, 1
        %s937 = smul.addr %s936, 32
        %s938 = scalar_lea.vmem [#allocation13], %s937
        %p939 = pneg %p216
        %p940 = pneg %p213
        %s941 = sand.u32 %s37, 1
        %s942 = scalar_lea.sflag [#allocation7], %s941
        %s943 = sand.u32 %s229, 1
        %s944 = scalar_lea.vmem [#allocation14], %s943
        %p945 = pneg %p242
        %p946 = pneg %p239
        %s947 = sand.u32 %s37, 1
        %s948 = scalar_lea.sflag [#allocation4], %s947
        %s949 = sand.u32 %s255, 1
        %s950 = scalar_lea.vmem [#allocation15], %s949
        %p951 = pneg %p268
        %p952 = pneg %p265
        %s953 = sand.u32 %s37, 1
        %s954 = scalar_lea.sflag [#allocation7], %s953
        %s955 = sand.u32 %s281, 1
        %s956 = scalar_lea.vmem [#allocation16], %s955
        %p957 = pneg %p294
        %p958 = pneg %p291
        %s959 = sand.u32 %s37, 1
        %s960 = scalar_lea.sflag [#allocation4], %s959
        %s961 = sand.u32 %s307, 1
        %s962 = smul.addr %s961, 32
        %s963 = scalar_lea.vmem [#allocation17], %s962
        %p964 = pneg %p320
        %p965 = pneg %p317
        %s966 = sand.u32 %s37, 1
        %s967 = scalar_lea.sflag [#allocation7], %s966
        %s968 = sand.u32 %s333, 1
        %s969 = scalar_lea.vmem [#allocation18], %s968
        %p970 = pneg %p346
        %p971 = pneg %p343
        %s972 = sand.u32 %s37, 1
        %s973 = scalar_lea.sflag [#allocation4], %s972
        %s974 = sand.u32 %s359, 1
        %s975 = smul.addr %s974, 64
        %s976 = scalar_lea.vmem [#allocation19], %s975
        %p977 = pneg %p372
        %p978 = pneg %p369
        %s979 = sand.u32 %s37, 1
        %s980 = scalar_lea.sflag [#allocation7], %s979
        %s981 = sand.u32 %s385, 1
        %s982 = scalar_lea.vmem [#allocation20], %s981
        %p983 = pneg %p398
        %p984 = pneg %p395
        %s985 = sand.u32 %s37, 1
        %s986 = scalar_lea.sflag [#allocation4], %s985
        %s987 = sand.u32 %s411, 1
        %s988 = scalar_lea.vmem [#allocation21], %s987
        %p989 = pneg %p424
        %p990 = pneg %p421
        %s991 = sand.u32 %s37, 1
        %s992 = scalar_lea.sflag [#allocation7], %s991
        %s993 = sand.u32 %s437, 1
        %s994 = scalar_lea.vmem [#allocation22], %s993
        %p995 = pneg %p450
        %p996 = pneg %p447
        %p997 = pneg %p476
        %p998 = pneg %p473
        %s999 = sand.u32 %s463, 1
        %s1000 = scalar_lea.sflag [#allocation5], %s999
        %s1001 = sand.u32 %s463, 1
        %s1002 = scalar_lea.vmem [#allocation23], %s1001
        %p1003 = scmp.eq.s32.totalorder %s42, 0
        // Predicated region
        $region149: #{tpu_custom_call.1} parent=83 // pred_check
          %p1004 = pneg %p1003
        $region150: #{tpu_custom_call.1} parent=83 // pred_check_branch
          %1006 = sbr.rel (%p1004) target = $region152
        $region151: #{tpu_custom_call.1} parent=83 // pred_region
          %v1007 = vld [vmem:[%s783] sm:$0xff]
          %v1008 = vld [vmem:[#allocation8] sm:$0x1]
          %v1009 = vld [vmem:[#allocation9] sm:$0x1]
          %vm1010 = vcmask 261120
          %v1011 = vsel %vm1010, %v1007, 0.0
          %1012 = vadd.xlane.f32.xlu0 %v1011
          %v1013 = vpop.xlane.xlu0 %1012
          %v1014 = vrcp.pop 32.0
          %v1015 = vmul.f32 %v1013, %v1014
          %v1016 = vsub.f32 %v1007, %v1015
          %v1017 = vmul.f32 %v1016, %v1016
          %v1018 = vsel %vm1010, %v1017, 0.0
          %1019 = vadd.xlane.f32.xlu0 %v1018
          %v1020 = vpop.xlane.xlu0 %1019
          %v1021 = vmul.f32 %v1020, %v1014
          %v1022 = vadd.f32 %v1021, 1e-12
          %v1023 = vrsqrt.pop %v1022
          %v1024 = vmul.f32 %v1016, %v1023
          %v1026 = vlaneseq
          %v1027 = vshrl.u32 %v1026, 7
          %v1028 = vsub.s32 0, %v1027
          %v1029 = vrot.slane %v1008, %v1028
          %v1031 = vmul.f32 %v1024, %v1029
          %v1033 = vlaneseq
          %v1034 = vshrl.u32 %v1033, 7
          %v1035 = vsub.s32 0, %v1034
          %v1036 = vrot.slane %v1009, %v1035
          %v1038 = vadd.f32 %v1031, %v1036
          %1039 = vst.msk [vmem:[#allocation2] sm:$0xff] %vm1010, %v1038
        $region152: #{tpu_custom_call.1} parent=83 // pred_fallthru
          _
        %v1040 = vld [vmem:[#allocation2] sm:$0xff]
        %v1041 = vld [vmem:[%s791] sm:$0x1]
        %v1042 = vld [vmem:[%s808] sm:$0xff]
        %v1043 = vld [vmem:[%s808 + $0x8] sm:$0xff]
        %v1044 = vld [vmem:[%s808 + $0x10] sm:$0xff]
        %v1045 = vld [vmem:[%s808 + $0x18] sm:$0xff]
        %v1046 = vld [vmem:[%s816] sm:$0x1]
        %v1048 = vlaneseq
        %v1049 = vshrl.u32 %v1048, 7
        %v1050 = vsub.s32 0, %v1049
        %v1051 = vrot.slane %v1046, %v1050
        %vm1053 = vcmask 261120
        %v1055 = vsel %vm1053, %v1040, 0
        %1057 = vmatprep.subr.mxu0 0.0
        %v1058 = vand.u32 %v1042, 4294901760
        %1059 = vmatpush1.msra.mxu0 %v1058
        %1060 = vmatprep.subr.mxu0 0.0
        %v1061 = vand.u32 %v1043, 4294901760
        %1062 = vmatpush1.msra.mxu0 %v1061
        %1063 = vmatprep.subr.mxu0 0.0
        %v1064 = vand.u32 %v1044, 4294901760
        %1065 = vmatpush1.msra.mxu0 %v1064
        %1066 = vmatprep.subr.mxu0 0.0
        %v1067 = vand.u32 %v1045, 4294901760
        %1068 = vmatpush1.msra.mxu0 %v1067
        %1069 = vmatprep.subr.mxu0 0.0
        %1070 = vmatpush1.msra.mxu0 0.0
        %1071 = vmatprep.subr.mxu0 0.0
        %1072 = vmatpush1.msra.mxu0 0.0
        %1073 = vmatprep.subr.mxu0 0.0
        %1074 = vmatpush1.msra.mxu0 0.0
        %1075 = vmatprep.subr.mxu0 0.0
        %1076 = vmatpush1.msra.mxu0 0.0
        %1077 = vmatprep.subr.mxu0 0.0
        %1078 = vmatpush1.msra.mxu0 0.0
        %1079 = vmatprep.subr.mxu0 0.0
        %1080 = vmatpush1.msra.mxu0 0.0
        %1081 = vmatprep.subr.mxu0 0.0
        %1082 = vmatpush1.msra.mxu0 0.0
        %1083 = vmatprep.subr.mxu0 0.0
        %1084 = vmatpush1.msra.mxu0 0.0
        %1085 = vmatprep.subr.mxu0 0.0
        %1086 = vmatpush1.msra.mxu0 0.0
        %1087 = vmatprep.subr.mxu0 0.0
        %1088 = vmatpush1.msra.mxu0 0.0
        %1089 = vmatprep.subr.mxu0 0.0
        %1090 = vmatpush1.msra.mxu0 0.0
        %1091 = vmatprep.subr.mxu0 0.0
        %1092 = vmatpush1.msra.mxu0 0.0
        %1093 = vmatprep.subr.mxu0 0.0
        %1094 = vmatpush1.msra.mxu0 0.0
        %1095 = vmatprep.subr.mxu0 0.0
        %1096 = vmatpush1.msra.mxu0 0.0
        %1097 = vmatprep.subr.mxu0 0.0
        %1098 = vmatpush1.msra.mxu0 0.0
        %1099 = vmatprep.subr.mxu0 0.0
        %1100 = vmatpush1.msra.mxu0 0.0
        %1101 = vmatprep.subr.mxu0 0.0
        %1102 = vmatpush1.msra.mxu0 0.0
        %1103 = vmatprep.subr.mxu0 0.0
        %1104 = vmatpush1.msra.mxu0 0.0
        %1105 = vmatprep.subr.mxu0 0.0
        %1106 = vmatpush1.msra.mxu0 0.0
        %1107 = vmatprep.subr.mxu0 0.0
        %1108 = vmatpush1.msra.mxu0 0.0
        %1109 = vmatprep.subr.mxu0 0.0
        %1110 = vmatpush1.msra.mxu0 0.0
        %1111 = vmatprep.subr.mxu0 0.0
        %1112 = vmatpush1.msra.mxu0 0.0
        %1113 = vmatprep.subr.mxu0 0.0
        %1114 = vmatpush1.msra.mxu0 0.0
        %1115 = vmatprep.subr.mxu0 0.0
        %1116 = vmatpush1.msra.mxu0 0.0
        %1117 = vmatprep.subr.mxu0 0.0
        %1118 = vmatpush1.msra.mxu0 0.0
        %1119 = vmatprep.subr.mxu0 0.0
        %1120 = vmatpush1.msra.mxu0 0.0
        %1121 = vmatprep.subr.mxu0 0.0
        %1122 = vmatpush1.msra.mxu0 0.0
        %1123 = vmatprep.subr.mxu0 0.0
        %1124 = vmatpush1.msra.mxu0 0.0
        %1125 = vmatprep.mubr.f32.mxu0 0.0
        %v1126 = vand.u32 %v1055, 4294901760
        %v1127 = vsub.f32 %v1055, %v1126
        %v1128 = vand.u32 %v1127, 4294901760
        %v1129 = vsub.f32 %v1127, %v1128
        %v1130 = vand.u32 %v1129, 4294901760
        %1131 = vmatmul.mubr.f32.gmra.mrb[0].mxu0 %v1130
        %v1132 = vpop.f32.mrb[0].mxu0
        %v1133 = vadd.f32 %v1051, %v1132
        %v1134 = vpop.f32.mrb[0].mxu0
        %1135 = vdwg.mxu0
        %1136 = vmatprep.subr.mxu0 0.0
        %v1137 = vand.u32 %v1042, 4294901760
        %v1138 = vsub.f32 %v1042, %v1137
        %v1139 = vand.u32 %v1138, 4294901760
        %v1140 = vsub.f32 %v1138, %v1139
        %v1141 = vand.u32 %v1140, 4294901760
        %1142 = vmatpush1.msra.mxu0 %v1141
        %1143 = vmatprep.subr.mxu0 0.0
        %v1144 = vand.u32 %v1043, 4294901760
        %v1145 = vsub.f32 %v1043, %v1144
        %v1146 = vand.u32 %v1145, 4294901760
        %v1147 = vsub.f32 %v1145, %v1146
        %v1148 = vand.u32 %v1147, 4294901760
        %1149 = vmatpush1.msra.mxu0 %v1148
        %1150 = vmatprep.subr.mxu0 0.0
        %v1151 = vand.u32 %v1044, 4294901760
        %v1152 = vsub.f32 %v1044, %v1151
        %v1153 = vand.u32 %v1152, 4294901760
        %v1154 = vsub.f32 %v1152, %v1153
        %v1155 = vand.u32 %v1154, 4294901760
        %1156 = vmatpush1.msra.mxu0 %v1155
        %1157 = vmatprep.subr.mxu0 0.0
        %v1158 = vand.u32 %v1045, 4294901760
        %v1159 = vsub.f32 %v1045, %v1158
        %v1160 = vand.u32 %v1159, 4294901760
        %v1161 = vsub.f32 %v1159, %v1160
        %v1162 = vand.u32 %v1161, 4294901760
        %1163 = vmatpush1.msra.mxu0 %v1162
        %1164 = vmatprep.subr.mxu0 0.0
        %1165 = vmatpush1.msra.mxu0 0.0
        %1166 = vmatprep.subr.mxu0 0.0
        %1167 = vmatpush1.msra.mxu0 0.0
        %1168 = vmatprep.subr.mxu0 0.0
        %1169 = vmatpush1.msra.mxu0 0.0
        %1170 = vmatprep.subr.mxu0 0.0
        %1171 = vmatpush1.msra.mxu0 0.0
        %1172 = vmatprep.subr.mxu0 0.0
        %1173 = vmatpush1.msra.mxu0 0.0
        %1174 = vmatprep.subr.mxu0 0.0
        %1175 = vmatpush1.msra.mxu0 0.0
        %1176 = vmatprep.subr.mxu0 0.0
        %1177 = vmatpush1.msra.mxu0 0.0
        %1178 = vmatprep.subr.mxu0 0.0
        %1179 = vmatpush1.msra.mxu0 0.0
        %1180 = vmatprep.subr.mxu0 0.0
        %1181 = vmatpush1.msra.mxu0 0.0
        %1182 = vmatprep.subr.mxu0 0.0
        %1183 = vmatpush1.msra.mxu0 0.0
        %1184 = vmatprep.subr.mxu0 0.0
        %1185 = vmatpush1.msra.mxu0 0.0
        %1186 = vmatprep.subr.mxu0 0.0
        %1187 = vmatpush1.msra.mxu0 0.0
        %1188 = vmatprep.subr.mxu0 0.0
        %1189 = vmatpush1.msra.mxu0 0.0
        %1190 = vmatprep.subr.mxu0 0.0
        %1191 = vmatpush1.msra.mxu0 0.0
        %1192 = vmatprep.subr.mxu0 0.0
        %1193 = vmatpush1.msra.mxu0 0.0
        %1194 = vmatprep.subr.mxu0 0.0
        %1195 = vmatpush1.msra.mxu0 0.0
        %1196 = vmatprep.subr.mxu0 0.0
        %1197 = vmatpush1.msra.mxu0 0.0
        %1198 = vmatprep.subr.mxu0 0.0
        %1199 = vmatpush1.msra.mxu0 0.0
        %1200 = vmatprep.subr.mxu0 0.0
        %1201 = vmatpush1.msra.mxu0 0.0
        %1202 = vmatprep.subr.mxu0 0.0
        %1203 = vmatpush1.msra.mxu0 0.0
        %1204 = vmatprep.subr.mxu0 0.0
        %1205 = vmatpush1.msra.mxu0 0.0
        %1206 = vmatprep.subr.mxu0 0.0
        %1207 = vmatpush1.msra.mxu0 0.0
        %1208 = vmatprep.subr.mxu0 0.0
        %1209 = vmatpush1.msra.mxu0 0.0
        %1210 = vmatprep.subr.mxu0 0.0
        %1211 = vmatpush1.msra.mxu0 0.0
        %1212 = vmatprep.subr.mxu0 0.0
        %1213 = vmatpush1.msra.mxu0 0.0
        %1214 = vmatprep.subr.mxu0 0.0
        %1215 = vmatpush1.msra.mxu0 0.0
        %1216 = vmatprep.subr.mxu0 0.0
        %1217 = vmatpush1.msra.mxu0 0.0
        %1218 = vmatprep.subr.mxu0 0.0
        %1219 = vmatpush1.msra.mxu0 0.0
        %1220 = vmatprep.mubr.f32.mxu0 0.0
        %v1221 = vand.u32 %v1055, 4294901760
        %1222 = vmatmul.mubr.f32.gmra.mrb[0].mxu0 %v1221
        %v1223 = vpop.f32.mrb[0].mxu0
        %v1224 = vadd.f32 %v1133, %v1223
        %v1225 = vpop.f32.mrb[0].mxu0
        %1226 = vdwg.mxu0
        %1227 = vmatprep.subr.mxu0 0.0
        %v1228 = vand.u32 %v1042, 4294901760
        %v1229 = vsub.f32 %v1042, %v1228
        %1230 = vmatpush1.msra.mxu0 %v1229
        %1231 = vmatprep.subr.mxu0 0.0
        %v1232 = vand.u32 %v1043, 4294901760
        %v1233 = vsub.f32 %v1043, %v1232
        %1234 = vmatpush1.msra.mxu0 %v1233
        %1235 = vmatprep.subr.mxu0 0.0
        %v1236 = vand.u32 %v1044, 4294901760
        %v1237 = vsub.f32 %v1044, %v1236
        %1238 = vmatpush1.msra.mxu0 %v1237
        %1239 = vmatprep.subr.mxu0 0.0
        %v1240 = vand.u32 %v1045, 4294901760
        %v1241 = vsub.f32 %v1045, %v1240
        %1242 = vmatpush1.msra.mxu0 %v1241
        %1243 = vmatprep.subr.mxu0 0.0
        %1244 = vmatpush1.msra.mxu0 0.0
        %1245 = vmatprep.subr.mxu0 0.0
        %1246 = vmatpush1.msra.mxu0 0.0
        %1247 = vmatprep.subr.mxu0 0.0
        %1248 = vmatpush1.msra.mxu0 0.0
        %1249 = vmatprep.subr.mxu0 0.0
        %1250 = vmatpush1.msra.mxu0 0.0
        %1251 = vmatprep.subr.mxu0 0.0
        %1252 = vmatpush1.msra.mxu0 0.0
        %1253 = vmatprep.subr.mxu0 0.0
        %1254 = vmatpush1.msra.mxu0 0.0
        %1255 = vmatprep.subr.mxu0 0.0
        %1256 = vmatpush1.msra.mxu0 0.0
        %1257 = vmatprep.subr.mxu0 0.0
        %1258 = vmatpush1.msra.mxu0 0.0
        %1259 = vmatprep.subr.mxu0 0.0
        %1260 = vmatpush1.msra.mxu0 0.0
        %1261 = vmatprep.subr.mxu0 0.0
        %1262 = vmatpush1.msra.mxu0 0.0
        %1263 = vmatprep.subr.mxu0 0.0
        %1264 = vmatpush1.msra.mxu0 0.0
        %1265 = vmatprep.subr.mxu0 0.0
        %1266 = vmatpush1.msra.mxu0 0.0
        %1267 = vmatprep.subr.mxu0 0.0
        %1268 = vmatpush1.msra.mxu0 0.0
        %1269 = vmatprep.subr.mxu0 0.0
        %1270 = vmatpush1.msra.mxu0 0.0
        %1271 = vmatprep.subr.mxu0 0.0
        %1272 = vmatpush1.msra.mxu0 0.0
        %1273 = vmatprep.subr.mxu0 0.0
        %1274 = vmatpush1.msra.mxu0 0.0
        %1275 = vmatprep.subr.mxu0 0.0
        %1276 = vmatpush1.msra.mxu0 0.0
        %1277 = vmatprep.subr.mxu0 0.0
        %1278 = vmatpush1.msra.mxu0 0.0
        %1279 = vmatprep.subr.mxu0 0.0
        %1280 = vmatpush1.msra.mxu0 0.0
        %1281 = vmatprep.subr.mxu0 0.0
        %1282 = vmatpush1.msra.mxu0 0.0
        %1283 = vmatprep.subr.mxu0 0.0
        %1284 = vmatpush1.msra.mxu0 0.0
        %1285 = vmatprep.subr.mxu0 0.0
        %1286 = vmatpush1.msra.mxu0 0.0
        %1287 = vmatprep.subr.mxu0 0.0
        %1288 = vmatpush1.msra.mxu0 0.0
        %1289 = vmatprep.subr.mxu0 0.0
        %1290 = vmatpush1.msra.mxu0 0.0
        %1291 = vmatprep.subr.mxu0 0.0
        %1292 = vmatpush1.msra.mxu0 0.0
        %1293 = vmatprep.subr.mxu0 0.0
        %1294 = vmatpush1.msra.mxu0 0.0
        %1295 = vmatprep.subr.mxu0 0.0
        %1296 = vmatpush1.msra.mxu0 0.0
        %1297 = vmatprep.subr.mxu0 0.0
        %1298 = vmatpush1.msra.mxu0 0.0
        %1299 = vmatprep.mubr.f32.mxu0 0.0
        %v1300 = vand.u32 %v1055, 4294901760
        %v1301 = vsub.f32 %v1055, %v1300
        %1302 = vmatmul.mubr.f32.gmra.mrb[0].mxu0 %v1301
        %v1303 = vpop.f32.mrb[0].mxu0
        %v1304 = vadd.f32 %v1224, %v1303
        %v1305 = vpop.f32.mrb[0].mxu0
        %1306 = vdwg.mxu0
        %1307 = vmatprep.subr.mxu0 0.0
        %v1308 = vand.u32 %v1042, 4294901760
        %1309 = vmatpush1.msra.mxu0 %v1308
        %1310 = vmatprep.subr.mxu0 0.0
        %v1311 = vand.u32 %v1043, 4294901760
        %1312 = vmatpush1.msra.mxu0 %v1311
        %1313 = vmatprep.subr.mxu0 0.0
        %v1314 = vand.u32 %v1044, 4294901760
        %1315 = vmatpush1.msra.mxu0 %v1314
        %1316 = vmatprep.subr.mxu0 0.0
        %v1317 = vand.u32 %v1045, 4294901760
        %1318 = vmatpush1.msra.mxu0 %v1317
        %1319 = vmatprep.subr.mxu0 0.0
        %1320 = vmatpush1.msra.mxu0 0.0
        %1321 = vmatprep.subr.mxu0 0.0
        %1322 = vmatpush1.msra.mxu0 0.0
        %1323 = vmatprep.subr.mxu0 0.0
        %1324 = vmatpush1.msra.mxu0 0.0
        %1325 = vmatprep.subr.mxu0 0.0
        %1326 = vmatpush1.msra.mxu0 0.0
        %1327 = vmatprep.subr.mxu0 0.0
        %1328 = vmatpush1.msra.mxu0 0.0
        %1329 = vmatprep.subr.mxu0 0.0
        %1330 = vmatpush1.msra.mxu0 0.0
        %1331 = vmatprep.subr.mxu0 0.0
        %1332 = vmatpush1.msra.mxu0 0.0
        %1333 = vmatprep.subr.mxu0 0.0
        %1334 = vmatpush1.msra.mxu0 0.0
        %1335 = vmatprep.subr.mxu0 0.0
        %1336 = vmatpush1.msra.mxu0 0.0
        %1337 = vmatprep.subr.mxu0 0.0
        %1338 = vmatpush1.msra.mxu0 0.0
        %1339 = vmatprep.subr.mxu0 0.0
        %1340 = vmatpush1.msra.mxu0 0.0
        %1341 = vmatprep.subr.mxu0 0.0
        %1342 = vmatpush1.msra.mxu0 0.0
        %1343 = vmatprep.subr.mxu0 0.0
        %1344 = vmatpush1.msra.mxu0 0.0
        %1345 = vmatprep.subr.mxu0 0.0
        %1346 = vmatpush1.msra.mxu0 0.0
        %1347 = vmatprep.subr.mxu0 0.0
        %1348 = vmatpush1.msra.mxu0 0.0
        %1349 = vmatprep.subr.mxu0 0.0
        %1350 = vmatpush1.msra.mxu0 0.0
        %1351 = vmatprep.subr.mxu0 0.0
        %1352 = vmatpush1.msra.mxu0 0.0
        %1353 = vmatprep.subr.mxu0 0.0
        %1354 = vmatpush1.msra.mxu0 0.0
        %1355 = vmatprep.subr.mxu0 0.0
        %1356 = vmatpush1.msra.mxu0 0.0
        %1357 = vmatprep.subr.mxu0 0.0
        %1358 = vmatpush1.msra.mxu0 0.0
        %1359 = vmatprep.subr.mxu0 0.0
        %1360 = vmatpush1.msra.mxu0 0.0
        %1361 = vmatprep.subr.mxu0 0.0
        %1362 = vmatpush1.msra.mxu0 0.0
        %1363 = vmatprep.subr.mxu0 0.0
        %1364 = vmatpush1.msra.mxu0 0.0
        %1365 = vmatprep.subr.mxu0 0.0
        %1366 = vmatpush1.msra.mxu0 0.0
        %1367 = vmatprep.subr.mxu0 0.0
        %1368 = vmatpush1.msra.mxu0 0.0
        %1369 = vmatprep.subr.mxu0 0.0
        %1370 = vmatpush1.msra.mxu0 0.0
        %1371 = vmatprep.subr.mxu0 0.0
        %1372 = vmatpush1.msra.mxu0 0.0
        %1373 = vmatprep.subr.mxu0 0.0
        %1374 = vmatpush1.msra.mxu0 0.0
        %1375 = vmatprep.mubr.f32.mxu0 0.0
        %v1376 = vand.u32 %v1055, 4294901760
        %v1377 = vsub.f32 %v1055, %v1376
        %v1378 = vand.u32 %v1377, 4294901760
        %1379 = vmatmul.mubr.f32.gmra.mrb[0].mxu0 %v1378
        %v1380 = vpop.f32.mrb[0].mxu0
        %v1381 = vadd.f32 %v1304, %v1380
        %v1382 = vpop.f32.mrb[0].mxu0
        %1383 = vdwg.mxu0
        %1384 = vmatprep.subr.mxu0 0.0
        %v1385 = vand.u32 %v1042, 4294901760
        %v1386 = vsub.f32 %v1042, %v1385
        %v1387 = vand.u32 %v1386, 4294901760
        %1388 = vmatpush1.msra.mxu0 %v1387
        %1389 = vmatprep.subr.mxu0 0.0
        %v1390 = vand.u32 %v1043, 4294901760
        %v1391 = vsub.f32 %v1043, %v1390
        %v1392 = vand.u32 %v1391, 4294901760
        %1393 = vmatpush1.msra.mxu0 %v1392
        %1394 = vmatprep.subr.mxu0 0.0
        %v1395 = vand.u32 %v1044, 4294901760
        %v1396 = vsub.f32 %v1044, %v1395
        %v1397 = vand.u32 %v1396, 4294901760
        %1398 = vmatpush1.msra.mxu0 %v1397
        %1399 = vmatprep.subr.mxu0 0.0
        %v1400 = vand.u32 %v1045, 4294901760
        %v1401 = vsub.f32 %v1045, %v1400
        %v1402 = vand.u32 %v1401, 4294901760
        %1403 = vmatpush1.msra.mxu0 %v1402
        %1404 = vmatprep.subr.mxu0 0.0
        %1405 = vmatpush1.msra.mxu0 0.0
        %1406 = vmatprep.subr.mxu0 0.0
        %1407 = vmatpush1.msra.mxu0 0.0
        %1408 = vmatprep.subr.mxu0 0.0
        %1409 = vmatpush1.msra.mxu0 0.0
        %1410 = vmatprep.subr.mxu0 0.0
        %1411 = vmatpush1.msra.mxu0 0.0
        %1412 = vmatprep.subr.mxu0 0.0
        %1413 = vmatpush1.msra.mxu0 0.0
        %1414 = vmatprep.subr.mxu0 0.0
        %1415 = vmatpush1.msra.mxu0 0.0
        %1416 = vmatprep.subr.mxu0 0.0
        %1417 = vmatpush1.msra.mxu0 0.0
        %1418 = vmatprep.subr.mxu0 0.0
        %1419 = vmatpush1.msra.mxu0 0.0
        %1420 = vmatprep.subr.mxu0 0.0
        %1421 = vmatpush1.msra.mxu0 0.0
        %1422 = vmatprep.subr.mxu0 0.0
        %1423 = vmatpush1.msra.mxu0 0.0
        %1424 = vmatprep.subr.mxu0 0.0
        %1425 = vmatpush1.msra.mxu0 0.0
        %1426 = vmatprep.subr.mxu0 0.0
        %1427 = vmatpush1.msra.mxu0 0.0
        %1428 = vmatprep.subr.mxu0 0.0
        %1429 = vmatpush1.msra.mxu0 0.0
        %1430 = vmatprep.subr.mxu0 0.0
        %1431 = vmatpush1.msra.mxu0 0.0
        %1432 = vmatprep.subr.mxu0 0.0
        %1433 = vmatpush1.msra.mxu0 0.0
        %1434 = vmatprep.subr.mxu0 0.0
        %1435 = vmatpush1.msra.mxu0 0.0
        %1436 = vmatprep.subr.mxu0 0.0
        %1437 = vmatpush1.msra.mxu0 0.0
        %1438 = vmatprep.subr.mxu0 0.0
        %1439 = vmatpush1.msra.mxu0 0.0
        %1440 = vmatprep.subr.mxu0 0.0
        %1441 = vmatpush1.msra.mxu0 0.0
        %1442 = vmatprep.subr.mxu0 0.0
        %1443 = vmatpush1.msra.mxu0 0.0
        %1444 = vmatprep.subr.mxu0 0.0
        %1445 = vmatpush1.msra.mxu0 0.0
        %1446 = vmatprep.subr.mxu0 0.0
        %1447 = vmatpush1.msra.mxu0 0.0
        %1448 = vmatprep.subr.mxu0 0.0
        %1449 = vmatpush1.msra.mxu0 0.0
        %1450 = vmatprep.subr.mxu0 0.0
        %1451 = vmatpush1.msra.mxu0 0.0
        %1452 = vmatprep.subr.mxu0 0.0
        %1453 = vmatpush1.msra.mxu0 0.0
        %1454 = vmatprep.subr.mxu0 0.0
        %1455 = vmatpush1.msra.mxu0 0.0
        %1456 = vmatprep.subr.mxu0 0.0
        %1457 = vmatpush1.msra.mxu0 0.0
        %1458 = vmatprep.subr.mxu0 0.0
        %1459 = vmatpush1.msra.mxu0 0.0
        %1460 = vmatprep.mubr.f32.mxu0 0.0
        %v1461 = vand.u32 %v1055, 4294901760
        %1462 = vmatmul.mubr.f32.gmra.mrb[0].mxu0 %v1461
        %v1463 = vpop.f32.mrb[0].mxu0
        %v1464 = vadd.f32 %v1381, %v1463
        %v1465 = vpop.f32.mrb[0].mxu0
        %1466 = vdwg.mxu0
        %1467 = vmatprep.subr.mxu0 0.0
        %v1468 = vand.u32 %v1042, 4294901760
        %1469 = vmatpush1.msra.mxu0 %v1468
        %1470 = vmatprep.subr.mxu0 0.0
        %v1471 = vand.u32 %v1043, 4294901760
        %1472 = vmatpush1.msra.mxu0 %v1471
        %1473 = vmatprep.subr.mxu0 0.0
        %v1474 = vand.u32 %v1044, 4294901760
        %1475 = vmatpush1.msra.mxu0 %v1474
        %1476 = vmatprep.subr.mxu0 0.0
        %v1477 = vand.u32 %v1045, 4294901760
        %1478 = vmatpush1.msra.mxu0 %v1477
        %1479 = vmatprep.subr.mxu0 0.0
        %1480 = vmatpush1.msra.mxu0 0.0
        %1481 = vmatprep.subr.mxu0 0.0
        %1482 = vmatpush1.msra.mxu0 0.0
        %1483 = vmatprep.subr.mxu0 0.0
        %1484 = vmatpush1.msra.mxu0 0.0
        %1485 = vmatprep.subr.mxu0 0.0
        %1486 = vmatpush1.msra.mxu0 0.0
        %1487 = vmatprep.subr.mxu0 0.0
        %1488 = vmatpush1.msra.mxu0 0.0
        %1489 = vmatprep.subr.mxu0 0.0
        %1490 = vmatpush1.msra.mxu0 0.0
        %1491 = vmatprep.subr.mxu0 0.0
        %1492 = vmatpush1.msra.mxu0 0.0
        %1493 = vmatprep.subr.mxu0 0.0
        %1494 = vmatpush1.msra.mxu0 0.0
        %1495 = vmatprep.subr.mxu0 0.0
        %1496 = vmatpush1.msra.mxu0 0.0
        %1497 = vmatprep.subr.mxu0 0.0
        %1498 = vmatpush1.msra.mxu0 0.0
        %1499 = vmatprep.subr.mxu0 0.0
        %1500 = vmatpush1.msra.mxu0 0.0
        %1501 = vmatprep.subr.mxu0 0.0
        %1502 = vmatpush1.msra.mxu0 0.0
        %1503 = vmatprep.subr.mxu0 0.0
        %1504 = vmatpush1.msra.mxu0 0.0
        %1505 = vmatprep.subr.mxu0 0.0
        %1506 = vmatpush1.msra.mxu0 0.0
        %1507 = vmatprep.subr.mxu0 0.0
        %1508 = vmatpush1.msra.mxu0 0.0
        %1509 = vmatprep.subr.mxu0 0.0
        %1510 = vmatpush1.msra.mxu0 0.0
        %1511 = vmatprep.subr.mxu0 0.0
        %1512 = vmatpush1.msra.mxu0 0.0
        %1513 = vmatprep.subr.mxu0 0.0
        %1514 = vmatpush1.msra.mxu0 0.0
        %1515 = vmatprep.subr.mxu0 0.0
        %1516 = vmatpush1.msra.mxu0 0.0
        %1517 = vmatprep.subr.mxu0 0.0
        %1518 = vmatpush1.msra.mxu0 0.0
        %1519 = vmatprep.subr.mxu0 0.0
        %1520 = vmatpush1.msra.mxu0 0.0
        %1521 = vmatprep.subr.mxu0 0.0
        %1522 = vmatpush1.msra.mxu0 0.0
        %1523 = vmatprep.subr.mxu0 0.0
        %1524 = vmatpush1.msra.mxu0 0.0
        %1525 = vmatprep.subr.mxu0 0.0
        %1526 = vmatpush1.msra.mxu0 0.0
        %1527 = vmatprep.subr.mxu0 0.0
        %1528 = vmatpush1.msra.mxu0 0.0
        %1529 = vmatprep.subr.mxu0 0.0
        %1530 = vmatpush1.msra.mxu0 0.0
        %1531 = vmatprep.subr.mxu0 0.0
        %1532 = vmatpush1.msra.mxu0 0.0
        %1533 = vmatprep.subr.mxu0 0.0
        %1534 = vmatpush1.msra.mxu0 0.0
        %1535 = vmatprep.mubr.f32.mxu0 0.0
        %v1536 = vand.u32 %v1055, 4294901760
        %1537 = vmatmul.mubr.f32.gmra.mrb[0].mxu0 %v1536
        %v1538 = vpop.f32.mrb[0].mxu0
        %v1539 = vadd.f32 %v1464, %v1538
        %v1540 = vpop.f32.mrb[0].mxu0
        %1541 = vdwg.mxu0
        %v1542 = vld [vmem:[%s825] sm:$0xff]
        %v1543 = vld [vmem:[%s825 + $0x8] sm:$0xff]
        %v1544 = vld [vmem:[%s825 + $0x10] sm:$0xff]
        %v1545 = vld [vmem:[%s825 + $0x18] sm:$0xff]
        %v1547 = vlaneseq
        %v1548 = vshrl.u32 %v1547, 7
        %v1549 = vsub.s32 0, %v1548
        %v1550 = vrot.slane %v1041, %v1549
        %1553 = vrot.lane.b32.xlu0 %v1539, 96
        %v1554 = vpop.permute.xlu0 %1553
        %vm1555 = vcmask 64512
        %v1556 = vsel %vm1555, %v1539, 0
        %v1558 = vsel %vm1555, %v1554, 0
        %1560 = vmatprep.subr.mxu0 0.0
        %v1561 = vand.u32 %v1558, 4294901760
        %1562 = vmatpush1.xpose.msra.mxu0 %v1561
        %1563 = vmatprep.subr.mxu0 0.0
        %1564 = vmatpush1.xpose.msra.mxu0 0.0
        %1565 = vmatprep.subr.mxu0 0.0
        %1566 = vmatpush1.xpose.msra.mxu0 0.0
        %1567 = vmatprep.subr.mxu0 0.0
        %1568 = vmatpush1.xpose.msra.mxu0 0.0
        %1569 = vmatprep.subr.mxu0 0.0
        %1570 = vmatpush1.xpose.msra.mxu0 0.0
        %1571 = vmatprep.subr.mxu0 0.0
        %1572 = vmatpush1.xpose.msra.mxu0 0.0
        %1573 = vmatprep.subr.mxu0 0.0
        %1574 = vmatpush1.xpose.msra.mxu0 0.0
        %1575 = vmatprep.subr.mxu0 0.0
        %1576 = vmatpush1.xpose.msra.mxu0 0.0
        %1577 = vmatprep.subr.mxu0 0.0
        %1578 = vmatpush1.xpose.msra.mxu0 0.0
        %1579 = vmatprep.subr.mxu0 0.0
        %1580 = vmatpush1.xpose.msra.mxu0 0.0
        %1581 = vmatprep.subr.mxu0 0.0
        %1582 = vmatpush1.xpose.msra.mxu0 0.0
        %1583 = vmatprep.subr.mxu0 0.0
        %1584 = vmatpush1.xpose.msra.mxu0 0.0
        %1585 = vmatprep.subr.mxu0 0.0
        %1586 = vmatpush1.xpose.msra.mxu0 0.0
        %1587 = vmatprep.subr.mxu0 0.0
        %1588 = vmatpush1.xpose.msra.mxu0 0.0
        %1589 = vmatprep.subr.mxu0 0.0
        %1590 = vmatpush1.xpose.msra.mxu0 0.0
        %1591 = vmatprep.subr.mxu0 0.0
        %1592 = vmatpush1.xpose.msra.mxu0 0.0
        %1593 = vmatprep.subr.mxu0 0.0
        %1594 = vmatpush1.xpose.msra.mxu0 0.0
        %1595 = vmatprep.subr.mxu0 0.0
        %1596 = vmatpush1.xpose.msra.mxu0 0.0
        %1597 = vmatprep.subr.mxu0 0.0
        %1598 = vmatpush1.xpose.msra.mxu0 0.0
        %1599 = vmatprep.subr.mxu0 0.0
        %1600 = vmatpush1.xpose.msra.mxu0 0.0
        %1601 = vmatprep.subr.mxu0 0.0
        %1602 = vmatpush1.xpose.msra.mxu0 0.0
        %1603 = vmatprep.subr.mxu0 0.0
        %1604 = vmatpush1.xpose.msra.mxu0 0.0
        %1605 = vmatprep.subr.mxu0 0.0
        %1606 = vmatpush1.xpose.msra.mxu0 0.0
        %1607 = vmatprep.subr.mxu0 0.0
        %1608 = vmatpush1.xpose.msra.mxu0 0.0
        %1609 = vmatprep.subr.mxu0 0.0
        %1610 = vmatpush1.xpose.msra.mxu0 0.0
        %1611 = vmatprep.subr.mxu0 0.0
        %1612 = vmatpush1.xpose.msra.mxu0 0.0
        %1613 = vmatprep.subr.mxu0 0.0
        %1614 = vmatpush1.xpose.msra.mxu0 0.0
        %1615 = vmatprep.subr.mxu0 0.0
        %1616 = vmatpush1.xpose.msra.mxu0 0.0
        %1617 = vmatprep.subr.mxu0 0.0
        %1618 = vmatpush1.xpose.msra.mxu0 0.0
        %1619 = vmatprep.subr.mxu0 0.0
        %1620 = vmatpush1.xpose.msra.mxu0 0.0
        %1621 = vmatprep.subr.mxu0 0.0
        %1622 = vmatpush1.xpose.msra.mxu0 0.0
        %1623 = vmatprep.subr.mxu0 0.0
        %1624 = vmatpush1.xpose.msra.mxu0 0.0
        %1625 = vmatprep.mubr.f32.mxu0 0.0
        %v1626 = vand.u32 %v1556, 4294901760
        %v1627 = vsub.f32 %v1556, %v1626
        %v1628 = vand.u32 %v1627, 4294901760
        %v1629 = vsub.f32 %v1627, %v1628
        %v1630 = vand.u32 %v1629, 4294901760
        %1631 = vmatmul.mubr.f32.gmra.mrb[0].mxu0 %v1630
        %v1632 = vpop.f32.mrb[0].mxu0
        %v1633 = vadd.f32 %v1550, %v1632
        %v1634 = vpop.f32.mrb[0].mxu0
        %1635 = vdwg.mxu0
        %1636 = vmatprep.subr.mxu0 0.0
        %v1637 = vand.u32 %v1558, 4294901760
        %v1638 = vsub.f32 %v1558, %v1637
        %v1639 = vand.u32 %v1638, 4294901760
        %v1640 = vsub.f32 %v1638, %v1639
        %v1641 = vand.u32 %v1640, 4294901760
        %1642 = vmatpush1.xpose.msra.mxu0 %v1641
        %1643 = vmatprep.subr.mxu0 0.0
        %1644 = vmatpush1.xpose.msra.mxu0 0.0
        %1645 = vmatprep.subr.mxu0 0.0
        %1646 = vmatpush1.xpose.msra.mxu0 0.0
        %1647 = vmatprep.subr.mxu0 0.0
        %1648 = vmatpush1.xpose.msra.mxu0 0.0
        %1649 = vmatprep.subr.mxu0 0.0
        %1650 = vmatpush1.xpose.msra.mxu0 0.0
        %1651 = vmatprep.subr.mxu0 0.0
        %1652 = vmatpush1.xpose.msra.mxu0 0.0
        %1653 = vmatprep.subr.mxu0 0.0
        %1654 = vmatpush1.xpose.msra.mxu0 0.0
        %1655 = vmatprep.subr.mxu0 0.0
        %1656 = vmatpush1.xpose.msra.mxu0 0.0
        %1657 = vmatprep.subr.mxu0 0.0
        %1658 = vmatpush1.xpose.msra.mxu0 0.0
        %1659 = vmatprep.subr.mxu0 0.0
        %1660 = vmatpush1.xpose.msra.mxu0 0.0
        %1661 = vmatprep.subr.mxu0 0.0
        %1662 = vmatpush1.xpose.msra.mxu0 0.0
        %1663 = vmatprep.subr.mxu0 0.0
        %1664 = vmatpush1.xpose.msra.mxu0 0.0
        %1665 = vmatprep.subr.mxu0 0.0
        %1666 = vmatpush1.xpose.msra.mxu0 0.0
        %1667 = vmatprep.subr.mxu0 0.0
        %1668 = vmatpush1.xpose.msra.mxu0 0.0
        %1669 = vmatprep.subr.mxu0 0.0
        %1670 = vmatpush1.xpose.msra.mxu0 0.0
        %1671 = vmatprep.subr.mxu0 0.0
        %1672 = vmatpush1.xpose.msra.mxu0 0.0
        %1673 = vmatprep.subr.mxu0 0.0
        %1674 = vmatpush1.xpose.msra.mxu0 0.0
        %1675 = vmatprep.subr.mxu0 0.0
        %1676 = vmatpush1.xpose.msra.mxu0 0.0
        %1677 = vmatprep.subr.mxu0 0.0
        %1678 = vmatpush1.xpose.msra.mxu0 0.0
        %1679 = vmatprep.subr.mxu0 0.0
        %1680 = vmatpush1.xpose.msra.mxu0 0.0
        %1681 = vmatprep.subr.mxu0 0.0
        %1682 = vmatpush1.xpose.msra.mxu0 0.0
        %1683 = vmatprep.subr.mxu0 0.0
        %1684 = vmatpush1.xpose.msra.mxu0 0.0
        %1685 = vmatprep.subr.mxu0 0.0
        %1686 = vmatpush1.xpose.msra.mxu0 0.0
        %1687 = vmatprep.subr.mxu0 0.0
        %1688 = vmatpush1.xpose.msra.mxu0 0.0
        %1689 = vmatprep.subr.mxu0 0.0
        %1690 = vmatpush1.xpose.msra.mxu0 0.0
        %1691 = vmatprep.subr.mxu0 0.0
        %1692 = vmatpush1.xpose.msra.mxu0 0.0
        %1693 = vmatprep.subr.mxu0 0.0
        %1694 = vmatpush1.xpose.msra.mxu0 0.0
        %1695 = vmatprep.subr.mxu0 0.0
        %1696 = vmatpush1.xpose.msra.mxu0 0.0
        %1697 = vmatprep.subr.mxu0 0.0
        %1698 = vmatpush1.xpose.msra.mxu0 0.0
        %1699 = vmatprep.subr.mxu0 0.0
        %1700 = vmatpush1.xpose.msra.mxu0 0.0
        %1701 = vmatprep.subr.mxu0 0.0
        %1702 = vmatpush1.xpose.msra.mxu0 0.0
        %1703 = vmatprep.subr.mxu0 0.0
        %1704 = vmatpush1.xpose.msra.mxu0 0.0
        %1705 = vmatprep.mubr.f32.mxu0 0.0
        %v1706 = vand.u32 %v1556, 4294901760
        %1707 = vmatmul.mubr.f32.gmra.mrb[0].mxu0 %v1706
        %v1708 = vpop.f32.mrb[0].mxu0
        %v1709 = vadd.f32 %v1633, %v1708
        %v1710 = vpop.f32.mrb[0].mxu0
        %1711 = vdwg.mxu0
        %1712 = vmatprep.subr.mxu0 0.0
        %v1713 = vand.u32 %v1558, 4294901760
        %v1714 = vsub.f32 %v1558, %v1713
        %1715 = vmatpush1.xpose.msra.mxu0 %v1714
        %1716 = vmatprep.subr.mxu0 0.0
        %1717 = vmatpush1.xpose.msra.mxu0 0.0
        %1718 = vmatprep.subr.mxu0 0.0
        %1719 = vmatpush1.xpose.msra.mxu0 0.0
        %1720 = vmatprep.subr.mxu0 0.0
        %1721 = vmatpush1.xpose.msra.mxu0 0.0
        %1722 = vmatprep.subr.mxu0 0.0
        %1723 = vmatpush1.xpose.msra.mxu0 0.0
        %1724 = vmatprep.subr.mxu0 0.0
        %1725 = vmatpush1.xpose.msra.mxu0 0.0
        %1726 = vmatprep.subr.mxu0 0.0
        %1727 = vmatpush1.xpose.msra.mxu0 0.0
        %1728 = vmatprep.subr.mxu0 0.0
        %1729 = vmatpush1.xpose.msra.mxu0 0.0
        %1730 = vmatprep.subr.mxu0 0.0
        %1731 = vmatpush1.xpose.msra.mxu0 0.0
        %1732 = vmatprep.subr.mxu0 0.0
        %1733 = vmatpush1.xpose.msra.mxu0 0.0
        %1734 = vmatprep.subr.mxu0 0.0
        %1735 = vmatpush1.xpose.msra.mxu0 0.0
        %1736 = vmatprep.subr.mxu0 0.0
        %1737 = vmatpush1.xpose.msra.mxu0 0.0
        %1738 = vmatprep.subr.mxu0 0.0
        %1739 = vmatpush1.xpose.msra.mxu0 0.0
        %1740 = vmatprep.subr.mxu0 0.0
        %1741 = vmatpush1.xpose.msra.mxu0 0.0
        %1742 = vmatprep.subr.mxu0 0.0
        %1743 = vmatpush1.xpose.msra.mxu0 0.0
        %1744 = vmatprep.subr.mxu0 0.0
        %1745 = vmatpush1.xpose.msra.mxu0 0.0
        %1746 = vmatprep.subr.mxu0 0.0
        %1747 = vmatpush1.xpose.msra.mxu0 0.0
        %1748 = vmatprep.subr.mxu0 0.0
        %1749 = vmatpush1.xpose.msra.mxu0 0.0
        %1750 = vmatprep.subr.mxu0 0.0
        %1751 = vmatpush1.xpose.msra.mxu0 0.0
        %1752 = vmatprep.subr.mxu0 0.0
        %1753 = vmatpush1.xpose.msra.mxu0 0.0
        %1754 = vmatprep.subr.mxu0 0.0
        %1755 = vmatpush1.xpose.msra.mxu0 0.0
        %1756 = vmatprep.subr.mxu0 0.0
        %1757 = vmatpush1.xpose.msra.mxu0 0.0
        %1758 = vmatprep.subr.mxu0 0.0
        %1759 = vmatpush1.xpose.msra.mxu0 0.0
        %1760 = vmatprep.subr.mxu0 0.0
        %1761 = vmatpush1.xpose.msra.mxu0 0.0
        %1762 = vmatprep.subr.mxu0 0.0
        %1763 = vmatpush1.xpose.msra.mxu0 0.0
        %1764 = vmatprep.subr.mxu0 0.0
        %1765 = vmatpush1.xpose.msra.mxu0 0.0
        %1766 = vmatprep.subr.mxu0 0.0
        %1767 = vmatpush1.xpose.msra.mxu0 0.0
        %1768 = vmatprep.subr.mxu0 0.0
        %1769 = vmatpush1.xpose.msra.mxu0 0.0
        %1770 = vmatprep.subr.mxu0 0.0
        %1771 = vmatpush1.xpose.msra.mxu0 0.0
        %1772 = vmatprep.subr.mxu0 0.0
        %1773 = vmatpush1.xpose.msra.mxu0 0.0
        %1774 = vmatprep.subr.mxu0 0.0
        %1775 = vmatpush1.xpose.msra.mxu0 0.0
        %1776 = vmatprep.subr.mxu0 0.0
        %1777 = vmatpush1.xpose.msra.mxu0 0.0
        %1778 = vmatprep.mubr.f32.mxu0 0.0
        %v1779 = vand.u32 %v1556, 4294901760
        %v1780 = vsub.f32 %v1556, %v1779
        %1781 = vmatmul.mubr.f32.gmra.mrb[0].mxu0 %v1780
        %v1782 = vpop.f32.mrb[0].mxu0
        %v1783 = vadd.f32 %v1709, %v1782
        %v1784 = vpop.f32.mrb[0].mxu0
        %1785 = vdwg.mxu0
        %1786 = vmatprep.subr.mxu0 0.0
        %v1787 = vand.u32 %v1558, 4294901760
        %1788 = vmatpush1.xpose.msra.mxu0 %v1787
        %1789 = vmatprep.subr.mxu0 0.0
        %1790 = vmatpush1.xpose.msra.mxu0 0.0
        %1791 = vmatprep.subr.mxu0 0.0
        %1792 = vmatpush1.xpose.msra.mxu0 0.0
        %1793 = vmatprep.subr.mxu0 0.0
        %1794 = vmatpush1.xpose.msra.mxu0 0.0
        %1795 = vmatprep.subr.mxu0 0.0
        %1796 = vmatpush1.xpose.msra.mxu0 0.0
        %1797 = vmatprep.subr.mxu0 0.0
        %1798 = vmatpush1.xpose.msra.mxu0 0.0
        %1799 = vmatprep.subr.mxu0 0.0
        %1800 = vmatpush1.xpose.msra.mxu0 0.0
        %1801 = vmatprep.subr.mxu0 0.0
        %1802 = vmatpush1.xpose.msra.mxu0 0.0
        %1803 = vmatprep.subr.mxu0 0.0
        %1804 = vmatpush1.xpose.msra.mxu0 0.0
        %1805 = vmatprep.subr.mxu0 0.0
        %1806 = vmatpush1.xpose.msra.mxu0 0.0
        %1807 = vmatprep.subr.mxu0 0.0
        %1808 = vmatpush1.xpose.msra.mxu0 0.0
        %1809 = vmatprep.subr.mxu0 0.0
        %1810 = vmatpush1.xpose.msra.mxu0 0.0
        %1811 = vmatprep.subr.mxu0 0.0
        %1812 = vmatpush1.xpose.msra.mxu0 0.0
        %1813 = vmatprep.subr.mxu0 0.0
        %1814 = vmatpush1.xpose.msra.mxu0 0.0
        %1815 = vmatprep.subr.mxu0 0.0
        %1816 = vmatpush1.xpose.msra.mxu0 0.0
        %1817 = vmatprep.subr.mxu0 0.0
        %1818 = vmatpush1.xpose.msra.mxu0 0.0
        %1819 = vmatprep.subr.mxu0 0.0
        %1820 = vmatpush1.xpose.msra.mxu0 0.0
        %1821 = vmatprep.subr.mxu0 0.0
        %1822 = vmatpush1.xpose.msra.mxu0 0.0
        %1823 = vmatprep.subr.mxu0 0.0
        %1824 = vmatpush1.xpose.msra.mxu0 0.0
        %1825 = vmatprep.subr.mxu0 0.0
        %1826 = vmatpush1.xpose.msra.mxu0 0.0
        %1827 = vmatprep.subr.mxu0 0.0
        %1828 = vmatpush1.xpose.msra.mxu0 0.0
        %1829 = vmatprep.subr.mxu0 0.0
        %1830 = vmatpush1.xpose.msra.mxu0 0.0
        %1831 = vmatprep.subr.mxu0 0.0
        %1832 = vmatpush1.xpose.msra.mxu0 0.0
        %1833 = vmatprep.subr.mxu0 0.0
        %1834 = vmatpush1.xpose.msra.mxu0 0.0
        %1835 = vmatprep.subr.mxu0 0.0
        %1836 = vmatpush1.xpose.msra.mxu0 0.0
        %1837 = vmatprep.subr.mxu0 0.0
        %1838 = vmatpush1.xpose.msra.mxu0 0.0
        %1839 = vmatprep.subr.mxu0 0.0
        %1840 = vmatpush1.xpose.msra.mxu0 0.0
        %1841 = vmatprep.subr.mxu0 0.0
        %1842 = vmatpush1.xpose.msra.mxu0 0.0
        %1843 = vmatprep.subr.mxu0 0.0
        %1844 = vmatpush1.xpose.msra.mxu0 0.0
        %1845 = vmatprep.subr.mxu0 0.0
        %1846 = vmatpush1.xpose.msra.mxu0 0.0
        %1847 = vmatprep.subr.mxu0 0.0
        %1848 = vmatpush1.xpose.msra.mxu0 0.0
        %1849 = vmatprep.subr.mxu0 0.0
        %1850 = vmatpush1.xpose.msra.mxu0 0.0
        %1851 = vmatprep.mubr.f32.mxu0 0.0
        %v1852 = vand.u32 %v1556, 4294901760
        %v1853 = vsub.f32 %v1556, %v1852
        %v1854 = vand.u32 %v1853, 4294901760
        %1855 = vmatmul.mubr.f32.gmra.mrb[0].mxu0 %v1854
        %v1856 = vpop.f32.mrb[0].mxu0
        %v1857 = vadd.f32 %v1783, %v1856
        %v1858 = vpop.f32.mrb[0].mxu0
        %1859 = vdwg.mxu0
        %1860 = vmatprep.subr.mxu0 0.0
        %v1861 = vand.u32 %v1558, 4294901760
        %v1862 = vsub.f32 %v1558, %v1861
        %v1863 = vand.u32 %v1862, 4294901760
        %1864 = vmatpush1.xpose.msra.mxu0 %v1863
        %1865 = vmatprep.subr.mxu0 0.0
        %1866 = vmatpush1.xpose.msra.mxu0 0.0
        %1867 = vmatprep.subr.mxu0 0.0
        %1868 = vmatpush1.xpose.msra.mxu0 0.0
        %1869 = vmatprep.subr.mxu0 0.0
        %1870 = vmatpush1.xpose.msra.mxu0 0.0
        %1871 = vmatprep.subr.mxu0 0.0
        %1872 = vmatpush1.xpose.msra.mxu0 0.0
        %1873 = vmatprep.subr.mxu0 0.0
        %1874 = vmatpush1.xpose.msra.mxu0 0.0
        %1875 = vmatprep.subr.mxu0 0.0
        %1876 = vmatpush1.xpose.msra.mxu0 0.0
        %1877 = vmatprep.subr.mxu0 0.0
        %1878 = vmatpush1.xpose.msra.mxu0 0.0
        %1879 = vmatprep.subr.mxu0 0.0
        %1880 = vmatpush1.xpose.msra.mxu0 0.0
        %1881 = vmatprep.subr.mxu0 0.0
        %1882 = vmatpush1.xpose.msra.mxu0 0.0
        %1883 = vmatprep.subr.mxu0 0.0
        %1884 = vmatpush1.xpose.msra.mxu0 0.0
        %1885 = vmatprep.subr.mxu0 0.0
        %1886 = vmatpush1.xpose.msra.mxu0 0.0
        %1887 = vmatprep.subr.mxu0 0.0
        %1888 = vmatpush1.xpose.msra.mxu0 0.0
        %1889 = vmatprep.subr.mxu0 0.0
        %1890 = vmatpush1.xpose.msra.mxu0 0.0
        %1891 = vmatprep.subr.mxu0 0.0
        %1892 = vmatpush1.xpose.msra.mxu0 0.0
        %1893 = vmatprep.subr.mxu0 0.0
        %1894 = vmatpush1.xpose.msra.mxu0 0.0
        %1895 = vmatprep.subr.mxu0 0.0
        %1896 = vmatpush1.xpose.msra.mxu0 0.0
        %1897 = vmatprep.subr.mxu0 0.0
        %1898 = vmatpush1.xpose.msra.mxu0 0.0
        %1899 = vmatprep.subr.mxu0 0.0
        %1900 = vmatpush1.xpose.msra.mxu0 0.0
        %1901 = vmatprep.subr.mxu0 0.0
        %1902 = vmatpush1.xpose.msra.mxu0 0.0
        %1903 = vmatprep.subr.mxu0 0.0
        %1904 = vmatpush1.xpose.msra.mxu0 0.0
        %1905 = vmatprep.subr.mxu0 0.0
        %1906 = vmatpush1.xpose.msra.mxu0 0.0
        %1907 = vmatprep.subr.mxu0 0.0
        %1908 = vmatpush1.xpose.msra.mxu0 0.0
        %1909 = vmatprep.subr.mxu0 0.0
        %1910 = vmatpush1.xpose.msra.mxu0 0.0
        %1911 = vmatprep.subr.mxu0 0.0
        %1912 = vmatpush1.xpose.msra.mxu0 0.0
        %1913 = vmatprep.subr.mxu0 0.0
        %1914 = vmatpush1.xpose.msra.mxu0 0.0
        %1915 = vmatprep.subr.mxu0 0.0
        %1916 = vmatpush1.xpose.msra.mxu0 0.0
        %1917 = vmatprep.subr.mxu0 0.0
        %1918 = vmatpush1.xpose.msra.mxu0 0.0
        %1919 = vmatprep.subr.mxu0 0.0
        %1920 = vmatpush1.xpose.msra.mxu0 0.0
        %1921 = vmatprep.subr.mxu0 0.0
        %1922 = vmatpush1.xpose.msra.mxu0 0.0
        %1923 = vmatprep.subr.mxu0 0.0
        %1924 = vmatpush1.xpose.msra.mxu0 0.0
        %1925 = vmatprep.subr.mxu0 0.0
        %1926 = vmatpush1.xpose.msra.mxu0 0.0
        %1927 = vmatprep.mubr.f32.mxu0 0.0
        %v1928 = vand.u32 %v1556, 4294901760
        %1929 = vmatmul.mubr.f32.gmra.mrb[0].mxu0 %v1928
        %v1930 = vpop.f32.mrb[0].mxu0
        %v1931 = vadd.f32 %v1857, %v1930
        %v1932 = vpop.f32.mrb[0].mxu0
        %1933 = vdwg.mxu0
        %1934 = vmatprep.subr.mxu0 0.0
        %v1935 = vand.u32 %v1558, 4294901760
        %1936 = vmatpush1.xpose.msra.mxu0 %v1935
        %1937 = vmatprep.subr.mxu0 0.0
        %1938 = vmatpush1.xpose.msra.mxu0 0.0
        %1939 = vmatprep.subr.mxu0 0.0
        %1940 = vmatpush1.xpose.msra.mxu0 0.0
        %1941 = vmatprep.subr.mxu0 0.0
        %1942 = vmatpush1.xpose.msra.mxu0 0.0
        %1943 = vmatprep.subr.mxu0 0.0
        %1944 = vmatpush1.xpose.msra.mxu0 0.0
        %1945 = vmatprep.subr.mxu0 0.0
        %1946 = vmatpush1.xpose.msra.mxu0 0.0
        %1947 = vmatprep.subr.mxu0 0.0
        %1948 = vmatpush1.xpose.msra.mxu0 0.0
        %1949 = vmatprep.subr.mxu0 0.0
        %1950 = vmatpush1.xpose.msra.mxu0 0.0
        %1951 = vmatprep.subr.mxu0 0.0
        %1952 = vmatpush1.xpose.msra.mxu0 0.0
        %1953 = vmatprep.subr.mxu0 0.0
        %1954 = vmatpush1.xpose.msra.mxu0 0.0
        %1955 = vmatprep.subr.mxu0 0.0
        %1956 = vmatpush1.xpose.msra.mxu0 0.0
        %1957 = vmatprep.subr.mxu0 0.0
        %1958 = vmatpush1.xpose.msra.mxu0 0.0
        %1959 = vmatprep.subr.mxu0 0.0
        %1960 = vmatpush1.xpose.msra.mxu0 0.0
        %1961 = vmatprep.subr.mxu0 0.0
        %1962 = vmatpush1.xpose.msra.mxu0 0.0
        %1963 = vmatprep.subr.mxu0 0.0
        %1964 = vmatpush1.xpose.msra.mxu0 0.0
        %1965 = vmatprep.subr.mxu0 0.0
        %1966 = vmatpush1.xpose.msra.mxu0 0.0
        %1967 = vmatprep.subr.mxu0 0.0
        %1968 = vmatpush1.xpose.msra.mxu0 0.0
        %1969 = vmatprep.subr.mxu0 0.0
        %1970 = vmatpush1.xpose.msra.mxu0 0.0
        %1971 = vmatprep.subr.mxu0 0.0
        %1972 = vmatpush1.xpose.msra.mxu0 0.0
        %1973 = vmatprep.subr.mxu0 0.0
        %1974 = vmatpush1.xpose.msra.mxu0 0.0
        %1975 = vmatprep.subr.mxu0 0.0
        %1976 = vmatpush1.xpose.msra.mxu0 0.0
        %1977 = vmatprep.subr.mxu0 0.0
        %1978 = vmatpush1.xpose.msra.mxu0 0.0
        %1979 = vmatprep.subr.mxu0 0.0
        %1980 = vmatpush1.xpose.msra.mxu0 0.0
        %1981 = vmatprep.subr.mxu0 0.0
        %1982 = vmatpush1.xpose.msra.mxu0 0.0
        %1983 = vmatprep.subr.mxu0 0.0
        %1984 = vmatpush1.xpose.msra.mxu0 0.0
        %1985 = vmatprep.subr.mxu0 0.0
        %1986 = vmatpush1.xpose.msra.mxu0 0.0
        %1987 = vmatprep.subr.mxu0 0.0
        %1988 = vmatpush1.xpose.msra.mxu0 0.0
        %1989 = vmatprep.subr.mxu0 0.0
        %1990 = vmatpush1.xpose.msra.mxu0 0.0
        %1991 = vmatprep.subr.mxu0 0.0
        %1992 = vmatpush1.xpose.msra.mxu0 0.0
        %1993 = vmatprep.subr.mxu0 0.0
        %1994 = vmatpush1.xpose.msra.mxu0 0.0
        %1995 = vmatprep.subr.mxu0 0.0
        %1996 = vmatpush1.xpose.msra.mxu0 0.0
        %1997 = vmatprep.subr.mxu0 0.0
        %1998 = vmatpush1.xpose.msra.mxu0 0.0
        %1999 = vmatprep.mubr.f32.mxu0 0.0
        %v2000 = vand.u32 %v1556, 4294901760
        %2001 = vmatmul.mubr.f32.gmra.mrb[0].mxu0 %v2000
        %v2002 = vpop.f32.mrb[0].mxu0
        %v2003 = vadd.f32 %v1931, %v2002
        %v2004 = vpop.f32.mrb[0].mxu0
        %2005 = vdwg.mxu0
        %v2006 = vsel %vm1555, %v2003, -inf
        %2007 = vmax.xlane.f32.xlu0 %v2006
        %v2008 = vpop.xlane.xlu0 %2007
        %v2009 = vsub.f32 %v2003, %v2008
        %v2010 = vmul.f32 %v2009, 1.442695
        %v2011 = vpow.pop %v2010
        %v2012 = vsel %vm1555, %v2011, 0.0
        %2013 = vadd.xlane.f32.xlu0 %v2012
        %v2014 = vpop.xlane.xlu0 %2013
        %v2015 = vrcp.pop %v2014
        %v2016 = vmul.f32 %v2011, %v2015
        %2017 = vrot.lane.b32.xlu0 %v1539, 64
        %v2018 = vpop.permute.xlu0 %2017
        %v2021 = vsel %vm1555, %v2016, 0
        %2023 = vmatprep.subr.mxu0 0.0
        %v2024 = vand.u32 %v2018, 4294901760
        %2025 = vmatpush1.msra.mxu0 %v2024
        %2026 = vmatprep.subr.mxu0 0.0
        %2027 = vmatpush1.msra.mxu0 0.0
        %2028 = vmatprep.subr.mxu0 0.0
        %2029 = vmatpush1.msra.mxu0 0.0
        %2030 = vmatprep.subr.mxu0 0.0
        %2031 = vmatpush1.msra.mxu0 0.0
        %2032 = vmatprep.subr.mxu0 0.0
        %2033 = vmatpush1.msra.mxu0 0.0
        %2034 = vmatprep.subr.mxu0 0.0
        %2035 = vmatpush1.msra.mxu0 0.0
        %2036 = vmatprep.subr.mxu0 0.0
        %2037 = vmatpush1.msra.mxu0 0.0
        %2038 = vmatprep.subr.mxu0 0.0
        %2039 = vmatpush1.msra.mxu0 0.0
        %2040 = vmatprep.subr.mxu0 0.0
        %2041 = vmatpush1.msra.mxu0 0.0
        %2042 = vmatprep.subr.mxu0 0.0
        %2043 = vmatpush1.msra.mxu0 0.0
        %2044 = vmatprep.subr.mxu0 0.0
        %2045 = vmatpush1.msra.mxu0 0.0
        %2046 = vmatprep.subr.mxu0 0.0
        %2047 = vmatpush1.msra.mxu0 0.0
        %2048 = vmatprep.subr.mxu0 0.0
        %2049 = vmatpush1.msra.mxu0 0.0
        %2050 = vmatprep.subr.mxu0 0.0
        %2051 = vmatpush1.msra.mxu0 0.0
        %2052 = vmatprep.subr.mxu0 0.0
        %2053 = vmatpush1.msra.mxu0 0.0
        %2054 = vmatprep.subr.mxu0 0.0
        %2055 = vmatpush1.msra.mxu0 0.0
        %2056 = vmatprep.subr.mxu0 0.0
        %2057 = vmatpush1.msra.mxu0 0.0
        %2058 = vmatprep.subr.mxu0 0.0
        %2059 = vmatpush1.msra.mxu0 0.0
        %2060 = vmatprep.subr.mxu0 0.0
        %2061 = vmatpush1.msra.mxu0 0.0
        %2062 = vmatprep.subr.mxu0 0.0
        %2063 = vmatpush1.msra.mxu0 0.0
        %2064 = vmatprep.subr.mxu0 0.0
        %2065 = vmatpush1.msra.mxu0 0.0
        %2066 = vmatprep.subr.mxu0 0.0
        %2067 = vmatpush1.msra.mxu0 0.0
        %2068 = vmatprep.subr.mxu0 0.0
        %2069 = vmatpush1.msra.mxu0 0.0
        %2070 = vmatprep.subr.mxu0 0.0
        %2071 = vmatpush1.msra.mxu0 0.0
        %2072 = vmatprep.subr.mxu0 0.0
        %2073 = vmatpush1.msra.mxu0 0.0
        %2074 = vmatprep.subr.mxu0 0.0
        %2075 = vmatpush1.msra.mxu0 0.0
        %2076 = vmatprep.subr.mxu0 0.0
        %2077 = vmatpush1.msra.mxu0 0.0
        %2078 = vmatprep.subr.mxu0 0.0
        %2079 = vmatpush1.msra.mxu0 0.0
        %2080 = vmatprep.subr.mxu0 0.0
        %2081 = vmatpush1.msra.mxu0 0.0
        %2082 = vmatprep.subr.mxu0 0.0
        %2083 = vmatpush1.msra.mxu0 0.0
        %2084 = vmatprep.subr.mxu0 0.0
        %2085 = vmatpush1.msra.mxu0 0.0
        %2086 = vmatprep.subr.mxu0 0.0
        %2087 = vmatpush1.msra.mxu0 0.0
        %2088 = vmatprep.mubr.f32.mxu0 0.0
        %v2089 = vand.u32 %v2021, 4294901760
        %v2090 = vsub.f32 %v2021, %v2089
        %v2091 = vand.u32 %v2090, 4294901760
        %v2092 = vsub.f32 %v2090, %v2091
        %v2093 = vand.u32 %v2092, 4294901760
        %2094 = vmatmul.mubr.f32.gmra.mrb[0].mxu0 %v2093
        %v2095 = vpop.f32.mrb[0].mxu0
        %v2096 = vadd.f32 0.0, %v2095
        %v2097 = vpop.f32.mrb[0].mxu0
        %2098 = vdwg.mxu0
        %2099 = vmatprep.subr.mxu0 0.0
        %v2100 = vand.u32 %v2018, 4294901760
        %v2101 = vsub.f32 %v2018, %v2100
        %v2102 = vand.u32 %v2101, 4294901760
        %v2103 = vsub.f32 %v2101, %v2102
        %v2104 = vand.u32 %v2103, 4294901760
        %2105 = vmatpush1.msra.mxu0 %v2104
        %2106 = vmatprep.subr.mxu0 0.0
        %2107 = vmatpush1.msra.mxu0 0.0
        %2108 = vmatprep.subr.mxu0 0.0
        %2109 = vmatpush1.msra.mxu0 0.0
        %2110 = vmatprep.subr.mxu0 0.0
        %2111 = vmatpush1.msra.mxu0 0.0
        %2112 = vmatprep.subr.mxu0 0.0
        %2113 = vmatpush1.msra.mxu0 0.0
        %2114 = vmatprep.subr.mxu0 0.0
        %2115 = vmatpush1.msra.mxu0 0.0
        %2116 = vmatprep.subr.mxu0 0.0
        %2117 = vmatpush1.msra.mxu0 0.0
        %2118 = vmatprep.subr.mxu0 0.0
        %2119 = vmatpush1.msra.mxu0 0.0
        %2120 = vmatprep.subr.mxu0 0.0
        %2121 = vmatpush1.msra.mxu0 0.0
        %2122 = vmatprep.subr.mxu0 0.0
        %2123 = vmatpush1.msra.mxu0 0.0
        %2124 = vmatprep.subr.mxu0 0.0
        %2125 = vmatpush1.msra.mxu0 0.0
        %2126 = vmatprep.subr.mxu0 0.0
        %2127 = vmatpush1.msra.mxu0 0.0
        %2128 = vmatprep.subr.mxu0 0.0
        %2129 = vmatpush1.msra.mxu0 0.0
        %2130 = vmatprep.subr.mxu0 0.0
        %2131 = vmatpush1.msra.mxu0 0.0
        %2132 = vmatprep.subr.mxu0 0.0
        %2133 = vmatpush1.msra.mxu0 0.0
        %2134 = vmatprep.subr.mxu0 0.0
        %2135 = vmatpush1.msra.mxu0 0.0
        %2136 = vmatprep.subr.mxu0 0.0
        %2137 = vmatpush1.msra.mxu0 0.0
        %2138 = vmatprep.subr.mxu0 0.0
        %2139 = vmatpush1.msra.mxu0 0.0
        %2140 = vmatprep.subr.mxu0 0.0
        %2141 = vmatpush1.msra.mxu0 0.0
        %2142 = vmatprep.subr.mxu0 0.0
        %2143 = vmatpush1.msra.mxu0 0.0
        %2144 = vmatprep.subr.mxu0 0.0
        %2145 = vmatpush1.msra.mxu0 0.0
        %2146 = vmatprep.subr.mxu0 0.0
        %2147 = vmatpush1.msra.mxu0 0.0
        %2148 = vmatprep.subr.mxu0 0.0
        %2149 = vmatpush1.msra.mxu0 0.0
        %2150 = vmatprep.subr.mxu0 0.0
        %2151 = vmatpush1.msra.mxu0 0.0
        %2152 = vmatprep.subr.mxu0 0.0
        %2153 = vmatpush1.msra.mxu0 0.0
        %2154 = vmatprep.subr.mxu0 0.0
        %2155 = vmatpush1.msra.mxu0 0.0
        %2156 = vmatprep.subr.mxu0 0.0
        %2157 = vmatpush1.msra.mxu0 0.0
        %2158 = vmatprep.subr.mxu0 0.0
        %2159 = vmatpush1.msra.mxu0 0.0
        %2160 = vmatprep.subr.mxu0 0.0
        %2161 = vmatpush1.msra.mxu0 0.0
        %2162 = vmatprep.subr.mxu0 0.0
        %2163 = vmatpush1.msra.mxu0 0.0
        %2164 = vmatprep.subr.mxu0 0.0
        %2165 = vmatpush1.msra.mxu0 0.0
        %2166 = vmatprep.subr.mxu0 0.0
        %2167 = vmatpush1.msra.mxu0 0.0
        %2168 = vmatprep.mubr.f32.mxu0 0.0
        %v2169 = vand.u32 %v2021, 4294901760
        %2170 = vmatmul.mubr.f32.gmra.mrb[0].mxu0 %v2169
        %v2171 = vpop.f32.mrb[0].mxu0
        %v2172 = vadd.f32 %v2096, %v2171
        %v2173 = vpop.f32.mrb[0].mxu0
        %2174 = vdwg.mxu0
        %2175 = vmatprep.subr.mxu0 0.0
        %v2176 = vand.u32 %v2018, 4294901760
        %v2177 = vsub.f32 %v2018, %v2176
        %2178 = vmatpush1.msra.mxu0 %v2177
        %2179 = vmatprep.subr.mxu0 0.0
        %2180 = vmatpush1.msra.mxu0 0.0
        %2181 = vmatprep.subr.mxu0 0.0
        %2182 = vmatpush1.msra.mxu0 0.0
        %2183 = vmatprep.subr.mxu0 0.0
        %2184 = vmatpush1.msra.mxu0 0.0
        %2185 = vmatprep.subr.mxu0 0.0
        %2186 = vmatpush1.msra.mxu0 0.0
        %2187 = vmatprep.subr.mxu0 0.0
        %2188 = vmatpush1.msra.mxu0 0.0
        %2189 = vmatprep.subr.mxu0 0.0
        %2190 = vmatpush1.msra.mxu0 0.0
        %2191 = vmatprep.subr.mxu0 0.0
        %2192 = vmatpush1.msra.mxu0 0.0
        %2193 = vmatprep.subr.mxu0 0.0
        %2194 = vmatpush1.msra.mxu0 0.0
        %2195 = vmatprep.subr.mxu0 0.0
        %2196 = vmatpush1.msra.mxu0 0.0
        %2197 = vmatprep.subr.mxu0 0.0
        %2198 = vmatpush1.msra.mxu0 0.0
        %2199 = vmatprep.subr.mxu0 0.0
        %2200 = vmatpush1.msra.mxu0 0.0
        %2201 = vmatprep.subr.mxu0 0.0
        %2202 = vmatpush1.msra.mxu0 0.0
        %2203 = vmatprep.subr.mxu0 0.0
        %2204 = vmatpush1.msra.mxu0 0.0
        %2205 = vmatprep.subr.mxu0 0.0
        %2206 = vmatpush1.msra.mxu0 0.0
        %2207 = vmatprep.subr.mxu0 0.0
        %2208 = vmatpush1.msra.mxu0 0.0
        %2209 = vmatprep.subr.mxu0 0.0
        %2210 = vmatpush1.msra.mxu0 0.0
        %2211 = vmatprep.subr.mxu0 0.0
        %2212 = vmatpush1.msra.mxu0 0.0
        %2213 = vmatprep.subr.mxu0 0.0
        %2214 = vmatpush1.msra.mxu0 0.0
        %2215 = vmatprep.subr.mxu0 0.0
        %2216 = vmatpush1.msra.mxu0 0.0
        %2217 = vmatprep.subr.mxu0 0.0
        %2218 = vmatpush1.msra.mxu0 0.0
        %2219 = vmatprep.subr.mxu0 0.0
        %2220 = vmatpush1.msra.mxu0 0.0
        %2221 = vmatprep.subr.mxu0 0.0
        %2222 = vmatpush1.msra.mxu0 0.0
        %2223 = vmatprep.subr.mxu0 0.0
        %2224 = vmatpush1.msra.mxu0 0.0
        %2225 = vmatprep.subr.mxu0 0.0
        %2226 = vmatpush1.msra.mxu0 0.0
        %2227 = vmatprep.subr.mxu0 0.0
        %2228 = vmatpush1.msra.mxu0 0.0
        %2229 = vmatprep.subr.mxu0 0.0
        %2230 = vmatpush1.msra.mxu0 0.0
        %2231 = vmatprep.subr.mxu0 0.0
        %2232 = vmatpush1.msra.mxu0 0.0
        %2233 = vmatprep.subr.mxu0 0.0
        %2234 = vmatpush1.msra.mxu0 0.0
        %2235 = vmatprep.subr.mxu0 0.0
        %2236 = vmatpush1.msra.mxu0 0.0
        %2237 = vmatprep.subr.mxu0 0.0
        %2238 = vmatpush1.msra.mxu0 0.0
        %2239 = vmatprep.subr.mxu0 0.0
        %2240 = vmatpush1.msra.mxu0 0.0
        %2241 = vmatprep.mubr.f32.mxu0 0.0
        %v2242 = vand.u32 %v2021, 4294901760
        %v2243 = vsub.f32 %v2021, %v2242
        %2244 = vmatmul.mubr.f32.gmra.mrb[0].mxu0 %v2243
        %v2245 = vpop.f32.mrb[0].mxu0
        %v2246 = vadd.f32 %v2172, %v2245
        %v2247 = vpop.f32.mrb[0].mxu0
        %2248 = vdwg.mxu0
        %2249 = vmatprep.subr.mxu0 0.0
        %v2250 = vand.u32 %v2018, 4294901760
        %2251 = vmatpush1.msra.mxu0 %v2250
        %2252 = vmatprep.subr.mxu0 0.0
        %2253 = vmatpush1.msra.mxu0 0.0
        %2254 = vmatprep.subr.mxu0 0.0
        %2255 = vmatpush1.msra.mxu0 0.0
        %2256 = vmatprep.subr.mxu0 0.0
        %2257 = vmatpush1.msra.mxu0 0.0
        %2258 = vmatprep.subr.mxu0 0.0
        %2259 = vmatpush1.msra.mxu0 0.0
        %2260 = vmatprep.subr.mxu0 0.0
        %2261 = vmatpush1.msra.mxu0 0.0
        %2262 = vmatprep.subr.mxu0 0.0
        %2263 = vmatpush1.msra.mxu0 0.0
        %2264 = vmatprep.subr.mxu0 0.0
        %2265 = vmatpush1.msra.mxu0 0.0
        %2266 = vmatprep.subr.mxu0 0.0
        %2267 = vmatpush1.msra.mxu0 0.0
        %2268 = vmatprep.subr.mxu0 0.0
        %2269 = vmatpush1.msra.mxu0 0.0
        %2270 = vmatprep.subr.mxu0 0.0
        %2271 = vmatpush1.msra.mxu0 0.0
        %2272 = vmatprep.subr.mxu0 0.0
        %2273 = vmatpush1.msra.mxu0 0.0
        %2274 = vmatprep.subr.mxu0 0.0
        %2275 = vmatpush1.msra.mxu0 0.0
        %2276 = vmatprep.subr.mxu0 0.0
        %2277 = vmatpush1.msra.mxu0 0.0
        %2278 = vmatprep.subr.mxu0 0.0
        %2279 = vmatpush1.msra.mxu0 0.0
        %2280 = vmatprep.subr.mxu0 0.0
        %2281 = vmatpush1.msra.mxu0 0.0
        %2282 = vmatprep.subr.mxu0 0.0
        %2283 = vmatpush1.msra.mxu0 0.0
        %2284 = vmatprep.subr.mxu0 0.0
        %2285 = vmatpush1.msra.mxu0 0.0
        %2286 = vmatprep.subr.mxu0 0.0
        %2287 = vmatpush1.msra.mxu0 0.0
        %2288 = vmatprep.subr.mxu0 0.0
        %2289 = vmatpush1.msra.mxu0 0.0
        %2290 = vmatprep.subr.mxu0 0.0
        %2291 = vmatpush1.msra.mxu0 0.0
        %2292 = vmatprep.subr.mxu0 0.0
        %2293 = vmatpush1.msra.mxu0 0.0
        %2294 = vmatprep.subr.mxu0 0.0
        %2295 = vmatpush1.msra.mxu0 0.0
        %2296 = vmatprep.subr.mxu0 0.0
        %2297 = vmatpush1.msra.mxu0 0.0
        %2298 = vmatprep.subr.mxu0 0.0
        %2299 = vmatpush1.msra.mxu0 0.0
        %2300 = vmatprep.subr.mxu0 0.0
        %2301 = vmatpush1.msra.mxu0 0.0
        %2302 = vmatprep.subr.mxu0 0.0
        %2303 = vmatpush1.msra.mxu0 0.0
        %2304 = vmatprep.subr.mxu0 0.0
        %2305 = vmatpush1.msra.mxu0 0.0
        %2306 = vmatprep.subr.mxu0 0.0
        %2307 = vmatpush1.msra.mxu0 0.0
        %2308 = vmatprep.subr.mxu0 0.0
        %2309 = vmatpush1.msra.mxu0 0.0
        %2310 = vmatprep.subr.mxu0 0.0
        %2311 = vmatpush1.msra.mxu0 0.0
        %2312 = vmatprep.subr.mxu0 0.0
        %2313 = vmatpush1.msra.mxu0 0.0
        %2314 = vmatprep.mubr.f32.mxu0 0.0
        %v2315 = vand.u32 %v2021, 4294901760
        %v2316 = vsub.f32 %v2021, %v2315
        %v2317 = vand.u32 %v2316, 4294901760
        %2318 = vmatmul.mubr.f32.gmra.mrb[0].mxu0 %v2317
        %v2319 = vpop.f32.mrb[0].mxu0
        %v2320 = vadd.f32 %v2246, %v2319
        %v2321 = vpop.f32.mrb[0].mxu0
        %2322 = vdwg.mxu0
        %2323 = vmatprep.subr.mxu0 0.0
        %v2324 = vand.u32 %v2018, 4294901760
        %v2325 = vsub.f32 %v2018, %v2324
        %v2326 = vand.u32 %v2325, 4294901760
        %2327 = vmatpush1.msra.mxu0 %v2326
        %2328 = vmatprep.subr.mxu0 0.0
        %2329 = vmatpush1.msra.mxu0 0.0
        %2330 = vmatprep.subr.mxu0 0.0
        %2331 = vmatpush1.msra.mxu0 0.0
        %2332 = vmatprep.subr.mxu0 0.0
        %2333 = vmatpush1.msra.mxu0 0.0
        %2334 = vmatprep.subr.mxu0 0.0
        %2335 = vmatpush1.msra.mxu0 0.0
        %2336 = vmatprep.subr.mxu0 0.0
        %2337 = vmatpush1.msra.mxu0 0.0
        %2338 = vmatprep.subr.mxu0 0.0
        %2339 = vmatpush1.msra.mxu0 0.0
        %2340 = vmatprep.subr.mxu0 0.0
        %2341 = vmatpush1.msra.mxu0 0.0
        %2342 = vmatprep.subr.mxu0 0.0
        %2343 = vmatpush1.msra.mxu0 0.0
        %2344 = vmatprep.subr.mxu0 0.0
        %2345 = vmatpush1.msra.mxu0 0.0
        %2346 = vmatprep.subr.mxu0 0.0
        %2347 = vmatpush1.msra.mxu0 0.0
        %2348 = vmatprep.subr.mxu0 0.0
        %2349 = vmatpush1.msra.mxu0 0.0
        %2350 = vmatprep.subr.mxu0 0.0
        %2351 = vmatpush1.msra.mxu0 0.0
        %2352 = vmatprep.subr.mxu0 0.0
        %2353 = vmatpush1.msra.mxu0 0.0
        %2354 = vmatprep.subr.mxu0 0.0
        %2355 = vmatpush1.msra.mxu0 0.0
        %2356 = vmatprep.subr.mxu0 0.0
        %2357 = vmatpush1.msra.mxu0 0.0
        %2358 = vmatprep.subr.mxu0 0.0
        %2359 = vmatpush1.msra.mxu0 0.0
        %2360 = vmatprep.subr.mxu0 0.0
        %2361 = vmatpush1.msra.mxu0 0.0
        %2362 = vmatprep.subr.mxu0 0.0
        %2363 = vmatpush1.msra.mxu0 0.0
        %2364 = vmatprep.subr.mxu0 0.0
        %2365 = vmatpush1.msra.mxu0 0.0
        %2366 = vmatprep.subr.mxu0 0.0
        %2367 = vmatpush1.msra.mxu0 0.0
        %2368 = vmatprep.subr.mxu0 0.0
        %2369 = vmatpush1.msra.mxu0 0.0
        %2370 = vmatprep.subr.mxu0 0.0
        %2371 = vmatpush1.msra.mxu0 0.0
        %2372 = vmatprep.subr.mxu0 0.0
        %2373 = vmatpush1.msra.mxu0 0.0
        %2374 = vmatprep.subr.mxu0 0.0
        %2375 = vmatpush1.msra.mxu0 0.0
        %2376 = vmatprep.subr.mxu0 0.0
        %2377 = vmatpush1.msra.mxu0 0.0
        %2378 = vmatprep.subr.mxu0 0.0
        %2379 = vmatpush1.msra.mxu0 0.0
        %2380 = vmatprep.subr.mxu0 0.0
        %2381 = vmatpush1.msra.mxu0 0.0
        %2382 = vmatprep.subr.mxu0 0.0
        %2383 = vmatpush1.msra.mxu0 0.0
        %2384 = vmatprep.subr.mxu0 0.0
        %2385 = vmatpush1.msra.mxu0 0.0
        %2386 = vmatprep.subr.mxu0 0.0
        %2387 = vmatpush1.msra.mxu0 0.0
        %2388 = vmatprep.subr.mxu0 0.0
        %2389 = vmatpush1.msra.mxu0 0.0
        %2390 = vmatprep.mubr.f32.mxu0 0.0
        %v2391 = vand.u32 %v2021, 4294901760
        %2392 = vmatmul.mubr.f32.gmra.mrb[0].mxu0 %v2391
        %v2393 = vpop.f32.mrb[0].mxu0
        %v2394 = vadd.f32 %v2320, %v2393
        %v2395 = vpop.f32.mrb[0].mxu0
        %2396 = vdwg.mxu0
        %2397 = vmatprep.subr.mxu0 0.0
        %v2398 = vand.u32 %v2018, 4294901760
        %2399 = vmatpush1.msra.mxu0 %v2398
        %2400 = vmatprep.subr.mxu0 0.0
        %2401 = vmatpush1.msra.mxu0 0.0
        %2402 = vmatprep.subr.mxu0 0.0
        %2403 = vmatpush1.msra.mxu0 0.0
        %2404 = vmatprep.subr.mxu0 0.0
        %2405 = vmatpush1.msra.mxu0 0.0
        %2406 = vmatprep.subr.mxu0 0.0
        %2407 = vmatpush1.msra.mxu0 0.0
        %2408 = vmatprep.subr.mxu0 0.0
        %2409 = vmatpush1.msra.mxu0 0.0
        %2410 = vmatprep.subr.mxu0 0.0
        %2411 = vmatpush1.msra.mxu0 0.0
        %2412 = vmatprep.subr.mxu0 0.0
        %2413 = vmatpush1.msra.mxu0 0.0
        %2414 = vmatprep.subr.mxu0 0.0
        %2415 = vmatpush1.msra.mxu0 0.0
        %2416 = vmatprep.subr.mxu0 0.0
        %2417 = vmatpush1.msra.mxu0 0.0
        %2418 = vmatprep.subr.mxu0 0.0
        %2419 = vmatpush1.msra.mxu0 0.0
        %2420 = vmatprep.subr.mxu0 0.0
        %2421 = vmatpush1.msra.mxu0 0.0
        %2422 = vmatprep.subr.mxu0 0.0
        %2423 = vmatpush1.msra.mxu0 0.0
        %2424 = vmatprep.subr.mxu0 0.0
        %2425 = vmatpush1.msra.mxu0 0.0
        %2426 = vmatprep.subr.mxu0 0.0
        %2427 = vmatpush1.msra.mxu0 0.0
        %2428 = vmatprep.subr.mxu0 0.0
        %2429 = vmatpush1.msra.mxu0 0.0
        %2430 = vmatprep.subr.mxu0 0.0
        %2431 = vmatpush1.msra.mxu0 0.0
        %2432 = vmatprep.subr.mxu0 0.0
        %2433 = vmatpush1.msra.mxu0 0.0
        %2434 = vmatprep.subr.mxu0 0.0
        %2435 = vmatpush1.msra.mxu0 0.0
        %2436 = vmatprep.subr.mxu0 0.0
        %2437 = vmatpush1.msra.mxu0 0.0
        %2438 = vmatprep.subr.mxu0 0.0
        %2439 = vmatpush1.msra.mxu0 0.0
        %2440 = vmatprep.subr.mxu0 0.0
        %2441 = vmatpush1.msra.mxu0 0.0
        %2442 = vmatprep.subr.mxu0 0.0
        %2443 = vmatpush1.msra.mxu0 0.0
        %2444 = vmatprep.subr.mxu0 0.0
        %2445 = vmatpush1.msra.mxu0 0.0
        %2446 = vmatprep.subr.mxu0 0.0
        %2447 = vmatpush1.msra.mxu0 0.0
        %2448 = vmatprep.subr.mxu0 0.0
        %2449 = vmatpush1.msra.mxu0 0.0
        %2450 = vmatprep.subr.mxu0 0.0
        %2451 = vmatpush1.msra.mxu0 0.0
        %2452 = vmatprep.subr.mxu0 0.0
        %2453 = vmatpush1.msra.mxu0 0.0
        %2454 = vmatprep.subr.mxu0 0.0
        %2455 = vmatpush1.msra.mxu0 0.0
        %2456 = vmatprep.subr.mxu0 0.0
        %2457 = vmatpush1.msra.mxu0 0.0
        %2458 = vmatprep.subr.mxu0 0.0
        %2459 = vmatpush1.msra.mxu0 0.0
        %2460 = vmatprep.subr.mxu0 0.0
        %2461 = vmatpush1.msra.mxu0 0.0
        %2462 = vmatprep.mubr.f32.mxu0 0.0
        %v2463 = vand.u32 %v2021, 4294901760
        %2464 = vmatmul.mubr.f32.gmra.mrb[0].mxu0 %v2463
        %v2465 = vpop.f32.mrb[0].mxu0
        %v2466 = vadd.f32 %v2394, %v2465
        %v2467 = vpop.f32.mrb[0].mxu0
        %2468 = vdwg.mxu0
        %2469 = vrot.lane.b32.xlu0 %v1539, 120
        %v2470 = vpop.permute.xlu0 %2469
        %2471 = vrot.lane.b32.xlu0 %v1539, 88
        %v2472 = vpop.permute.xlu0 %2471
        %v2473 = vsel %vm1555, %v2470, 0
        %v2475 = vsel %vm1555, %v2472, 0
        %2477 = vmatprep.subr.mxu0 0.0
        %v2478 = vand.u32 %v2475, 4294901760
        %2479 = vmatpush1.xpose.msra.mxu0 %v2478
        %2480 = vmatprep.subr.mxu0 0.0
        %2481 = vmatpush1.xpose.msra.mxu0 0.0
        %2482 = vmatprep.subr.mxu0 0.0
        %2483 = vmatpush1.xpose.msra.mxu0 0.0
        %2484 = vmatprep.subr.mxu0 0.0
        %2485 = vmatpush1.xpose.msra.mxu0 0.0
        %2486 = vmatprep.subr.mxu0 0.0
        %2487 = vmatpush1.xpose.msra.mxu0 0.0
        %2488 = vmatprep.subr.mxu0 0.0
        %2489 = vmatpush1.xpose.msra.mxu0 0.0
        %2490 = vmatprep.subr.mxu0 0.0
        %2491 = vmatpush1.xpose.msra.mxu0 0.0
        %2492 = vmatprep.subr.mxu0 0.0
        %2493 = vmatpush1.xpose.msra.mxu0 0.0
        %2494 = vmatprep.subr.mxu0 0.0
        %2495 = vmatpush1.xpose.msra.mxu0 0.0
        %2496 = vmatprep.subr.mxu0 0.0
        %2497 = vmatpush1.xpose.msra.mxu0 0.0
        %2498 = vmatprep.subr.mxu0 0.0
        %2499 = vmatpush1.xpose.msra.mxu0 0.0
        %2500 = vmatprep.subr.mxu0 0.0
        %2501 = vmatpush1.xpose.msra.mxu0 0.0
        %2502 = vmatprep.subr.mxu0 0.0
        %2503 = vmatpush1.xpose.msra.mxu0 0.0
        %2504 = vmatprep.subr.mxu0 0.0
        %2505 = vmatpush1.xpose.msra.mxu0 0.0
        %2506 = vmatprep.subr.mxu0 0.0
        %2507 = vmatpush1.xpose.msra.mxu0 0.0
        %2508 = vmatprep.subr.mxu0 0.0
        %2509 = vmatpush1.xpose.msra.mxu0 0.0
        %2510 = vmatprep.subr.mxu0 0.0
        %2511 = vmatpush1.xpose.msra.mxu0 0.0
        %2512 = vmatprep.subr.mxu0 0.0
        %2513 = vmatpush1.xpose.msra.mxu0 0.0
        %2514 = vmatprep.subr.mxu0 0.0
        %2515 = vmatpush1.xpose.msra.mxu0 0.0
        %2516 = vmatprep.subr.mxu0 0.0
        %2517 = vmatpush1.xpose.msra.mxu0 0.0
        %2518 = vmatprep.subr.mxu0 0.0
        %2519 = vmatpush1.xpose.msra.mxu0 0.0
        %2520 = vmatprep.subr.mxu0 0.0
        %2521 = vmatpush1.xpose.msra.mxu0 0.0
        %2522 = vmatprep.subr.mxu0 0.0
        %2523 = vmatpush1.xpose.msra.mxu0 0.0
        %2524 = vmatprep.subr.mxu0 0.0
        %2525 = vmatpush1.xpose.msra.mxu0 0.0
        %2526 = vmatprep.subr.mxu0 0.0
        %2527 = vmatpush1.xpose.msra.mxu0 0.0
        %2528 = vmatprep.subr.mxu0 0.0
        %2529 = vmatpush1.xpose.msra.mxu0 0.0
        %2530 = vmatprep.subr.mxu0 0.0
        %2531 = vmatpush1.xpose.msra.mxu0 0.0
        %2532 = vmatprep.subr.mxu0 0.0
        %2533 = vmatpush1.xpose.msra.mxu0 0.0
        %2534 = vmatprep.subr.mxu0 0.0
        %2535 = vmatpush1.xpose.msra.mxu0 0.0
        %2536 = vmatprep.subr.mxu0 0.0
        %2537 = vmatpush1.xpose.msra.mxu0 0.0
        %2538 = vmatprep.subr.mxu0 0.0
        %2539 = vmatpush1.xpose.msra.mxu0 0.0
        %2540 = vmatprep.subr.mxu0 0.0
        %2541 = vmatpush1.xpose.msra.mxu0 0.0
        %2542 = vmatprep.mubr.f32.mxu0 0.0
        %v2543 = vand.u32 %v2473, 4294901760
        %v2544 = vsub.f32 %v2473, %v2543
        %v2545 = vand.u32 %v2544, 4294901760
        %v2546 = vsub.f32 %v2544, %v2545
        %v2547 = vand.u32 %v2546, 4294901760
        %2548 = vmatmul.mubr.f32.gmra.mrb[0].mxu0 %v2547
        %v2549 = vpop.f32.mrb[0].mxu0
        %v2550 = vadd.f32 %v1550, %v2549
        %v2551 = vpop.f32.mrb[0].mxu0
        %2552 = vdwg.mxu0
        %2553 = vmatprep.subr.mxu0 0.0
        %v2554 = vand.u32 %v2475, 4294901760
        %v2555 = vsub.f32 %v2475, %v2554
        %v2556 = vand.u32 %v2555, 4294901760
        %v2557 = vsub.f32 %v2555, %v2556
        %v2558 = vand.u32 %v2557, 4294901760
        %2559 = vmatpush1.xpose.msra.mxu0 %v2558
        %2560 = vmatprep.subr.mxu0 0.0
        %2561 = vmatpush1.xpose.msra.mxu0 0.0
        %2562 = vmatprep.subr.mxu0 0.0
        %2563 = vmatpush1.xpose.msra.mxu0 0.0
        %2564 = vmatprep.subr.mxu0 0.0
        %2565 = vmatpush1.xpose.msra.mxu0 0.0
        %2566 = vmatprep.subr.mxu0 0.0
        %2567 = vmatpush1.xpose.msra.mxu0 0.0
        %2568 = vmatprep.subr.mxu0 0.0
        %2569 = vmatpush1.xpose.msra.mxu0 0.0
        %2570 = vmatprep.subr.mxu0 0.0
        %2571 = vmatpush1.xpose.msra.mxu0 0.0
        %2572 = vmatprep.subr.mxu0 0.0
        %2573 = vmatpush1.xpose.msra.mxu0 0.0
        %2574 = vmatprep.subr.mxu0 0.0
        %2575 = vmatpush1.xpose.msra.mxu0 0.0
        %2576 = vmatprep.subr.mxu0 0.0
        %2577 = vmatpush1.xpose.msra.mxu0 0.0
        %2578 = vmatprep.subr.mxu0 0.0
        %2579 = vmatpush1.xpose.msra.mxu0 0.0
        %2580 = vmatprep.subr.mxu0 0.0
        %2581 = vmatpush1.xpose.msra.mxu0 0.0
        %2582 = vmatprep.subr.mxu0 0.0
        %2583 = vmatpush1.xpose.msra.mxu0 0.0
        %2584 = vmatprep.subr.mxu0 0.0
        %2585 = vmatpush1.xpose.msra.mxu0 0.0
        %2586 = vmatprep.subr.mxu0 0.0
        %2587 = vmatpush1.xpose.msra.mxu0 0.0
        %2588 = vmatprep.subr.mxu0 0.0
        %2589 = vmatpush1.xpose.msra.mxu0 0.0
        %2590 = vmatprep.subr.mxu0 0.0
        %2591 = vmatpush1.xpose.msra.mxu0 0.0
        %2592 = vmatprep.subr.mxu0 0.0
        %2593 = vmatpush1.xpose.msra.mxu0 0.0
        %2594 = vmatprep.subr.mxu0 0.0
        %2595 = vmatpush1.xpose.msra.mxu0 0.0
        %2596 = vmatprep.subr.mxu0 0.0
        %2597 = vmatpush1.xpose.msra.mxu0 0.0
        %2598 = vmatprep.subr.mxu0 0.0
        %2599 = vmatpush1.xpose.msra.mxu0 0.0
        %2600 = vmatprep.subr.mxu0 0.0
        %2601 = vmatpush1.xpose.msra.mxu0 0.0
        %2602 = vmatprep.subr.mxu0 0.0
        %2603 = vmatpush1.xpose.msra.mxu0 0.0
        %2604 = vmatprep.subr.mxu0 0.0
        %2605 = vmatpush1.xpose.msra.mxu0 0.0
        %2606 = vmatprep.subr.mxu0 0.0
        %2607 = vmatpush1.xpose.msra.mxu0 0.0
        %2608 = vmatprep.subr.mxu0 0.0
        %2609 = vmatpush1.xpose.msra.mxu0 0.0
        %2610 = vmatprep.subr.mxu0 0.0
        %2611 = vmatpush1.xpose.msra.mxu0 0.0
        %2612 = vmatprep.subr.mxu0 0.0
        %2613 = vmatpush1.xpose.msra.mxu0 0.0
        %2614 = vmatprep.subr.mxu0 0.0
        %2615 = vmatpush1.xpose.msra.mxu0 0.0
        %2616 = vmatprep.subr.mxu0 0.0
        %2617 = vmatpush1.xpose.msra.mxu0 0.0
        %2618 = vmatprep.subr.mxu0 0.0
        %2619 = vmatpush1.xpose.msra.mxu0 0.0
        %2620 = vmatprep.subr.mxu0 0.0
        %2621 = vmatpush1.xpose.msra.mxu0 0.0
        %2622 = vmatprep.mubr.f32.mxu0 0.0
        %v2623 = vand.u32 %v2473, 4294901760
        %2624 = vmatmul.mubr.f32.gmra.mrb[0].mxu0 %v2623
        %v2625 = vpop.f32.mrb[0].mxu0
        %v2626 = vadd.f32 %v2550, %v2625
        %v2627 = vpop.f32.mrb[0].mxu0
        %2628 = vdwg.mxu0
        %2629 = vmatprep.subr.mxu0 0.0
        %v2630 = vand.u32 %v2475, 4294901760
        %v2631 = vsub.f32 %v2475, %v2630
        %2632 = vmatpush1.xpose.msra.mxu0 %v2631
        %2633 = vmatprep.subr.mxu0 0.0
        %2634 = vmatpush1.xpose.msra.mxu0 0.0
        %2635 = vmatprep.subr.mxu0 0.0
        %2636 = vmatpush1.xpose.msra.mxu0 0.0
        %2637 = vmatprep.subr.mxu0 0.0
        %2638 = vmatpush1.xpose.msra.mxu0 0.0
        %2639 = vmatprep.subr.mxu0 0.0
        %2640 = vmatpush1.xpose.msra.mxu0 0.0
        %2641 = vmatprep.subr.mxu0 0.0
        %2642 = vmatpush1.xpose.msra.mxu0 0.0
        %2643 = vmatprep.subr.mxu0 0.0
        %2644 = vmatpush1.xpose.msra.mxu0 0.0
        %2645 = vmatprep.subr.mxu0 0.0
        %2646 = vmatpush1.xpose.msra.mxu0 0.0
        %2647 = vmatprep.subr.mxu0 0.0
        %2648 = vmatpush1.xpose.msra.mxu0 0.0
        %2649 = vmatprep.subr.mxu0 0.0
        %2650 = vmatpush1.xpose.msra.mxu0 0.0
        %2651 = vmatprep.subr.mxu0 0.0
        %2652 = vmatpush1.xpose.msra.mxu0 0.0
        %2653 = vmatprep.subr.mxu0 0.0
        %2654 = vmatpush1.xpose.msra.mxu0 0.0
        %2655 = vmatprep.subr.mxu0 0.0
        %2656 = vmatpush1.xpose.msra.mxu0 0.0
        %2657 = vmatprep.subr.mxu0 0.0
        %2658 = vmatpush1.xpose.msra.mxu0 0.0
        %2659 = vmatprep.subr.mxu0 0.0
        %2660 = vmatpush1.xpose.msra.mxu0 0.0
        %2661 = vmatprep.subr.mxu0 0.0
        %2662 = vmatpush1.xpose.msra.mxu0 0.0
        %2663 = vmatprep.subr.mxu0 0.0
        %2664 = vmatpush1.xpose.msra.mxu0 0.0
        %2665 = vmatprep.subr.mxu0 0.0
        %2666 = vmatpush1.xpose.msra.mxu0 0.0
        %2667 = vmatprep.subr.mxu0 0.0
        %2668 = vmatpush1.xpose.msra.mxu0 0.0
        %2669 = vmatprep.subr.mxu0 0.0
        %2670 = vmatpush1.xpose.msra.mxu0 0.0
        %2671 = vmatprep.subr.mxu0 0.0
        %2672 = vmatpush1.xpose.msra.mxu0 0.0
        %2673 = vmatprep.subr.mxu0 0.0
        %2674 = vmatpush1.xpose.msra.mxu0 0.0
        %2675 = vmatprep.subr.mxu0 0.0
        %2676 = vmatpush1.xpose.msra.mxu0 0.0
        %2677 = vmatprep.subr.mxu0 0.0
        %2678 = vmatpush1.xpose.msra.mxu0 0.0
        %2679 = vmatprep.subr.mxu0 0.0
        %2680 = vmatpush1.xpose.msra.mxu0 0.0
        %2681 = vmatprep.subr.mxu0 0.0
        %2682 = vmatpush1.xpose.msra.mxu0 0.0
        %2683 = vmatprep.subr.mxu0 0.0
        %2684 = vmatpush1.xpose.msra.mxu0 0.0
        %2685 = vmatprep.subr.mxu0 0.0
        %2686 = vmatpush1.xpose.msra.mxu0 0.0
        %2687 = vmatprep.subr.mxu0 0.0
        %2688 = vmatpush1.xpose.msra.mxu0 0.0
        %2689 = vmatprep.subr.mxu0 0.0
        %2690 = vmatpush1.xpose.msra.mxu0 0.0
        %2691 = vmatprep.subr.mxu0 0.0
        %2692 = vmatpush1.xpose.msra.mxu0 0.0
        %2693 = vmatprep.subr.mxu0 0.0
        %2694 = vmatpush1.xpose.msra.mxu0 0.0
        %2695 = vmatprep.mubr.f32.mxu0 0.0
        %v2696 = vand.u32 %v2473, 4294901760
        %v2697 = vsub.f32 %v2473, %v2696
        %2698 = vmatmul.mubr.f32.gmra.mrb[0].mxu0 %v2697
        %v2699 = vpop.f32.mrb[0].mxu0
        %v2700 = vadd.f32 %v2626, %v2699
        %v2701 = vpop.f32.mrb[0].mxu0
        %2702 = vdwg.mxu0
        %2703 = vmatprep.subr.mxu0 0.0
        %v2704 = vand.u32 %v2475, 4294901760
        %2705 = vmatpush1.xpose.msra.mxu0 %v2704
        %2706 = vmatprep.subr.mxu0 0.0
        %2707 = vmatpush1.xpose.msra.mxu0 0.0
        %2708 = vmatprep.subr.mxu0 0.0
        %2709 = vmatpush1.xpose.msra.mxu0 0.0
        %2710 = vmatprep.subr.mxu0 0.0
        %2711 = vmatpush1.xpose.msra.mxu0 0.0
        %2712 = vmatprep.subr.mxu0 0.0
        %2713 = vmatpush1.xpose.msra.mxu0 0.0
        %2714 = vmatprep.subr.mxu0 0.0
        %2715 = vmatpush1.xpose.msra.mxu0 0.0
        %2716 = vmatprep.subr.mxu0 0.0
        %2717 = vmatpush1.xpose.msra.mxu0 0.0
        %2718 = vmatprep.subr.mxu0 0.0
        %2719 = vmatpush1.xpose.msra.mxu0 0.0
        %2720 = vmatprep.subr.mxu0 0.0
        %2721 = vmatpush1.xpose.msra.mxu0 0.0
        %2722 = vmatprep.subr.mxu0 0.0
        %2723 = vmatpush1.xpose.msra.mxu0 0.0
        %2724 = vmatprep.subr.mxu0 0.0
        %2725 = vmatpush1.xpose.msra.mxu0 0.0
        %2726 = vmatprep.subr.mxu0 0.0
        %2727 = vmatpush1.xpose.msra.mxu0 0.0
        %2728 = vmatprep.subr.mxu0 0.0
        %2729 = vmatpush1.xpose.msra.mxu0 0.0
        %2730 = vmatprep.subr.mxu0 0.0
        %2731 = vmatpush1.xpose.msra.mxu0 0.0
        %2732 = vmatprep.subr.mxu0 0.0
        %2733 = vmatpush1.xpose.msra.mxu0 0.0
        %2734 = vmatprep.subr.mxu0 0.0
        %2735 = vmatpush1.xpose.msra.mxu0 0.0
        %2736 = vmatprep.subr.mxu0 0.0
        %2737 = vmatpush1.xpose.msra.mxu0 0.0
        %2738 = vmatprep.subr.mxu0 0.0
        %2739 = vmatpush1.xpose.msra.mxu0 0.0
        %2740 = vmatprep.subr.mxu0 0.0
        %2741 = vmatpush1.xpose.msra.mxu0 0.0
        %2742 = vmatprep.subr.mxu0 0.0
        %2743 = vmatpush1.xpose.msra.mxu0 0.0
        %2744 = vmatprep.subr.mxu0 0.0
        %2745 = vmatpush1.xpose.msra.mxu0 0.0
        %2746 = vmatprep.subr.mxu0 0.0
        %2747 = vmatpush1.xpose.msra.mxu0 0.0
        %2748 = vmatprep.subr.mxu0 0.0
        %2749 = vmatpush1.xpose.msra.mxu0 0.0
        %2750 = vmatprep.subr.mxu0 0.0
        %2751 = vmatpush1.xpose.msra.mxu0 0.0
        %2752 = vmatprep.subr.mxu0 0.0
        %2753 = vmatpush1.xpose.msra.mxu0 0.0
        %2754 = vmatprep.subr.mxu0 0.0
        %2755 = vmatpush1.xpose.msra.mxu0 0.0
        %2756 = vmatprep.subr.mxu0 0.0
        %2757 = vmatpush1.xpose.msra.mxu0 0.0
        %2758 = vmatprep.subr.mxu0 0.0
        %2759 = vmatpush1.xpose.msra.mxu0 0.0
        %2760 = vmatprep.subr.mxu0 0.0
        %2761 = vmatpush1.xpose.msra.mxu0 0.0
        %2762 = vmatprep.subr.mxu0 0.0
        %2763 = vmatpush1.xpose.msra.mxu0 0.0
        %2764 = vmatprep.subr.mxu0 0.0
        %2765 = vmatpush1.xpose.msra.mxu0 0.0
        %2766 = vmatprep.subr.mxu0 0.0
        %2767 = vmatpush1.xpose.msra.mxu0 0.0
        %2768 = vmatprep.mubr.f32.mxu0 0.0
        %v2769 = vand.u32 %v2473, 4294901760
        %v2770 = vsub.f32 %v2473, %v2769
        %v2771 = vand.u32 %v2770, 4294901760
        %2772 = vmatmul.mubr.f32.gmra.mrb[0].mxu0 %v2771
        %v2773 = vpop.f32.mrb[0].mxu0
        %v2774 = vadd.f32 %v2700, %v2773
        %v2775 = vpop.f32.mrb[0].mxu0
        %2776 = vdwg.mxu0
        %2777 = vmatprep.subr.mxu0 0.0
        %v2778 = vand.u32 %v2475, 4294901760
        %v2779 = vsub.f32 %v2475, %v2778
        %v2780 = vand.u32 %v2779, 4294901760
        %2781 = vmatpush1.xpose.msra.mxu0 %v2780
        %2782 = vmatprep.subr.mxu0 0.0
        %2783 = vmatpush1.xpose.msra.mxu0 0.0
        %2784 = vmatprep.subr.mxu0 0.0
        %2785 = vmatpush1.xpose.msra.mxu0 0.0
        %2786 = vmatprep.subr.mxu0 0.0
        %2787 = vmatpush1.xpose.msra.mxu0 0.0
        %2788 = vmatprep.subr.mxu0 0.0
        %2789 = vmatpush1.xpose.msra.mxu0 0.0
        %2790 = vmatprep.subr.mxu0 0.0
        %2791 = vmatpush1.xpose.msra.mxu0 0.0
        %2792 = vmatprep.subr.mxu0 0.0
        %2793 = vmatpush1.xpose.msra.mxu0 0.0
        %2794 = vmatprep.subr.mxu0 0.0
        %2795 = vmatpush1.xpose.msra.mxu0 0.0
        %2796 = vmatprep.subr.mxu0 0.0
        %2797 = vmatpush1.xpose.msra.mxu0 0.0
        %2798 = vmatprep.subr.mxu0 0.0
        %2799 = vmatpush1.xpose.msra.mxu0 0.0
        %2800 = vmatprep.subr.mxu0 0.0
        %2801 = vmatpush1.xpose.msra.mxu0 0.0
        %2802 = vmatprep.subr.mxu0 0.0
        %2803 = vmatpush1.xpose.msra.mxu0 0.0
        %2804 = vmatprep.subr.mxu0 0.0
        %2805 = vmatpush1.xpose.msra.mxu0 0.0
        %2806 = vmatprep.subr.mxu0 0.0
        %2807 = vmatpush1.xpose.msra.mxu0 0.0
        %2808 = vmatprep.subr.mxu0 0.0
        %2809 = vmatpush1.xpose.msra.mxu0 0.0
        %2810 = vmatprep.subr.mxu0 0.0
        %2811 = vmatpush1.xpose.msra.mxu0 0.0
        %2812 = vmatprep.subr.mxu0 0.0
        %2813 = vmatpush1.xpose.msra.mxu0 0.0
        %2814 = vmatprep.subr.mxu0 0.0
        %2815 = vmatpush1.xpose.msra.mxu0 0.0
        %2816 = vmatprep.subr.mxu0 0.0
        %2817 = vmatpush1.xpose.msra.mxu0 0.0
        %2818 = vmatprep.subr.mxu0 0.0
        %2819 = vmatpush1.xpose.msra.mxu0 0.0
        %2820 = vmatprep.subr.mxu0 0.0
        %2821 = vmatpush1.xpose.msra.mxu0 0.0
        %2822 = vmatprep.subr.mxu0 0.0
        %2823 = vmatpush1.xpose.msra.mxu0 0.0
        %2824 = vmatprep.subr.mxu0 0.0
        %2825 = vmatpush1.xpose.msra.mxu0 0.0
        %2826 = vmatprep.subr.mxu0 0.0
        %2827 = vmatpush1.xpose.msra.mxu0 0.0
        %2828 = vmatprep.subr.mxu0 0.0
        %2829 = vmatpush1.xpose.msra.mxu0 0.0
        %2830 = vmatprep.subr.mxu0 0.0
        %2831 = vmatpush1.xpose.msra.mxu0 0.0
        %2832 = vmatprep.subr.mxu0 0.0
        %2833 = vmatpush1.xpose.msra.mxu0 0.0
        %2834 = vmatprep.subr.mxu0 0.0
        %2835 = vmatpush1.xpose.msra.mxu0 0.0
        %2836 = vmatprep.subr.mxu0 0.0
        %2837 = vmatpush1.xpose.msra.mxu0 0.0
        %2838 = vmatprep.subr.mxu0 0.0
        %2839 = vmatpush1.xpose.msra.mxu0 0.0
        %2840 = vmatprep.subr.mxu0 0.0
        %2841 = vmatpush1.xpose.msra.mxu0 0.0
        %2842 = vmatprep.subr.mxu0 0.0
        %2843 = vmatpush1.xpose.msra.mxu0 0.0
        %2844 = vmatprep.mubr.f32.mxu0 0.0
        %v2845 = vand.u32 %v2473, 4294901760
        %2846 = vmatmul.mubr.f32.gmra.mrb[0].mxu0 %v2845
        %v2847 = vpop.f32.mrb[0].mxu0
        %v2848 = vadd.f32 %v2774, %v2847
        %v2849 = vpop.f32.mrb[0].mxu0
        %2850 = vdwg.mxu0
        %2851 = vmatprep.subr.mxu0 0.0
        %v2852 = vand.u32 %v2475, 4294901760
        %2853 = vmatpush1.xpose.msra.mxu0 %v2852
        %2854 = vmatprep.subr.mxu0 0.0
        %2855 = vmatpush1.xpose.msra.mxu0 0.0
        %2856 = vmatprep.subr.mxu0 0.0
        %2857 = vmatpush1.xpose.msra.mxu0 0.0
        %2858 = vmatprep.subr.mxu0 0.0
        %2859 = vmatpush1.xpose.msra.mxu0 0.0
        %2860 = vmatprep.subr.mxu0 0.0
        %2861 = vmatpush1.xpose.msra.mxu0 0.0
        %2862 = vmatprep.subr.mxu0 0.0
        %2863 = vmatpush1.xpose.msra.mxu0 0.0
        %2864 = vmatprep.subr.mxu0 0.0
        %2865 = vmatpush1.xpose.msra.mxu0 0.0
        %2866 = vmatprep.subr.mxu0 0.0
        %2867 = vmatpush1.xpose.msra.mxu0 0.0
        %2868 = vmatprep.subr.mxu0 0.0
        %2869 = vmatpush1.xpose.msra.mxu0 0.0
        %2870 = vmatprep.subr.mxu0 0.0
        %2871 = vmatpush1.xpose.msra.mxu0 0.0
        %2872 = vmatprep.subr.mxu0 0.0
        %2873 = vmatpush1.xpose.msra.mxu0 0.0
        %2874 = vmatprep.subr.mxu0 0.0
        %2875 = vmatpush1.xpose.msra.mxu0 0.0
        %2876 = vmatprep.subr.mxu0 0.0
        %2877 = vmatpush1.xpose.msra.mxu0 0.0
        %2878 = vmatprep.subr.mxu0 0.0
        %2879 = vmatpush1.xpose.msra.mxu0 0.0
        %2880 = vmatprep.subr.mxu0 0.0
        %2881 = vmatpush1.xpose.msra.mxu0 0.0
        %2882 = vmatprep.subr.mxu0 0.0
        %2883 = vmatpush1.xpose.msra.mxu0 0.0
        %2884 = vmatprep.subr.mxu0 0.0
        %2885 = vmatpush1.xpose.msra.mxu0 0.0
        %2886 = vmatprep.subr.mxu0 0.0
        %2887 = vmatpush1.xpose.msra.mxu0 0.0
        %2888 = vmatprep.subr.mxu0 0.0
        %2889 = vmatpush1.xpose.msra.mxu0 0.0
        %2890 = vmatprep.subr.mxu0 0.0
        %2891 = vmatpush1.xpose.msra.mxu0 0.0
        %2892 = vmatprep.subr.mxu0 0.0
        %2893 = vmatpush1.xpose.msra.mxu0 0.0
        %2894 = vmatprep.subr.mxu0 0.0
        %2895 = vmatpush1.xpose.msra.mxu0 0.0
        %2896 = vmatprep.subr.mxu0 0.0
        %2897 = vmatpush1.xpose.msra.mxu0 0.0
        %2898 = vmatprep.subr.mxu0 0.0
        %2899 = vmatpush1.xpose.msra.mxu0 0.0
        %2900 = vmatprep.subr.mxu0 0.0
        %2901 = vmatpush1.xpose.msra.mxu0 0.0
        %2902 = vmatprep.subr.mxu0 0.0
        %2903 = vmatpush1.xpose.msra.mxu0 0.0
        %2904 = vmatprep.subr.mxu0 0.0
        %2905 = vmatpush1.xpose.msra.mxu0 0.0
        %2906 = vmatprep.subr.mxu0 0.0
        %2907 = vmatpush1.xpose.msra.mxu0 0.0
        %2908 = vmatprep.subr.mxu0 0.0
        %2909 = vmatpush1.xpose.msra.mxu0 0.0
        %2910 = vmatprep.subr.mxu0 0.0
        %2911 = vmatpush1.xpose.msra.mxu0 0.0
        %2912 = vmatprep.subr.mxu0 0.0
        %2913 = vmatpush1.xpose.msra.mxu0 0.0
        %2914 = vmatprep.subr.mxu0 0.0
        %2915 = vmatpush1.xpose.msra.mxu0 0.0
        %2916 = vmatprep.mubr.f32.mxu0 0.0
        %v2917 = vand.u32 %v2473, 4294901760
        %2918 = vmatmul.mubr.f32.gmra.mrb[0].mxu0 %v2917
        %v2919 = vpop.f32.mrb[0].mxu0
        %v2920 = vadd.f32 %v2848, %v2919
        %v2921 = vpop.f32.mrb[0].mxu0
        %2922 = vdwg.mxu0
        %v2923 = vsel %vm1555, %v2920, -inf
        %2924 = vmax.xlane.f32.xlu0 %v2923
        %v2925 = vpop.xlane.xlu0 %2924
        %v2926 = vsub.f32 %v2920, %v2925
        %v2927 = vmul.f32 %v2926, 1.442695
        %v2928 = vpow.pop %v2927
        %v2929 = vsel %vm1555, %v2928, 0.0
        %2930 = vadd.xlane.f32.xlu0 %v2929
        %v2931 = vpop.xlane.xlu0 %2930
        %v2932 = vrcp.pop %v2931
        %v2933 = vmul.f32 %v2928, %v2932
        %2934 = vrot.lane.b32.xlu0 %v1539, 56
        %v2935 = vpop.permute.xlu0 %2934
        %v2938 = vsel %vm1555, %v2933, 0
        %2940 = vmatprep.subr.mxu0 0.0
        %v2941 = vand.u32 %v2935, 4294901760
        %2942 = vmatpush1.msra.mxu0 %v2941
        %2943 = vmatprep.subr.mxu0 0.0
        %2944 = vmatpush1.msra.mxu0 0.0
        %2945 = vmatprep.subr.mxu0 0.0
        %2946 = vmatpush1.msra.mxu0 0.0
        %2947 = vmatprep.subr.mxu0 0.0
        %2948 = vmatpush1.msra.mxu0 0.0
        %2949 = vmatprep.subr.mxu0 0.0
        %2950 = vmatpush1.msra.mxu0 0.0
        %2951 = vmatprep.subr.mxu0 0.0
        %2952 = vmatpush1.msra.mxu0 0.0
        %2953 = vmatprep.subr.mxu0 0.0
        %2954 = vmatpush1.msra.mxu0 0.0
        %2955 = vmatprep.subr.mxu0 0.0
        %2956 = vmatpush1.msra.mxu0 0.0
        %2957 = vmatprep.subr.mxu0 0.0
        %2958 = vmatpush1.msra.mxu0 0.0
        %2959 = vmatprep.subr.mxu0 0.0
        %2960 = vmatpush1.msra.mxu0 0.0
        %2961 = vmatprep.subr.mxu0 0.0
        %2962 = vmatpush1.msra.mxu0 0.0
        %2963 = vmatprep.subr.mxu0 0.0
        %2964 = vmatpush1.msra.mxu0 0.0
        %2965 = vmatprep.subr.mxu0 0.0
        %2966 = vmatpush1.msra.mxu0 0.0
        %2967 = vmatprep.subr.mxu0 0.0
        %2968 = vmatpush1.msra.mxu0 0.0
        %2969 = vmatprep.subr.mxu0 0.0
        %2970 = vmatpush1.msra.mxu0 0.0
        %2971 = vmatprep.subr.mxu0 0.0
        %2972 = vmatpush1.msra.mxu0 0.0
        %2973 = vmatprep.subr.mxu0 0.0
        %2974 = vmatpush1.msra.mxu0 0.0
        %2975 = vmatprep.subr.mxu0 0.0
        %2976 = vmatpush1.msra.mxu0 0.0
        %2977 = vmatprep.subr.mxu0 0.0
        %2978 = vmatpush1.msra.mxu0 0.0
        %2979 = vmatprep.subr.mxu0 0.0
        %2980 = vmatpush1.msra.mxu0 0.0
        %2981 = vmatprep.subr.mxu0 0.0
        %2982 = vmatpush1.msra.mxu0 0.0
        %2983 = vmatprep.subr.mxu0 0.0
        %2984 = vmatpush1.msra.mxu0 0.0
        %2985 = vmatprep.subr.mxu0 0.0
        %2986 = vmatpush1.msra.mxu0 0.0
        %2987 = vmatprep.subr.mxu0 0.0
        %2988 = vmatpush1.msra.mxu0 0.0
        %2989 = vmatprep.subr.mxu0 0.0
        %2990 = vmatpush1.msra.mxu0 0.0
        %2991 = vmatprep.subr.mxu0 0.0
        %2992 = vmatpush1.msra.mxu0 0.0
        %2993 = vmatprep.subr.mxu0 0.0
        %2994 = vmatpush1.msra.mxu0 0.0
        %2995 = vmatprep.subr.mxu0 0.0
        %2996 = vmatpush1.msra.mxu0 0.0
        %2997 = vmatprep.subr.mxu0 0.0
        %2998 = vmatpush1.msra.mxu0 0.0
        %2999 = vmatprep.subr.mxu0 0.0
        %3000 = vmatpush1.msra.mxu0 0.0
        %3001 = vmatprep.subr.mxu0 0.0
        %3002 = vmatpush1.msra.mxu0 0.0
        %3003 = vmatprep.subr.mxu0 0.0
        %3004 = vmatpush1.msra.mxu0 0.0
        %3005 = vmatprep.mubr.f32.mxu0 0.0
        %v3006 = vand.u32 %v2938, 4294901760
        %v3007 = vsub.f32 %v2938, %v3006
        %v3008 = vand.u32 %v3007, 4294901760
        %v3009 = vsub.f32 %v3007, %v3008
        %v3010 = vand.u32 %v3009, 4294901760
        %3011 = vmatmul.mubr.f32.gmra.mrb[0].mxu0 %v3010
        %v3012 = vpop.f32.mrb[0].mxu0
        %v3013 = vadd.f32 0.0, %v3012
        %v3014 = vpop.f32.mrb[0].mxu0
        %3015 = vdwg.mxu0
        %3016 = vmatprep.subr.mxu0 0.0
        %v3017 = vand.u32 %v2935, 4294901760
        %v3018 = vsub.f32 %v2935, %v3017
        %v3019 = vand.u32 %v3018, 4294901760
        %v3020 = vsub.f32 %v3018, %v3019
        %v3021 = vand.u32 %v3020, 4294901760
        %3022 = vmatpush1.msra.mxu0 %v3021
        %3023 = vmatprep.subr.mxu0 0.0
        %3024 = vmatpush1.msra.mxu0 0.0
        %3025 = vmatprep.subr.mxu0 0.0
        %3026 = vmatpush1.msra.mxu0 0.0
        %3027 = vmatprep.subr.mxu0 0.0
        %3028 = vmatpush1.msra.mxu0 0.0
        %3029 = vmatprep.subr.mxu0 0.0
        %3030 = vmatpush1.msra.mxu0 0.0
        %3031 = vmatprep.subr.mxu0 0.0
        %3032 = vmatpush1.msra.mxu0 0.0
        %3033 = vmatprep.subr.mxu0 0.0
        %3034 = vmatpush1.msra.mxu0 0.0
        %3035 = vmatprep.subr.mxu0 0.0
        %3036 = vmatpush1.msra.mxu0 0.0
        %3037 = vmatprep.subr.mxu0 0.0
        %3038 = vmatpush1.msra.mxu0 0.0
        %3039 = vmatprep.subr.mxu0 0.0
        %3040 = vmatpush1.msra.mxu0 0.0
        %3041 = vmatprep.subr.mxu0 0.0
        %3042 = vmatpush1.msra.mxu0 0.0
        %3043 = vmatprep.subr.mxu0 0.0
        %3044 = vmatpush1.msra.mxu0 0.0
        %3045 = vmatprep.subr.mxu0 0.0
        %3046 = vmatpush1.msra.mxu0 0.0
        %3047 = vmatprep.subr.mxu0 0.0
        %3048 = vmatpush1.msra.mxu0 0.0
        %3049 = vmatprep.subr.mxu0 0.0
        %3050 = vmatpush1.msra.mxu0 0.0
        %3051 = vmatprep.subr.mxu0 0.0
        %3052 = vmatpush1.msra.mxu0 0.0
        %3053 = vmatprep.subr.mxu0 0.0
        %3054 = vmatpush1.msra.mxu0 0.0
        %3055 = vmatprep.subr.mxu0 0.0
        %3056 = vmatpush1.msra.mxu0 0.0
        %3057 = vmatprep.subr.mxu0 0.0
        %3058 = vmatpush1.msra.mxu0 0.0
        %3059 = vmatprep.subr.mxu0 0.0
        %3060 = vmatpush1.msra.mxu0 0.0
        %3061 = vmatprep.subr.mxu0 0.0
        %3062 = vmatpush1.msra.mxu0 0.0
        %3063 = vmatprep.subr.mxu0 0.0
        %3064 = vmatpush1.msra.mxu0 0.0
        %3065 = vmatprep.subr.mxu0 0.0
        %3066 = vmatpush1.msra.mxu0 0.0
        %3067 = vmatprep.subr.mxu0 0.0
        %3068 = vmatpush1.msra.mxu0 0.0
        %3069 = vmatprep.subr.mxu0 0.0
        %3070 = vmatpush1.msra.mxu0 0.0
        %3071 = vmatprep.subr.mxu0 0.0
        %3072 = vmatpush1.msra.mxu0 0.0
        %3073 = vmatprep.subr.mxu0 0.0
        %3074 = vmatpush1.msra.mxu0 0.0
        %3075 = vmatprep.subr.mxu0 0.0
        %3076 = vmatpush1.msra.mxu0 0.0
        %3077 = vmatprep.subr.mxu0 0.0
        %3078 = vmatpush1.msra.mxu0 0.0
        %3079 = vmatprep.subr.mxu0 0.0
        %3080 = vmatpush1.msra.mxu0 0.0
        %3081 = vmatprep.subr.mxu0 0.0
        %3082 = vmatpush1.msra.mxu0 0.0
        %3083 = vmatprep.subr.mxu0 0.0
        %3084 = vmatpush1.msra.mxu0 0.0
        %3085 = vmatprep.mubr.f32.mxu0 0.0
        %v3086 = vand.u32 %v2938, 4294901760
        %3087 = vmatmul.mubr.f32.gmra.mrb[0].mxu0 %v3086
        %v3088 = vpop.f32.mrb[0].mxu0
        %v3089 = vadd.f32 %v3013, %v3088
        %v3090 = vpop.f32.mrb[0].mxu0
        %3091 = vdwg.mxu0
        %3092 = vmatprep.subr.mxu0 0.0
        %v3093 = vand.u32 %v2935, 4294901760
        %v3094 = vsub.f32 %v2935, %v3093
        %3095 = vmatpush1.msra.mxu0 %v3094
        %3096 = vmatprep.subr.mxu0 0.0
        %3097 = vmatpush1.msra.mxu0 0.0
        %3098 = vmatprep.subr.mxu0 0.0
        %3099 = vmatpush1.msra.mxu0 0.0
        %3100 = vmatprep.subr.mxu0 0.0
        %3101 = vmatpush1.msra.mxu0 0.0
        %3102 = vmatprep.subr.mxu0 0.0
        %3103 = vmatpush1.msra.mxu0 0.0
        %3104 = vmatprep.subr.mxu0 0.0
        %3105 = vmatpush1.msra.mxu0 0.0
        %3106 = vmatprep.subr.mxu0 0.0
        %3107 = vmatpush1.msra.mxu0 0.0
        %3108 = vmatprep.subr.mxu0 0.0
        %3109 = vmatpush1.msra.mxu0 0.0
        %3110 = vmatprep.subr.mxu0 0.0
        %3111 = vmatpush1.msra.mxu0 0.0
        %3112 = vmatprep.subr.mxu0 0.0
        %3113 = vmatpush1.msra.mxu0 0.0
        %3114 = vmatprep.subr.mxu0 0.0
        %3115 = vmatpush1.msra.mxu0 0.0
        %3116 = vmatprep.subr.mxu0 0.0
        %3117 = vmatpush1.msra.mxu0 0.0
        %3118 = vmatprep.subr.mxu0 0.0
        %3119 = vmatpush1.msra.mxu0 0.0
        %3120 = vmatprep.subr.mxu0 0.0
        %3121 = vmatpush1.msra.mxu0 0.0
        %3122 = vmatprep.subr.mxu0 0.0
        %3123 = vmatpush1.msra.mxu0 0.0
        %3124 = vmatprep.subr.mxu0 0.0
        %3125 = vmatpush1.msra.mxu0 0.0
        %3126 = vmatprep.subr.mxu0 0.0
        %3127 = vmatpush1.msra.mxu0 0.0
        %3128 = vmatprep.subr.mxu0 0.0
        %3129 = vmatpush1.msra.mxu0 0.0
        %3130 = vmatprep.subr.mxu0 0.0
        %3131 = vmatpush1.msra.mxu0 0.0
        %3132 = vmatprep.subr.mxu0 0.0
        %3133 = vmatpush1.msra.mxu0 0.0
        %3134 = vmatprep.subr.mxu0 0.0
        %3135 = vmatpush1.msra.mxu0 0.0
        %3136 = vmatprep.subr.mxu0 0.0
        %3137 = vmatpush1.msra.mxu0 0.0
        %3138 = vmatprep.subr.mxu0 0.0
        %3139 = vmatpush1.msra.mxu0 0.0
        %3140 = vmatprep.subr.mxu0 0.0
        %3141 = vmatpush1.msra.mxu0 0.0
        %3142 = vmatprep.subr.mxu0 0.0
        %3143 = vmatpush1.msra.mxu0 0.0
        %3144 = vmatprep.subr.mxu0 0.0
        %3145 = vmatpush1.msra.mxu0 0.0
        %3146 = vmatprep.subr.mxu0 0.0
        %3147 = vmatpush1.msra.mxu0 0.0
        %3148 = vmatprep.subr.mxu0 0.0
        %3149 = vmatpush1.msra.mxu0 0.0
        %3150 = vmatprep.subr.mxu0 0.0
        %3151 = vmatpush1.msra.mxu0 0.0
        %3152 = vmatprep.subr.mxu0 0.0
        %3153 = vmatpush1.msra.mxu0 0.0
        %3154 = vmatprep.subr.mxu0 0.0
        %3155 = vmatpush1.msra.mxu0 0.0
        %3156 = vmatprep.subr.mxu0 0.0
        %3157 = vmatpush1.msra.mxu0 0.0
        %3158 = vmatprep.mubr.f32.mxu0 0.0
        %v3159 = vand.u32 %v2938, 4294901760
        %v3160 = vsub.f32 %v2938, %v3159
        %3161 = vmatmul.mubr.f32.gmra.mrb[0].mxu0 %v3160
        %v3162 = vpop.f32.mrb[0].mxu0
        %v3163 = vadd.f32 %v3089, %v3162
        %v3164 = vpop.f32.mrb[0].mxu0
        %3165 = vdwg.mxu0
        %3166 = vmatprep.subr.mxu0 0.0
        %v3167 = vand.u32 %v2935, 4294901760
        %3168 = vmatpush1.msra.mxu0 %v3167
        %3169 = vmatprep.subr.mxu0 0.0
        %3170 = vmatpush1.msra.mxu0 0.0
        %3171 = vmatprep.subr.mxu0 0.0
        %3172 = vmatpush1.msra.mxu0 0.0
        %3173 = vmatprep.subr.mxu0 0.0
        %3174 = vmatpush1.msra.mxu0 0.0
        %3175 = vmatprep.subr.mxu0 0.0
        %3176 = vmatpush1.msra.mxu0 0.0
        %3177 = vmatprep.subr.mxu0 0.0
        %3178 = vmatpush1.msra.mxu0 0.0
        %3179 = vmatprep.subr.mxu0 0.0
        %3180 = vmatpush1.msra.mxu0 0.0
        %3181 = vmatprep.subr.mxu0 0.0
        %3182 = vmatpush1.msra.mxu0 0.0
        %3183 = vmatprep.subr.mxu0 0.0
        %3184 = vmatpush1.msra.mxu0 0.0
        %3185 = vmatprep.subr.mxu0 0.0
        %3186 = vmatpush1.msra.mxu0 0.0
        %3187 = vmatprep.subr.mxu0 0.0
        %3188 = vmatpush1.msra.mxu0 0.0
        %3189 = vmatprep.subr.mxu0 0.0
        %3190 = vmatpush1.msra.mxu0 0.0
        %3191 = vmatprep.subr.mxu0 0.0
        %3192 = vmatpush1.msra.mxu0 0.0
        %3193 = vmatprep.subr.mxu0 0.0
        %3194 = vmatpush1.msra.mxu0 0.0
        %3195 = vmatprep.subr.mxu0 0.0
        %3196 = vmatpush1.msra.mxu0 0.0
        %3197 = vmatprep.subr.mxu0 0.0
        %3198 = vmatpush1.msra.mxu0 0.0
        %3199 = vmatprep.subr.mxu0 0.0
        %3200 = vmatpush1.msra.mxu0 0.0
        %3201 = vmatprep.subr.mxu0 0.0
        %3202 = vmatpush1.msra.mxu0 0.0
        %3203 = vmatprep.subr.mxu0 0.0
        %3204 = vmatpush1.msra.mxu0 0.0
        %3205 = vmatprep.subr.mxu0 0.0
        %3206 = vmatpush1.msra.mxu0 0.0
        %3207 = vmatprep.subr.mxu0 0.0
        %3208 = vmatpush1.msra.mxu0 0.0
        %3209 = vmatprep.subr.mxu0 0.0
        %3210 = vmatpush1.msra.mxu0 0.0
        %3211 = vmatprep.subr.mxu0 0.0
        %3212 = vmatpush1.msra.mxu0 0.0
        %3213 = vmatprep.subr.mxu0 0.0
        %3214 = vmatpush1.msra.mxu0 0.0
        %3215 = vmatprep.subr.mxu0 0.0
        %3216 = vmatpush1.msra.mxu0 0.0
        %3217 = vmatprep.subr.mxu0 0.0
        %3218 = vmatpush1.msra.mxu0 0.0
        %3219 = vmatprep.subr.mxu0 0.0
        %3220 = vmatpush1.msra.mxu0 0.0
        %3221 = vmatprep.subr.mxu0 0.0
        %3222 = vmatpush1.msra.mxu0 0.0
        %3223 = vmatprep.subr.mxu0 0.0
        %3224 = vmatpush1.msra.mxu0 0.0
        %3225 = vmatprep.subr.mxu0 0.0
        %3226 = vmatpush1.msra.mxu0 0.0
        %3227 = vmatprep.subr.mxu0 0.0
        %3228 = vmatpush1.msra.mxu0 0.0
        %3229 = vmatprep.subr.mxu0 0.0
        %3230 = vmatpush1.msra.mxu0 0.0
        %3231 = vmatprep.mubr.f32.mxu0 0.0
        %v3232 = vand.u32 %v2938, 4294901760
        %v3233 = vsub.f32 %v2938, %v3232
        %v3234 = vand.u32 %v3233, 4294901760
        %3235 = vmatmul.mubr.f32.gmra.mrb[0].mxu0 %v3234
        %v3236 = vpop.f32.mrb[0].mxu0
        %v3237 = vadd.f32 %v3163, %v3236
        %v3238 = vpop.f32.mrb[0].mxu0
        %3239 = vdwg.mxu0
        %3240 = vmatprep.subr.mxu0 0.0
        %v3241 = vand.u32 %v2935, 4294901760
        %v3242 = vsub.f32 %v2935, %v3241
        %v3243 = vand.u32 %v3242, 4294901760
        %3244 = vmatpush1.msra.mxu0 %v3243
        %3245 = vmatprep.subr.mxu0 0.0
        %3246 = vmatpush1.msra.mxu0 0.0
        %3247 = vmatprep.subr.mxu0 0.0
        %3248 = vmatpush1.msra.mxu0 0.0
        %3249 = vmatprep.subr.mxu0 0.0
        %3250 = vmatpush1.msra.mxu0 0.0
        %3251 = vmatprep.subr.mxu0 0.0
        %3252 = vmatpush1.msra.mxu0 0.0
        %3253 = vmatprep.subr.mxu0 0.0
        %3254 = vmatpush1.msra.mxu0 0.0
        %3255 = vmatprep.subr.mxu0 0.0
        %3256 = vmatpush1.msra.mxu0 0.0
        %3257 = vmatprep.subr.mxu0 0.0
        %3258 = vmatpush1.msra.mxu0 0.0
        %3259 = vmatprep.subr.mxu0 0.0
        %3260 = vmatpush1.msra.mxu0 0.0
        %3261 = vmatprep.subr.mxu0 0.0
        %3262 = vmatpush1.msra.mxu0 0.0
        %3263 = vmatprep.subr.mxu0 0.0
        %3264 = vmatpush1.msra.mxu0 0.0
        %3265 = vmatprep.subr.mxu0 0.0
        %3266 = vmatpush1.msra.mxu0 0.0
        %3267 = vmatprep.subr.mxu0 0.0
        %3268 = vmatpush1.msra.mxu0 0.0
        %3269 = vmatprep.subr.mxu0 0.0
        %3270 = vmatpush1.msra.mxu0 0.0
        %3271 = vmatprep.subr.mxu0 0.0
        %3272 = vmatpush1.msra.mxu0 0.0
        %3273 = vmatprep.subr.mxu0 0.0
        %3274 = vmatpush1.msra.mxu0 0.0
        %3275 = vmatprep.subr.mxu0 0.0
        %3276 = vmatpush1.msra.mxu0 0.0
        %3277 = vmatprep.subr.mxu0 0.0
        %3278 = vmatpush1.msra.mxu0 0.0
        %3279 = vmatprep.subr.mxu0 0.0
        %3280 = vmatpush1.msra.mxu0 0.0
        %3281 = vmatprep.subr.mxu0 0.0
        %3282 = vmatpush1.msra.mxu0 0.0
        %3283 = vmatprep.subr.mxu0 0.0
        %3284 = vmatpush1.msra.mxu0 0.0
        %3285 = vmatprep.subr.mxu0 0.0
        %3286 = vmatpush1.msra.mxu0 0.0
        %3287 = vmatprep.subr.mxu0 0.0
        %3288 = vmatpush1.msra.mxu0 0.0
        %3289 = vmatprep.subr.mxu0 0.0
        %3290 = vmatpush1.msra.mxu0 0.0
        %3291 = vmatprep.subr.mxu0 0.0
        %3292 = vmatpush1.msra.mxu0 0.0
        %3293 = vmatprep.subr.mxu0 0.0
        %3294 = vmatpush1.msra.mxu0 0.0
        %3295 = vmatprep.subr.mxu0 0.0
        %3296 = vmatpush1.msra.mxu0 0.0
        %3297 = vmatprep.subr.mxu0 0.0
        %3298 = vmatpush1.msra.mxu0 0.0
        %3299 = vmatprep.subr.mxu0 0.0
        %3300 = vmatpush1.msra.mxu0 0.0
        %3301 = vmatprep.subr.mxu0 0.0
        %3302 = vmatpush1.msra.mxu0 0.0
        %3303 = vmatprep.subr.mxu0 0.0
        %3304 = vmatpush1.msra.mxu0 0.0
        %3305 = vmatprep.subr.mxu0 0.0
        %3306 = vmatpush1.msra.mxu0 0.0
        %3307 = vmatprep.mubr.f32.mxu0 0.0
        %v3308 = vand.u32 %v2938, 4294901760
        %3309 = vmatmul.mubr.f32.gmra.mrb[0].mxu0 %v3308
        %v3310 = vpop.f32.mrb[0].mxu0
        %v3311 = vadd.f32 %v3237, %v3310
        %v3312 = vpop.f32.mrb[0].mxu0
        %3313 = vdwg.mxu0
        %3314 = vmatprep.subr.mxu0 0.0
        %v3315 = vand.u32 %v2935, 4294901760
        %3316 = vmatpush1.msra.mxu0 %v3315
        %3317 = vmatprep.subr.mxu0 0.0
        %3318 = vmatpush1.msra.mxu0 0.0
        %3319 = vmatprep.subr.mxu0 0.0
        %3320 = vmatpush1.msra.mxu0 0.0
        %3321 = vmatprep.subr.mxu0 0.0
        %3322 = vmatpush1.msra.mxu0 0.0
        %3323 = vmatprep.subr.mxu0 0.0
        %3324 = vmatpush1.msra.mxu0 0.0
        %3325 = vmatprep.subr.mxu0 0.0
        %3326 = vmatpush1.msra.mxu0 0.0
        %3327 = vmatprep.subr.mxu0 0.0
        %3328 = vmatpush1.msra.mxu0 0.0
        %3329 = vmatprep.subr.mxu0 0.0
        %3330 = vmatpush1.msra.mxu0 0.0
        %3331 = vmatprep.subr.mxu0 0.0
        %3332 = vmatpush1.msra.mxu0 0.0
        %3333 = vmatprep.subr.mxu0 0.0
        %3334 = vmatpush1.msra.mxu0 0.0
        %3335 = vmatprep.subr.mxu0 0.0
        %3336 = vmatpush1.msra.mxu0 0.0
        %3337 = vmatprep.subr.mxu0 0.0
        %3338 = vmatpush1.msra.mxu0 0.0
        %3339 = vmatprep.subr.mxu0 0.0
        %3340 = vmatpush1.msra.mxu0 0.0
        %3341 = vmatprep.subr.mxu0 0.0
        %3342 = vmatpush1.msra.mxu0 0.0
        %3343 = vmatprep.subr.mxu0 0.0
        %3344 = vmatpush1.msra.mxu0 0.0
        %3345 = vmatprep.subr.mxu0 0.0
        %3346 = vmatpush1.msra.mxu0 0.0
        %3347 = vmatprep.subr.mxu0 0.0
        %3348 = vmatpush1.msra.mxu0 0.0
        %3349 = vmatprep.subr.mxu0 0.0
        %3350 = vmatpush1.msra.mxu0 0.0
        %3351 = vmatprep.subr.mxu0 0.0
        %3352 = vmatpush1.msra.mxu0 0.0
        %3353 = vmatprep.subr.mxu0 0.0
        %3354 = vmatpush1.msra.mxu0 0.0
        %3355 = vmatprep.subr.mxu0 0.0
        %3356 = vmatpush1.msra.mxu0 0.0
        %3357 = vmatprep.subr.mxu0 0.0
        %3358 = vmatpush1.msra.mxu0 0.0
        %3359 = vmatprep.subr.mxu0 0.0
        %3360 = vmatpush1.msra.mxu0 0.0
        %3361 = vmatprep.subr.mxu0 0.0
        %3362 = vmatpush1.msra.mxu0 0.0
        %3363 = vmatprep.subr.mxu0 0.0
        %3364 = vmatpush1.msra.mxu0 0.0
        %3365 = vmatprep.subr.mxu0 0.0
        %3366 = vmatpush1.msra.mxu0 0.0
        %3367 = vmatprep.subr.mxu0 0.0
        %3368 = vmatpush1.msra.mxu0 0.0
        %3369 = vmatprep.subr.mxu0 0.0
        %3370 = vmatpush1.msra.mxu0 0.0
        %3371 = vmatprep.subr.mxu0 0.0
        %3372 = vmatpush1.msra.mxu0 0.0
        %3373 = vmatprep.subr.mxu0 0.0
        %3374 = vmatpush1.msra.mxu0 0.0
        %3375 = vmatprep.subr.mxu0 0.0
        %3376 = vmatpush1.msra.mxu0 0.0
        %3377 = vmatprep.subr.mxu0 0.0
        %3378 = vmatpush1.msra.mxu0 0.0
        %3379 = vmatprep.mubr.f32.mxu0 0.0
        %v3380 = vand.u32 %v2938, 4294901760
        %3381 = vmatmul.mubr.f32.gmra.mrb[0].mxu0 %v3380
        %v3382 = vpop.f32.mrb[0].mxu0
        %v3383 = vadd.f32 %v3311, %v3382
        %v3384 = vpop.f32.mrb[0].mxu0
        %3385 = vdwg.mxu0
        %v3387 = vsel %vm1555, %v3383, 0
        %3389 = vmatprep.subr.mxu0 0.0
        %v3390 = vand.u32 %v1543, 4294901760
        %3391 = vmatpush1.msra.mxu0 %v3390
        %3392 = vmatprep.subr.mxu0 0.0
        %3393 = vmatpush1.msra.mxu0 0.0
        %3394 = vmatprep.subr.mxu0 0.0
        %3395 = vmatpush1.msra.mxu0 0.0
        %3396 = vmatprep.subr.mxu0 0.0
        %3397 = vmatpush1.msra.mxu0 0.0
        %3398 = vmatprep.subr.mxu0 0.0
        %3399 = vmatpush1.msra.mxu0 0.0
        %3400 = vmatprep.subr.mxu0 0.0
        %3401 = vmatpush1.msra.mxu0 0.0
        %3402 = vmatprep.subr.mxu0 0.0
        %3403 = vmatpush1.msra.mxu0 0.0
        %3404 = vmatprep.subr.mxu0 0.0
        %3405 = vmatpush1.msra.mxu0 0.0
        %3406 = vmatprep.subr.mxu0 0.0
        %3407 = vmatpush1.msra.mxu0 0.0
        %3408 = vmatprep.subr.mxu0 0.0
        %3409 = vmatpush1.msra.mxu0 0.0
        %3410 = vmatprep.subr.mxu0 0.0
        %3411 = vmatpush1.msra.mxu0 0.0
        %3412 = vmatprep.subr.mxu0 0.0
        %3413 = vmatpush1.msra.mxu0 0.0
        %3414 = vmatprep.subr.mxu0 0.0
        %3415 = vmatpush1.msra.mxu0 0.0
        %3416 = vmatprep.subr.mxu0 0.0
        %3417 = vmatpush1.msra.mxu0 0.0
        %3418 = vmatprep.subr.mxu0 0.0
        %3419 = vmatpush1.msra.mxu0 0.0
        %3420 = vmatprep.subr.mxu0 0.0
        %3421 = vmatpush1.msra.mxu0 0.0
        %3422 = vmatprep.subr.mxu0 0.0
        %3423 = vmatpush1.msra.mxu0 0.0
        %3424 = vmatprep.subr.mxu0 0.0
        %3425 = vmatpush1.msra.mxu0 0.0
        %3426 = vmatprep.subr.mxu0 0.0
        %3427 = vmatpush1.msra.mxu0 0.0
        %3428 = vmatprep.subr.mxu0 0.0
        %3429 = vmatpush1.msra.mxu0 0.0
        %3430 = vmatprep.subr.mxu0 0.0
        %3431 = vmatpush1.msra.mxu0 0.0
        %3432 = vmatprep.subr.mxu0 0.0
        %3433 = vmatpush1.msra.mxu0 0.0
        %3434 = vmatprep.subr.mxu0 0.0
        %3435 = vmatpush1.msra.mxu0 0.0
        %3436 = vmatprep.subr.mxu0 0.0
        %3437 = vmatpush1.msra.mxu0 0.0
        %3438 = vmatprep.subr.mxu0 0.0
        %3439 = vmatpush1.msra.mxu0 0.0
        %3440 = vmatprep.subr.mxu0 0.0
        %3441 = vmatpush1.msra.mxu0 0.0
        %3442 = vmatprep.subr.mxu0 0.0
        %3443 = vmatpush1.msra.mxu0 0.0
        %3444 = vmatprep.subr.mxu0 0.0
        %3445 = vmatpush1.msra.mxu0 0.0
        %3446 = vmatprep.subr.mxu0 0.0
        %3447 = vmatpush1.msra.mxu0 0.0
        %3448 = vmatprep.subr.mxu0 0.0
        %3449 = vmatpush1.msra.mxu0 0.0
        %3450 = vmatprep.subr.mxu0 0.0
        %3451 = vmatpush1.msra.mxu0 0.0
        %3452 = vmatprep.subr.mxu0 0.0
        %3453 = vmatpush1.msra.mxu0 0.0
        %3454 = vmatprep.mubr.f32.mxu0 0.0
        %v3455 = vand.u32 %v3387, 4294901760
        %v3456 = vsub.f32 %v3387, %v3455
        %v3457 = vand.u32 %v3456, 4294901760
        %v3458 = vsub.f32 %v3456, %v3457
        %v3459 = vand.u32 %v3458, 4294901760
        %3460 = vmatmul.mubr.f32.gmra.mrb[0].mxu0 %v3459
        %v3461 = vpop.f32.mrb[0].mxu0
        %v3462 = vadd.f32 0.0, %v3461
        %v3463 = vpop.f32.mrb[0].mxu0
        %3464 = vdwg.mxu0
        %3465 = vmatprep.subr.mxu0 0.0
        %v3466 = vand.u32 %v1543, 4294901760
        %v3467 = vsub.f32 %v1543, %v3466
        %v3468 = vand.u32 %v3467, 4294901760
        %v3469 = vsub.f32 %v3467, %v3468
        %v3470 = vand.u32 %v3469, 4294901760
        %3471 = vmatpush1.msra.mxu0 %v3470
        %3472 = vmatprep.subr.mxu0 0.0
        %3473 = vmatpush1.msra.mxu0 0.0
        %3474 = vmatprep.subr.mxu0 0.0
        %3475 = vmatpush1.msra.mxu0 0.0
        %3476 = vmatprep.subr.mxu0 0.0
        %3477 = vmatpush1.msra.mxu0 0.0
        %3478 = vmatprep.subr.mxu0 0.0
        %3479 = vmatpush1.msra.mxu0 0.0
        %3480 = vmatprep.subr.mxu0 0.0
        %3481 = vmatpush1.msra.mxu0 0.0
        %3482 = vmatprep.subr.mxu0 0.0
        %3483 = vmatpush1.msra.mxu0 0.0
        %3484 = vmatprep.subr.mxu0 0.0
        %3485 = vmatpush1.msra.mxu0 0.0
        %3486 = vmatprep.subr.mxu0 0.0
        %3487 = vmatpush1.msra.mxu0 0.0
        %3488 = vmatprep.subr.mxu0 0.0
        %3489 = vmatpush1.msra.mxu0 0.0
        %3490 = vmatprep.subr.mxu0 0.0
        %3491 = vmatpush1.msra.mxu0 0.0
        %3492 = vmatprep.subr.mxu0 0.0
        %3493 = vmatpush1.msra.mxu0 0.0
        %3494 = vmatprep.subr.mxu0 0.0
        %3495 = vmatpush1.msra.mxu0 0.0
        %3496 = vmatprep.subr.mxu0 0.0
        %3497 = vmatpush1.msra.mxu0 0.0
        %3498 = vmatprep.subr.mxu0 0.0
        %3499 = vmatpush1.msra.mxu0 0.0
        %3500 = vmatprep.subr.mxu0 0.0
        %3501 = vmatpush1.msra.mxu0 0.0
        %3502 = vmatprep.subr.mxu0 0.0
        %3503 = vmatpush1.msra.mxu0 0.0
        %3504 = vmatprep.subr.mxu0 0.0
        %3505 = vmatpush1.msra.mxu0 0.0
        %3506 = vmatprep.subr.mxu0 0.0
        %3507 = vmatpush1.msra.mxu0 0.0
        %3508 = vmatprep.subr.mxu0 0.0
        %3509 = vmatpush1.msra.mxu0 0.0
        %3510 = vmatprep.subr.mxu0 0.0
        %3511 = vmatpush1.msra.mxu0 0.0
        %3512 = vmatprep.subr.mxu0 0.0
        %3513 = vmatpush1.msra.mxu0 0.0
        %3514 = vmatprep.subr.mxu0 0.0
        %3515 = vmatpush1.msra.mxu0 0.0
        %3516 = vmatprep.subr.mxu0 0.0
        %3517 = vmatpush1.msra.mxu0 0.0
        %3518 = vmatprep.subr.mxu0 0.0
        %3519 = vmatpush1.msra.mxu0 0.0
        %3520 = vmatprep.subr.mxu0 0.0
        %3521 = vmatpush1.msra.mxu0 0.0
        %3522 = vmatprep.subr.mxu0 0.0
        %3523 = vmatpush1.msra.mxu0 0.0
        %3524 = vmatprep.subr.mxu0 0.0
        %3525 = vmatpush1.msra.mxu0 0.0
        %3526 = vmatprep.subr.mxu0 0.0
        %3527 = vmatpush1.msra.mxu0 0.0
        %3528 = vmatprep.subr.mxu0 0.0
        %3529 = vmatpush1.msra.mxu0 0.0
        %3530 = vmatprep.subr.mxu0 0.0
        %3531 = vmatpush1.msra.mxu0 0.0
        %3532 = vmatprep.subr.mxu0 0.0
        %3533 = vmatpush1.msra.mxu0 0.0
        %3534 = vmatprep.mubr.f32.mxu0 0.0
        %v3535 = vand.u32 %v3387, 4294901760
        %3536 = vmatmul.mubr.f32.gmra.mrb[0].mxu0 %v3535
        %v3537 = vpop.f32.mrb[0].mxu0
        %v3538 = vadd.f32 %v3462, %v3537
        %v3539 = vpop.f32.mrb[0].mxu0
        %3540 = vdwg.mxu0
        %3541 = vmatprep.subr.mxu0 0.0
        %v3542 = vand.u32 %v1543, 4294901760
        %v3543 = vsub.f32 %v1543, %v3542
        %3544 = vmatpush1.msra.mxu0 %v3543
        %3545 = vmatprep.subr.mxu0 0.0
        %3546 = vmatpush1.msra.mxu0 0.0
        %3547 = vmatprep.subr.mxu0 0.0
        %3548 = vmatpush1.msra.mxu0 0.0
        %3549 = vmatprep.subr.mxu0 0.0
        %3550 = vmatpush1.msra.mxu0 0.0
        %3551 = vmatprep.subr.mxu0 0.0
        %3552 = vmatpush1.msra.mxu0 0.0
        %3553 = vmatprep.subr.mxu0 0.0
        %3554 = vmatpush1.msra.mxu0 0.0
        %3555 = vmatprep.subr.mxu0 0.0
        %3556 = vmatpush1.msra.mxu0 0.0
        %3557 = vmatprep.subr.mxu0 0.0
        %3558 = vmatpush1.msra.mxu0 0.0
        %3559 = vmatprep.subr.mxu0 0.0
        %3560 = vmatpush1.msra.mxu0 0.0
        %3561 = vmatprep.subr.mxu0 0.0
        %3562 = vmatpush1.msra.mxu0 0.0
        %3563 = vmatprep.subr.mxu0 0.0
        %3564 = vmatpush1.msra.mxu0 0.0
        %3565 = vmatprep.subr.mxu0 0.0
        %3566 = vmatpush1.msra.mxu0 0.0
        %3567 = vmatprep.subr.mxu0 0.0
        %3568 = vmatpush1.msra.mxu0 0.0
        %3569 = vmatprep.subr.mxu0 0.0
        %3570 = vmatpush1.msra.mxu0 0.0
        %3571 = vmatprep.subr.mxu0 0.0
        %3572 = vmatpush1.msra.mxu0 0.0
        %3573 = vmatprep.subr.mxu0 0.0
        %3574 = vmatpush1.msra.mxu0 0.0
        %3575 = vmatprep.subr.mxu0 0.0
        %3576 = vmatpush1.msra.mxu0 0.0
        %3577 = vmatprep.subr.mxu0 0.0
        %3578 = vmatpush1.msra.mxu0 0.0
        %3579 = vmatprep.subr.mxu0 0.0
        %3580 = vmatpush1.msra.mxu0 0.0
        %3581 = vmatprep.subr.mxu0 0.0
        %3582 = vmatpush1.msra.mxu0 0.0
        %3583 = vmatprep.subr.mxu0 0.0
        %3584 = vmatpush1.msra.mxu0 0.0
        %3585 = vmatprep.subr.mxu0 0.0
        %3586 = vmatpush1.msra.mxu0 0.0
        %3587 = vmatprep.subr.mxu0 0.0
        %3588 = vmatpush1.msra.mxu0 0.0
        %3589 = vmatprep.subr.mxu0 0.0
        %3590 = vmatpush1.msra.mxu0 0.0
        %3591 = vmatprep.subr.mxu0 0.0
        %3592 = vmatpush1.msra.mxu0 0.0
        %3593 = vmatprep.subr.mxu0 0.0
        %3594 = vmatpush1.msra.mxu0 0.0
        %3595 = vmatprep.subr.mxu0 0.0
        %3596 = vmatpush1.msra.mxu0 0.0
        %3597 = vmatprep.subr.mxu0 0.0
        %3598 = vmatpush1.msra.mxu0 0.0
        %3599 = vmatprep.subr.mxu0 0.0
        %3600 = vmatpush1.msra.mxu0 0.0
        %3601 = vmatprep.subr.mxu0 0.0
        %3602 = vmatpush1.msra.mxu0 0.0
        %3603 = vmatprep.subr.mxu0 0.0
        %3604 = vmatpush1.msra.mxu0 0.0
        %3605 = vmatprep.subr.mxu0 0.0
        %3606 = vmatpush1.msra.mxu0 0.0
        %3607 = vmatprep.mubr.f32.mxu0 0.0
        %v3608 = vand.u32 %v3387, 4294901760
        %v3609 = vsub.f32 %v3387, %v3608
        %3610 = vmatmul.mubr.f32.gmra.mrb[0].mxu0 %v3609
        %v3611 = vpop.f32.mrb[0].mxu0
        %v3612 = vadd.f32 %v3538, %v3611
        %v3613 = vpop.f32.mrb[0].mxu0
        %3614 = vdwg.mxu0
        %3615 = vmatprep.subr.mxu0 0.0
        %v3616 = vand.u32 %v1543, 4294901760
        %3617 = vmatpush1.msra.mxu0 %v3616
        %3618 = vmatprep.subr.mxu0 0.0
        %3619 = vmatpush1.msra.mxu0 0.0
        %3620 = vmatprep.subr.mxu0 0.0
        %3621 = vmatpush1.msra.mxu0 0.0
        %3622 = vmatprep.subr.mxu0 0.0
        %3623 = vmatpush1.msra.mxu0 0.0
        %3624 = vmatprep.subr.mxu0 0.0
        %3625 = vmatpush1.msra.mxu0 0.0
        %3626 = vmatprep.subr.mxu0 0.0
        %3627 = vmatpush1.msra.mxu0 0.0
        %3628 = vmatprep.subr.mxu0 0.0
        %3629 = vmatpush1.msra.mxu0 0.0
        %3630 = vmatprep.subr.mxu0 0.0
        %3631 = vmatpush1.msra.mxu0 0.0
        %3632 = vmatprep.subr.mxu0 0.0
        %3633 = vmatpush1.msra.mxu0 0.0
        %3634 = vmatprep.subr.mxu0 0.0
        %3635 = vmatpush1.msra.mxu0 0.0
        %3636 = vmatprep.subr.mxu0 0.0
        %3637 = vmatpush1.msra.mxu0 0.0
        %3638 = vmatprep.subr.mxu0 0.0
        %3639 = vmatpush1.msra.mxu0 0.0
        %3640 = vmatprep.subr.mxu0 0.0
        %3641 = vmatpush1.msra.mxu0 0.0
        %3642 = vmatprep.subr.mxu0 0.0
        %3643 = vmatpush1.msra.mxu0 0.0
        %3644 = vmatprep.subr.mxu0 0.0
        %3645 = vmatpush1.msra.mxu0 0.0
        %3646 = vmatprep.subr.mxu0 0.0
        %3647 = vmatpush1.msra.mxu0 0.0
        %3648 = vmatprep.subr.mxu0 0.0
        %3649 = vmatpush1.msra.mxu0 0.0
        %3650 = vmatprep.subr.mxu0 0.0
        %3651 = vmatpush1.msra.mxu0 0.0
        %3652 = vmatprep.subr.mxu0 0.0
        %3653 = vmatpush1.msra.mxu0 0.0
        %3654 = vmatprep.subr.mxu0 0.0
        %3655 = vmatpush1.msra.mxu0 0.0
        %3656 = vmatprep.subr.mxu0 0.0
        %3657 = vmatpush1.msra.mxu0 0.0
        %3658 = vmatprep.subr.mxu0 0.0
        %3659 = vmatpush1.msra.mxu0 0.0
        %3660 = vmatprep.subr.mxu0 0.0
        %3661 = vmatpush1.msra.mxu0 0.0
        %3662 = vmatprep.subr.mxu0 0.0
        %3663 = vmatpush1.msra.mxu0 0.0
        %3664 = vmatprep.subr.mxu0 0.0
        %3665 = vmatpush1.msra.mxu0 0.0
        %3666 = vmatprep.subr.mxu0 0.0
        %3667 = vmatpush1.msra.mxu0 0.0
        %3668 = vmatprep.subr.mxu0 0.0
        %3669 = vmatpush1.msra.mxu0 0.0
        %3670 = vmatprep.subr.mxu0 0.0
        %3671 = vmatpush1.msra.mxu0 0.0
        %3672 = vmatprep.subr.mxu0 0.0
        %3673 = vmatpush1.msra.mxu0 0.0
        %3674 = vmatprep.subr.mxu0 0.0
        %3675 = vmatpush1.msra.mxu0 0.0
        %3676 = vmatprep.subr.mxu0 0.0
        %3677 = vmatpush1.msra.mxu0 0.0
        %3678 = vmatprep.subr.mxu0 0.0
        %3679 = vmatpush1.msra.mxu0 0.0
        %3680 = vmatprep.mubr.f32.mxu0 0.0
        %v3681 = vand.u32 %v3387, 4294901760
        %v3682 = vsub.f32 %v3387, %v3681
        %v3683 = vand.u32 %v3682, 4294901760
        %3684 = vmatmul.mubr.f32.gmra.mrb[0].mxu0 %v3683
        %v3685 = vpop.f32.mrb[0].mxu0
        %v3686 = vadd.f32 %v3612, %v3685
        %v3687 = vpop.f32.mrb[0].mxu0
        %3688 = vdwg.mxu0
        %3689 = vmatprep.subr.mxu0 0.0
        %v3690 = vand.u32 %v1543, 4294901760
        %v3691 = vsub.f32 %v1543, %v3690
        %v3692 = vand.u32 %v3691, 4294901760
        %3693 = vmatpush1.msra.mxu0 %v3692
        %3694 = vmatprep.subr.mxu0 0.0
        %3695 = vmatpush1.msra.mxu0 0.0
        %3696 = vmatprep.subr.mxu0 0.0
        %3697 = vmatpush1.msra.mxu0 0.0
        %3698 = vmatprep.subr.mxu0 0.0
        %3699 = vmatpush1.msra.mxu0 0.0
        %3700 = vmatprep.subr.mxu0 0.0
        %3701 = vmatpush1.msra.mxu0 0.0
        %3702 = vmatprep.subr.mxu0 0.0
        %3703 = vmatpush1.msra.mxu0 0.0
        %3704 = vmatprep.subr.mxu0 0.0
        %3705 = vmatpush1.msra.mxu0 0.0
        %3706 = vmatprep.subr.mxu0 0.0
        %3707 = vmatpush1.msra.mxu0 0.0
        %3708 = vmatprep.subr.mxu0 0.0
        %3709 = vmatpush1.msra.mxu0 0.0
        %3710 = vmatprep.subr.mxu0 0.0
        %3711 = vmatpush1.msra.mxu0 0.0
        %3712 = vmatprep.subr.mxu0 0.0
        %3713 = vmatpush1.msra.mxu0 0.0
        %3714 = vmatprep.subr.mxu0 0.0
        %3715 = vmatpush1.msra.mxu0 0.0
        %3716 = vmatprep.subr.mxu0 0.0
        %3717 = vmatpush1.msra.mxu0 0.0
        %3718 = vmatprep.subr.mxu0 0.0
        %3719 = vmatpush1.msra.mxu0 0.0
        %3720 = vmatprep.subr.mxu0 0.0
        %3721 = vmatpush1.msra.mxu0 0.0
        %3722 = vmatprep.subr.mxu0 0.0
        %3723 = vmatpush1.msra.mxu0 0.0
        %3724 = vmatprep.subr.mxu0 0.0
        %3725 = vmatpush1.msra.mxu0 0.0
        %3726 = vmatprep.subr.mxu0 0.0
        %3727 = vmatpush1.msra.mxu0 0.0
        %3728 = vmatprep.subr.mxu0 0.0
        %3729 = vmatpush1.msra.mxu0 0.0
        %3730 = vmatprep.subr.mxu0 0.0
        %3731 = vmatpush1.msra.mxu0 0.0
        %3732 = vmatprep.subr.mxu0 0.0
        %3733 = vmatpush1.msra.mxu0 0.0
        %3734 = vmatprep.subr.mxu0 0.0
        %3735 = vmatpush1.msra.mxu0 0.0
        %3736 = vmatprep.subr.mxu0 0.0
        %3737 = vmatpush1.msra.mxu0 0.0
        %3738 = vmatprep.subr.mxu0 0.0
        %3739 = vmatpush1.msra.mxu0 0.0
        %3740 = vmatprep.subr.mxu0 0.0
        %3741 = vmatpush1.msra.mxu0 0.0
        %3742 = vmatprep.subr.mxu0 0.0
        %3743 = vmatpush1.msra.mxu0 0.0
        %3744 = vmatprep.subr.mxu0 0.0
        %3745 = vmatpush1.msra.mxu0 0.0
        %3746 = vmatprep.subr.mxu0 0.0
        %3747 = vmatpush1.msra.mxu0 0.0
        %3748 = vmatprep.subr.mxu0 0.0
        %3749 = vmatpush1.msra.mxu0 0.0
        %3750 = vmatprep.subr.mxu0 0.0
        %3751 = vmatpush1.msra.mxu0 0.0
        %3752 = vmatprep.subr.mxu0 0.0
        %3753 = vmatpush1.msra.mxu0 0.0
        %3754 = vmatprep.subr.mxu0 0.0
        %3755 = vmatpush1.msra.mxu0 0.0
        %3756 = vmatprep.mubr.f32.mxu0 0.0
        %v3757 = vand.u32 %v3387, 4294901760
        %3758 = vmatmul.mubr.f32.gmra.mrb[0].mxu0 %v3757
        %v3759 = vpop.f32.mrb[0].mxu0
        %v3760 = vadd.f32 %v3686, %v3759
        %v3761 = vpop.f32.mrb[0].mxu0
        %3762 = vdwg.mxu0
        %3763 = vmatprep.subr.mxu0 0.0
        %v3764 = vand.u32 %v1543, 4294901760
        %3765 = vmatpush1.msra.mxu0 %v3764
        %3766 = vmatprep.subr.mxu0 0.0
        %3767 = vmatpush1.msra.mxu0 0.0
        %3768 = vmatprep.subr.mxu0 0.0
        %3769 = vmatpush1.msra.mxu0 0.0
        %3770 = vmatprep.subr.mxu0 0.0
        %3771 = vmatpush1.msra.mxu0 0.0
        %3772 = vmatprep.subr.mxu0 0.0
        %3773 = vmatpush1.msra.mxu0 0.0
        %3774 = vmatprep.subr.mxu0 0.0
        %3775 = vmatpush1.msra.mxu0 0.0
        %3776 = vmatprep.subr.mxu0 0.0
        %3777 = vmatpush1.msra.mxu0 0.0
        %3778 = vmatprep.subr.mxu0 0.0
        %3779 = vmatpush1.msra.mxu0 0.0
        %3780 = vmatprep.subr.mxu0 0.0
        %3781 = vmatpush1.msra.mxu0 0.0
        %3782 = vmatprep.subr.mxu0 0.0
        %3783 = vmatpush1.msra.mxu0 0.0
        %3784 = vmatprep.subr.mxu0 0.0
        %3785 = vmatpush1.msra.mxu0 0.0
        %3786 = vmatprep.subr.mxu0 0.0
        %3787 = vmatpush1.msra.mxu0 0.0
        %3788 = vmatprep.subr.mxu0 0.0
        %3789 = vmatpush1.msra.mxu0 0.0
        %3790 = vmatprep.subr.mxu0 0.0
        %3791 = vmatpush1.msra.mxu0 0.0
        %3792 = vmatprep.subr.mxu0 0.0
        %3793 = vmatpush1.msra.mxu0 0.0
        %3794 = vmatprep.subr.mxu0 0.0
        %3795 = vmatpush1.msra.mxu0 0.0
        %3796 = vmatprep.subr.mxu0 0.0
        %3797 = vmatpush1.msra.mxu0 0.0
        %3798 = vmatprep.subr.mxu0 0.0
        %3799 = vmatpush1.msra.mxu0 0.0
        %3800 = vmatprep.subr.mxu0 0.0
        %3801 = vmatpush1.msra.mxu0 0.0
        %3802 = vmatprep.subr.mxu0 0.0
        %3803 = vmatpush1.msra.mxu0 0.0
        %3804 = vmatprep.subr.mxu0 0.0
        %3805 = vmatpush1.msra.mxu0 0.0
        %3806 = vmatprep.subr.mxu0 0.0
        %3807 = vmatpush1.msra.mxu0 0.0
        %3808 = vmatprep.subr.mxu0 0.0
        %3809 = vmatpush1.msra.mxu0 0.0
        %3810 = vmatprep.subr.mxu0 0.0
        %3811 = vmatpush1.msra.mxu0 0.0
        %3812 = vmatprep.subr.mxu0 0.0
        %3813 = vmatpush1.msra.mxu0 0.0
        %3814 = vmatprep.subr.mxu0 0.0
        %3815 = vmatpush1.msra.mxu0 0.0
        %3816 = vmatprep.subr.mxu0 0.0
        %3817 = vmatpush1.msra.mxu0 0.0
        %3818 = vmatprep.subr.mxu0 0.0
        %3819 = vmatpush1.msra.mxu0 0.0
        %3820 = vmatprep.subr.mxu0 0.0
        %3821 = vmatpush1.msra.mxu0 0.0
        %3822 = vmatprep.subr.mxu0 0.0
        %3823 = vmatpush1.msra.mxu0 0.0
        %3824 = vmatprep.subr.mxu0 0.0
        %3825 = vmatpush1.msra.mxu0 0.0
        %3826 = vmatprep.subr.mxu0 0.0
        %3827 = vmatpush1.msra.mxu0 0.0
        %3828 = vmatprep.mubr.f32.mxu0 0.0
        %v3829 = vand.u32 %v3387, 4294901760
        %3830 = vmatmul.mubr.f32.gmra.mrb[0].mxu0 %v3829
        %v3831 = vpop.f32.mrb[0].mxu0
        %v3832 = vadd.f32 %v3760, %v3831
        %v3833 = vpop.f32.mrb[0].mxu0
        %3834 = vdwg.mxu0
        %v3836 = vsel %vm1555, %v2466, 0
        %3838 = vmatprep.subr.mxu0 0.0
        %v3839 = vand.u32 %v1542, 4294901760
        %3840 = vmatpush1.msra.mxu0 %v3839
        %3841 = vmatprep.subr.mxu0 0.0
        %3842 = vmatpush1.msra.mxu0 0.0
        %3843 = vmatprep.subr.mxu0 0.0
        %3844 = vmatpush1.msra.mxu0 0.0
        %3845 = vmatprep.subr.mxu0 0.0
        %3846 = vmatpush1.msra.mxu0 0.0
        %3847 = vmatprep.subr.mxu0 0.0
        %3848 = vmatpush1.msra.mxu0 0.0
        %3849 = vmatprep.subr.mxu0 0.0
        %3850 = vmatpush1.msra.mxu0 0.0
        %3851 = vmatprep.subr.mxu0 0.0
        %3852 = vmatpush1.msra.mxu0 0.0
        %3853 = vmatprep.subr.mxu0 0.0
        %3854 = vmatpush1.msra.mxu0 0.0
        %3855 = vmatprep.subr.mxu0 0.0
        %3856 = vmatpush1.msra.mxu0 0.0
        %3857 = vmatprep.subr.mxu0 0.0
        %3858 = vmatpush1.msra.mxu0 0.0
        %3859 = vmatprep.subr.mxu0 0.0
        %3860 = vmatpush1.msra.mxu0 0.0
        %3861 = vmatprep.subr.mxu0 0.0
        %3862 = vmatpush1.msra.mxu0 0.0
        %3863 = vmatprep.subr.mxu0 0.0
        %3864 = vmatpush1.msra.mxu0 0.0
        %3865 = vmatprep.subr.mxu0 0.0
        %3866 = vmatpush1.msra.mxu0 0.0
        %3867 = vmatprep.subr.mxu0 0.0
        %3868 = vmatpush1.msra.mxu0 0.0
        %3869 = vmatprep.subr.mxu0 0.0
        %3870 = vmatpush1.msra.mxu0 0.0
        %3871 = vmatprep.subr.mxu0 0.0
        %3872 = vmatpush1.msra.mxu0 0.0
        %3873 = vmatprep.subr.mxu0 0.0
        %3874 = vmatpush1.msra.mxu0 0.0
        %3875 = vmatprep.subr.mxu0 0.0
        %3876 = vmatpush1.msra.mxu0 0.0
        %3877 = vmatprep.subr.mxu0 0.0
        %3878 = vmatpush1.msra.mxu0 0.0
        %3879 = vmatprep.subr.mxu0 0.0
        %3880 = vmatpush1.msra.mxu0 0.0
        %3881 = vmatprep.subr.mxu0 0.0
        %3882 = vmatpush1.msra.mxu0 0.0
        %3883 = vmatprep.subr.mxu0 0.0
        %3884 = vmatpush1.msra.mxu0 0.0
        %3885 = vmatprep.subr.mxu0 0.0
        %3886 = vmatpush1.msra.mxu0 0.0
        %3887 = vmatprep.subr.mxu0 0.0
        %3888 = vmatpush1.msra.mxu0 0.0
        %3889 = vmatprep.subr.mxu0 0.0
        %3890 = vmatpush1.msra.mxu0 0.0
        %3891 = vmatprep.subr.mxu0 0.0
        %3892 = vmatpush1.msra.mxu0 0.0
        %3893 = vmatprep.subr.mxu0 0.0
        %3894 = vmatpush1.msra.mxu0 0.0
        %3895 = vmatprep.subr.mxu0 0.0
        %3896 = vmatpush1.msra.mxu0 0.0
        %3897 = vmatprep.subr.mxu0 0.0
        %3898 = vmatpush1.msra.mxu0 0.0
        %3899 = vmatprep.subr.mxu0 0.0
        %3900 = vmatpush1.msra.mxu0 0.0
        %3901 = vmatprep.subr.mxu0 0.0
        %3902 = vmatpush1.msra.mxu0 0.0
        %3903 = vmatprep.mubr.f32.mxu0 0.0
        %v3904 = vand.u32 %v3836, 4294901760
        %v3905 = vsub.f32 %v3836, %v3904
        %v3906 = vand.u32 %v3905, 4294901760
        %v3907 = vsub.f32 %v3905, %v3906
        %v3908 = vand.u32 %v3907, 4294901760
        %3909 = vmatmul.mubr.f32.gmra.mrb[0].mxu0 %v3908
        %v3910 = vpop.f32.mrb[0].mxu0
        %v3911 = vadd.f32 %v3832, %v3910
        %v3912 = vpop.f32.mrb[0].mxu0
        %3913 = vdwg.mxu0
        %3914 = vmatprep.subr.mxu0 0.0
        %v3915 = vand.u32 %v1542, 4294901760
        %v3916 = vsub.f32 %v1542, %v3915
        %v3917 = vand.u32 %v3916, 4294901760
        %v3918 = vsub.f32 %v3916, %v3917
        %v3919 = vand.u32 %v3918, 4294901760
        %3920 = vmatpush1.msra.mxu0 %v3919
        %3921 = vmatprep.subr.mxu0 0.0
        %3922 = vmatpush1.msra.mxu0 0.0
        %3923 = vmatprep.subr.mxu0 0.0
        %3924 = vmatpush1.msra.mxu0 0.0
        %3925 = vmatprep.subr.mxu0 0.0
        %3926 = vmatpush1.msra.mxu0 0.0
        %3927 = vmatprep.subr.mxu0 0.0
        %3928 = vmatpush1.msra.mxu0 0.0
        %3929 = vmatprep.subr.mxu0 0.0
        %3930 = vmatpush1.msra.mxu0 0.0
        %3931 = vmatprep.subr.mxu0 0.0
        %3932 = vmatpush1.msra.mxu0 0.0
        %3933 = vmatprep.subr.mxu0 0.0
        %3934 = vmatpush1.msra.mxu0 0.0
        %3935 = vmatprep.subr.mxu0 0.0
        %3936 = vmatpush1.msra.mxu0 0.0
        %3937 = vmatprep.subr.mxu0 0.0
        %3938 = vmatpush1.msra.mxu0 0.0
        %3939 = vmatprep.subr.mxu0 0.0
        %3940 = vmatpush1.msra.mxu0 0.0
        %3941 = vmatprep.subr.mxu0 0.0
        %3942 = vmatpush1.msra.mxu0 0.0
        %3943 = vmatprep.subr.mxu0 0.0
        %3944 = vmatpush1.msra.mxu0 0.0
        %3945 = vmatprep.subr.mxu0 0.0
        %3946 = vmatpush1.msra.mxu0 0.0
        %3947 = vmatprep.subr.mxu0 0.0
        %3948 = vmatpush1.msra.mxu0 0.0
        %3949 = vmatprep.subr.mxu0 0.0
        %3950 = vmatpush1.msra.mxu0 0.0
        %3951 = vmatprep.subr.mxu0 0.0
        %3952 = vmatpush1.msra.mxu0 0.0
        %3953 = vmatprep.subr.mxu0 0.0
        %3954 = vmatpush1.msra.mxu0 0.0
        %3955 = vmatprep.subr.mxu0 0.0
        %3956 = vmatpush1.msra.mxu0 0.0
        %3957 = vmatprep.subr.mxu0 0.0
        %3958 = vmatpush1.msra.mxu0 0.0
        %3959 = vmatprep.subr.mxu0 0.0
        %3960 = vmatpush1.msra.mxu0 0.0
        %3961 = vmatprep.subr.mxu0 0.0
        %3962 = vmatpush1.msra.mxu0 0.0
        %3963 = vmatprep.subr.mxu0 0.0
        %3964 = vmatpush1.msra.mxu0 0.0
        %3965 = vmatprep.subr.mxu0 0.0
        %3966 = vmatpush1.msra.mxu0 0.0
        %3967 = vmatprep.subr.mxu0 0.0
        %3968 = vmatpush1.msra.mxu0 0.0
        %3969 = vmatprep.subr.mxu0 0.0
        %3970 = vmatpush1.msra.mxu0 0.0
        %3971 = vmatprep.subr.mxu0 0.0
        %3972 = vmatpush1.msra.mxu0 0.0
        %3973 = vmatprep.subr.mxu0 0.0
        %3974 = vmatpush1.msra.mxu0 0.0
        %3975 = vmatprep.subr.mxu0 0.0
        %3976 = vmatpush1.msra.mxu0 0.0
        %3977 = vmatprep.subr.mxu0 0.0
        %3978 = vmatpush1.msra.mxu0 0.0
        %3979 = vmatprep.subr.mxu0 0.0
        %3980 = vmatpush1.msra.mxu0 0.0
        %3981 = vmatprep.subr.mxu0 0.0
        %3982 = vmatpush1.msra.mxu0 0.0
        %3983 = vmatprep.mubr.f32.mxu0 0.0
        %v3984 = vand.u32 %v3836, 4294901760
        %3985 = vmatmul.mubr.f32.gmra.mrb[0].mxu0 %v3984
        %v3986 = vpop.f32.mrb[0].mxu0
        %v3987 = vadd.f32 %v3911, %v3986
        %v3988 = vpop.f32.mrb[0].mxu0
        %3989 = vdwg.mxu0
        %3990 = vmatprep.subr.mxu0 0.0
        %v3991 = vand.u32 %v1542, 4294901760
        %v3992 = vsub.f32 %v1542, %v3991
        %3993 = vmatpush1.msra.mxu0 %v3992
        %3994 = vmatprep.subr.mxu0 0.0
        %3995 = vmatpush1.msra.mxu0 0.0
        %3996 = vmatprep.subr.mxu0 0.0
        %3997 = vmatpush1.msra.mxu0 0.0
        %3998 = vmatprep.subr.mxu0 0.0
        %3999 = vmatpush1.msra.mxu0 0.0
        %4000 = vmatprep.subr.mxu0 0.0
        %4001 = vmatpush1.msra.mxu0 0.0
        %4002 = vmatprep.subr.mxu0 0.0
        %4003 = vmatpush1.msra.mxu0 0.0
        %4004 = vmatprep.subr.mxu0 0.0
        %4005 = vmatpush1.msra.mxu0 0.0
        %4006 = vmatprep.subr.mxu0 0.0
        %4007 = vmatpush1.msra.mxu0 0.0
        %4008 = vmatprep.subr.mxu0 0.0
        %4009 = vmatpush1.msra.mxu0 0.0
        %4010 = vmatprep.subr.mxu0 0.0
        %4011 = vmatpush1.msra.mxu0 0.0
        %4012 = vmatprep.subr.mxu0 0.0
        %4013 = vmatpush1.msra.mxu0 0.0
        %4014 = vmatprep.subr.mxu0 0.0
        %4015 = vmatpush1.msra.mxu0 0.0
        %4016 = vmatprep.subr.mxu0 0.0
        %4017 = vmatpush1.msra.mxu0 0.0
        %4018 = vmatprep.subr.mxu0 0.0
        %4019 = vmatpush1.msra.mxu0 0.0
        %4020 = vmatprep.subr.mxu0 0.0
        %4021 = vmatpush1.msra.mxu0 0.0
        %4022 = vmatprep.subr.mxu0 0.0
        %4023 = vmatpush1.msra.mxu0 0.0
        %4024 = vmatprep.subr.mxu0 0.0
        %4025 = vmatpush1.msra.mxu0 0.0
        %4026 = vmatprep.subr.mxu0 0.0
        %4027 = vmatpush1.msra.mxu0 0.0
        %4028 = vmatprep.subr.mxu0 0.0
        %4029 = vmatpush1.msra.mxu0 0.0
        %4030 = vmatprep.subr.mxu0 0.0
        %4031 = vmatpush1.msra.mxu0 0.0
        %4032 = vmatprep.subr.mxu0 0.0
        %4033 = vmatpush1.msra.mxu0 0.0
        %4034 = vmatprep.subr.mxu0 0.0
        %4035 = vmatpush1.msra.mxu0 0.0
        %4036 = vmatprep.subr.mxu0 0.0
        %4037 = vmatpush1.msra.mxu0 0.0
        %4038 = vmatprep.subr.mxu0 0.0
        %4039 = vmatpush1.msra.mxu0 0.0
        %4040 = vmatprep.subr.mxu0 0.0
        %4041 = vmatpush1.msra.mxu0 0.0
        %4042 = vmatprep.subr.mxu0 0.0
        %4043 = vmatpush1.msra.mxu0 0.0
        %4044 = vmatprep.subr.mxu0 0.0
        %4045 = vmatpush1.msra.mxu0 0.0
        %4046 = vmatprep.subr.mxu0 0.0
        %4047 = vmatpush1.msra.mxu0 0.0
        %4048 = vmatprep.subr.mxu0 0.0
        %4049 = vmatpush1.msra.mxu0 0.0
        %4050 = vmatprep.subr.mxu0 0.0
        %4051 = vmatpush1.msra.mxu0 0.0
        %4052 = vmatprep.subr.mxu0 0.0
        %4053 = vmatpush1.msra.mxu0 0.0
        %4054 = vmatprep.subr.mxu0 0.0
        %4055 = vmatpush1.msra.mxu0 0.0
        %4056 = vmatprep.mubr.f32.mxu0 0.0
        %v4057 = vand.u32 %v3836, 4294901760
        %v4058 = vsub.f32 %v3836, %v4057
        %4059 = vmatmul.mubr.f32.gmra.mrb[0].mxu0 %v4058
        %v4060 = vpop.f32.mrb[0].mxu0
        %v4061 = vadd.f32 %v3987, %v4060
        %v4062 = vpop.f32.mrb[0].mxu0
        %4063 = vdwg.mxu0
        %4064 = vmatprep.subr.mxu0 0.0
        %v4065 = vand.u32 %v1542, 4294901760
        %4066 = vmatpush1.msra.mxu0 %v4065
        %4067 = vmatprep.subr.mxu0 0.0
        %4068 = vmatpush1.msra.mxu0 0.0
        %4069 = vmatprep.subr.mxu0 0.0
        %4070 = vmatpush1.msra.mxu0 0.0
        %4071 = vmatprep.subr.mxu0 0.0
        %4072 = vmatpush1.msra.mxu0 0.0
        %4073 = vmatprep.subr.mxu0 0.0
        %4074 = vmatpush1.msra.mxu0 0.0
        %4075 = vmatprep.subr.mxu0 0.0
        %4076 = vmatpush1.msra.mxu0 0.0
        %4077 = vmatprep.subr.mxu0 0.0
        %4078 = vmatpush1.msra.mxu0 0.0
        %4079 = vmatprep.subr.mxu0 0.0
        %4080 = vmatpush1.msra.mxu0 0.0
        %4081 = vmatprep.subr.mxu0 0.0
        %4082 = vmatpush1.msra.mxu0 0.0
        %4083 = vmatprep.subr.mxu0 0.0
        %4084 = vmatpush1.msra.mxu0 0.0
        %4085 = vmatprep.subr.mxu0 0.0
        %4086 = vmatpush1.msra.mxu0 0.0
        %4087 = vmatprep.subr.mxu0 0.0
        %4088 = vmatpush1.msra.mxu0 0.0
        %4089 = vmatprep.subr.mxu0 0.0
        %4090 = vmatpush1.msra.mxu0 0.0
        %4091 = vmatprep.subr.mxu0 0.0
        %4092 = vmatpush1.msra.mxu0 0.0
        %4093 = vmatprep.subr.mxu0 0.0
        %4094 = vmatpush1.msra.mxu0 0.0
        %4095 = vmatprep.subr.mxu0 0.0
        %4096 = vmatpush1.msra.mxu0 0.0
        %4097 = vmatprep.subr.mxu0 0.0
        %4098 = vmatpush1.msra.mxu0 0.0
        %4099 = vmatprep.subr.mxu0 0.0
        %4100 = vmatpush1.msra.mxu0 0.0
        %4101 = vmatprep.subr.mxu0 0.0
        %4102 = vmatpush1.msra.mxu0 0.0
        %4103 = vmatprep.subr.mxu0 0.0
        %4104 = vmatpush1.msra.mxu0 0.0
        %4105 = vmatprep.subr.mxu0 0.0
        %4106 = vmatpush1.msra.mxu0 0.0
        %4107 = vmatprep.subr.mxu0 0.0
        %4108 = vmatpush1.msra.mxu0 0.0
        %4109 = vmatprep.subr.mxu0 0.0
        %4110 = vmatpush1.msra.mxu0 0.0
        %4111 = vmatprep.subr.mxu0 0.0
        %4112 = vmatpush1.msra.mxu0 0.0
        %4113 = vmatprep.subr.mxu0 0.0
        %4114 = vmatpush1.msra.mxu0 0.0
        %4115 = vmatprep.subr.mxu0 0.0
        %4116 = vmatpush1.msra.mxu0 0.0
        %4117 = vmatprep.subr.mxu0 0.0
        %4118 = vmatpush1.msra.mxu0 0.0
        %4119 = vmatprep.subr.mxu0 0.0
        %4120 = vmatpush1.msra.mxu0 0.0
        %4121 = vmatprep.subr.mxu0 0.0
        %4122 = vmatpush1.msra.mxu0 0.0
        %4123 = vmatprep.subr.mxu0 0.0
        %4124 = vmatpush1.msra.mxu0 0.0
        %4125 = vmatprep.subr.mxu0 0.0
        %4126 = vmatpush1.msra.mxu0 0.0
        %4127 = vmatprep.subr.mxu0 0.0
        %4128 = vmatpush1.msra.mxu0 0.0
        %4129 = vmatprep.mubr.f32.mxu0 0.0
        %v4130 = vand.u32 %v3836, 4294901760
        %v4131 = vsub.f32 %v3836, %v4130
        %v4132 = vand.u32 %v4131, 4294901760
        %4133 = vmatmul.mubr.f32.gmra.mrb[0].mxu0 %v4132
        %v4134 = vpop.f32.mrb[0].mxu0
        %v4135 = vadd.f32 %v4061, %v4134
        %v4136 = vpop.f32.mrb[0].mxu0
        %4137 = vdwg.mxu0
        %4138 = vmatprep.subr.mxu0 0.0
        %v4139 = vand.u32 %v1542, 4294901760
        %v4140 = vsub.f32 %v1542, %v4139
        %v4141 = vand.u32 %v4140, 4294901760
        %4142 = vmatpush1.msra.mxu0 %v4141
        %4143 = vmatprep.subr.mxu0 0.0
        %4144 = vmatpush1.msra.mxu0 0.0
        %4145 = vmatprep.subr.mxu0 0.0
        %4146 = vmatpush1.msra.mxu0 0.0
        %4147 = vmatprep.subr.mxu0 0.0
        %4148 = vmatpush1.msra.mxu0 0.0
        %4149 = vmatprep.subr.mxu0 0.0
        %4150 = vmatpush1.msra.mxu0 0.0
        %4151 = vmatprep.subr.mxu0 0.0
        %4152 = vmatpush1.msra.mxu0 0.0
        %4153 = vmatprep.subr.mxu0 0.0
        %4154 = vmatpush1.msra.mxu0 0.0
        %4155 = vmatprep.subr.mxu0 0.0
        %4156 = vmatpush1.msra.mxu0 0.0
        %4157 = vmatprep.subr.mxu0 0.0
        %4158 = vmatpush1.msra.mxu0 0.0
        %4159 = vmatprep.subr.mxu0 0.0
        %4160 = vmatpush1.msra.mxu0 0.0
        %4161 = vmatprep.subr.mxu0 0.0
        %4162 = vmatpush1.msra.mxu0 0.0
        %4163 = vmatprep.subr.mxu0 0.0
        %4164 = vmatpush1.msra.mxu0 0.0
        %4165 = vmatprep.subr.mxu0 0.0
        %4166 = vmatpush1.msra.mxu0 0.0
        %4167 = vmatprep.subr.mxu0 0.0
        %4168 = vmatpush1.msra.mxu0 0.0
        %4169 = vmatprep.subr.mxu0 0.0
        %4170 = vmatpush1.msra.mxu0 0.0
        %4171 = vmatprep.subr.mxu0 0.0
        %4172 = vmatpush1.msra.mxu0 0.0
        %4173 = vmatprep.subr.mxu0 0.0
        %4174 = vmatpush1.msra.mxu0 0.0
        %4175 = vmatprep.subr.mxu0 0.0
        %4176 = vmatpush1.msra.mxu0 0.0
        %4177 = vmatprep.subr.mxu0 0.0
        %4178 = vmatpush1.msra.mxu0 0.0
        %4179 = vmatprep.subr.mxu0 0.0
        %4180 = vmatpush1.msra.mxu0 0.0
        %4181 = vmatprep.subr.mxu0 0.0
        %4182 = vmatpush1.msra.mxu0 0.0
        %4183 = vmatprep.subr.mxu0 0.0
        %4184 = vmatpush1.msra.mxu0 0.0
        %4185 = vmatprep.subr.mxu0 0.0
        %4186 = vmatpush1.msra.mxu0 0.0
        %4187 = vmatprep.subr.mxu0 0.0
        %4188 = vmatpush1.msra.mxu0 0.0
        %4189 = vmatprep.subr.mxu0 0.0
        %4190 = vmatpush1.msra.mxu0 0.0
        %4191 = vmatprep.subr.mxu0 0.0
        %4192 = vmatpush1.msra.mxu0 0.0
        %4193 = vmatprep.subr.mxu0 0.0
        %4194 = vmatpush1.msra.mxu0 0.0
        %4195 = vmatprep.subr.mxu0 0.0
        %4196 = vmatpush1.msra.mxu0 0.0
        %4197 = vmatprep.subr.mxu0 0.0
        %4198 = vmatpush1.msra.mxu0 0.0
        %4199 = vmatprep.subr.mxu0 0.0
        %4200 = vmatpush1.msra.mxu0 0.0
        %4201 = vmatprep.subr.mxu0 0.0
        %4202 = vmatpush1.msra.mxu0 0.0
        %4203 = vmatprep.subr.mxu0 0.0
        %4204 = vmatpush1.msra.mxu0 0.0
        %4205 = vmatprep.mubr.f32.mxu0 0.0
        %v4206 = vand.u32 %v3836, 4294901760
        %4207 = vmatmul.mubr.f32.gmra.mrb[0].mxu0 %v4206
        %v4208 = vpop.f32.mrb[0].mxu0
        %v4209 = vadd.f32 %v4135, %v4208
        %v4210 = vpop.f32.mrb[0].mxu0
        %4211 = vdwg.mxu0
        %4212 = vmatprep.subr.mxu0 0.0
        %v4213 = vand.u32 %v1542, 4294901760
        %4214 = vmatpush1.msra.mxu0 %v4213
        %4215 = vmatprep.subr.mxu0 0.0
        %4216 = vmatpush1.msra.mxu0 0.0
        %4217 = vmatprep.subr.mxu0 0.0
        %4218 = vmatpush1.msra.mxu0 0.0
        %4219 = vmatprep.subr.mxu0 0.0
        %4220 = vmatpush1.msra.mxu0 0.0
        %4221 = vmatprep.subr.mxu0 0.0
        %4222 = vmatpush1.msra.mxu0 0.0
        %4223 = vmatprep.subr.mxu0 0.0
        %4224 = vmatpush1.msra.mxu0 0.0
        %4225 = vmatprep.subr.mxu0 0.0
        %4226 = vmatpush1.msra.mxu0 0.0
        %4227 = vmatprep.subr.mxu0 0.0
        %4228 = vmatpush1.msra.mxu0 0.0
        %4229 = vmatprep.subr.mxu0 0.0
        %4230 = vmatpush1.msra.mxu0 0.0
        %4231 = vmatprep.subr.mxu0 0.0
        %4232 = vmatpush1.msra.mxu0 0.0
        %4233 = vmatprep.subr.mxu0 0.0
        %4234 = vmatpush1.msra.mxu0 0.0
        %4235 = vmatprep.subr.mxu0 0.0
        %4236 = vmatpush1.msra.mxu0 0.0
        %4237 = vmatprep.subr.mxu0 0.0
        %4238 = vmatpush1.msra.mxu0 0.0
        %4239 = vmatprep.subr.mxu0 0.0
        %4240 = vmatpush1.msra.mxu0 0.0
        %4241 = vmatprep.subr.mxu0 0.0
        %4242 = vmatpush1.msra.mxu0 0.0
        %4243 = vmatprep.subr.mxu0 0.0
        %4244 = vmatpush1.msra.mxu0 0.0
        %4245 = vmatprep.subr.mxu0 0.0
        %4246 = vmatpush1.msra.mxu0 0.0
        %4247 = vmatprep.subr.mxu0 0.0
        %4248 = vmatpush1.msra.mxu0 0.0
        %4249 = vmatprep.subr.mxu0 0.0
        %4250 = vmatpush1.msra.mxu0 0.0
        %4251 = vmatprep.subr.mxu0 0.0
        %4252 = vmatpush1.msra.mxu0 0.0
        %4253 = vmatprep.subr.mxu0 0.0
        %4254 = vmatpush1.msra.mxu0 0.0
        %4255 = vmatprep.subr.mxu0 0.0
        %4256 = vmatpush1.msra.mxu0 0.0
        %4257 = vmatprep.subr.mxu0 0.0
        %4258 = vmatpush1.msra.mxu0 0.0
        %4259 = vmatprep.subr.mxu0 0.0
        %4260 = vmatpush1.msra.mxu0 0.0
        %4261 = vmatprep.subr.mxu0 0.0
        %4262 = vmatpush1.msra.mxu0 0.0
        %4263 = vmatprep.subr.mxu0 0.0
        %4264 = vmatpush1.msra.mxu0 0.0
        %4265 = vmatprep.subr.mxu0 0.0
        %4266 = vmatpush1.msra.mxu0 0.0
        %4267 = vmatprep.subr.mxu0 0.0
        %4268 = vmatpush1.msra.mxu0 0.0
        %4269 = vmatprep.subr.mxu0 0.0
        %4270 = vmatpush1.msra.mxu0 0.0
        %4271 = vmatprep.subr.mxu0 0.0
        %4272 = vmatpush1.msra.mxu0 0.0
        %4273 = vmatprep.subr.mxu0 0.0
        %4274 = vmatpush1.msra.mxu0 0.0
        %4275 = vmatprep.subr.mxu0 0.0
        %4276 = vmatpush1.msra.mxu0 0.0
        %4277 = vmatprep.mubr.f32.mxu0 0.0
        %v4278 = vand.u32 %v3836, 4294901760
        %4279 = vmatmul.mubr.f32.gmra.mrb[0].mxu0 %v4278
        %v4280 = vpop.f32.mrb[0].mxu0
        %v4281 = vadd.f32 %v4209, %v4280
        %v4282 = vpop.f32.mrb[0].mxu0
        %4283 = vdwg.mxu0
        %4284 = vrot.lane.b32.xlu0 %v1539, 112
        %v4285 = vpop.permute.xlu0 %4284
        %4286 = vrot.lane.b32.xlu0 %v1539, 80
        %v4287 = vpop.permute.xlu0 %4286
        %v4288 = vsel %vm1555, %v4285, 0
        %v4290 = vsel %vm1555, %v4287, 0
        %4292 = vmatprep.subr.mxu0 0.0
        %v4293 = vand.u32 %v4290, 4294901760
        %4294 = vmatpush1.xpose.msra.mxu0 %v4293
        %4295 = vmatprep.subr.mxu0 0.0
        %4296 = vmatpush1.xpose.msra.mxu0 0.0
        %4297 = vmatprep.subr.mxu0 0.0
        %4298 = vmatpush1.xpose.msra.mxu0 0.0
        %4299 = vmatprep.subr.mxu0 0.0
        %4300 = vmatpush1.xpose.msra.mxu0 0.0
        %4301 = vmatprep.subr.mxu0 0.0
        %4302 = vmatpush1.xpose.msra.mxu0 0.0
        %4303 = vmatprep.subr.mxu0 0.0
        %4304 = vmatpush1.xpose.msra.mxu0 0.0
        %4305 = vmatprep.subr.mxu0 0.0
        %4306 = vmatpush1.xpose.msra.mxu0 0.0
        %4307 = vmatprep.subr.mxu0 0.0
        %4308 = vmatpush1.xpose.msra.mxu0 0.0
        %4309 = vmatprep.subr.mxu0 0.0
        %4310 = vmatpush1.xpose.msra.mxu0 0.0
        %4311 = vmatprep.subr.mxu0 0.0
        %4312 = vmatpush1.xpose.msra.mxu0 0.0
        %4313 = vmatprep.subr.mxu0 0.0
        %4314 = vmatpush1.xpose.msra.mxu0 0.0
        %4315 = vmatprep.subr.mxu0 0.0
        %4316 = vmatpush1.xpose.msra.mxu0 0.0
        %4317 = vmatprep.subr.mxu0 0.0
        %4318 = vmatpush1.xpose.msra.mxu0 0.0
        %4319 = vmatprep.subr.mxu0 0.0
        %4320 = vmatpush1.xpose.msra.mxu0 0.0
        %4321 = vmatprep.subr.mxu0 0.0
        %4322 = vmatpush1.xpose.msra.mxu0 0.0
        %4323 = vmatprep.subr.mxu0 0.0
        %4324 = vmatpush1.xpose.msra.mxu0 0.0
        %4325 = vmatprep.subr.mxu0 0.0
        %4326 = vmatpush1.xpose.msra.mxu0 0.0
        %4327 = vmatprep.subr.mxu0 0.0
        %4328 = vmatpush1.xpose.msra.mxu0 0.0
        %4329 = vmatprep.subr.mxu0 0.0
        %4330 = vmatpush1.xpose.msra.mxu0 0.0
        %4331 = vmatprep.subr.mxu0 0.0
        %4332 = vmatpush1.xpose.msra.mxu0 0.0
        %4333 = vmatprep.subr.mxu0 0.0
        %4334 = vmatpush1.xpose.msra.mxu0 0.0
        %4335 = vmatprep.subr.mxu0 0.0
        %4336 = vmatpush1.xpose.msra.mxu0 0.0
        %4337 = vmatprep.subr.mxu0 0.0
        %4338 = vmatpush1.xpose.msra.mxu0 0.0
        %4339 = vmatprep.subr.mxu0 0.0
        %4340 = vmatpush1.xpose.msra.mxu0 0.0
        %4341 = vmatprep.subr.mxu0 0.0
        %4342 = vmatpush1.xpose.msra.mxu0 0.0
        %4343 = vmatprep.subr.mxu0 0.0
        %4344 = vmatpush1.xpose.msra.mxu0 0.0
        %4345 = vmatprep.subr.mxu0 0.0
        %4346 = vmatpush1.xpose.msra.mxu0 0.0
        %4347 = vmatprep.subr.mxu0 0.0
        %4348 = vmatpush1.xpose.msra.mxu0 0.0
        %4349 = vmatprep.subr.mxu0 0.0
        %4350 = vmatpush1.xpose.msra.mxu0 0.0
        %4351 = vmatprep.subr.mxu0 0.0
        %4352 = vmatpush1.xpose.msra.mxu0 0.0
        %4353 = vmatprep.subr.mxu0 0.0
        %4354 = vmatpush1.xpose.msra.mxu0 0.0
        %4355 = vmatprep.subr.mxu0 0.0
        %4356 = vmatpush1.xpose.msra.mxu0 0.0
        %4357 = vmatprep.mubr.f32.mxu0 0.0
        %v4358 = vand.u32 %v4288, 4294901760
        %v4359 = vsub.f32 %v4288, %v4358
        %v4360 = vand.u32 %v4359, 4294901760
        %v4361 = vsub.f32 %v4359, %v4360
        %v4362 = vand.u32 %v4361, 4294901760
        %4363 = vmatmul.mubr.f32.gmra.mrb[0].mxu0 %v4362
        %v4364 = vpop.f32.mrb[0].mxu0
        %v4365 = vadd.f32 %v1550, %v4364
        %v4366 = vpop.f32.mrb[0].mxu0
        %4367 = vdwg.mxu0
        %4368 = vmatprep.subr.mxu0 0.0
        %v4369 = vand.u32 %v4290, 4294901760
        %v4370 = vsub.f32 %v4290, %v4369
        %v4371 = vand.u32 %v4370, 4294901760
        %v4372 = vsub.f32 %v4370, %v4371
        %v4373 = vand.u32 %v4372, 4294901760
        %4374 = vmatpush1.xpose.msra.mxu0 %v4373
        %4375 = vmatprep.subr.mxu0 0.0
        %4376 = vmatpush1.xpose.msra.mxu0 0.0
        %4377 = vmatprep.subr.mxu0 0.0
        %4378 = vmatpush1.xpose.msra.mxu0 0.0
        %4379 = vmatprep.subr.mxu0 0.0
        %4380 = vmatpush1.xpose.msra.mxu0 0.0
        %4381 = vmatprep.subr.mxu0 0.0
        %4382 = vmatpush1.xpose.msra.mxu0 0.0
        %4383 = vmatprep.subr.mxu0 0.0
        %4384 = vmatpush1.xpose.msra.mxu0 0.0
        %4385 = vmatprep.subr.mxu0 0.0
        %4386 = vmatpush1.xpose.msra.mxu0 0.0
        %4387 = vmatprep.subr.mxu0 0.0
        %4388 = vmatpush1.xpose.msra.mxu0 0.0
        %4389 = vmatprep.subr.mxu0 0.0
        %4390 = vmatpush1.xpose.msra.mxu0 0.0
        %4391 = vmatprep.subr.mxu0 0.0
        %4392 = vmatpush1.xpose.msra.mxu0 0.0
        %4393 = vmatprep.subr.mxu0 0.0
        %4394 = vmatpush1.xpose.msra.mxu0 0.0
        %4395 = vmatprep.subr.mxu0 0.0
        %4396 = vmatpush1.xpose.msra.mxu0 0.0
        %4397 = vmatprep.subr.mxu0 0.0
        %4398 = vmatpush1.xpose.msra.mxu0 0.0
        %4399 = vmatprep.subr.mxu0 0.0
        %4400 = vmatpush1.xpose.msra.mxu0 0.0
        %4401 = vmatprep.subr.mxu0 0.0
        %4402 = vmatpush1.xpose.msra.mxu0 0.0
        %4403 = vmatprep.subr.mxu0 0.0
        %4404 = vmatpush1.xpose.msra.mxu0 0.0
        %4405 = vmatprep.subr.mxu0 0.0
        %4406 = vmatpush1.xpose.msra.mxu0 0.0
        %4407 = vmatprep.subr.mxu0 0.0
        %4408 = vmatpush1.xpose.msra.mxu0 0.0
        %4409 = vmatprep.subr.mxu0 0.0
        %4410 = vmatpush1.xpose.msra.mxu0 0.0
        %4411 = vmatprep.subr.mxu0 0.0
        %4412 = vmatpush1.xpose.msra.mxu0 0.0
        %4413 = vmatprep.subr.mxu0 0.0
        %4414 = vmatpush1.xpose.msra.mxu0 0.0
        %4415 = vmatprep.subr.mxu0 0.0
        %4416 = vmatpush1.xpose.msra.mxu0 0.0
        %4417 = vmatprep.subr.mxu0 0.0
        %4418 = vmatpush1.xpose.msra.mxu0 0.0
        %4419 = vmatprep.subr.mxu0 0.0
        %4420 = vmatpush1.xpose.msra.mxu0 0.0
        %4421 = vmatprep.subr.mxu0 0.0
        %4422 = vmatpush1.xpose.msra.mxu0 0.0
        %4423 = vmatprep.subr.mxu0 0.0
        %4424 = vmatpush1.xpose.msra.mxu0 0.0
        %4425 = vmatprep.subr.mxu0 0.0
        %4426 = vmatpush1.xpose.msra.mxu0 0.0
        %4427 = vmatprep.subr.mxu0 0.0
        %4428 = vmatpush1.xpose.msra.mxu0 0.0
        %4429 = vmatprep.subr.mxu0 0.0
        %4430 = vmatpush1.xpose.msra.mxu0 0.0
        %4431 = vmatprep.subr.mxu0 0.0
        %4432 = vmatpush1.xpose.msra.mxu0 0.0
        %4433 = vmatprep.subr.mxu0 0.0
        %4434 = vmatpush1.xpose.msra.mxu0 0.0
        %4435 = vmatprep.subr.mxu0 0.0
        %4436 = vmatpush1.xpose.msra.mxu0 0.0
        %4437 = vmatprep.mubr.f32.mxu0 0.0
        %v4438 = vand.u32 %v4288, 4294901760
        %4439 = vmatmul.mubr.f32.gmra.mrb[0].mxu0 %v4438
        %v4440 = vpop.f32.mrb[0].mxu0
        %v4441 = vadd.f32 %v4365, %v4440
        %v4442 = vpop.f32.mrb[0].mxu0
        %4443 = vdwg.mxu0
        %4444 = vmatprep.subr.mxu0 0.0
        %v4445 = vand.u32 %v4290, 4294901760
        %v4446 = vsub.f32 %v4290, %v4445
        %4447 = vmatpush1.xpose.msra.mxu0 %v4446
        %4448 = vmatprep.subr.mxu0 0.0
        %4449 = vmatpush1.xpose.msra.mxu0 0.0
        %4450 = vmatprep.subr.mxu0 0.0
        %4451 = vmatpush1.xpose.msra.mxu0 0.0
        %4452 = vmatprep.subr.mxu0 0.0
        %4453 = vmatpush1.xpose.msra.mxu0 0.0
        %4454 = vmatprep.subr.mxu0 0.0
        %4455 = vmatpush1.xpose.msra.mxu0 0.0
        %4456 = vmatprep.subr.mxu0 0.0
        %4457 = vmatpush1.xpose.msra.mxu0 0.0
        %4458 = vmatprep.subr.mxu0 0.0
        %4459 = vmatpush1.xpose.msra.mxu0 0.0
        %4460 = vmatprep.subr.mxu0 0.0
        %4461 = vmatpush1.xpose.msra.mxu0 0.0
        %4462 = vmatprep.subr.mxu0 0.0
        %4463 = vmatpush1.xpose.msra.mxu0 0.0
        %4464 = vmatprep.subr.mxu0 0.0
        %4465 = vmatpush1.xpose.msra.mxu0 0.0
        %4466 = vmatprep.subr.mxu0 0.0
        %4467 = vmatpush1.xpose.msra.mxu0 0.0
        %4468 = vmatprep.subr.mxu0 0.0
        %4469 = vmatpush1.xpose.msra.mxu0 0.0
        %4470 = vmatprep.subr.mxu0 0.0
        %4471 = vmatpush1.xpose.msra.mxu0 0.0
        %4472 = vmatprep.subr.mxu0 0.0
        %4473 = vmatpush1.xpose.msra.mxu0 0.0
        %4474 = vmatprep.subr.mxu0 0.0
        %4475 = vmatpush1.xpose.msra.mxu0 0.0
        %4476 = vmatprep.subr.mxu0 0.0
        %4477 = vmatpush1.xpose.msra.mxu0 0.0
        %4478 = vmatprep.subr.mxu0 0.0
        %4479 = vmatpush1.xpose.msra.mxu0 0.0
        %4480 = vmatprep.subr.mxu0 0.0
        %4481 = vmatpush1.xpose.msra.mxu0 0.0
        %4482 = vmatprep.subr.mxu0 0.0
        %4483 = vmatpush1.xpose.msra.mxu0 0.0
        %4484 = vmatprep.subr.mxu0 0.0
        %4485 = vmatpush1.xpose.msra.mxu0 0.0
        %4486 = vmatprep.subr.mxu0 0.0
        %4487 = vmatpush1.xpose.msra.mxu0 0.0
        %4488 = vmatprep.subr.mxu0 0.0
        %4489 = vmatpush1.xpose.msra.mxu0 0.0
        %4490 = vmatprep.subr.mxu0 0.0
        %4491 = vmatpush1.xpose.msra.mxu0 0.0
        %4492 = vmatprep.subr.mxu0 0.0
        %4493 = vmatpush1.xpose.msra.mxu0 0.0
        %4494 = vmatprep.subr.mxu0 0.0
        %4495 = vmatpush1.xpose.msra.mxu0 0.0
        %4496 = vmatprep.subr.mxu0 0.0
        %4497 = vmatpush1.xpose.msra.mxu0 0.0
        %4498 = vmatprep.subr.mxu0 0.0
        %4499 = vmatpush1.xpose.msra.mxu0 0.0
        %4500 = vmatprep.subr.mxu0 0.0
        %4501 = vmatpush1.xpose.msra.mxu0 0.0
        %4502 = vmatprep.subr.mxu0 0.0
        %4503 = vmatpush1.xpose.msra.mxu0 0.0
        %4504 = vmatprep.subr.mxu0 0.0
        %4505 = vmatpush1.xpose.msra.mxu0 0.0
        %4506 = vmatprep.subr.mxu0 0.0
        %4507 = vmatpush1.xpose.msra.mxu0 0.0
        %4508 = vmatprep.subr.mxu0 0.0
        %4509 = vmatpush1.xpose.msra.mxu0 0.0
        %4510 = vmatprep.mubr.f32.mxu0 0.0
        %v4511 = vand.u32 %v4288, 4294901760
        %v4512 = vsub.f32 %v4288, %v4511
        %4513 = vmatmul.mubr.f32.gmra.mrb[0].mxu0 %v4512
        %v4514 = vpop.f32.mrb[0].mxu0
        %v4515 = vadd.f32 %v4441, %v4514
        %v4516 = vpop.f32.mrb[0].mxu0
        %4517 = vdwg.mxu0
        %4518 = vmatprep.subr.mxu0 0.0
        %v4519 = vand.u32 %v4290, 4294901760
        %4520 = vmatpush1.xpose.msra.mxu0 %v4519
        %4521 = vmatprep.subr.mxu0 0.0
        %4522 = vmatpush1.xpose.msra.mxu0 0.0
        %4523 = vmatprep.subr.mxu0 0.0
        %4524 = vmatpush1.xpose.msra.mxu0 0.0
        %4525 = vmatprep.subr.mxu0 0.0
        %4526 = vmatpush1.xpose.msra.mxu0 0.0
        %4527 = vmatprep.subr.mxu0 0.0
        %4528 = vmatpush1.xpose.msra.mxu0 0.0
        %4529 = vmatprep.subr.mxu0 0.0
        %4530 = vmatpush1.xpose.msra.mxu0 0.0
        %4531 = vmatprep.subr.mxu0 0.0
        %4532 = vmatpush1.xpose.msra.mxu0 0.0
        %4533 = vmatprep.subr.mxu0 0.0
        %4534 = vmatpush1.xpose.msra.mxu0 0.0
        %4535 = vmatprep.subr.mxu0 0.0
        %4536 = vmatpush1.xpose.msra.mxu0 0.0
        %4537 = vmatprep.subr.mxu0 0.0
        %4538 = vmatpush1.xpose.msra.mxu0 0.0
        %4539 = vmatprep.subr.mxu0 0.0
        %4540 = vmatpush1.xpose.msra.mxu0 0.0
        %4541 = vmatprep.subr.mxu0 0.0
        %4542 = vmatpush1.xpose.msra.mxu0 0.0
        %4543 = vmatprep.subr.mxu0 0.0
        %4544 = vmatpush1.xpose.msra.mxu0 0.0
        %4545 = vmatprep.subr.mxu0 0.0
        %4546 = vmatpush1.xpose.msra.mxu0 0.0
        %4547 = vmatprep.subr.mxu0 0.0
        %4548 = vmatpush1.xpose.msra.mxu0 0.0
        %4549 = vmatprep.subr.mxu0 0.0
        %4550 = vmatpush1.xpose.msra.mxu0 0.0
        %4551 = vmatprep.subr.mxu0 0.0
        %4552 = vmatpush1.xpose.msra.mxu0 0.0
        %4553 = vmatprep.subr.mxu0 0.0
        %4554 = vmatpush1.xpose.msra.mxu0 0.0
        %4555 = vmatprep.subr.mxu0 0.0
        %4556 = vmatpush1.xpose.msra.mxu0 0.0
        %4557 = vmatprep.subr.mxu0 0.0
        %4558 = vmatpush1.xpose.msra.mxu0 0.0
        %4559 = vmatprep.subr.mxu0 0.0
        %4560 = vmatpush1.xpose.msra.mxu0 0.0
        %4561 = vmatprep.subr.mxu0 0.0
        %4562 = vmatpush1.xpose.msra.mxu0 0.0
        %4563 = vmatprep.subr.mxu0 0.0
        %4564 = vmatpush1.xpose.msra.mxu0 0.0
        %4565 = vmatprep.subr.mxu0 0.0
        %4566 = vmatpush1.xpose.msra.mxu0 0.0
        %4567 = vmatprep.subr.mxu0 0.0
        %4568 = vmatpush1.xpose.msra.mxu0 0.0
        %4569 = vmatprep.subr.mxu0 0.0
        %4570 = vmatpush1.xpose.msra.mxu0 0.0
        %4571 = vmatprep.subr.mxu0 0.0
        %4572 = vmatpush1.xpose.msra.mxu0 0.0
        %4573 = vmatprep.subr.mxu0 0.0
        %4574 = vmatpush1.xpose.msra.mxu0 0.0
        %4575 = vmatprep.subr.mxu0 0.0
        %4576 = vmatpush1.xpose.msra.mxu0 0.0
        %4577 = vmatprep.subr.mxu0 0.0
        %4578 = vmatpush1.xpose.msra.mxu0 0.0
        %4579 = vmatprep.subr.mxu0 0.0
        %4580 = vmatpush1.xpose.msra.mxu0 0.0
        %4581 = vmatprep.subr.mxu0 0.0
        %4582 = vmatpush1.xpose.msra.mxu0 0.0
        %4583 = vmatprep.mubr.f32.mxu0 0.0
        %v4584 = vand.u32 %v4288, 4294901760
        %v4585 = vsub.f32 %v4288, %v4584
        %v4586 = vand.u32 %v4585, 4294901760
        %4587 = vmatmul.mubr.f32.gmra.mrb[0].mxu0 %v4586
        %v4588 = vpop.f32.mrb[0].mxu0
        %v4589 = vadd.f32 %v4515, %v4588
        %v4590 = vpop.f32.mrb[0].mxu0
        %4591 = vdwg.mxu0
        %4592 = vmatprep.subr.mxu0 0.0
        %v4593 = vand.u32 %v4290, 4294901760
        %v4594 = vsub.f32 %v4290, %v4593
        %v4595 = vand.u32 %v4594, 4294901760
        %4596 = vmatpush1.xpose.msra.mxu0 %v4595
        %4597 = vmatprep.subr.mxu0 0.0
        %4598 = vmatpush1.xpose.msra.mxu0 0.0
        %4599 = vmatprep.subr.mxu0 0.0
        %4600 = vmatpush1.xpose.msra.mxu0 0.0
        %4601 = vmatprep.subr.mxu0 0.0
        %4602 = vmatpush1.xpose.msra.mxu0 0.0
        %4603 = vmatprep.subr.mxu0 0.0
        %4604 = vmatpush1.xpose.msra.mxu0 0.0
        %4605 = vmatprep.subr.mxu0 0.0
        %4606 = vmatpush1.xpose.msra.mxu0 0.0
        %4607 = vmatprep.subr.mxu0 0.0
        %4608 = vmatpush1.xpose.msra.mxu0 0.0
        %4609 = vmatprep.subr.mxu0 0.0
        %4610 = vmatpush1.xpose.msra.mxu0 0.0
        %4611 = vmatprep.subr.mxu0 0.0
        %4612 = vmatpush1.xpose.msra.mxu0 0.0
        %4613 = vmatprep.subr.mxu0 0.0
        %4614 = vmatpush1.xpose.msra.mxu0 0.0
        %4615 = vmatprep.subr.mxu0 0.0
        %4616 = vmatpush1.xpose.msra.mxu0 0.0
        %4617 = vmatprep.subr.mxu0 0.0
        %4618 = vmatpush1.xpose.msra.mxu0 0.0
        %4619 = vmatprep.subr.mxu0 0.0
        %4620 = vmatpush1.xpose.msra.mxu0 0.0
        %4621 = vmatprep.subr.mxu0 0.0
        %4622 = vmatpush1.xpose.msra.mxu0 0.0
        %4623 = vmatprep.subr.mxu0 0.0
        %4624 = vmatpush1.xpose.msra.mxu0 0.0
        %4625 = vmatprep.subr.mxu0 0.0
        %4626 = vmatpush1.xpose.msra.mxu0 0.0
        %4627 = vmatprep.subr.mxu0 0.0
        %4628 = vmatpush1.xpose.msra.mxu0 0.0
        %4629 = vmatprep.subr.mxu0 0.0
        %4630 = vmatpush1.xpose.msra.mxu0 0.0
        %4631 = vmatprep.subr.mxu0 0.0
        %4632 = vmatpush1.xpose.msra.mxu0 0.0
        %4633 = vmatprep.subr.mxu0 0.0
        %4634 = vmatpush1.xpose.msra.mxu0 0.0
        %4635 = vmatprep.subr.mxu0 0.0
        %4636 = vmatpush1.xpose.msra.mxu0 0.0
        %4637 = vmatprep.subr.mxu0 0.0
        %4638 = vmatpush1.xpose.msra.mxu0 0.0
        %4639 = vmatprep.subr.mxu0 0.0
        %4640 = vmatpush1.xpose.msra.mxu0 0.0
        %4641 = vmatprep.subr.mxu0 0.0
        %4642 = vmatpush1.xpose.msra.mxu0 0.0
        %4643 = vmatprep.subr.mxu0 0.0
        %4644 = vmatpush1.xpose.msra.mxu0 0.0
        %4645 = vmatprep.subr.mxu0 0.0
        %4646 = vmatpush1.xpose.msra.mxu0 0.0
        %4647 = vmatprep.subr.mxu0 0.0
        %4648 = vmatpush1.xpose.msra.mxu0 0.0
        %4649 = vmatprep.subr.mxu0 0.0
        %4650 = vmatpush1.xpose.msra.mxu0 0.0
        %4651 = vmatprep.subr.mxu0 0.0
        %4652 = vmatpush1.xpose.msra.mxu0 0.0
        %4653 = vmatprep.subr.mxu0 0.0
        %4654 = vmatpush1.xpose.msra.mxu0 0.0
        %4655 = vmatprep.subr.mxu0 0.0
        %4656 = vmatpush1.xpose.msra.mxu0 0.0
        %4657 = vmatprep.subr.mxu0 0.0
        %4658 = vmatpush1.xpose.msra.mxu0 0.0
        %4659 = vmatprep.mubr.f32.mxu0 0.0
        %v4660 = vand.u32 %v4288, 4294901760
        %4661 = vmatmul.mubr.f32.gmra.mrb[0].mxu0 %v4660
        %v4662 = vpop.f32.mrb[0].mxu0
        %v4663 = vadd.f32 %v4589, %v4662
        %v4664 = vpop.f32.mrb[0].mxu0
        %4665 = vdwg.mxu0
        %4666 = vmatprep.subr.mxu0 0.0
        %v4667 = vand.u32 %v4290, 4294901760
        %4668 = vmatpush1.xpose.msra.mxu0 %v4667
        %4669 = vmatprep.subr.mxu0 0.0
        %4670 = vmatpush1.xpose.msra.mxu0 0.0
        %4671 = vmatprep.subr.mxu0 0.0
        %4672 = vmatpush1.xpose.msra.mxu0 0.0
        %4673 = vmatprep.subr.mxu0 0.0
        %4674 = vmatpush1.xpose.msra.mxu0 0.0
        %4675 = vmatprep.subr.mxu0 0.0
        %4676 = vmatpush1.xpose.msra.mxu0 0.0
        %4677 = vmatprep.subr.mxu0 0.0
        %4678 = vmatpush1.xpose.msra.mxu0 0.0
        %4679 = vmatprep.subr.mxu0 0.0
        %4680 = vmatpush1.xpose.msra.mxu0 0.0
        %4681 = vmatprep.subr.mxu0 0.0
        %4682 = vmatpush1.xpose.msra.mxu0 0.0
        %4683 = vmatprep.subr.mxu0 0.0
        %4684 = vmatpush1.xpose.msra.mxu0 0.0
        %4685 = vmatprep.subr.mxu0 0.0
        %4686 = vmatpush1.xpose.msra.mxu0 0.0
        %4687 = vmatprep.subr.mxu0 0.0
        %4688 = vmatpush1.xpose.msra.mxu0 0.0
        %4689 = vmatprep.subr.mxu0 0.0
        %4690 = vmatpush1.xpose.msra.mxu0 0.0
        %4691 = vmatprep.subr.mxu0 0.0
        %4692 = vmatpush1.xpose.msra.mxu0 0.0
        %4693 = vmatprep.subr.mxu0 0.0
        %4694 = vmatpush1.xpose.msra.mxu0 0.0
        %4695 = vmatprep.subr.mxu0 0.0
        %4696 = vmatpush1.xpose.msra.mxu0 0.0
        %4697 = vmatprep.subr.mxu0 0.0
        %4698 = vmatpush1.xpose.msra.mxu0 0.0
        %4699 = vmatprep.subr.mxu0 0.0
        %4700 = vmatpush1.xpose.msra.mxu0 0.0
        %4701 = vmatprep.subr.mxu0 0.0
        %4702 = vmatpush1.xpose.msra.mxu0 0.0
        %4703 = vmatprep.subr.mxu0 0.0
        %4704 = vmatpush1.xpose.msra.mxu0 0.0
        %4705 = vmatprep.subr.mxu0 0.0
        %4706 = vmatpush1.xpose.msra.mxu0 0.0
        %4707 = vmatprep.subr.mxu0 0.0
        %4708 = vmatpush1.xpose.msra.mxu0 0.0
        %4709 = vmatprep.subr.mxu0 0.0
        %4710 = vmatpush1.xpose.msra.mxu0 0.0
        %4711 = vmatprep.subr.mxu0 0.0
        %4712 = vmatpush1.xpose.msra.mxu0 0.0
        %4713 = vmatprep.subr.mxu0 0.0
        %4714 = vmatpush1.xpose.msra.mxu0 0.0
        %4715 = vmatprep.subr.mxu0 0.0
        %4716 = vmatpush1.xpose.msra.mxu0 0.0
        %4717 = vmatprep.subr.mxu0 0.0
        %4718 = vmatpush1.xpose.msra.mxu0 0.0
        %4719 = vmatprep.subr.mxu0 0.0
        %4720 = vmatpush1.xpose.msra.mxu0 0.0
        %4721 = vmatprep.subr.mxu0 0.0
        %4722 = vmatpush1.xpose.msra.mxu0 0.0
        %4723 = vmatprep.subr.mxu0 0.0
        %4724 = vmatpush1.xpose.msra.mxu0 0.0
        %4725 = vmatprep.subr.mxu0 0.0
        %4726 = vmatpush1.xpose.msra.mxu0 0.0
        %4727 = vmatprep.subr.mxu0 0.0
        %4728 = vmatpush1.xpose.msra.mxu0 0.0
        %4729 = vmatprep.subr.mxu0 0.0
        %4730 = vmatpush1.xpose.msra.mxu0 0.0
        %4731 = vmatprep.mubr.f32.mxu0 0.0
        %v4732 = vand.u32 %v4288, 4294901760
        %4733 = vmatmul.mubr.f32.gmra.mrb[0].mxu0 %v4732
        %v4734 = vpop.f32.mrb[0].mxu0
        %v4735 = vadd.f32 %v4663, %v4734
        %v4736 = vpop.f32.mrb[0].mxu0
        %4737 = vdwg.mxu0
        %v4738 = vsel %vm1555, %v4735, -inf
        %4739 = vmax.xlane.f32.xlu0 %v4738
        %v4740 = vpop.xlane.xlu0 %4739
        %v4741 = vsub.f32 %v4735, %v4740
        %v4742 = vmul.f32 %v4741, 1.442695
        %v4743 = vpow.pop %v4742
        %v4744 = vsel %vm1555, %v4743, 0.0
        %4745 = vadd.xlane.f32.xlu0 %v4744
        %v4746 = vpop.xlane.xlu0 %4745
        %v4747 = vrcp.pop %v4746
        %v4748 = vmul.f32 %v4743, %v4747
        %4749 = vrot.lane.b32.xlu0 %v1539, 48
        %v4750 = vpop.permute.xlu0 %4749
        %v4753 = vsel %vm1555, %v4748, 0
        %4755 = vmatprep.subr.mxu0 0.0
        %v4756 = vand.u32 %v4750, 4294901760
        %4757 = vmatpush1.msra.mxu0 %v4756
        %4758 = vmatprep.subr.mxu0 0.0
        %4759 = vmatpush1.msra.mxu0 0.0
        %4760 = vmatprep.subr.mxu0 0.0
        %4761 = vmatpush1.msra.mxu0 0.0
        %4762 = vmatprep.subr.mxu0 0.0
        %4763 = vmatpush1.msra.mxu0 0.0
        %4764 = vmatprep.subr.mxu0 0.0
        %4765 = vmatpush1.msra.mxu0 0.0
        %4766 = vmatprep.subr.mxu0 0.0
        %4767 = vmatpush1.msra.mxu0 0.0
        %4768 = vmatprep.subr.mxu0 0.0
        %4769 = vmatpush1.msra.mxu0 0.0
        %4770 = vmatprep.subr.mxu0 0.0
        %4771 = vmatpush1.msra.mxu0 0.0
        %4772 = vmatprep.subr.mxu0 0.0
        %4773 = vmatpush1.msra.mxu0 0.0
        %4774 = vmatprep.subr.mxu0 0.0
        %4775 = vmatpush1.msra.mxu0 0.0
        %4776 = vmatprep.subr.mxu0 0.0
        %4777 = vmatpush1.msra.mxu0 0.0
        %4778 = vmatprep.subr.mxu0 0.0
        %4779 = vmatpush1.msra.mxu0 0.0
        %4780 = vmatprep.subr.mxu0 0.0
        %4781 = vmatpush1.msra.mxu0 0.0
        %4782 = vmatprep.subr.mxu0 0.0
        %4783 = vmatpush1.msra.mxu0 0.0
        %4784 = vmatprep.subr.mxu0 0.0
        %4785 = vmatpush1.msra.mxu0 0.0
        %4786 = vmatprep.subr.mxu0 0.0
        %4787 = vmatpush1.msra.mxu0 0.0
        %4788 = vmatprep.subr.mxu0 0.0
        %4789 = vmatpush1.msra.mxu0 0.0
        %4790 = vmatprep.subr.mxu0 0.0
        %4791 = vmatpush1.msra.mxu0 0.0
        %4792 = vmatprep.subr.mxu0 0.0
        %4793 = vmatpush1.msra.mxu0 0.0
        %4794 = vmatprep.subr.mxu0 0.0
        %4795 = vmatpush1.msra.mxu0 0.0
        %4796 = vmatprep.subr.mxu0 0.0
        %4797 = vmatpush1.msra.mxu0 0.0
        %4798 = vmatprep.subr.mxu0 0.0
        %4799 = vmatpush1.msra.mxu0 0.0
        %4800 = vmatprep.subr.mxu0 0.0
        %4801 = vmatpush1.msra.mxu0 0.0
        %4802 = vmatprep.subr.mxu0 0.0
        %4803 = vmatpush1.msra.mxu0 0.0
        %4804 = vmatprep.subr.mxu0 0.0
        %4805 = vmatpush1.msra.mxu0 0.0
        %4806 = vmatprep.subr.mxu0 0.0
        %4807 = vmatpush1.msra.mxu0 0.0
        %4808 = vmatprep.subr.mxu0 0.0
        %4809 = vmatpush1.msra.mxu0 0.0
        %4810 = vmatprep.subr.mxu0 0.0
        %4811 = vmatpush1.msra.mxu0 0.0
        %4812 = vmatprep.subr.mxu0 0.0
        %4813 = vmatpush1.msra.mxu0 0.0
        %4814 = vmatprep.subr.mxu0 0.0
        %4815 = vmatpush1.msra.mxu0 0.0
        %4816 = vmatprep.subr.mxu0 0.0
        %4817 = vmatpush1.msra.mxu0 0.0
        %4818 = vmatprep.subr.mxu0 0.0
        %4819 = vmatpush1.msra.mxu0 0.0
        %4820 = vmatprep.mubr.f32.mxu0 0.0
        %v4821 = vand.u32 %v4753, 4294901760
        %v4822 = vsub.f32 %v4753, %v4821
        %v4823 = vand.u32 %v4822, 4294901760
        %v4824 = vsub.f32 %v4822, %v4823
        %v4825 = vand.u32 %v4824, 4294901760
        %4826 = vmatmul.mubr.f32.gmra.mrb[0].mxu0 %v4825
        %v4827 = vpop.f32.mrb[0].mxu0
        %v4828 = vadd.f32 0.0, %v4827
        %v4829 = vpop.f32.mrb[0].mxu0
        %4830 = vdwg.mxu0
        %4831 = vmatprep.subr.mxu0 0.0
        %v4832 = vand.u32 %v4750, 4294901760
        %v4833 = vsub.f32 %v4750, %v4832
        %v4834 = vand.u32 %v4833, 4294901760
        %v4835 = vsub.f32 %v4833, %v4834
        %v4836 = vand.u32 %v4835, 4294901760
        %4837 = vmatpush1.msra.mxu0 %v4836
        %4838 = vmatprep.subr.mxu0 0.0
        %4839 = vmatpush1.msra.mxu0 0.0
        %4840 = vmatprep.subr.mxu0 0.0
        %4841 = vmatpush1.msra.mxu0 0.0
        %4842 = vmatprep.subr.mxu0 0.0
        %4843 = vmatpush1.msra.mxu0 0.0
        %4844 = vmatprep.subr.mxu0 0.0
        %4845 = vmatpush1.msra.mxu0 0.0
        %4846 = vmatprep.subr.mxu0 0.0
        %4847 = vmatpush1.msra.mxu0 0.0
        %4848 = vmatprep.subr.mxu0 0.0
        %4849 = vmatpush1.msra.mxu0 0.0
        %4850 = vmatprep.subr.mxu0 0.0
        %4851 = vmatpush1.msra.mxu0 0.0
        %4852 = vmatprep.subr.mxu0 0.0
        %4853 = vmatpush1.msra.mxu0 0.0
        %4854 = vmatprep.subr.mxu0 0.0
        %4855 = vmatpush1.msra.mxu0 0.0
        %4856 = vmatprep.subr.mxu0 0.0
        %4857 = vmatpush1.msra.mxu0 0.0
        %4858 = vmatprep.subr.mxu0 0.0
        %4859 = vmatpush1.msra.mxu0 0.0
        %4860 = vmatprep.subr.mxu0 0.0
        %4861 = vmatpush1.msra.mxu0 0.0
        %4862 = vmatprep.subr.mxu0 0.0
        %4863 = vmatpush1.msra.mxu0 0.0
        %4864 = vmatprep.subr.mxu0 0.0
        %4865 = vmatpush1.msra.mxu0 0.0
        %4866 = vmatprep.subr.mxu0 0.0
        %4867 = vmatpush1.msra.mxu0 0.0
        %4868 = vmatprep.subr.mxu0 0.0
        %4869 = vmatpush1.msra.mxu0 0.0
        %4870 = vmatprep.subr.mxu0 0.0
        %4871 = vmatpush1.msra.mxu0 0.0
        %4872 = vmatprep.subr.mxu0 0.0
        %4873 = vmatpush1.msra.mxu0 0.0
        %4874 = vmatprep.subr.mxu0 0.0
        %4875 = vmatpush1.msra.mxu0 0.0
        %4876 = vmatprep.subr.mxu0 0.0
        %4877 = vmatpush1.msra.mxu0 0.0
        %4878 = vmatprep.subr.mxu0 0.0
        %4879 = vmatpush1.msra.mxu0 0.0
        %4880 = vmatprep.subr.mxu0 0.0
        %4881 = vmatpush1.msra.mxu0 0.0
        %4882 = vmatprep.subr.mxu0 0.0
        %4883 = vmatpush1.msra.mxu0 0.0
        %4884 = vmatprep.subr.mxu0 0.0
        %4885 = vmatpush1.msra.mxu0 0.0
        %4886 = vmatprep.subr.mxu0 0.0
        %4887 = vmatpush1.msra.mxu0 0.0
        %4888 = vmatprep.subr.mxu0 0.0
        %4889 = vmatpush1.msra.mxu0 0.0
        %4890 = vmatprep.subr.mxu0 0.0
        %4891 = vmatpush1.msra.mxu0 0.0
        %4892 = vmatprep.subr.mxu0 0.0
        %4893 = vmatpush1.msra.mxu0 0.0
        %4894 = vmatprep.subr.mxu0 0.0
        %4895 = vmatpush1.msra.mxu0 0.0
        %4896 = vmatprep.subr.mxu0 0.0
        %4897 = vmatpush1.msra.mxu0 0.0
        %4898 = vmatprep.subr.mxu0 0.0
        %4899 = vmatpush1.msra.mxu0 0.0
        %4900 = vmatprep.mubr.f32.mxu0 0.0
        %v4901 = vand.u32 %v4753, 4294901760
        %4902 = vmatmul.mubr.f32.gmra.mrb[0].mxu0 %v4901
        %v4903 = vpop.f32.mrb[0].mxu0
        %v4904 = vadd.f32 %v4828, %v4903
        %v4905 = vpop.f32.mrb[0].mxu0
        %4906 = vdwg.mxu0
        %4907 = vmatprep.subr.mxu0 0.0
        %v4908 = vand.u32 %v4750, 4294901760
        %v4909 = vsub.f32 %v4750, %v4908
        %4910 = vmatpush1.msra.mxu0 %v4909
        %4911 = vmatprep.subr.mxu0 0.0
        %4912 = vmatpush1.msra.mxu0 0.0
        %4913 = vmatprep.subr.mxu0 0.0
        %4914 = vmatpush1.msra.mxu0 0.0
        %4915 = vmatprep.subr.mxu0 0.0
        %4916 = vmatpush1.msra.mxu0 0.0
        %4917 = vmatprep.subr.mxu0 0.0
        %4918 = vmatpush1.msra.mxu0 0.0
        %4919 = vmatprep.subr.mxu0 0.0
        %4920 = vmatpush1.msra.mxu0 0.0
        %4921 = vmatprep.subr.mxu0 0.0
        %4922 = vmatpush1.msra.mxu0 0.0
        %4923 = vmatprep.subr.mxu0 0.0
        %4924 = vmatpush1.msra.mxu0 0.0
        %4925 = vmatprep.subr.mxu0 0.0
        %4926 = vmatpush1.msra.mxu0 0.0
        %4927 = vmatprep.subr.mxu0 0.0
        %4928 = vmatpush1.msra.mxu0 0.0
        %4929 = vmatprep.subr.mxu0 0.0
        %4930 = vmatpush1.msra.mxu0 0.0
        %4931 = vmatprep.subr.mxu0 0.0
        %4932 = vmatpush1.msra.mxu0 0.0
        %4933 = vmatprep.subr.mxu0 0.0
        %4934 = vmatpush1.msra.mxu0 0.0
        %4935 = vmatprep.subr.mxu0 0.0
        %4936 = vmatpush1.msra.mxu0 0.0
        %4937 = vmatprep.subr.mxu0 0.0
        %4938 = vmatpush1.msra.mxu0 0.0
        %4939 = vmatprep.subr.mxu0 0.0
        %4940 = vmatpush1.msra.mxu0 0.0
        %4941 = vmatprep.subr.mxu0 0.0
        %4942 = vmatpush1.msra.mxu0 0.0
        %4943 = vmatprep.subr.mxu0 0.0
        %4944 = vmatpush1.msra.mxu0 0.0
        %4945 = vmatprep.subr.mxu0 0.0
        %4946 = vmatpush1.msra.mxu0 0.0
        %4947 = vmatprep.subr.mxu0 0.0
        %4948 = vmatpush1.msra.mxu0 0.0
        %4949 = vmatprep.subr.mxu0 0.0
        %4950 = vmatpush1.msra.mxu0 0.0
        %4951 = vmatprep.subr.mxu0 0.0
        %4952 = vmatpush1.msra.mxu0 0.0
        %4953 = vmatprep.subr.mxu0 0.0
        %4954 = vmatpush1.msra.mxu0 0.0
        %4955 = vmatprep.subr.mxu0 0.0
        %4956 = vmatpush1.msra.mxu0 0.0
        %4957 = vmatprep.subr.mxu0 0.0
        %4958 = vmatpush1.msra.mxu0 0.0
        %4959 = vmatprep.subr.mxu0 0.0
        %4960 = vmatpush1.msra.mxu0 0.0
        %4961 = vmatprep.subr.mxu0 0.0
        %4962 = vmatpush1.msra.mxu0 0.0
        %4963 = vmatprep.subr.mxu0 0.0
        %4964 = vmatpush1.msra.mxu0 0.0
        %4965 = vmatprep.subr.mxu0 0.0
        %4966 = vmatpush1.msra.mxu0 0.0
        %4967 = vmatprep.subr.mxu0 0.0
        %4968 = vmatpush1.msra.mxu0 0.0
        %4969 = vmatprep.subr.mxu0 0.0
        %4970 = vmatpush1.msra.mxu0 0.0
        %4971 = vmatprep.subr.mxu0 0.0
        %4972 = vmatpush1.msra.mxu0 0.0
        %4973 = vmatprep.mubr.f32.mxu0 0.0
        %v4974 = vand.u32 %v4753, 4294901760
        %v4975 = vsub.f32 %v4753, %v4974
        %4976 = vmatmul.mubr.f32.gmra.mrb[0].mxu0 %v4975
        %v4977 = vpop.f32.mrb[0].mxu0
        %v4978 = vadd.f32 %v4904, %v4977
        %v4979 = vpop.f32.mrb[0].mxu0
        %4980 = vdwg.mxu0
        %4981 = vmatprep.subr.mxu0 0.0
        %v4982 = vand.u32 %v4750, 4294901760
        %4983 = vmatpush1.msra.mxu0 %v4982
        %4984 = vmatprep.subr.mxu0 0.0
        %4985 = vmatpush1.msra.mxu0 0.0
        %4986 = vmatprep.subr.mxu0 0.0
        %4987 = vmatpush1.msra.mxu0 0.0
        %4988 = vmatprep.subr.mxu0 0.0
        %4989 = vmatpush1.msra.mxu0 0.0
        %4990 = vmatprep.subr.mxu0 0.0
        %4991 = vmatpush1.msra.mxu0 0.0
        %4992 = vmatprep.subr.mxu0 0.0
        %4993 = vmatpush1.msra.mxu0 0.0
        %4994 = vmatprep.subr.mxu0 0.0
        %4995 = vmatpush1.msra.mxu0 0.0
        %4996 = vmatprep.subr.mxu0 0.0
        %4997 = vmatpush1.msra.mxu0 0.0
        %4998 = vmatprep.subr.mxu0 0.0
        %4999 = vmatpush1.msra.mxu0 0.0
        %5000 = vmatprep.subr.mxu0 0.0
        %5001 = vmatpush1.msra.mxu0 0.0
        %5002 = vmatprep.subr.mxu0 0.0
        %5003 = vmatpush1.msra.mxu0 0.0
        %5004 = vmatprep.subr.mxu0 0.0
        %5005 = vmatpush1.msra.mxu0 0.0
        %5006 = vmatprep.subr.mxu0 0.0
        %5007 = vmatpush1.msra.mxu0 0.0
        %5008 = vmatprep.subr.mxu0 0.0
        %5009 = vmatpush1.msra.mxu0 0.0
        %5010 = vmatprep.subr.mxu0 0.0
        %5011 = vmatpush1.msra.mxu0 0.0
        %5012 = vmatprep.subr.mxu0 0.0
        %5013 = vmatpush1.msra.mxu0 0.0
        %5014 = vmatprep.subr.mxu0 0.0
        %5015 = vmatpush1.msra.mxu0 0.0
        %5016 = vmatprep.subr.mxu0 0.0
        %5017 = vmatpush1.msra.mxu0 0.0
        %5018 = vmatprep.subr.mxu0 0.0
        %5019 = vmatpush1.msra.mxu0 0.0
        %5020 = vmatprep.subr.mxu0 0.0
        %5021 = vmatpush1.msra.mxu0 0.0
        %5022 = vmatprep.subr.mxu0 0.0
        %5023 = vmatpush1.msra.mxu0 0.0
        %5024 = vmatprep.subr.mxu0 0.0
        %5025 = vmatpush1.msra.mxu0 0.0
        %5026 = vmatprep.subr.mxu0 0.0
        %5027 = vmatpush1.msra.mxu0 0.0
        %5028 = vmatprep.subr.mxu0 0.0
        %5029 = vmatpush1.msra.mxu0 0.0
        %5030 = vmatprep.subr.mxu0 0.0
        %5031 = vmatpush1.msra.mxu0 0.0
        %5032 = vmatprep.subr.mxu0 0.0
        %5033 = vmatpush1.msra.mxu0 0.0
        %5034 = vmatprep.subr.mxu0 0.0
        %5035 = vmatpush1.msra.mxu0 0.0
        %5036 = vmatprep.subr.mxu0 0.0
        %5037 = vmatpush1.msra.mxu0 0.0
        %5038 = vmatprep.subr.mxu0 0.0
        %5039 = vmatpush1.msra.mxu0 0.0
        %5040 = vmatprep.subr.mxu0 0.0
        %5041 = vmatpush1.msra.mxu0 0.0
        %5042 = vmatprep.subr.mxu0 0.0
        %5043 = vmatpush1.msra.mxu0 0.0
        %5044 = vmatprep.subr.mxu0 0.0
        %5045 = vmatpush1.msra.mxu0 0.0
        %5046 = vmatprep.mubr.f32.mxu0 0.0
        %v5047 = vand.u32 %v4753, 4294901760
        %v5048 = vsub.f32 %v4753, %v5047
        %v5049 = vand.u32 %v5048, 4294901760
        %5050 = vmatmul.mubr.f32.gmra.mrb[0].mxu0 %v5049
        %v5051 = vpop.f32.mrb[0].mxu0
        %v5052 = vadd.f32 %v4978, %v5051
        %v5053 = vpop.f32.mrb[0].mxu0
        %5054 = vdwg.mxu0
        %5055 = vmatprep.subr.mxu0 0.0
        %v5056 = vand.u32 %v4750, 4294901760
        %v5057 = vsub.f32 %v4750, %v5056
        %v5058 = vand.u32 %v5057, 4294901760
        %5059 = vmatpush1.msra.mxu0 %v5058
        %5060 = vmatprep.subr.mxu0 0.0
        %5061 = vmatpush1.msra.mxu0 0.0
        %5062 = vmatprep.subr.mxu0 0.0
        %5063 = vmatpush1.msra.mxu0 0.0
        %5064 = vmatprep.subr.mxu0 0.0
        %5065 = vmatpush1.msra.mxu0 0.0
        %5066 = vmatprep.subr.mxu0 0.0
        %5067 = vmatpush1.msra.mxu0 0.0
        %5068 = vmatprep.subr.mxu0 0.0
        %5069 = vmatpush1.msra.mxu0 0.0
        %5070 = vmatprep.subr.mxu0 0.0
        %5071 = vmatpush1.msra.mxu0 0.0
        %5072 = vmatprep.subr.mxu0 0.0
        %5073 = vmatpush1.msra.mxu0 0.0
        %5074 = vmatprep.subr.mxu0 0.0
        %5075 = vmatpush1.msra.mxu0 0.0
        %5076 = vmatprep.subr.mxu0 0.0
        %5077 = vmatpush1.msra.mxu0 0.0
        %5078 = vmatprep.subr.mxu0 0.0
        %5079 = vmatpush1.msra.mxu0 0.0
        %5080 = vmatprep.subr.mxu0 0.0
        %5081 = vmatpush1.msra.mxu0 0.0
        %5082 = vmatprep.subr.mxu0 0.0
        %5083 = vmatpush1.msra.mxu0 0.0
        %5084 = vmatprep.subr.mxu0 0.0
        %5085 = vmatpush1.msra.mxu0 0.0
        %5086 = vmatprep.subr.mxu0 0.0
        %5087 = vmatpush1.msra.mxu0 0.0
        %5088 = vmatprep.subr.mxu0 0.0
        %5089 = vmatpush1.msra.mxu0 0.0
        %5090 = vmatprep.subr.mxu0 0.0
        %5091 = vmatpush1.msra.mxu0 0.0
        %5092 = vmatprep.subr.mxu0 0.0
        %5093 = vmatpush1.msra.mxu0 0.0
        %5094 = vmatprep.subr.mxu0 0.0
        %5095 = vmatpush1.msra.mxu0 0.0
        %5096 = vmatprep.subr.mxu0 0.0
        %5097 = vmatpush1.msra.mxu0 0.0
        %5098 = vmatprep.subr.mxu0 0.0
        %5099 = vmatpush1.msra.mxu0 0.0
        %5100 = vmatprep.subr.mxu0 0.0
        %5101 = vmatpush1.msra.mxu0 0.0
        %5102 = vmatprep.subr.mxu0 0.0
        %5103 = vmatpush1.msra.mxu0 0.0
        %5104 = vmatprep.subr.mxu0 0.0
        %5105 = vmatpush1.msra.mxu0 0.0
        %5106 = vmatprep.subr.mxu0 0.0
        %5107 = vmatpush1.msra.mxu0 0.0
        %5108 = vmatprep.subr.mxu0 0.0
        %5109 = vmatpush1.msra.mxu0 0.0
        %5110 = vmatprep.subr.mxu0 0.0
        %5111 = vmatpush1.msra.mxu0 0.0
        %5112 = vmatprep.subr.mxu0 0.0
        %5113 = vmatpush1.msra.mxu0 0.0
        %5114 = vmatprep.subr.mxu0 0.0
        %5115 = vmatpush1.msra.mxu0 0.0
        %5116 = vmatprep.subr.mxu0 0.0
        %5117 = vmatpush1.msra.mxu0 0.0
        %5118 = vmatprep.subr.mxu0 0.0
        %5119 = vmatpush1.msra.mxu0 0.0
        %5120 = vmatprep.subr.mxu0 0.0
        %5121 = vmatpush1.msra.mxu0 0.0
        %5122 = vmatprep.mubr.f32.mxu0 0.0
        %v5123 = vand.u32 %v4753, 4294901760
        %5124 = vmatmul.mubr.f32.gmra.mrb[0].mxu0 %v5123
        %v5125 = vpop.f32.mrb[0].mxu0
        %v5126 = vadd.f32 %v5052, %v5125
        %v5127 = vpop.f32.mrb[0].mxu0
        %5128 = vdwg.mxu0
        %5129 = vmatprep.subr.mxu0 0.0
        %v5130 = vand.u32 %v4750, 4294901760
        %5131 = vmatpush1.msra.mxu0 %v5130
        %5132 = vmatprep.subr.mxu0 0.0
        %5133 = vmatpush1.msra.mxu0 0.0
        %5134 = vmatprep.subr.mxu0 0.0
        %5135 = vmatpush1.msra.mxu0 0.0
        %5136 = vmatprep.subr.mxu0 0.0
        %5137 = vmatpush1.msra.mxu0 0.0
        %5138 = vmatprep.subr.mxu0 0.0
        %5139 = vmatpush1.msra.mxu0 0.0
        %5140 = vmatprep.subr.mxu0 0.0
        %5141 = vmatpush1.msra.mxu0 0.0
        %5142 = vmatprep.subr.mxu0 0.0
        %5143 = vmatpush1.msra.mxu0 0.0
        %5144 = vmatprep.subr.mxu0 0.0
        %5145 = vmatpush1.msra.mxu0 0.0
        %5146 = vmatprep.subr.mxu0 0.0
        %5147 = vmatpush1.msra.mxu0 0.0
        %5148 = vmatprep.subr.mxu0 0.0
        %5149 = vmatpush1.msra.mxu0 0.0
        %5150 = vmatprep.subr.mxu0 0.0
        %5151 = vmatpush1.msra.mxu0 0.0
        %5152 = vmatprep.subr.mxu0 0.0
        %5153 = vmatpush1.msra.mxu0 0.0
        %5154 = vmatprep.subr.mxu0 0.0
        %5155 = vmatpush1.msra.mxu0 0.0
        %5156 = vmatprep.subr.mxu0 0.0
        %5157 = vmatpush1.msra.mxu0 0.0
        %5158 = vmatprep.subr.mxu0 0.0
        %5159 = vmatpush1.msra.mxu0 0.0
        %5160 = vmatprep.subr.mxu0 0.0
        %5161 = vmatpush1.msra.mxu0 0.0
        %5162 = vmatprep.subr.mxu0 0.0
        %5163 = vmatpush1.msra.mxu0 0.0
        %5164 = vmatprep.subr.mxu0 0.0
        %5165 = vmatpush1.msra.mxu0 0.0
        %5166 = vmatprep.subr.mxu0 0.0
        %5167 = vmatpush1.msra.mxu0 0.0
        %5168 = vmatprep.subr.mxu0 0.0
        %5169 = vmatpush1.msra.mxu0 0.0
        %5170 = vmatprep.subr.mxu0 0.0
        %5171 = vmatpush1.msra.mxu0 0.0
        %5172 = vmatprep.subr.mxu0 0.0
        %5173 = vmatpush1.msra.mxu0 0.0
        %5174 = vmatprep.subr.mxu0 0.0
        %5175 = vmatpush1.msra.mxu0 0.0
        %5176 = vmatprep.subr.mxu0 0.0
        %5177 = vmatpush1.msra.mxu0 0.0
        %5178 = vmatprep.subr.mxu0 0.0
        %5179 = vmatpush1.msra.mxu0 0.0
        %5180 = vmatprep.subr.mxu0 0.0
        %5181 = vmatpush1.msra.mxu0 0.0
        %5182 = vmatprep.subr.mxu0 0.0
        %5183 = vmatpush1.msra.mxu0 0.0
        %5184 = vmatprep.subr.mxu0 0.0
        %5185 = vmatpush1.msra.mxu0 0.0
        %5186 = vmatprep.subr.mxu0 0.0
        %5187 = vmatpush1.msra.mxu0 0.0
        %5188 = vmatprep.subr.mxu0 0.0
        %5189 = vmatpush1.msra.mxu0 0.0
        %5190 = vmatprep.subr.mxu0 0.0
        %5191 = vmatpush1.msra.mxu0 0.0
        %5192 = vmatprep.subr.mxu0 0.0
        %5193 = vmatpush1.msra.mxu0 0.0
        %5194 = vmatprep.mubr.f32.mxu0 0.0
        %v5195 = vand.u32 %v4753, 4294901760
        %5196 = vmatmul.mubr.f32.gmra.mrb[0].mxu0 %v5195
        %v5197 = vpop.f32.mrb[0].mxu0
        %v5198 = vadd.f32 %v5126, %v5197
        %v5199 = vpop.f32.mrb[0].mxu0
        %5200 = vdwg.mxu0
        %v5202 = vsel %vm1555, %v5198, 0
        %5204 = vmatprep.subr.mxu0 0.0
        %v5205 = vand.u32 %v1544, 4294901760
        %5206 = vmatpush1.msra.mxu0 %v5205
        %5207 = vmatprep.subr.mxu0 0.0
        %5208 = vmatpush1.msra.mxu0 0.0
        %5209 = vmatprep.subr.mxu0 0.0
        %5210 = vmatpush1.msra.mxu0 0.0
        %5211 = vmatprep.subr.mxu0 0.0
        %5212 = vmatpush1.msra.mxu0 0.0
        %5213 = vmatprep.subr.mxu0 0.0
        %5214 = vmatpush1.msra.mxu0 0.0
        %5215 = vmatprep.subr.mxu0 0.0
        %5216 = vmatpush1.msra.mxu0 0.0
        %5217 = vmatprep.subr.mxu0 0.0
        %5218 = vmatpush1.msra.mxu0 0.0
        %5219 = vmatprep.subr.mxu0 0.0
        %5220 = vmatpush1.msra.mxu0 0.0
        %5221 = vmatprep.subr.mxu0 0.0
        %5222 = vmatpush1.msra.mxu0 0.0
        %5223 = vmatprep.subr.mxu0 0.0
        %5224 = vmatpush1.msra.mxu0 0.0
        %5225 = vmatprep.subr.mxu0 0.0
        %5226 = vmatpush1.msra.mxu0 0.0
        %5227 = vmatprep.subr.mxu0 0.0
        %5228 = vmatpush1.msra.mxu0 0.0
        %5229 = vmatprep.subr.mxu0 0.0
        %5230 = vmatpush1.msra.mxu0 0.0
        %5231 = vmatprep.subr.mxu0 0.0
        %5232 = vmatpush1.msra.mxu0 0.0
        %5233 = vmatprep.subr.mxu0 0.0
        %5234 = vmatpush1.msra.mxu0 0.0
        %5235 = vmatprep.subr.mxu0 0.0
        %5236 = vmatpush1.msra.mxu0 0.0
        %5237 = vmatprep.subr.mxu0 0.0
        %5238 = vmatpush1.msra.mxu0 0.0
        %5239 = vmatprep.subr.mxu0 0.0
        %5240 = vmatpush1.msra.mxu0 0.0
        %5241 = vmatprep.subr.mxu0 0.0
        %5242 = vmatpush1.msra.mxu0 0.0
        %5243 = vmatprep.subr.mxu0 0.0
        %5244 = vmatpush1.msra.mxu0 0.0
        %5245 = vmatprep.subr.mxu0 0.0
        %5246 = vmatpush1.msra.mxu0 0.0
        %5247 = vmatprep.subr.mxu0 0.0
        %5248 = vmatpush1.msra.mxu0 0.0
        %5249 = vmatprep.subr.mxu0 0.0
        %5250 = vmatpush1.msra.mxu0 0.0
        %5251 = vmatprep.subr.mxu0 0.0
        %5252 = vmatpush1.msra.mxu0 0.0
        %5253 = vmatprep.subr.mxu0 0.0
        %5254 = vmatpush1.msra.mxu0 0.0
        %5255 = vmatprep.subr.mxu0 0.0
        %5256 = vmatpush1.msra.mxu0 0.0
        %5257 = vmatprep.subr.mxu0 0.0
        %5258 = vmatpush1.msra.mxu0 0.0
        %5259 = vmatprep.subr.mxu0 0.0
        %5260 = vmatpush1.msra.mxu0 0.0
        %5261 = vmatprep.subr.mxu0 0.0
        %5262 = vmatpush1.msra.mxu0 0.0
        %5263 = vmatprep.subr.mxu0 0.0
        %5264 = vmatpush1.msra.mxu0 0.0
        %5265 = vmatprep.subr.mxu0 0.0
        %5266 = vmatpush1.msra.mxu0 0.0
        %5267 = vmatprep.subr.mxu0 0.0
        %5268 = vmatpush1.msra.mxu0 0.0
        %5269 = vmatprep.mubr.f32.mxu0 0.0
        %v5270 = vand.u32 %v5202, 4294901760
        %v5271 = vsub.f32 %v5202, %v5270
        %v5272 = vand.u32 %v5271, 4294901760
        %v5273 = vsub.f32 %v5271, %v5272
        %v5274 = vand.u32 %v5273, 4294901760
        %5275 = vmatmul.mubr.f32.gmra.mrb[0].mxu0 %v5274
        %v5276 = vpop.f32.mrb[0].mxu0
        %v5277 = vadd.f32 0.0, %v5276
        %v5278 = vpop.f32.mrb[0].mxu0
        %5279 = vdwg.mxu0
        %5280 = vmatprep.subr.mxu0 0.0
        %v5281 = vand.u32 %v1544, 4294901760
        %v5282 = vsub.f32 %v1544, %v5281
        %v5283 = vand.u32 %v5282, 4294901760
        %v5284 = vsub.f32 %v5282, %v5283
        %v5285 = vand.u32 %v5284, 4294901760
        %5286 = vmatpush1.msra.mxu0 %v5285
        %5287 = vmatprep.subr.mxu0 0.0
        %5288 = vmatpush1.msra.mxu0 0.0
        %5289 = vmatprep.subr.mxu0 0.0
        %5290 = vmatpush1.msra.mxu0 0.0
        %5291 = vmatprep.subr.mxu0 0.0
        %5292 = vmatpush1.msra.mxu0 0.0
        %5293 = vmatprep.subr.mxu0 0.0
        %5294 = vmatpush1.msra.mxu0 0.0
        %5295 = vmatprep.subr.mxu0 0.0
        %5296 = vmatpush1.msra.mxu0 0.0
        %5297 = vmatprep.subr.mxu0 0.0
        %5298 = vmatpush1.msra.mxu0 0.0
        %5299 = vmatprep.subr.mxu0 0.0
        %5300 = vmatpush1.msra.mxu0 0.0
        %5301 = vmatprep.subr.mxu0 0.0
        %5302 = vmatpush1.msra.mxu0 0.0
        %5303 = vmatprep.subr.mxu0 0.0
        %5304 = vmatpush1.msra.mxu0 0.0
        %5305 = vmatprep.subr.mxu0 0.0
        %5306 = vmatpush1.msra.mxu0 0.0
        %5307 = vmatprep.subr.mxu0 0.0
        %5308 = vmatpush1.msra.mxu0 0.0
        %5309 = vmatprep.subr.mxu0 0.0
        %5310 = vmatpush1.msra.mxu0 0.0
        %5311 = vmatprep.subr.mxu0 0.0
        %5312 = vmatpush1.msra.mxu0 0.0
        %5313 = vmatprep.subr.mxu0 0.0
        %5314 = vmatpush1.msra.mxu0 0.0
        %5315 = vmatprep.subr.mxu0 0.0
        %5316 = vmatpush1.msra.mxu0 0.0
        %5317 = vmatprep.subr.mxu0 0.0
        %5318 = vmatpush1.msra.mxu0 0.0
        %5319 = vmatprep.subr.mxu0 0.0
        %5320 = vmatpush1.msra.mxu0 0.0
        %5321 = vmatprep.subr.mxu0 0.0
        %5322 = vmatpush1.msra.mxu0 0.0
        %5323 = vmatprep.subr.mxu0 0.0
        %5324 = vmatpush1.msra.mxu0 0.0
        %5325 = vmatprep.subr.mxu0 0.0
        %5326 = vmatpush1.msra.mxu0 0.0
        %5327 = vmatprep.subr.mxu0 0.0
        %5328 = vmatpush1.msra.mxu0 0.0
        %5329 = vmatprep.subr.mxu0 0.0
        %5330 = vmatpush1.msra.mxu0 0.0
        %5331 = vmatprep.subr.mxu0 0.0
        %5332 = vmatpush1.msra.mxu0 0.0
        %5333 = vmatprep.subr.mxu0 0.0
        %5334 = vmatpush1.msra.mxu0 0.0
        %5335 = vmatprep.subr.mxu0 0.0
        %5336 = vmatpush1.msra.mxu0 0.0
        %5337 = vmatprep.subr.mxu0 0.0
        %5338 = vmatpush1.msra.mxu0 0.0
        %5339 = vmatprep.subr.mxu0 0.0
        %5340 = vmatpush1.msra.mxu0 0.0
        %5341 = vmatprep.subr.mxu0 0.0
        %5342 = vmatpush1.msra.mxu0 0.0
        %5343 = vmatprep.subr.mxu0 0.0
        %5344 = vmatpush1.msra.mxu0 0.0
        %5345 = vmatprep.subr.mxu0 0.0
        %5346 = vmatpush1.msra.mxu0 0.0
        %5347 = vmatprep.subr.mxu0 0.0
        %5348 = vmatpush1.msra.mxu0 0.0
        %5349 = vmatprep.mubr.f32.mxu0 0.0
        %v5350 = vand.u32 %v5202, 4294901760
        %5351 = vmatmul.mubr.f32.gmra.mrb[0].mxu0 %v5350
        %v5352 = vpop.f32.mrb[0].mxu0
        %v5353 = vadd.f32 %v5277, %v5352
        %v5354 = vpop.f32.mrb[0].mxu0
        %5355 = vdwg.mxu0
        %5356 = vmatprep.subr.mxu0 0.0
        %v5357 = vand.u32 %v1544, 4294901760
        %v5358 = vsub.f32 %v1544, %v5357
        %5359 = vmatpush1.msra.mxu0 %v5358
        %5360 = vmatprep.subr.mxu0 0.0
        %5361 = vmatpush1.msra.mxu0 0.0
        %5362 = vmatprep.subr.mxu0 0.0
        %5363 = vmatpush1.msra.mxu0 0.0
        %5364 = vmatprep.subr.mxu0 0.0
        %5365 = vmatpush1.msra.mxu0 0.0
        %5366 = vmatprep.subr.mxu0 0.0
        %5367 = vmatpush1.msra.mxu0 0.0
        %5368 = vmatprep.subr.mxu0 0.0
        %5369 = vmatpush1.msra.mxu0 0.0
        %5370 = vmatprep.subr.mxu0 0.0
        %5371 = vmatpush1.msra.mxu0 0.0
        %5372 = vmatprep.subr.mxu0 0.0
        %5373 = vmatpush1.msra.mxu0 0.0
        %5374 = vmatprep.subr.mxu0 0.0
        %5375 = vmatpush1.msra.mxu0 0.0
        %5376 = vmatprep.subr.mxu0 0.0
        %5377 = vmatpush1.msra.mxu0 0.0
        %5378 = vmatprep.subr.mxu0 0.0
        %5379 = vmatpush1.msra.mxu0 0.0
        %5380 = vmatprep.subr.mxu0 0.0
        %5381 = vmatpush1.msra.mxu0 0.0
        %5382 = vmatprep.subr.mxu0 0.0
        %5383 = vmatpush1.msra.mxu0 0.0
        %5384 = vmatprep.subr.mxu0 0.0
        %5385 = vmatpush1.msra.mxu0 0.0
        %5386 = vmatprep.subr.mxu0 0.0
        %5387 = vmatpush1.msra.mxu0 0.0
        %5388 = vmatprep.subr.mxu0 0.0
        %5389 = vmatpush1.msra.mxu0 0.0
        %5390 = vmatprep.subr.mxu0 0.0
        %5391 = vmatpush1.msra.mxu0 0.0
        %5392 = vmatprep.subr.mxu0 0.0
        %5393 = vmatpush1.msra.mxu0 0.0
        %5394 = vmatprep.subr.mxu0 0.0
        %5395 = vmatpush1.msra.mxu0 0.0
        %5396 = vmatprep.subr.mxu0 0.0
        %5397 = vmatpush1.msra.mxu0 0.0
        %5398 = vmatprep.subr.mxu0 0.0
        %5399 = vmatpush1.msra.mxu0 0.0
        %5400 = vmatprep.subr.mxu0 0.0
        %5401 = vmatpush1.msra.mxu0 0.0
        %5402 = vmatprep.subr.mxu0 0.0
        %5403 = vmatpush1.msra.mxu0 0.0
        %5404 = vmatprep.subr.mxu0 0.0
        %5405 = vmatpush1.msra.mxu0 0.0
        %5406 = vmatprep.subr.mxu0 0.0
        %5407 = vmatpush1.msra.mxu0 0.0
        %5408 = vmatprep.subr.mxu0 0.0
        %5409 = vmatpush1.msra.mxu0 0.0
        %5410 = vmatprep.subr.mxu0 0.0
        %5411 = vmatpush1.msra.mxu0 0.0
        %5412 = vmatprep.subr.mxu0 0.0
        %5413 = vmatpush1.msra.mxu0 0.0
        %5414 = vmatprep.subr.mxu0 0.0
        %5415 = vmatpush1.msra.mxu0 0.0
        %5416 = vmatprep.subr.mxu0 0.0
        %5417 = vmatpush1.msra.mxu0 0.0
        %5418 = vmatprep.subr.mxu0 0.0
        %5419 = vmatpush1.msra.mxu0 0.0
        %5420 = vmatprep.subr.mxu0 0.0
        %5421 = vmatpush1.msra.mxu0 0.0
        %5422 = vmatprep.mubr.f32.mxu0 0.0
        %v5423 = vand.u32 %v5202, 4294901760
        %v5424 = vsub.f32 %v5202, %v5423
        %5425 = vmatmul.mubr.f32.gmra.mrb[0].mxu0 %v5424
        %v5426 = vpop.f32.mrb[0].mxu0
        %v5427 = vadd.f32 %v5353, %v5426
        %v5428 = vpop.f32.mrb[0].mxu0
        %5429 = vdwg.mxu0
        %5430 = vmatprep.subr.mxu0 0.0
        %v5431 = vand.u32 %v1544, 4294901760
        %5432 = vmatpush1.msra.mxu0 %v5431
        %5433 = vmatprep.subr.mxu0 0.0
        %5434 = vmatpush1.msra.mxu0 0.0
        %5435 = vmatprep.subr.mxu0 0.0
        %5436 = vmatpush1.msra.mxu0 0.0
        %5437 = vmatprep.subr.mxu0 0.0
        %5438 = vmatpush1.msra.mxu0 0.0
        %5439 = vmatprep.subr.mxu0 0.0
        %5440 = vmatpush1.msra.mxu0 0.0
        %5441 = vmatprep.subr.mxu0 0.0
        %5442 = vmatpush1.msra.mxu0 0.0
        %5443 = vmatprep.subr.mxu0 0.0
        %5444 = vmatpush1.msra.mxu0 0.0
        %5445 = vmatprep.subr.mxu0 0.0
        %5446 = vmatpush1.msra.mxu0 0.0
        %5447 = vmatprep.subr.mxu0 0.0
        %5448 = vmatpush1.msra.mxu0 0.0
        %5449 = vmatprep.subr.mxu0 0.0
        %5450 = vmatpush1.msra.mxu0 0.0
        %5451 = vmatprep.subr.mxu0 0.0
        %5452 = vmatpush1.msra.mxu0 0.0
        %5453 = vmatprep.subr.mxu0 0.0
        %5454 = vmatpush1.msra.mxu0 0.0
        %5455 = vmatprep.subr.mxu0 0.0
        %5456 = vmatpush1.msra.mxu0 0.0
        %5457 = vmatprep.subr.mxu0 0.0
        %5458 = vmatpush1.msra.mxu0 0.0
        %5459 = vmatprep.subr.mxu0 0.0
        %5460 = vmatpush1.msra.mxu0 0.0
        %5461 = vmatprep.subr.mxu0 0.0
        %5462 = vmatpush1.msra.mxu0 0.0
        %5463 = vmatprep.subr.mxu0 0.0
        %5464 = vmatpush1.msra.mxu0 0.0
        %5465 = vmatprep.subr.mxu0 0.0
        %5466 = vmatpush1.msra.mxu0 0.0
        %5467 = vmatprep.subr.mxu0 0.0
        %5468 = vmatpush1.msra.mxu0 0.0
        %5469 = vmatprep.subr.mxu0 0.0
        %5470 = vmatpush1.msra.mxu0 0.0
        %5471 = vmatprep.subr.mxu0 0.0
        %5472 = vmatpush1.msra.mxu0 0.0
        %5473 = vmatprep.subr.mxu0 0.0
        %5474 = vmatpush1.msra.mxu0 0.0
        %5475 = vmatprep.subr.mxu0 0.0
        %5476 = vmatpush1.msra.mxu0 0.0
        %5477 = vmatprep.subr.mxu0 0.0
        %5478 = vmatpush1.msra.mxu0 0.0
        %5479 = vmatprep.subr.mxu0 0.0
        %5480 = vmatpush1.msra.mxu0 0.0
        %5481 = vmatprep.subr.mxu0 0.0
        %5482 = vmatpush1.msra.mxu0 0.0
        %5483 = vmatprep.subr.mxu0 0.0
        %5484 = vmatpush1.msra.mxu0 0.0
        %5485 = vmatprep.subr.mxu0 0.0
        %5486 = vmatpush1.msra.mxu0 0.0
        %5487 = vmatprep.subr.mxu0 0.0
        %5488 = vmatpush1.msra.mxu0 0.0
        %5489 = vmatprep.subr.mxu0 0.0
        %5490 = vmatpush1.msra.mxu0 0.0
        %5491 = vmatprep.subr.mxu0 0.0
        %5492 = vmatpush1.msra.mxu0 0.0
        %5493 = vmatprep.subr.mxu0 0.0
        %5494 = vmatpush1.msra.mxu0 0.0
        %5495 = vmatprep.mubr.f32.mxu0 0.0
        %v5496 = vand.u32 %v5202, 4294901760
        %v5497 = vsub.f32 %v5202, %v5496
        %v5498 = vand.u32 %v5497, 4294901760
        %5499 = vmatmul.mubr.f32.gmra.mrb[0].mxu0 %v5498
        %v5500 = vpop.f32.mrb[0].mxu0
        %v5501 = vadd.f32 %v5427, %v5500
        %v5502 = vpop.f32.mrb[0].mxu0
        %5503 = vdwg.mxu0
        %5504 = vmatprep.subr.mxu0 0.0
        %v5505 = vand.u32 %v1544, 4294901760
        %v5506 = vsub.f32 %v1544, %v5505
        %v5507 = vand.u32 %v5506, 4294901760
        %5508 = vmatpush1.msra.mxu0 %v5507
        %5509 = vmatprep.subr.mxu0 0.0
        %5510 = vmatpush1.msra.mxu0 0.0
        %5511 = vmatprep.subr.mxu0 0.0
        %5512 = vmatpush1.msra.mxu0 0.0
        %5513 = vmatprep.subr.mxu0 0.0
        %5514 = vmatpush1.msra.mxu0 0.0
        %5515 = vmatprep.subr.mxu0 0.0
        %5516 = vmatpush1.msra.mxu0 0.0
        %5517 = vmatprep.subr.mxu0 0.0
        %5518 = vmatpush1.msra.mxu0 0.0
        %5519 = vmatprep.subr.mxu0 0.0
        %5520 = vmatpush1.msra.mxu0 0.0
        %5521 = vmatprep.subr.mxu0 0.0
        %5522 = vmatpush1.msra.mxu0 0.0
        %5523 = vmatprep.subr.mxu0 0.0
        %5524 = vmatpush1.msra.mxu0 0.0
        %5525 = vmatprep.subr.mxu0 0.0
        %5526 = vmatpush1.msra.mxu0 0.0
        %5527 = vmatprep.subr.mxu0 0.0
        %5528 = vmatpush1.msra.mxu0 0.0
        %5529 = vmatprep.subr.mxu0 0.0
        %5530 = vmatpush1.msra.mxu0 0.0
        %5531 = vmatprep.subr.mxu0 0.0
        %5532 = vmatpush1.msra.mxu0 0.0
        %5533 = vmatprep.subr.mxu0 0.0
        %5534 = vmatpush1.msra.mxu0 0.0
        %5535 = vmatprep.subr.mxu0 0.0
        %5536 = vmatpush1.msra.mxu0 0.0
        %5537 = vmatprep.subr.mxu0 0.0
        %5538 = vmatpush1.msra.mxu0 0.0
        %5539 = vmatprep.subr.mxu0 0.0
        %5540 = vmatpush1.msra.mxu0 0.0
        %5541 = vmatprep.subr.mxu0 0.0
        %5542 = vmatpush1.msra.mxu0 0.0
        %5543 = vmatprep.subr.mxu0 0.0
        %5544 = vmatpush1.msra.mxu0 0.0
        %5545 = vmatprep.subr.mxu0 0.0
        %5546 = vmatpush1.msra.mxu0 0.0
        %5547 = vmatprep.subr.mxu0 0.0
        %5548 = vmatpush1.msra.mxu0 0.0
        %5549 = vmatprep.subr.mxu0 0.0
        %5550 = vmatpush1.msra.mxu0 0.0
        %5551 = vmatprep.subr.mxu0 0.0
        %5552 = vmatpush1.msra.mxu0 0.0
        %5553 = vmatprep.subr.mxu0 0.0
        %5554 = vmatpush1.msra.mxu0 0.0
        %5555 = vmatprep.subr.mxu0 0.0
        %5556 = vmatpush1.msra.mxu0 0.0
        %5557 = vmatprep.subr.mxu0 0.0
        %5558 = vmatpush1.msra.mxu0 0.0
        %5559 = vmatprep.subr.mxu0 0.0
        %5560 = vmatpush1.msra.mxu0 0.0
        %5561 = vmatprep.subr.mxu0 0.0
        %5562 = vmatpush1.msra.mxu0 0.0
        %5563 = vmatprep.subr.mxu0 0.0
        %5564 = vmatpush1.msra.mxu0 0.0
        %5565 = vmatprep.subr.mxu0 0.0
        %5566 = vmatpush1.msra.mxu0 0.0
        %5567 = vmatprep.subr.mxu0 0.0
        %5568 = vmatpush1.msra.mxu0 0.0
        %5569 = vmatprep.subr.mxu0 0.0
        %5570 = vmatpush1.msra.mxu0 0.0
        %5571 = vmatprep.mubr.f32.mxu0 0.0
        %v5572 = vand.u32 %v5202, 4294901760
        %5573 = vmatmul.mubr.f32.gmra.mrb[0].mxu0 %v5572
        %v5574 = vpop.f32.mrb[0].mxu0
        %v5575 = vadd.f32 %v5501, %v5574
        %v5576 = vpop.f32.mrb[0].mxu0
        %5577 = vdwg.mxu0
        %5578 = vmatprep.subr.mxu0 0.0
        %v5579 = vand.u32 %v1544, 4294901760
        %5580 = vmatpush1.msra.mxu0 %v5579
        %5581 = vmatprep.subr.mxu0 0.0
        %5582 = vmatpush1.msra.mxu0 0.0
        %5583 = vmatprep.subr.mxu0 0.0
        %5584 = vmatpush1.msra.mxu0 0.0
        %5585 = vmatprep.subr.mxu0 0.0
        %5586 = vmatpush1.msra.mxu0 0.0
        %5587 = vmatprep.subr.mxu0 0.0
        %5588 = vmatpush1.msra.mxu0 0.0
        %5589 = vmatprep.subr.mxu0 0.0
        %5590 = vmatpush1.msra.mxu0 0.0
        %5591 = vmatprep.subr.mxu0 0.0
        %5592 = vmatpush1.msra.mxu0 0.0
        %5593 = vmatprep.subr.mxu0 0.0
        %5594 = vmatpush1.msra.mxu0 0.0
        %5595 = vmatprep.subr.mxu0 0.0
        %5596 = vmatpush1.msra.mxu0 0.0
        %5597 = vmatprep.subr.mxu0 0.0
        %5598 = vmatpush1.msra.mxu0 0.0
        %5599 = vmatprep.subr.mxu0 0.0
        %5600 = vmatpush1.msra.mxu0 0.0
        %5601 = vmatprep.subr.mxu0 0.0
        %5602 = vmatpush1.msra.mxu0 0.0
        %5603 = vmatprep.subr.mxu0 0.0
        %5604 = vmatpush1.msra.mxu0 0.0
        %5605 = vmatprep.subr.mxu0 0.0
        %5606 = vmatpush1.msra.mxu0 0.0
        %5607 = vmatprep.subr.mxu0 0.0
        %5608 = vmatpush1.msra.mxu0 0.0
        %5609 = vmatprep.subr.mxu0 0.0
        %5610 = vmatpush1.msra.mxu0 0.0
        %5611 = vmatprep.subr.mxu0 0.0
        %5612 = vmatpush1.msra.mxu0 0.0
        %5613 = vmatprep.subr.mxu0 0.0
        %5614 = vmatpush1.msra.mxu0 0.0
        %5615 = vmatprep.subr.mxu0 0.0
        %5616 = vmatpush1.msra.mxu0 0.0
        %5617 = vmatprep.subr.mxu0 0.0
        %5618 = vmatpush1.msra.mxu0 0.0
        %5619 = vmatprep.subr.mxu0 0.0
        %5620 = vmatpush1.msra.mxu0 0.0
        %5621 = vmatprep.subr.mxu0 0.0
        %5622 = vmatpush1.msra.mxu0 0.0
        %5623 = vmatprep.subr.mxu0 0.0
        %5624 = vmatpush1.msra.mxu0 0.0
        %5625 = vmatprep.subr.mxu0 0.0
        %5626 = vmatpush1.msra.mxu0 0.0
        %5627 = vmatprep.subr.mxu0 0.0
        %5628 = vmatpush1.msra.mxu0 0.0
        %5629 = vmatprep.subr.mxu0 0.0
        %5630 = vmatpush1.msra.mxu0 0.0
        %5631 = vmatprep.subr.mxu0 0.0
        %5632 = vmatpush1.msra.mxu0 0.0
        %5633 = vmatprep.subr.mxu0 0.0
        %5634 = vmatpush1.msra.mxu0 0.0
        %5635 = vmatprep.subr.mxu0 0.0
        %5636 = vmatpush1.msra.mxu0 0.0
        %5637 = vmatprep.subr.mxu0 0.0
        %5638 = vmatpush1.msra.mxu0 0.0
        %5639 = vmatprep.subr.mxu0 0.0
        %5640 = vmatpush1.msra.mxu0 0.0
        %5641 = vmatprep.subr.mxu0 0.0
        %5642 = vmatpush1.msra.mxu0 0.0
        %5643 = vmatprep.mubr.f32.mxu0 0.0
        %v5644 = vand.u32 %v5202, 4294901760
        %5645 = vmatmul.mubr.f32.gmra.mrb[0].mxu0 %v5644
        %v5646 = vpop.f32.mrb[0].mxu0
        %v5647 = vadd.f32 %v5575, %v5646
        %v5648 = vpop.f32.mrb[0].mxu0
        %5649 = vdwg.mxu0
        %v5650 = vadd.f32 %v4281, %v5647
        %5651 = vrot.lane.b32.xlu0 %v1539, 104
        %v5652 = vpop.permute.xlu0 %5651
        %5653 = vrot.lane.b32.xlu0 %v1539, 72
        %v5654 = vpop.permute.xlu0 %5653
        %v5655 = vsel %vm1555, %v5652, 0
        %v5657 = vsel %vm1555, %v5654, 0
        %5659 = vmatprep.subr.mxu0 0.0
        %v5660 = vand.u32 %v5657, 4294901760
        %5661 = vmatpush1.xpose.msra.mxu0 %v5660
        %5662 = vmatprep.subr.mxu0 0.0
        %5663 = vmatpush1.xpose.msra.mxu0 0.0
        %5664 = vmatprep.subr.mxu0 0.0
        %5665 = vmatpush1.xpose.msra.mxu0 0.0
        %5666 = vmatprep.subr.mxu0 0.0
        %5667 = vmatpush1.xpose.msra.mxu0 0.0
        %5668 = vmatprep.subr.mxu0 0.0
        %5669 = vmatpush1.xpose.msra.mxu0 0.0
        %5670 = vmatprep.subr.mxu0 0.0
        %5671 = vmatpush1.xpose.msra.mxu0 0.0
        %5672 = vmatprep.subr.mxu0 0.0
        %5673 = vmatpush1.xpose.msra.mxu0 0.0
        %5674 = vmatprep.subr.mxu0 0.0
        %5675 = vmatpush1.xpose.msra.mxu0 0.0
        %5676 = vmatprep.subr.mxu0 0.0
        %5677 = vmatpush1.xpose.msra.mxu0 0.0
        %5678 = vmatprep.subr.mxu0 0.0
        %5679 = vmatpush1.xpose.msra.mxu0 0.0
        %5680 = vmatprep.subr.mxu0 0.0
        %5681 = vmatpush1.xpose.msra.mxu0 0.0
        %5682 = vmatprep.subr.mxu0 0.0
        %5683 = vmatpush1.xpose.msra.mxu0 0.0
        %5684 = vmatprep.subr.mxu0 0.0
        %5685 = vmatpush1.xpose.msra.mxu0 0.0
        %5686 = vmatprep.subr.mxu0 0.0
        %5687 = vmatpush1.xpose.msra.mxu0 0.0
        %5688 = vmatprep.subr.mxu0 0.0
        %5689 = vmatpush1.xpose.msra.mxu0 0.0
        %5690 = vmatprep.subr.mxu0 0.0
        %5691 = vmatpush1.xpose.msra.mxu0 0.0
        %5692 = vmatprep.subr.mxu0 0.0
        %5693 = vmatpush1.xpose.msra.mxu0 0.0
        %5694 = vmatprep.subr.mxu0 0.0
        %5695 = vmatpush1.xpose.msra.mxu0 0.0
        %5696 = vmatprep.subr.mxu0 0.0
        %5697 = vmatpush1.xpose.msra.mxu0 0.0
        %5698 = vmatprep.subr.mxu0 0.0
        %5699 = vmatpush1.xpose.msra.mxu0 0.0
        %5700 = vmatprep.subr.mxu0 0.0
        %5701 = vmatpush1.xpose.msra.mxu0 0.0
        %5702 = vmatprep.subr.mxu0 0.0
        %5703 = vmatpush1.xpose.msra.mxu0 0.0
        %5704 = vmatprep.subr.mxu0 0.0
        %5705 = vmatpush1.xpose.msra.mxu0 0.0
        %5706 = vmatprep.subr.mxu0 0.0
        %5707 = vmatpush1.xpose.msra.mxu0 0.0
        %5708 = vmatprep.subr.mxu0 0.0
        %5709 = vmatpush1.xpose.msra.mxu0 0.0
        %5710 = vmatprep.subr.mxu0 0.0
        %5711 = vmatpush1.xpose.msra.mxu0 0.0
        %5712 = vmatprep.subr.mxu0 0.0
        %5713 = vmatpush1.xpose.msra.mxu0 0.0
        %5714 = vmatprep.subr.mxu0 0.0
        %5715 = vmatpush1.xpose.msra.mxu0 0.0
        %5716 = vmatprep.subr.mxu0 0.0
        %5717 = vmatpush1.xpose.msra.mxu0 0.0
        %5718 = vmatprep.subr.mxu0 0.0
        %5719 = vmatpush1.xpose.msra.mxu0 0.0
        %5720 = vmatprep.subr.mxu0 0.0
        %5721 = vmatpush1.xpose.msra.mxu0 0.0
        %5722 = vmatprep.subr.mxu0 0.0
        %5723 = vmatpush1.xpose.msra.mxu0 0.0
        %5724 = vmatprep.mubr.f32.mxu0 0.0
        %v5725 = vand.u32 %v5655, 4294901760
        %v5726 = vsub.f32 %v5655, %v5725
        %v5727 = vand.u32 %v5726, 4294901760
        %v5728 = vsub.f32 %v5726, %v5727
        %v5729 = vand.u32 %v5728, 4294901760
        %5730 = vmatmul.mubr.f32.gmra.mrb[0].mxu0 %v5729
        %v5731 = vpop.f32.mrb[0].mxu0
        %v5732 = vadd.f32 %v1550, %v5731
        %v5733 = vpop.f32.mrb[0].mxu0
        %5734 = vdwg.mxu0
        %5735 = vmatprep.subr.mxu0 0.0
        %v5736 = vand.u32 %v5657, 4294901760
        %v5737 = vsub.f32 %v5657, %v5736
        %v5738 = vand.u32 %v5737, 4294901760
        %v5739 = vsub.f32 %v5737, %v5738
        %v5740 = vand.u32 %v5739, 4294901760
        %5741 = vmatpush1.xpose.msra.mxu0 %v5740
        %5742 = vmatprep.subr.mxu0 0.0
        %5743 = vmatpush1.xpose.msra.mxu0 0.0
        %5744 = vmatprep.subr.mxu0 0.0
        %5745 = vmatpush1.xpose.msra.mxu0 0.0
        %5746 = vmatprep.subr.mxu0 0.0
        %5747 = vmatpush1.xpose.msra.mxu0 0.0
        %5748 = vmatprep.subr.mxu0 0.0
        %5749 = vmatpush1.xpose.msra.mxu0 0.0
        %5750 = vmatprep.subr.mxu0 0.0
        %5751 = vmatpush1.xpose.msra.mxu0 0.0
        %5752 = vmatprep.subr.mxu0 0.0
        %5753 = vmatpush1.xpose.msra.mxu0 0.0
        %5754 = vmatprep.subr.mxu0 0.0
        %5755 = vmatpush1.xpose.msra.mxu0 0.0
        %5756 = vmatprep.subr.mxu0 0.0
        %5757 = vmatpush1.xpose.msra.mxu0 0.0
        %5758 = vmatprep.subr.mxu0 0.0
        %5759 = vmatpush1.xpose.msra.mxu0 0.0
        %5760 = vmatprep.subr.mxu0 0.0
        %5761 = vmatpush1.xpose.msra.mxu0 0.0
        %5762 = vmatprep.subr.mxu0 0.0
        %5763 = vmatpush1.xpose.msra.mxu0 0.0
        %5764 = vmatprep.subr.mxu0 0.0
        %5765 = vmatpush1.xpose.msra.mxu0 0.0
        %5766 = vmatprep.subr.mxu0 0.0
        %5767 = vmatpush1.xpose.msra.mxu0 0.0
        %5768 = vmatprep.subr.mxu0 0.0
        %5769 = vmatpush1.xpose.msra.mxu0 0.0
        %5770 = vmatprep.subr.mxu0 0.0
        %5771 = vmatpush1.xpose.msra.mxu0 0.0
        %5772 = vmatprep.subr.mxu0 0.0
        %5773 = vmatpush1.xpose.msra.mxu0 0.0
        %5774 = vmatprep.subr.mxu0 0.0
        %5775 = vmatpush1.xpose.msra.mxu0 0.0
        %5776 = vmatprep.subr.mxu0 0.0
        %5777 = vmatpush1.xpose.msra.mxu0 0.0
        %5778 = vmatprep.subr.mxu0 0.0
        %5779 = vmatpush1.xpose.msra.mxu0 0.0
        %5780 = vmatprep.subr.mxu0 0.0
        %5781 = vmatpush1.xpose.msra.mxu0 0.0
        %5782 = vmatprep.subr.mxu0 0.0
        %5783 = vmatpush1.xpose.msra.mxu0 0.0
        %5784 = vmatprep.subr.mxu0 0.0
        %5785 = vmatpush1.xpose.msra.mxu0 0.0
        %5786 = vmatprep.subr.mxu0 0.0
        %5787 = vmatpush1.xpose.msra.mxu0 0.0
        %5788 = vmatprep.subr.mxu0 0.0
        %5789 = vmatpush1.xpose.msra.mxu0 0.0
        %5790 = vmatprep.subr.mxu0 0.0
        %5791 = vmatpush1.xpose.msra.mxu0 0.0
        %5792 = vmatprep.subr.mxu0 0.0
        %5793 = vmatpush1.xpose.msra.mxu0 0.0
        %5794 = vmatprep.subr.mxu0 0.0
        %5795 = vmatpush1.xpose.msra.mxu0 0.0
        %5796 = vmatprep.subr.mxu0 0.0
        %5797 = vmatpush1.xpose.msra.mxu0 0.0
        %5798 = vmatprep.subr.mxu0 0.0
        %5799 = vmatpush1.xpose.msra.mxu0 0.0
        %5800 = vmatprep.subr.mxu0 0.0
        %5801 = vmatpush1.xpose.msra.mxu0 0.0
        %5802 = vmatprep.subr.mxu0 0.0
        %5803 = vmatpush1.xpose.msra.mxu0 0.0
        %5804 = vmatprep.mubr.f32.mxu0 0.0
        %v5805 = vand.u32 %v5655, 4294901760
        %5806 = vmatmul.mubr.f32.gmra.mrb[0].mxu0 %v5805
        %v5807 = vpop.f32.mrb[0].mxu0
        %v5808 = vadd.f32 %v5732, %v5807
        %v5809 = vpop.f32.mrb[0].mxu0
        %5810 = vdwg.mxu0
        %5811 = vmatprep.subr.mxu0 0.0
        %v5812 = vand.u32 %v5657, 4294901760
        %v5813 = vsub.f32 %v5657, %v5812
        %5814 = vmatpush1.xpose.msra.mxu0 %v5813
        %5815 = vmatprep.subr.mxu0 0.0
        %5816 = vmatpush1.xpose.msra.mxu0 0.0
        %5817 = vmatprep.subr.mxu0 0.0
        %5818 = vmatpush1.xpose.msra.mxu0 0.0
        %5819 = vmatprep.subr.mxu0 0.0
        %5820 = vmatpush1.xpose.msra.mxu0 0.0
        %5821 = vmatprep.subr.mxu0 0.0
        %5822 = vmatpush1.xpose.msra.mxu0 0.0
        %5823 = vmatprep.subr.mxu0 0.0
        %5824 = vmatpush1.xpose.msra.mxu0 0.0
        %5825 = vmatprep.subr.mxu0 0.0
        %5826 = vmatpush1.xpose.msra.mxu0 0.0
        %5827 = vmatprep.subr.mxu0 0.0
        %5828 = vmatpush1.xpose.msra.mxu0 0.0
        %5829 = vmatprep.subr.mxu0 0.0
        %5830 = vmatpush1.xpose.msra.mxu0 0.0
        %5831 = vmatprep.subr.mxu0 0.0
        %5832 = vmatpush1.xpose.msra.mxu0 0.0
        %5833 = vmatprep.subr.mxu0 0.0
        %5834 = vmatpush1.xpose.msra.mxu0 0.0
        %5835 = vmatprep.subr.mxu0 0.0
        %5836 = vmatpush1.xpose.msra.mxu0 0.0
        %5837 = vmatprep.subr.mxu0 0.0
        %5838 = vmatpush1.xpose.msra.mxu0 0.0
        %5839 = vmatprep.subr.mxu0 0.0
        %5840 = vmatpush1.xpose.msra.mxu0 0.0
        %5841 = vmatprep.subr.mxu0 0.0
        %5842 = vmatpush1.xpose.msra.mxu0 0.0
        %5843 = vmatprep.subr.mxu0 0.0
        %5844 = vmatpush1.xpose.msra.mxu0 0.0
        %5845 = vmatprep.subr.mxu0 0.0
        %5846 = vmatpush1.xpose.msra.mxu0 0.0
        %5847 = vmatprep.subr.mxu0 0.0
        %5848 = vmatpush1.xpose.msra.mxu0 0.0
        %5849 = vmatprep.subr.mxu0 0.0
        %5850 = vmatpush1.xpose.msra.mxu0 0.0
        %5851 = vmatprep.subr.mxu0 0.0
        %5852 = vmatpush1.xpose.msra.mxu0 0.0
        %5853 = vmatprep.subr.mxu0 0.0
        %5854 = vmatpush1.xpose.msra.mxu0 0.0
        %5855 = vmatprep.subr.mxu0 0.0
        %5856 = vmatpush1.xpose.msra.mxu0 0.0
        %5857 = vmatprep.subr.mxu0 0.0
        %5858 = vmatpush1.xpose.msra.mxu0 0.0
        %5859 = vmatprep.subr.mxu0 0.0
        %5860 = vmatpush1.xpose.msra.mxu0 0.0
        %5861 = vmatprep.subr.mxu0 0.0
        %5862 = vmatpush1.xpose.msra.mxu0 0.0
        %5863 = vmatprep.subr.mxu0 0.0
        %5864 = vmatpush1.xpose.msra.mxu0 0.0
        %5865 = vmatprep.subr.mxu0 0.0
        %5866 = vmatpush1.xpose.msra.mxu0 0.0
        %5867 = vmatprep.subr.mxu0 0.0
        %5868 = vmatpush1.xpose.msra.mxu0 0.0
        %5869 = vmatprep.subr.mxu0 0.0
        %5870 = vmatpush1.xpose.msra.mxu0 0.0
        %5871 = vmatprep.subr.mxu0 0.0
        %5872 = vmatpush1.xpose.msra.mxu0 0.0
        %5873 = vmatprep.subr.mxu0 0.0
        %5874 = vmatpush1.xpose.msra.mxu0 0.0
        %5875 = vmatprep.subr.mxu0 0.0
        %5876 = vmatpush1.xpose.msra.mxu0 0.0
        %5877 = vmatprep.mubr.f32.mxu0 0.0
        %v5878 = vand.u32 %v5655, 4294901760
        %v5879 = vsub.f32 %v5655, %v5878
        %5880 = vmatmul.mubr.f32.gmra.mrb[0].mxu0 %v5879
        %v5881 = vpop.f32.mrb[0].mxu0
        %v5882 = vadd.f32 %v5808, %v5881
        %v5883 = vpop.f32.mrb[0].mxu0
        %5884 = vdwg.mxu0
        %5885 = vmatprep.subr.mxu0 0.0
        %v5886 = vand.u32 %v5657, 4294901760
        %5887 = vmatpush1.xpose.msra.mxu0 %v5886
        %5888 = vmatprep.subr.mxu0 0.0
        %5889 = vmatpush1.xpose.msra.mxu0 0.0
        %5890 = vmatprep.subr.mxu0 0.0
        %5891 = vmatpush1.xpose.msra.mxu0 0.0
        %5892 = vmatprep.subr.mxu0 0.0
        %5893 = vmatpush1.xpose.msra.mxu0 0.0
        %5894 = vmatprep.subr.mxu0 0.0
        %5895 = vmatpush1.xpose.msra.mxu0 0.0
        %5896 = vmatprep.subr.mxu0 0.0
        %5897 = vmatpush1.xpose.msra.mxu0 0.0
        %5898 = vmatprep.subr.mxu0 0.0
        %5899 = vmatpush1.xpose.msra.mxu0 0.0
        %5900 = vmatprep.subr.mxu0 0.0
        %5901 = vmatpush1.xpose.msra.mxu0 0.0
        %5902 = vmatprep.subr.mxu0 0.0
        %5903 = vmatpush1.xpose.msra.mxu0 0.0
        %5904 = vmatprep.subr.mxu0 0.0
        %5905 = vmatpush1.xpose.msra.mxu0 0.0
        %5906 = vmatprep.subr.mxu0 0.0
        %5907 = vmatpush1.xpose.msra.mxu0 0.0
        %5908 = vmatprep.subr.mxu0 0.0
        %5909 = vmatpush1.xpose.msra.mxu0 0.0
        %5910 = vmatprep.subr.mxu0 0.0
        %5911 = vmatpush1.xpose.msra.mxu0 0.0
        %5912 = vmatprep.subr.mxu0 0.0
        %5913 = vmatpush1.xpose.msra.mxu0 0.0
        %5914 = vmatprep.subr.mxu0 0.0
        %5915 = vmatpush1.xpose.msra.mxu0 0.0
        %5916 = vmatprep.subr.mxu0 0.0
        %5917 = vmatpush1.xpose.msra.mxu0 0.0
        %5918 = vmatprep.subr.mxu0 0.0
        %5919 = vmatpush1.xpose.msra.mxu0 0.0
        %5920 = vmatprep.subr.mxu0 0.0
        %5921 = vmatpush1.xpose.msra.mxu0 0.0
        %5922 = vmatprep.subr.mxu0 0.0
        %5923 = vmatpush1.xpose.msra.mxu0 0.0
        %5924 = vmatprep.subr.mxu0 0.0
        %5925 = vmatpush1.xpose.msra.mxu0 0.0
        %5926 = vmatprep.subr.mxu0 0.0
        %5927 = vmatpush1.xpose.msra.mxu0 0.0
        %5928 = vmatprep.subr.mxu0 0.0
        %5929 = vmatpush1.xpose.msra.mxu0 0.0
        %5930 = vmatprep.subr.mxu0 0.0
        %5931 = vmatpush1.xpose.msra.mxu0 0.0
        %5932 = vmatprep.subr.mxu0 0.0
        %5933 = vmatpush1.xpose.msra.mxu0 0.0
        %5934 = vmatprep.subr.mxu0 0.0
        %5935 = vmatpush1.xpose.msra.mxu0 0.0
        %5936 = vmatprep.subr.mxu0 0.0
        %5937 = vmatpush1.xpose.msra.mxu0 0.0
        %5938 = vmatprep.subr.mxu0 0.0
        %5939 = vmatpush1.xpose.msra.mxu0 0.0
        %5940 = vmatprep.subr.mxu0 0.0
        %5941 = vmatpush1.xpose.msra.mxu0 0.0
        %5942 = vmatprep.subr.mxu0 0.0
        %5943 = vmatpush1.xpose.msra.mxu0 0.0
        %5944 = vmatprep.subr.mxu0 0.0
        %5945 = vmatpush1.xpose.msra.mxu0 0.0
        %5946 = vmatprep.subr.mxu0 0.0
        %5947 = vmatpush1.xpose.msra.mxu0 0.0
        %5948 = vmatprep.subr.mxu0 0.0
        %5949 = vmatpush1.xpose.msra.mxu0 0.0
        %5950 = vmatprep.mubr.f32.mxu0 0.0
        %v5951 = vand.u32 %v5655, 4294901760
        %v5952 = vsub.f32 %v5655, %v5951
        %v5953 = vand.u32 %v5952, 4294901760
        %5954 = vmatmul.mubr.f32.gmra.mrb[0].mxu0 %v5953
        %v5955 = vpop.f32.mrb[0].mxu0
        %v5956 = vadd.f32 %v5882, %v5955
        %v5957 = vpop.f32.mrb[0].mxu0
        %5958 = vdwg.mxu0
        %5959 = vmatprep.subr.mxu0 0.0
        %v5960 = vand.u32 %v5657, 4294901760
        %v5961 = vsub.f32 %v5657, %v5960
        %v5962 = vand.u32 %v5961, 4294901760
        %5963 = vmatpush1.xpose.msra.mxu0 %v5962
        %5964 = vmatprep.subr.mxu0 0.0
        %5965 = vmatpush1.xpose.msra.mxu0 0.0
        %5966 = vmatprep.subr.mxu0 0.0
        %5967 = vmatpush1.xpose.msra.mxu0 0.0
        %5968 = vmatprep.subr.mxu0 0.0
        %5969 = vmatpush1.xpose.msra.mxu0 0.0
        %5970 = vmatprep.subr.mxu0 0.0
        %5971 = vmatpush1.xpose.msra.mxu0 0.0
        %5972 = vmatprep.subr.mxu0 0.0
        %5973 = vmatpush1.xpose.msra.mxu0 0.0
        %5974 = vmatprep.subr.mxu0 0.0
        %5975 = vmatpush1.xpose.msra.mxu0 0.0
        %5976 = vmatprep.subr.mxu0 0.0
        %5977 = vmatpush1.xpose.msra.mxu0 0.0
        %5978 = vmatprep.subr.mxu0 0.0
        %5979 = vmatpush1.xpose.msra.mxu0 0.0
        %5980 = vmatprep.subr.mxu0 0.0
        %5981 = vmatpush1.xpose.msra.mxu0 0.0
        %5982 = vmatprep.subr.mxu0 0.0
        %5983 = vmatpush1.xpose.msra.mxu0 0.0
        %5984 = vmatprep.subr.mxu0 0.0
        %5985 = vmatpush1.xpose.msra.mxu0 0.0
        %5986 = vmatprep.subr.mxu0 0.0
        %5987 = vmatpush1.xpose.msra.mxu0 0.0
        %5988 = vmatprep.subr.mxu0 0.0
        %5989 = vmatpush1.xpose.msra.mxu0 0.0
        %5990 = vmatprep.subr.mxu0 0.0
        %5991 = vmatpush1.xpose.msra.mxu0 0.0
        %5992 = vmatprep.subr.mxu0 0.0
        %5993 = vmatpush1.xpose.msra.mxu0 0.0
        %5994 = vmatprep.subr.mxu0 0.0
        %5995 = vmatpush1.xpose.msra.mxu0 0.0
        %5996 = vmatprep.subr.mxu0 0.0
        %5997 = vmatpush1.xpose.msra.mxu0 0.0
        %5998 = vmatprep.subr.mxu0 0.0
        %5999 = vmatpush1.xpose.msra.mxu0 0.0
        %6000 = vmatprep.subr.mxu0 0.0
        %6001 = vmatpush1.xpose.msra.mxu0 0.0
        %6002 = vmatprep.subr.mxu0 0.0
        %6003 = vmatpush1.xpose.msra.mxu0 0.0
        %6004 = vmatprep.subr.mxu0 0.0
        %6005 = vmatpush1.xpose.msra.mxu0 0.0
        %6006 = vmatprep.subr.mxu0 0.0
        %6007 = vmatpush1.xpose.msra.mxu0 0.0
        %6008 = vmatprep.subr.mxu0 0.0
        %6009 = vmatpush1.xpose.msra.mxu0 0.0
        %6010 = vmatprep.subr.mxu0 0.0
        %6011 = vmatpush1.xpose.msra.mxu0 0.0
        %6012 = vmatprep.subr.mxu0 0.0
        %6013 = vmatpush1.xpose.msra.mxu0 0.0
        %6014 = vmatprep.subr.mxu0 0.0
        %6015 = vmatpush1.xpose.msra.mxu0 0.0
        %6016 = vmatprep.subr.mxu0 0.0
        %6017 = vmatpush1.xpose.msra.mxu0 0.0
        %6018 = vmatprep.subr.mxu0 0.0
        %6019 = vmatpush1.xpose.msra.mxu0 0.0
        %6020 = vmatprep.subr.mxu0 0.0
        %6021 = vmatpush1.xpose.msra.mxu0 0.0
        %6022 = vmatprep.subr.mxu0 0.0
        %6023 = vmatpush1.xpose.msra.mxu0 0.0
        %6024 = vmatprep.subr.mxu0 0.0
        %6025 = vmatpush1.xpose.msra.mxu0 0.0
        %6026 = vmatprep.mubr.f32.mxu0 0.0
        %v6027 = vand.u32 %v5655, 4294901760
        %6028 = vmatmul.mubr.f32.gmra.mrb[0].mxu0 %v6027
        %v6029 = vpop.f32.mrb[0].mxu0
        %v6030 = vadd.f32 %v5956, %v6029
        %v6031 = vpop.f32.mrb[0].mxu0
        %6032 = vdwg.mxu0
        %6033 = vmatprep.subr.mxu0 0.0
        %v6034 = vand.u32 %v5657, 4294901760
        %6035 = vmatpush1.xpose.msra.mxu0 %v6034
        %6036 = vmatprep.subr.mxu0 0.0
        %6037 = vmatpush1.xpose.msra.mxu0 0.0
        %6038 = vmatprep.subr.mxu0 0.0
        %6039 = vmatpush1.xpose.msra.mxu0 0.0
        %6040 = vmatprep.subr.mxu0 0.0
        %6041 = vmatpush1.xpose.msra.mxu0 0.0
        %6042 = vmatprep.subr.mxu0 0.0
        %6043 = vmatpush1.xpose.msra.mxu0 0.0
        %6044 = vmatprep.subr.mxu0 0.0
        %6045 = vmatpush1.xpose.msra.mxu0 0.0
        %6046 = vmatprep.subr.mxu0 0.0
        %6047 = vmatpush1.xpose.msra.mxu0 0.0
        %6048 = vmatprep.subr.mxu0 0.0
        %6049 = vmatpush1.xpose.msra.mxu0 0.0
        %6050 = vmatprep.subr.mxu0 0.0
        %6051 = vmatpush1.xpose.msra.mxu0 0.0
        %6052 = vmatprep.subr.mxu0 0.0
        %6053 = vmatpush1.xpose.msra.mxu0 0.0
        %6054 = vmatprep.subr.mxu0 0.0
        %6055 = vmatpush1.xpose.msra.mxu0 0.0
        %6056 = vmatprep.subr.mxu0 0.0
        %6057 = vmatpush1.xpose.msra.mxu0 0.0
        %6058 = vmatprep.subr.mxu0 0.0
        %6059 = vmatpush1.xpose.msra.mxu0 0.0
        %6060 = vmatprep.subr.mxu0 0.0
        %6061 = vmatpush1.xpose.msra.mxu0 0.0
        %6062 = vmatprep.subr.mxu0 0.0
        %6063 = vmatpush1.xpose.msra.mxu0 0.0
        %6064 = vmatprep.subr.mxu0 0.0
        %6065 = vmatpush1.xpose.msra.mxu0 0.0
        %6066 = vmatprep.subr.mxu0 0.0
        %6067 = vmatpush1.xpose.msra.mxu0 0.0
        %6068 = vmatprep.subr.mxu0 0.0
        %6069 = vmatpush1.xpose.msra.mxu0 0.0
        %6070 = vmatprep.subr.mxu0 0.0
        %6071 = vmatpush1.xpose.msra.mxu0 0.0
        %6072 = vmatprep.subr.mxu0 0.0
        %6073 = vmatpush1.xpose.msra.mxu0 0.0
        %6074 = vmatprep.subr.mxu0 0.0
        %6075 = vmatpush1.xpose.msra.mxu0 0.0
        %6076 = vmatprep.subr.mxu0 0.0
        %6077 = vmatpush1.xpose.msra.mxu0 0.0
        %6078 = vmatprep.subr.mxu0 0.0
        %6079 = vmatpush1.xpose.msra.mxu0 0.0
        %6080 = vmatprep.subr.mxu0 0.0
        %6081 = vmatpush1.xpose.msra.mxu0 0.0
        %6082 = vmatprep.subr.mxu0 0.0
        %6083 = vmatpush1.xpose.msra.mxu0 0.0
        %6084 = vmatprep.subr.mxu0 0.0
        %6085 = vmatpush1.xpose.msra.mxu0 0.0
        %6086 = vmatprep.subr.mxu0 0.0
        %6087 = vmatpush1.xpose.msra.mxu0 0.0
        %6088 = vmatprep.subr.mxu0 0.0
        %6089 = vmatpush1.xpose.msra.mxu0 0.0
        %6090 = vmatprep.subr.mxu0 0.0
        %6091 = vmatpush1.xpose.msra.mxu0 0.0
        %6092 = vmatprep.subr.mxu0 0.0
        %6093 = vmatpush1.xpose.msra.mxu0 0.0
        %6094 = vmatprep.subr.mxu0 0.0
        %6095 = vmatpush1.xpose.msra.mxu0 0.0
        %6096 = vmatprep.subr.mxu0 0.0
        %6097 = vmatpush1.xpose.msra.mxu0 0.0
        %6098 = vmatprep.mubr.f32.mxu0 0.0
        %v6099 = vand.u32 %v5655, 4294901760
        %6100 = vmatmul.mubr.f32.gmra.mrb[0].mxu0 %v6099
        %v6101 = vpop.f32.mrb[0].mxu0
        %v6102 = vadd.f32 %v6030, %v6101
        %v6103 = vpop.f32.mrb[0].mxu0
        %6104 = vdwg.mxu0
        %v6105 = vsel %vm1555, %v6102, -inf
        %6106 = vmax.xlane.f32.xlu0 %v6105
        %v6107 = vpop.xlane.xlu0 %6106
        %v6108 = vsub.f32 %v6102, %v6107
        %v6109 = vmul.f32 %v6108, 1.442695
        %v6110 = vpow.pop %v6109
        %v6111 = vsel %vm1555, %v6110, 0.0
        %6112 = vadd.xlane.f32.xlu0 %v6111
        %v6113 = vpop.xlane.xlu0 %6112
        %v6114 = vrcp.pop %v6113
        %v6115 = vmul.f32 %v6110, %v6114
        %6116 = vrot.lane.b32.xlu0 %v1539, 40
        %v6117 = vpop.permute.xlu0 %6116
        %v6120 = vsel %vm1555, %v6115, 0
        %6122 = vmatprep.subr.mxu0 0.0
        %v6123 = vand.u32 %v6117, 4294901760
        %6124 = vmatpush1.msra.mxu0 %v6123
        %6125 = vmatprep.subr.mxu0 0.0
        %6126 = vmatpush1.msra.mxu0 0.0
        %6127 = vmatprep.subr.mxu0 0.0
        %6128 = vmatpush1.msra.mxu0 0.0
        %6129 = vmatprep.subr.mxu0 0.0
        %6130 = vmatpush1.msra.mxu0 0.0
        %6131 = vmatprep.subr.mxu0 0.0
        %6132 = vmatpush1.msra.mxu0 0.0
        %6133 = vmatprep.subr.mxu0 0.0
        %6134 = vmatpush1.msra.mxu0 0.0
        %6135 = vmatprep.subr.mxu0 0.0
        %6136 = vmatpush1.msra.mxu0 0.0
        %6137 = vmatprep.subr.mxu0 0.0
        %6138 = vmatpush1.msra.mxu0 0.0
        %6139 = vmatprep.subr.mxu0 0.0
        %6140 = vmatpush1.msra.mxu0 0.0
        %6141 = vmatprep.subr.mxu0 0.0
        %6142 = vmatpush1.msra.mxu0 0.0
        %6143 = vmatprep.subr.mxu0 0.0
        %6144 = vmatpush1.msra.mxu0 0.0
        %6145 = vmatprep.subr.mxu0 0.0
        %6146 = vmatpush1.msra.mxu0 0.0
        %6147 = vmatprep.subr.mxu0 0.0
        %6148 = vmatpush1.msra.mxu0 0.0
        %6149 = vmatprep.subr.mxu0 0.0
        %6150 = vmatpush1.msra.mxu0 0.0
        %6151 = vmatprep.subr.mxu0 0.0
        %6152 = vmatpush1.msra.mxu0 0.0
        %6153 = vmatprep.subr.mxu0 0.0
        %6154 = vmatpush1.msra.mxu0 0.0
        %6155 = vmatprep.subr.mxu0 0.0
        %6156 = vmatpush1.msra.mxu0 0.0
        %6157 = vmatprep.subr.mxu0 0.0
        %6158 = vmatpush1.msra.mxu0 0.0
        %6159 = vmatprep.subr.mxu0 0.0
        %6160 = vmatpush1.msra.mxu0 0.0
        %6161 = vmatprep.subr.mxu0 0.0
        %6162 = vmatpush1.msra.mxu0 0.0
        %6163 = vmatprep.subr.mxu0 0.0
        %6164 = vmatpush1.msra.mxu0 0.0
        %6165 = vmatprep.subr.mxu0 0.0
        %6166 = vmatpush1.msra.mxu0 0.0
        %6167 = vmatprep.subr.mxu0 0.0
        %6168 = vmatpush1.msra.mxu0 0.0
        %6169 = vmatprep.subr.mxu0 0.0
        %6170 = vmatpush1.msra.mxu0 0.0
        %6171 = vmatprep.subr.mxu0 0.0
        %6172 = vmatpush1.msra.mxu0 0.0
        %6173 = vmatprep.subr.mxu0 0.0
        %6174 = vmatpush1.msra.mxu0 0.0
        %6175 = vmatprep.subr.mxu0 0.0
        %6176 = vmatpush1.msra.mxu0 0.0
        %6177 = vmatprep.subr.mxu0 0.0
        %6178 = vmatpush1.msra.mxu0 0.0
        %6179 = vmatprep.subr.mxu0 0.0
        %6180 = vmatpush1.msra.mxu0 0.0
        %6181 = vmatprep.subr.mxu0 0.0
        %6182 = vmatpush1.msra.mxu0 0.0
        %6183 = vmatprep.subr.mxu0 0.0
        %6184 = vmatpush1.msra.mxu0 0.0
        %6185 = vmatprep.subr.mxu0 0.0
        %6186 = vmatpush1.msra.mxu0 0.0
        %6187 = vmatprep.mubr.f32.mxu0 0.0
        %v6188 = vand.u32 %v6120, 4294901760
        %v6189 = vsub.f32 %v6120, %v6188
        %v6190 = vand.u32 %v6189, 4294901760
        %v6191 = vsub.f32 %v6189, %v6190
        %v6192 = vand.u32 %v6191, 4294901760
        %6193 = vmatmul.mubr.f32.gmra.mrb[0].mxu0 %v6192
        %v6194 = vpop.f32.mrb[0].mxu0
        %v6195 = vadd.f32 0.0, %v6194
        %v6196 = vpop.f32.mrb[0].mxu0
        %6197 = vdwg.mxu0
        %6198 = vmatprep.subr.mxu0 0.0
        %v6199 = vand.u32 %v6117, 4294901760
        %v6200 = vsub.f32 %v6117, %v6199
        %v6201 = vand.u32 %v6200, 4294901760
        %v6202 = vsub.f32 %v6200, %v6201
        %v6203 = vand.u32 %v6202, 4294901760
        %6204 = vmatpush1.msra.mxu0 %v6203
        %6205 = vmatprep.subr.mxu0 0.0
        %6206 = vmatpush1.msra.mxu0 0.0
        %6207 = vmatprep.subr.mxu0 0.0
        %6208 = vmatpush1.msra.mxu0 0.0
        %6209 = vmatprep.subr.mxu0 0.0
        %6210 = vmatpush1.msra.mxu0 0.0
        %6211 = vmatprep.subr.mxu0 0.0
        %6212 = vmatpush1.msra.mxu0 0.0
        %6213 = vmatprep.subr.mxu0 0.0
        %6214 = vmatpush1.msra.mxu0 0.0
        %6215 = vmatprep.subr.mxu0 0.0
        %6216 = vmatpush1.msra.mxu0 0.0
        %6217 = vmatprep.subr.mxu0 0.0
        %6218 = vmatpush1.msra.mxu0 0.0
        %6219 = vmatprep.subr.mxu0 0.0
        %6220 = vmatpush1.msra.mxu0 0.0
        %6221 = vmatprep.subr.mxu0 0.0
        %6222 = vmatpush1.msra.mxu0 0.0
        %6223 = vmatprep.subr.mxu0 0.0
        %6224 = vmatpush1.msra.mxu0 0.0
        %6225 = vmatprep.subr.mxu0 0.0
        %6226 = vmatpush1.msra.mxu0 0.0
        %6227 = vmatprep.subr.mxu0 0.0
        %6228 = vmatpush1.msra.mxu0 0.0
        %6229 = vmatprep.subr.mxu0 0.0
        %6230 = vmatpush1.msra.mxu0 0.0
        %6231 = vmatprep.subr.mxu0 0.0
        %6232 = vmatpush1.msra.mxu0 0.0
        %6233 = vmatprep.subr.mxu0 0.0
        %6234 = vmatpush1.msra.mxu0 0.0
        %6235 = vmatprep.subr.mxu0 0.0
        %6236 = vmatpush1.msra.mxu0 0.0
        %6237 = vmatprep.subr.mxu0 0.0
        %6238 = vmatpush1.msra.mxu0 0.0
        %6239 = vmatprep.subr.mxu0 0.0
        %6240 = vmatpush1.msra.mxu0 0.0
        %6241 = vmatprep.subr.mxu0 0.0
        %6242 = vmatpush1.msra.mxu0 0.0
        %6243 = vmatprep.subr.mxu0 0.0
        %6244 = vmatpush1.msra.mxu0 0.0
        %6245 = vmatprep.subr.mxu0 0.0
        %6246 = vmatpush1.msra.mxu0 0.0
        %6247 = vmatprep.subr.mxu0 0.0
        %6248 = vmatpush1.msra.mxu0 0.0
        %6249 = vmatprep.subr.mxu0 0.0
        %6250 = vmatpush1.msra.mxu0 0.0
        %6251 = vmatprep.subr.mxu0 0.0
        %6252 = vmatpush1.msra.mxu0 0.0
        %6253 = vmatprep.subr.mxu0 0.0
        %6254 = vmatpush1.msra.mxu0 0.0
        %6255 = vmatprep.subr.mxu0 0.0
        %6256 = vmatpush1.msra.mxu0 0.0
        %6257 = vmatprep.subr.mxu0 0.0
        %6258 = vmatpush1.msra.mxu0 0.0
        %6259 = vmatprep.subr.mxu0 0.0
        %6260 = vmatpush1.msra.mxu0 0.0
        %6261 = vmatprep.subr.mxu0 0.0
        %6262 = vmatpush1.msra.mxu0 0.0
        %6263 = vmatprep.subr.mxu0 0.0
        %6264 = vmatpush1.msra.mxu0 0.0
        %6265 = vmatprep.subr.mxu0 0.0
        %6266 = vmatpush1.msra.mxu0 0.0
        %6267 = vmatprep.mubr.f32.mxu0 0.0
        %v6268 = vand.u32 %v6120, 4294901760
        %6269 = vmatmul.mubr.f32.gmra.mrb[0].mxu0 %v6268
        %v6270 = vpop.f32.mrb[0].mxu0
        %v6271 = vadd.f32 %v6195, %v6270
        %v6272 = vpop.f32.mrb[0].mxu0
        %6273 = vdwg.mxu0
        %6274 = vmatprep.subr.mxu0 0.0
        %v6275 = vand.u32 %v6117, 4294901760
        %v6276 = vsub.f32 %v6117, %v6275
        %6277 = vmatpush1.msra.mxu0 %v6276
        %6278 = vmatprep.subr.mxu0 0.0
        %6279 = vmatpush1.msra.mxu0 0.0
        %6280 = vmatprep.subr.mxu0 0.0
        %6281 = vmatpush1.msra.mxu0 0.0
        %6282 = vmatprep.subr.mxu0 0.0
        %6283 = vmatpush1.msra.mxu0 0.0
        %6284 = vmatprep.subr.mxu0 0.0
        %6285 = vmatpush1.msra.mxu0 0.0
        %6286 = vmatprep.subr.mxu0 0.0
        %6287 = vmatpush1.msra.mxu0 0.0
        %6288 = vmatprep.subr.mxu0 0.0
        %6289 = vmatpush1.msra.mxu0 0.0
        %6290 = vmatprep.subr.mxu0 0.0
        %6291 = vmatpush1.msra.mxu0 0.0
        %6292 = vmatprep.subr.mxu0 0.0
        %6293 = vmatpush1.msra.mxu0 0.0
        %6294 = vmatprep.subr.mxu0 0.0
        %6295 = vmatpush1.msra.mxu0 0.0
        %6296 = vmatprep.subr.mxu0 0.0
        %6297 = vmatpush1.msra.mxu0 0.0
        %6298 = vmatprep.subr.mxu0 0.0
        %6299 = vmatpush1.msra.mxu0 0.0
        %6300 = vmatprep.subr.mxu0 0.0
        %6301 = vmatpush1.msra.mxu0 0.0
        %6302 = vmatprep.subr.mxu0 0.0
        %6303 = vmatpush1.msra.mxu0 0.0
        %6304 = vmatprep.subr.mxu0 0.0
        %6305 = vmatpush1.msra.mxu0 0.0
        %6306 = vmatprep.subr.mxu0 0.0
        %6307 = vmatpush1.msra.mxu0 0.0
        %6308 = vmatprep.subr.mxu0 0.0
        %6309 = vmatpush1.msra.mxu0 0.0
        %6310 = vmatprep.subr.mxu0 0.0
        %6311 = vmatpush1.msra.mxu0 0.0
        %6312 = vmatprep.subr.mxu0 0.0
        %6313 = vmatpush1.msra.mxu0 0.0
        %6314 = vmatprep.subr.mxu0 0.0
        %6315 = vmatpush1.msra.mxu0 0.0
        %6316 = vmatprep.subr.mxu0 0.0
        %6317 = vmatpush1.msra.mxu0 0.0
        %6318 = vmatprep.subr.mxu0 0.0
        %6319 = vmatpush1.msra.mxu0 0.0
        %6320 = vmatprep.subr.mxu0 0.0
        %6321 = vmatpush1.msra.mxu0 0.0
        %6322 = vmatprep.subr.mxu0 0.0
        %6323 = vmatpush1.msra.mxu0 0.0
        %6324 = vmatprep.subr.mxu0 0.0
        %6325 = vmatpush1.msra.mxu0 0.0
        %6326 = vmatprep.subr.mxu0 0.0
        %6327 = vmatpush1.msra.mxu0 0.0
        %6328 = vmatprep.subr.mxu0 0.0
        %6329 = vmatpush1.msra.mxu0 0.0
        %6330 = vmatprep.subr.mxu0 0.0
        %6331 = vmatpush1.msra.mxu0 0.0
        %6332 = vmatprep.subr.mxu0 0.0
        %6333 = vmatpush1.msra.mxu0 0.0
        %6334 = vmatprep.subr.mxu0 0.0
        %6335 = vmatpush1.msra.mxu0 0.0
        %6336 = vmatprep.subr.mxu0 0.0
        %6337 = vmatpush1.msra.mxu0 0.0
        %6338 = vmatprep.subr.mxu0 0.0
        %6339 = vmatpush1.msra.mxu0 0.0
        %6340 = vmatprep.mubr.f32.mxu0 0.0
        %v6341 = vand.u32 %v6120, 4294901760
        %v6342 = vsub.f32 %v6120, %v6341
        %6343 = vmatmul.mubr.f32.gmra.mrb[0].mxu0 %v6342
        %v6344 = vpop.f32.mrb[0].mxu0
        %v6345 = vadd.f32 %v6271, %v6344
        %v6346 = vpop.f32.mrb[0].mxu0
        %6347 = vdwg.mxu0
        %6348 = vmatprep.subr.mxu0 0.0
        %v6349 = vand.u32 %v6117, 4294901760
        %6350 = vmatpush1.msra.mxu0 %v6349
        %6351 = vmatprep.subr.mxu0 0.0
        %6352 = vmatpush1.msra.mxu0 0.0
        %6353 = vmatprep.subr.mxu0 0.0
        %6354 = vmatpush1.msra.mxu0 0.0
        %6355 = vmatprep.subr.mxu0 0.0
        %6356 = vmatpush1.msra.mxu0 0.0
        %6357 = vmatprep.subr.mxu0 0.0
        %6358 = vmatpush1.msra.mxu0 0.0
        %6359 = vmatprep.subr.mxu0 0.0
        %6360 = vmatpush1.msra.mxu0 0.0
        %6361 = vmatprep.subr.mxu0 0.0
        %6362 = vmatpush1.msra.mxu0 0.0
        %6363 = vmatprep.subr.mxu0 0.0
        %6364 = vmatpush1.msra.mxu0 0.0
        %6365 = vmatprep.subr.mxu0 0.0
        %6366 = vmatpush1.msra.mxu0 0.0
        %6367 = vmatprep.subr.mxu0 0.0
        %6368 = vmatpush1.msra.mxu0 0.0
        %6369 = vmatprep.subr.mxu0 0.0
        %6370 = vmatpush1.msra.mxu0 0.0
        %6371 = vmatprep.subr.mxu0 0.0
        %6372 = vmatpush1.msra.mxu0 0.0
        %6373 = vmatprep.subr.mxu0 0.0
        %6374 = vmatpush1.msra.mxu0 0.0
        %6375 = vmatprep.subr.mxu0 0.0
        %6376 = vmatpush1.msra.mxu0 0.0
        %6377 = vmatprep.subr.mxu0 0.0
        %6378 = vmatpush1.msra.mxu0 0.0
        %6379 = vmatprep.subr.mxu0 0.0
        %6380 = vmatpush1.msra.mxu0 0.0
        %6381 = vmatprep.subr.mxu0 0.0
        %6382 = vmatpush1.msra.mxu0 0.0
        %6383 = vmatprep.subr.mxu0 0.0
        %6384 = vmatpush1.msra.mxu0 0.0
        %6385 = vmatprep.subr.mxu0 0.0
        %6386 = vmatpush1.msra.mxu0 0.0
        %6387 = vmatprep.subr.mxu0 0.0
        %6388 = vmatpush1.msra.mxu0 0.0
        %6389 = vmatprep.subr.mxu0 0.0
        %6390 = vmatpush1.msra.mxu0 0.0
        %6391 = vmatprep.subr.mxu0 0.0
        %6392 = vmatpush1.msra.mxu0 0.0
        %6393 = vmatprep.subr.mxu0 0.0
        %6394 = vmatpush1.msra.mxu0 0.0
        %6395 = vmatprep.subr.mxu0 0.0
        %6396 = vmatpush1.msra.mxu0 0.0
        %6397 = vmatprep.subr.mxu0 0.0
        %6398 = vmatpush1.msra.mxu0 0.0
        %6399 = vmatprep.subr.mxu0 0.0
        %6400 = vmatpush1.msra.mxu0 0.0
        %6401 = vmatprep.subr.mxu0 0.0
        %6402 = vmatpush1.msra.mxu0 0.0
        %6403 = vmatprep.subr.mxu0 0.0
        %6404 = vmatpush1.msra.mxu0 0.0
        %6405 = vmatprep.subr.mxu0 0.0
        %6406 = vmatpush1.msra.mxu0 0.0
        %6407 = vmatprep.subr.mxu0 0.0
        %6408 = vmatpush1.msra.mxu0 0.0
        %6409 = vmatprep.subr.mxu0 0.0
        %6410 = vmatpush1.msra.mxu0 0.0
        %6411 = vmatprep.subr.mxu0 0.0
        %6412 = vmatpush1.msra.mxu0 0.0
        %6413 = vmatprep.mubr.f32.mxu0 0.0
        %v6414 = vand.u32 %v6120, 4294901760
        %v6415 = vsub.f32 %v6120, %v6414
        %v6416 = vand.u32 %v6415, 4294901760
        %6417 = vmatmul.mubr.f32.gmra.mrb[0].mxu0 %v6416
        %v6418 = vpop.f32.mrb[0].mxu0
        %v6419 = vadd.f32 %v6345, %v6418
        %v6420 = vpop.f32.mrb[0].mxu0
        %6421 = vdwg.mxu0
        %6422 = vmatprep.subr.mxu0 0.0
        %v6423 = vand.u32 %v6117, 4294901760
        %v6424 = vsub.f32 %v6117, %v6423
        %v6425 = vand.u32 %v6424, 4294901760
        %6426 = vmatpush1.msra.mxu0 %v6425
        %6427 = vmatprep.subr.mxu0 0.0
        %6428 = vmatpush1.msra.mxu0 0.0
        %6429 = vmatprep.subr.mxu0 0.0
        %6430 = vmatpush1.msra.mxu0 0.0
        %6431 = vmatprep.subr.mxu0 0.0
        %6432 = vmatpush1.msra.mxu0 0.0
        %6433 = vmatprep.subr.mxu0 0.0
        %6434 = vmatpush1.msra.mxu0 0.0
        %6435 = vmatprep.subr.mxu0 0.0
        %6436 = vmatpush1.msra.mxu0 0.0
        %6437 = vmatprep.subr.mxu0 0.0
        %6438 = vmatpush1.msra.mxu0 0.0
        %6439 = vmatprep.subr.mxu0 0.0
        %6440 = vmatpush1.msra.mxu0 0.0
        %6441 = vmatprep.subr.mxu0 0.0
        %6442 = vmatpush1.msra.mxu0 0.0
        %6443 = vmatprep.subr.mxu0 0.0
        %6444 = vmatpush1.msra.mxu0 0.0
        %6445 = vmatprep.subr.mxu0 0.0
        %6446 = vmatpush1.msra.mxu0 0.0
        %6447 = vmatprep.subr.mxu0 0.0
        %6448 = vmatpush1.msra.mxu0 0.0
        %6449 = vmatprep.subr.mxu0 0.0
        %6450 = vmatpush1.msra.mxu0 0.0
        %6451 = vmatprep.subr.mxu0 0.0
        %6452 = vmatpush1.msra.mxu0 0.0
        %6453 = vmatprep.subr.mxu0 0.0
        %6454 = vmatpush1.msra.mxu0 0.0
        %6455 = vmatprep.subr.mxu0 0.0
        %6456 = vmatpush1.msra.mxu0 0.0
        %6457 = vmatprep.subr.mxu0 0.0
        %6458 = vmatpush1.msra.mxu0 0.0
        %6459 = vmatprep.subr.mxu0 0.0
        %6460 = vmatpush1.msra.mxu0 0.0
        %6461 = vmatprep.subr.mxu0 0.0
        %6462 = vmatpush1.msra.mxu0 0.0
        %6463 = vmatprep.subr.mxu0 0.0
        %6464 = vmatpush1.msra.mxu0 0.0
        %6465 = vmatprep.subr.mxu0 0.0
        %6466 = vmatpush1.msra.mxu0 0.0
        %6467 = vmatprep.subr.mxu0 0.0
        %6468 = vmatpush1.msra.mxu0 0.0
        %6469 = vmatprep.subr.mxu0 0.0
        %6470 = vmatpush1.msra.mxu0 0.0
        %6471 = vmatprep.subr.mxu0 0.0
        %6472 = vmatpush1.msra.mxu0 0.0
        %6473 = vmatprep.subr.mxu0 0.0
        %6474 = vmatpush1.msra.mxu0 0.0
        %6475 = vmatprep.subr.mxu0 0.0
        %6476 = vmatpush1.msra.mxu0 0.0
        %6477 = vmatprep.subr.mxu0 0.0
        %6478 = vmatpush1.msra.mxu0 0.0
        %6479 = vmatprep.subr.mxu0 0.0
        %6480 = vmatpush1.msra.mxu0 0.0
        %6481 = vmatprep.subr.mxu0 0.0
        %6482 = vmatpush1.msra.mxu0 0.0
        %6483 = vmatprep.subr.mxu0 0.0
        %6484 = vmatpush1.msra.mxu0 0.0
        %6485 = vmatprep.subr.mxu0 0.0
        %6486 = vmatpush1.msra.mxu0 0.0
        %6487 = vmatprep.subr.mxu0 0.0
        %6488 = vmatpush1.msra.mxu0 0.0
        %6489 = vmatprep.mubr.f32.mxu0 0.0
        %v6490 = vand.u32 %v6120, 4294901760
        %6491 = vmatmul.mubr.f32.gmra.mrb[0].mxu0 %v6490
        %v6492 = vpop.f32.mrb[0].mxu0
        %v6493 = vadd.f32 %v6419, %v6492
        %v6494 = vpop.f32.mrb[0].mxu0
        %6495 = vdwg.mxu0
        %6496 = vmatprep.subr.mxu0 0.0
        %v6497 = vand.u32 %v6117, 4294901760
        %6498 = vmatpush1.msra.mxu0 %v6497
        %6499 = vmatprep.subr.mxu0 0.0
        %6500 = vmatpush1.msra.mxu0 0.0
        %6501 = vmatprep.subr.mxu0 0.0
        %6502 = vmatpush1.msra.mxu0 0.0
        %6503 = vmatprep.subr.mxu0 0.0
        %6504 = vmatpush1.msra.mxu0 0.0
        %6505 = vmatprep.subr.mxu0 0.0
        %6506 = vmatpush1.msra.mxu0 0.0
        %6507 = vmatprep.subr.mxu0 0.0
        %6508 = vmatpush1.msra.mxu0 0.0
        %6509 = vmatprep.subr.mxu0 0.0
        %6510 = vmatpush1.msra.mxu0 0.0
        %6511 = vmatprep.subr.mxu0 0.0
        %6512 = vmatpush1.msra.mxu0 0.0
        %6513 = vmatprep.subr.mxu0 0.0
        %6514 = vmatpush1.msra.mxu0 0.0
        %6515 = vmatprep.subr.mxu0 0.0
        %6516 = vmatpush1.msra.mxu0 0.0
        %6517 = vmatprep.subr.mxu0 0.0
        %6518 = vmatpush1.msra.mxu0 0.0
        %6519 = vmatprep.subr.mxu0 0.0
        %6520 = vmatpush1.msra.mxu0 0.0
        %6521 = vmatprep.subr.mxu0 0.0
        %6522 = vmatpush1.msra.mxu0 0.0
        %6523 = vmatprep.subr.mxu0 0.0
        %6524 = vmatpush1.msra.mxu0 0.0
        %6525 = vmatprep.subr.mxu0 0.0
        %6526 = vmatpush1.msra.mxu0 0.0
        %6527 = vmatprep.subr.mxu0 0.0
        %6528 = vmatpush1.msra.mxu0 0.0
        %6529 = vmatprep.subr.mxu0 0.0
        %6530 = vmatpush1.msra.mxu0 0.0
        %6531 = vmatprep.subr.mxu0 0.0
        %6532 = vmatpush1.msra.mxu0 0.0
        %6533 = vmatprep.subr.mxu0 0.0
        %6534 = vmatpush1.msra.mxu0 0.0
        %6535 = vmatprep.subr.mxu0 0.0
        %6536 = vmatpush1.msra.mxu0 0.0
        %6537 = vmatprep.subr.mxu0 0.0
        %6538 = vmatpush1.msra.mxu0 0.0
        %6539 = vmatprep.subr.mxu0 0.0
        %6540 = vmatpush1.msra.mxu0 0.0
        %6541 = vmatprep.subr.mxu0 0.0
        %6542 = vmatpush1.msra.mxu0 0.0
        %6543 = vmatprep.subr.mxu0 0.0
        %6544 = vmatpush1.msra.mxu0 0.0
        %6545 = vmatprep.subr.mxu0 0.0
        %6546 = vmatpush1.msra.mxu0 0.0
        %6547 = vmatprep.subr.mxu0 0.0
        %6548 = vmatpush1.msra.mxu0 0.0
        %6549 = vmatprep.subr.mxu0 0.0
        %6550 = vmatpush1.msra.mxu0 0.0
        %6551 = vmatprep.subr.mxu0 0.0
        %6552 = vmatpush1.msra.mxu0 0.0
        %6553 = vmatprep.subr.mxu0 0.0
        %6554 = vmatpush1.msra.mxu0 0.0
        %6555 = vmatprep.subr.mxu0 0.0
        %6556 = vmatpush1.msra.mxu0 0.0
        %6557 = vmatprep.subr.mxu0 0.0
        %6558 = vmatpush1.msra.mxu0 0.0
        %6559 = vmatprep.subr.mxu0 0.0
        %6560 = vmatpush1.msra.mxu0 0.0
        %6561 = vmatprep.mubr.f32.mxu0 0.0
        %v6562 = vand.u32 %v6120, 4294901760
        %6563 = vmatmul.mubr.f32.gmra.mrb[0].mxu0 %v6562
        %v6564 = vpop.f32.mrb[0].mxu0
        %v6565 = vadd.f32 %v6493, %v6564
        %v6566 = vpop.f32.mrb[0].mxu0
        %6567 = vdwg.mxu0
        %v6569 = vsel %vm1555, %v6565, 0
        %6571 = vmatprep.subr.mxu0 0.0
        %v6572 = vand.u32 %v1545, 4294901760
        %6573 = vmatpush1.msra.mxu0 %v6572
        %6574 = vmatprep.subr.mxu0 0.0
        %6575 = vmatpush1.msra.mxu0 0.0
        %6576 = vmatprep.subr.mxu0 0.0
        %6577 = vmatpush1.msra.mxu0 0.0
        %6578 = vmatprep.subr.mxu0 0.0
        %6579 = vmatpush1.msra.mxu0 0.0
        %6580 = vmatprep.subr.mxu0 0.0
        %6581 = vmatpush1.msra.mxu0 0.0
        %6582 = vmatprep.subr.mxu0 0.0
        %6583 = vmatpush1.msra.mxu0 0.0
        %6584 = vmatprep.subr.mxu0 0.0
        %6585 = vmatpush1.msra.mxu0 0.0
        %6586 = vmatprep.subr.mxu0 0.0
        %6587 = vmatpush1.msra.mxu0 0.0
        %6588 = vmatprep.subr.mxu0 0.0
        %6589 = vmatpush1.msra.mxu0 0.0
        %6590 = vmatprep.subr.mxu0 0.0
        %6591 = vmatpush1.msra.mxu0 0.0
        %6592 = vmatprep.subr.mxu0 0.0
        %6593 = vmatpush1.msra.mxu0 0.0
        %6594 = vmatprep.subr.mxu0 0.0
        %6595 = vmatpush1.msra.mxu0 0.0
        %6596 = vmatprep.subr.mxu0 0.0
        %6597 = vmatpush1.msra.mxu0 0.0
        %6598 = vmatprep.subr.mxu0 0.0
        %6599 = vmatpush1.msra.mxu0 0.0
        %6600 = vmatprep.subr.mxu0 0.0
        %6601 = vmatpush1.msra.mxu0 0.0
        %6602 = vmatprep.subr.mxu0 0.0
        %6603 = vmatpush1.msra.mxu0 0.0
        %6604 = vmatprep.subr.mxu0 0.0
        %6605 = vmatpush1.msra.mxu0 0.0
        %6606 = vmatprep.subr.mxu0 0.0
        %6607 = vmatpush1.msra.mxu0 0.0
        %6608 = vmatprep.subr.mxu0 0.0
        %6609 = vmatpush1.msra.mxu0 0.0
        %6610 = vmatprep.subr.mxu0 0.0
        %6611 = vmatpush1.msra.mxu0 0.0
        %6612 = vmatprep.subr.mxu0 0.0
        %6613 = vmatpush1.msra.mxu0 0.0
        %6614 = vmatprep.subr.mxu0 0.0
        %6615 = vmatpush1.msra.mxu0 0.0
        %6616 = vmatprep.subr.mxu0 0.0
        %6617 = vmatpush1.msra.mxu0 0.0
        %6618 = vmatprep.subr.mxu0 0.0
        %6619 = vmatpush1.msra.mxu0 0.0
        %6620 = vmatprep.subr.mxu0 0.0
        %6621 = vmatpush1.msra.mxu0 0.0
        %6622 = vmatprep.subr.mxu0 0.0
        %6623 = vmatpush1.msra.mxu0 0.0
        %6624 = vmatprep.subr.mxu0 0.0
        %6625 = vmatpush1.msra.mxu0 0.0
        %6626 = vmatprep.subr.mxu0 0.0
        %6627 = vmatpush1.msra.mxu0 0.0
        %6628 = vmatprep.subr.mxu0 0.0
        %6629 = vmatpush1.msra.mxu0 0.0
        %6630 = vmatprep.subr.mxu0 0.0
        %6631 = vmatpush1.msra.mxu0 0.0
        %6632 = vmatprep.subr.mxu0 0.0
        %6633 = vmatpush1.msra.mxu0 0.0
        %6634 = vmatprep.subr.mxu0 0.0
        %6635 = vmatpush1.msra.mxu0 0.0
        %6636 = vmatprep.mubr.f32.mxu0 0.0
        %v6637 = vand.u32 %v6569, 4294901760
        %v6638 = vsub.f32 %v6569, %v6637
        %v6639 = vand.u32 %v6638, 4294901760
        %v6640 = vsub.f32 %v6638, %v6639
        %v6641 = vand.u32 %v6640, 4294901760
        %6642 = vmatmul.mubr.f32.gmra.mrb[0].mxu0 %v6641
        %v6643 = vpop.f32.mrb[0].mxu0
        %v6644 = vadd.f32 0.0, %v6643
        %v6645 = vpop.f32.mrb[0].mxu0
        %6646 = vdwg.mxu0
        %6647 = vmatprep.subr.mxu0 0.0
        %v6648 = vand.u32 %v1545, 4294901760
        %v6649 = vsub.f32 %v1545, %v6648
        %v6650 = vand.u32 %v6649, 4294901760
        %v6651 = vsub.f32 %v6649, %v6650
        %v6652 = vand.u32 %v6651, 4294901760
        %6653 = vmatpush1.msra.mxu0 %v6652
        %6654 = vmatprep.subr.mxu0 0.0
        %6655 = vmatpush1.msra.mxu0 0.0
        %6656 = vmatprep.subr.mxu0 0.0
        %6657 = vmatpush1.msra.mxu0 0.0
        %6658 = vmatprep.subr.mxu0 0.0
        %6659 = vmatpush1.msra.mxu0 0.0
        %6660 = vmatprep.subr.mxu0 0.0
        %6661 = vmatpush1.msra.mxu0 0.0
        %6662 = vmatprep.subr.mxu0 0.0
        %6663 = vmatpush1.msra.mxu0 0.0
        %6664 = vmatprep.subr.mxu0 0.0
        %6665 = vmatpush1.msra.mxu0 0.0
        %6666 = vmatprep.subr.mxu0 0.0
        %6667 = vmatpush1.msra.mxu0 0.0
        %6668 = vmatprep.subr.mxu0 0.0
        %6669 = vmatpush1.msra.mxu0 0.0
        %6670 = vmatprep.subr.mxu0 0.0
        %6671 = vmatpush1.msra.mxu0 0.0
        %6672 = vmatprep.subr.mxu0 0.0
        %6673 = vmatpush1.msra.mxu0 0.0
        %6674 = vmatprep.subr.mxu0 0.0
        %6675 = vmatpush1.msra.mxu0 0.0
        %6676 = vmatprep.subr.mxu0 0.0
        %6677 = vmatpush1.msra.mxu0 0.0
        %6678 = vmatprep.subr.mxu0 0.0
        %6679 = vmatpush1.msra.mxu0 0.0
        %6680 = vmatprep.subr.mxu0 0.0
        %6681 = vmatpush1.msra.mxu0 0.0
        %6682 = vmatprep.subr.mxu0 0.0
        %6683 = vmatpush1.msra.mxu0 0.0
        %6684 = vmatprep.subr.mxu0 0.0
        %6685 = vmatpush1.msra.mxu0 0.0
        %6686 = vmatprep.subr.mxu0 0.0
        %6687 = vmatpush1.msra.mxu0 0.0
        %6688 = vmatprep.subr.mxu0 0.0
        %6689 = vmatpush1.msra.mxu0 0.0
        %6690 = vmatprep.subr.mxu0 0.0
        %6691 = vmatpush1.msra.mxu0 0.0
        %6692 = vmatprep.subr.mxu0 0.0
        %6693 = vmatpush1.msra.mxu0 0.0
        %6694 = vmatprep.subr.mxu0 0.0
        %6695 = vmatpush1.msra.mxu0 0.0
        %6696 = vmatprep.subr.mxu0 0.0
        %6697 = vmatpush1.msra.mxu0 0.0
        %6698 = vmatprep.subr.mxu0 0.0
        %6699 = vmatpush1.msra.mxu0 0.0
        %6700 = vmatprep.subr.mxu0 0.0
        %6701 = vmatpush1.msra.mxu0 0.0
        %6702 = vmatprep.subr.mxu0 0.0
        %6703 = vmatpush1.msra.mxu0 0.0
        %6704 = vmatprep.subr.mxu0 0.0
        %6705 = vmatpush1.msra.mxu0 0.0
        %6706 = vmatprep.subr.mxu0 0.0
        %6707 = vmatpush1.msra.mxu0 0.0
        %6708 = vmatprep.subr.mxu0 0.0
        %6709 = vmatpush1.msra.mxu0 0.0
        %6710 = vmatprep.subr.mxu0 0.0
        %6711 = vmatpush1.msra.mxu0 0.0
        %6712 = vmatprep.subr.mxu0 0.0
        %6713 = vmatpush1.msra.mxu0 0.0
        %6714 = vmatprep.subr.mxu0 0.0
        %6715 = vmatpush1.msra.mxu0 0.0
        %6716 = vmatprep.mubr.f32.mxu0 0.0
        %v6717 = vand.u32 %v6569, 4294901760
        %6718 = vmatmul.mubr.f32.gmra.mrb[0].mxu0 %v6717
        %v6719 = vpop.f32.mrb[0].mxu0
        %v6720 = vadd.f32 %v6644, %v6719
        %v6721 = vpop.f32.mrb[0].mxu0
        %6722 = vdwg.mxu0
        %6723 = vmatprep.subr.mxu0 0.0
        %v6724 = vand.u32 %v1545, 4294901760
        %v6725 = vsub.f32 %v1545, %v6724
        %6726 = vmatpush1.msra.mxu0 %v6725
        %6727 = vmatprep.subr.mxu0 0.0
        %6728 = vmatpush1.msra.mxu0 0.0
        %6729 = vmatprep.subr.mxu0 0.0
        %6730 = vmatpush1.msra.mxu0 0.0
        %6731 = vmatprep.subr.mxu0 0.0
        %6732 = vmatpush1.msra.mxu0 0.0
        %6733 = vmatprep.subr.mxu0 0.0
        %6734 = vmatpush1.msra.mxu0 0.0
        %6735 = vmatprep.subr.mxu0 0.0
        %6736 = vmatpush1.msra.mxu0 0.0
        %6737 = vmatprep.subr.mxu0 0.0
        %6738 = vmatpush1.msra.mxu0 0.0
        %6739 = vmatprep.subr.mxu0 0.0
        %6740 = vmatpush1.msra.mxu0 0.0
        %6741 = vmatprep.subr.mxu0 0.0
        %6742 = vmatpush1.msra.mxu0 0.0
        %6743 = vmatprep.subr.mxu0 0.0
        %6744 = vmatpush1.msra.mxu0 0.0
        %6745 = vmatprep.subr.mxu0 0.0
        %6746 = vmatpush1.msra.mxu0 0.0
        %6747 = vmatprep.subr.mxu0 0.0
        %6748 = vmatpush1.msra.mxu0 0.0
        %6749 = vmatprep.subr.mxu0 0.0
        %6750 = vmatpush1.msra.mxu0 0.0
        %6751 = vmatprep.subr.mxu0 0.0
        %6752 = vmatpush1.msra.mxu0 0.0
        %6753 = vmatprep.subr.mxu0 0.0
        %6754 = vmatpush1.msra.mxu0 0.0
        %6755 = vmatprep.subr.mxu0 0.0
        %6756 = vmatpush1.msra.mxu0 0.0
        %6757 = vmatprep.subr.mxu0 0.0
        %6758 = vmatpush1.msra.mxu0 0.0
        %6759 = vmatprep.subr.mxu0 0.0
        %6760 = vmatpush1.msra.mxu0 0.0
        %6761 = vmatprep.subr.mxu0 0.0
        %6762 = vmatpush1.msra.mxu0 0.0
        %6763 = vmatprep.subr.mxu0 0.0
        %6764 = vmatpush1.msra.mxu0 0.0
        %6765 = vmatprep.subr.mxu0 0.0
        %6766 = vmatpush1.msra.mxu0 0.0
        %6767 = vmatprep.subr.mxu0 0.0
        %6768 = vmatpush1.msra.mxu0 0.0
        %6769 = vmatprep.subr.mxu0 0.0
        %6770 = vmatpush1.msra.mxu0 0.0
        %6771 = vmatprep.subr.mxu0 0.0
        %6772 = vmatpush1.msra.mxu0 0.0
        %6773 = vmatprep.subr.mxu0 0.0
        %6774 = vmatpush1.msra.mxu0 0.0
        %6775 = vmatprep.subr.mxu0 0.0
        %6776 = vmatpush1.msra.mxu0 0.0
        %6777 = vmatprep.subr.mxu0 0.0
        %6778 = vmatpush1.msra.mxu0 0.0
        %6779 = vmatprep.subr.mxu0 0.0
        %6780 = vmatpush1.msra.mxu0 0.0
        %6781 = vmatprep.subr.mxu0 0.0
        %6782 = vmatpush1.msra.mxu0 0.0
        %6783 = vmatprep.subr.mxu0 0.0
        %6784 = vmatpush1.msra.mxu0 0.0
        %6785 = vmatprep.subr.mxu0 0.0
        %6786 = vmatpush1.msra.mxu0 0.0
        %6787 = vmatprep.subr.mxu0 0.0
        %6788 = vmatpush1.msra.mxu0 0.0
        %6789 = vmatprep.mubr.f32.mxu0 0.0
        %v6790 = vand.u32 %v6569, 4294901760
        %v6791 = vsub.f32 %v6569, %v6790
        %6792 = vmatmul.mubr.f32.gmra.mrb[0].mxu0 %v6791
        %v6793 = vpop.f32.mrb[0].mxu0
        %v6794 = vadd.f32 %v6720, %v6793
        %v6795 = vpop.f32.mrb[0].mxu0
        %6796 = vdwg.mxu0
        %6797 = vmatprep.subr.mxu0 0.0
        %v6798 = vand.u32 %v1545, 4294901760
        %6799 = vmatpush1.msra.mxu0 %v6798
        %6800 = vmatprep.subr.mxu0 0.0
        %6801 = vmatpush1.msra.mxu0 0.0
        %6802 = vmatprep.subr.mxu0 0.0
        %6803 = vmatpush1.msra.mxu0 0.0
        %6804 = vmatprep.subr.mxu0 0.0
        %6805 = vmatpush1.msra.mxu0 0.0
        %6806 = vmatprep.subr.mxu0 0.0
        %6807 = vmatpush1.msra.mxu0 0.0
        %6808 = vmatprep.subr.mxu0 0.0
        %6809 = vmatpush1.msra.mxu0 0.0
        %6810 = vmatprep.subr.mxu0 0.0
        %6811 = vmatpush1.msra.mxu0 0.0
        %6812 = vmatprep.subr.mxu0 0.0
        %6813 = vmatpush1.msra.mxu0 0.0
        %6814 = vmatprep.subr.mxu0 0.0
        %6815 = vmatpush1.msra.mxu0 0.0
        %6816 = vmatprep.subr.mxu0 0.0
        %6817 = vmatpush1.msra.mxu0 0.0
        %6818 = vmatprep.subr.mxu0 0.0
        %6819 = vmatpush1.msra.mxu0 0.0
        %6820 = vmatprep.subr.mxu0 0.0
        %6821 = vmatpush1.msra.mxu0 0.0
        %6822 = vmatprep.subr.mxu0 0.0
        %6823 = vmatpush1.msra.mxu0 0.0
        %6824 = vmatprep.subr.mxu0 0.0
        %6825 = vmatpush1.msra.mxu0 0.0
        %6826 = vmatprep.subr.mxu0 0.0
        %6827 = vmatpush1.msra.mxu0 0.0
        %6828 = vmatprep.subr.mxu0 0.0
        %6829 = vmatpush1.msra.mxu0 0.0
        %6830 = vmatprep.subr.mxu0 0.0
        %6831 = vmatpush1.msra.mxu0 0.0
        %6832 = vmatprep.subr.mxu0 0.0
        %6833 = vmatpush1.msra.mxu0 0.0
        %6834 = vmatprep.subr.mxu0 0.0
        %6835 = vmatpush1.msra.mxu0 0.0
        %6836 = vmatprep.subr.mxu0 0.0
        %6837 = vmatpush1.msra.mxu0 0.0
        %6838 = vmatprep.subr.mxu0 0.0
        %6839 = vmatpush1.msra.mxu0 0.0
        %6840 = vmatprep.subr.mxu0 0.0
        %6841 = vmatpush1.msra.mxu0 0.0
        %6842 = vmatprep.subr.mxu0 0.0
        %6843 = vmatpush1.msra.mxu0 0.0
        %6844 = vmatprep.subr.mxu0 0.0
        %6845 = vmatpush1.msra.mxu0 0.0
        %6846 = vmatprep.subr.mxu0 0.0
        %6847 = vmatpush1.msra.mxu0 0.0
        %6848 = vmatprep.subr.mxu0 0.0
        %6849 = vmatpush1.msra.mxu0 0.0
        %6850 = vmatprep.subr.mxu0 0.0
        %6851 = vmatpush1.msra.mxu0 0.0
        %6852 = vmatprep.subr.mxu0 0.0
        %6853 = vmatpush1.msra.mxu0 0.0
        %6854 = vmatprep.subr.mxu0 0.0
        %6855 = vmatpush1.msra.mxu0 0.0
        %6856 = vmatprep.subr.mxu0 0.0
        %6857 = vmatpush1.msra.mxu0 0.0
        %6858 = vmatprep.subr.mxu0 0.0
        %6859 = vmatpush1.msra.mxu0 0.0
        %6860 = vmatprep.subr.mxu0 0.0
        %6861 = vmatpush1.msra.mxu0 0.0
        %6862 = vmatprep.mubr.f32.mxu0 0.0
        %v6863 = vand.u32 %v6569, 4294901760
        %v6864 = vsub.f32 %v6569, %v6863
        %v6865 = vand.u32 %v6864, 4294901760
        %6866 = vmatmul.mubr.f32.gmra.mrb[0].mxu0 %v6865
        %v6867 = vpop.f32.mrb[0].mxu0
        %v6868 = vadd.f32 %v6794, %v6867
        %v6869 = vpop.f32.mrb[0].mxu0
        %6870 = vdwg.mxu0
        %6871 = vmatprep.subr.mxu0 0.0
        %v6872 = vand.u32 %v1545, 4294901760
        %v6873 = vsub.f32 %v1545, %v6872
        %v6874 = vand.u32 %v6873, 4294901760
        %6875 = vmatpush1.msra.mxu0 %v6874
        %6876 = vmatprep.subr.mxu0 0.0
        %6877 = vmatpush1.msra.mxu0 0.0
        %6878 = vmatprep.subr.mxu0 0.0
        %6879 = vmatpush1.msra.mxu0 0.0
        %6880 = vmatprep.subr.mxu0 0.0
        %6881 = vmatpush1.msra.mxu0 0.0
        %6882 = vmatprep.subr.mxu0 0.0
        %6883 = vmatpush1.msra.mxu0 0.0
        %6884 = vmatprep.subr.mxu0 0.0
        %6885 = vmatpush1.msra.mxu0 0.0
        %6886 = vmatprep.subr.mxu0 0.0
        %6887 = vmatpush1.msra.mxu0 0.0
        %6888 = vmatprep.subr.mxu0 0.0
        %6889 = vmatpush1.msra.mxu0 0.0
        %6890 = vmatprep.subr.mxu0 0.0
        %6891 = vmatpush1.msra.mxu0 0.0
        %6892 = vmatprep.subr.mxu0 0.0
        %6893 = vmatpush1.msra.mxu0 0.0
        %6894 = vmatprep.subr.mxu0 0.0
        %6895 = vmatpush1.msra.mxu0 0.0
        %6896 = vmatprep.subr.mxu0 0.0
        %6897 = vmatpush1.msra.mxu0 0.0
        %6898 = vmatprep.subr.mxu0 0.0
        %6899 = vmatpush1.msra.mxu0 0.0
        %6900 = vmatprep.subr.mxu0 0.0
        %6901 = vmatpush1.msra.mxu0 0.0
        %6902 = vmatprep.subr.mxu0 0.0
        %6903 = vmatpush1.msra.mxu0 0.0
        %6904 = vmatprep.subr.mxu0 0.0
        %6905 = vmatpush1.msra.mxu0 0.0
        %6906 = vmatprep.subr.mxu0 0.0
        %6907 = vmatpush1.msra.mxu0 0.0
        %6908 = vmatprep.subr.mxu0 0.0
        %6909 = vmatpush1.msra.mxu0 0.0
        %6910 = vmatprep.subr.mxu0 0.0
        %6911 = vmatpush1.msra.mxu0 0.0
        %6912 = vmatprep.subr.mxu0 0.0
        %6913 = vmatpush1.msra.mxu0 0.0
        %6914 = vmatprep.subr.mxu0 0.0
        %6915 = vmatpush1.msra.mxu0 0.0
        %6916 = vmatprep.subr.mxu0 0.0
        %6917 = vmatpush1.msra.mxu0 0.0
        %6918 = vmatprep.subr.mxu0 0.0
        %6919 = vmatpush1.msra.mxu0 0.0
        %6920 = vmatprep.subr.mxu0 0.0
        %6921 = vmatpush1.msra.mxu0 0.0
        %6922 = vmatprep.subr.mxu0 0.0
        %6923 = vmatpush1.msra.mxu0 0.0
        %6924 = vmatprep.subr.mxu0 0.0
        %6925 = vmatpush1.msra.mxu0 0.0
        %6926 = vmatprep.subr.mxu0 0.0
        %6927 = vmatpush1.msra.mxu0 0.0
        %6928 = vmatprep.subr.mxu0 0.0
        %6929 = vmatpush1.msra.mxu0 0.0
        %6930 = vmatprep.subr.mxu0 0.0
        %6931 = vmatpush1.msra.mxu0 0.0
        %6932 = vmatprep.subr.mxu0 0.0
        %6933 = vmatpush1.msra.mxu0 0.0
        %6934 = vmatprep.subr.mxu0 0.0
        %6935 = vmatpush1.msra.mxu0 0.0
        %6936 = vmatprep.subr.mxu0 0.0
        %6937 = vmatpush1.msra.mxu0 0.0
        %6938 = vmatprep.mubr.f32.mxu0 0.0
        %v6939 = vand.u32 %v6569, 4294901760
        %6940 = vmatmul.mubr.f32.gmra.mrb[0].mxu0 %v6939
        %v6941 = vpop.f32.mrb[0].mxu0
        %v6942 = vadd.f32 %v6868, %v6941
        %v6943 = vpop.f32.mrb[0].mxu0
        %6944 = vdwg.mxu0
        %6945 = vmatprep.subr.mxu0 0.0
        %v6946 = vand.u32 %v1545, 4294901760
        %6947 = vmatpush1.msra.mxu0 %v6946
        %6948 = vmatprep.subr.mxu0 0.0
        %6949 = vmatpush1.msra.mxu0 0.0
        %6950 = vmatprep.subr.mxu0 0.0
        %6951 = vmatpush1.msra.mxu0 0.0
        %6952 = vmatprep.subr.mxu0 0.0
        %6953 = vmatpush1.msra.mxu0 0.0
        %6954 = vmatprep.subr.mxu0 0.0
        %6955 = vmatpush1.msra.mxu0 0.0
        %6956 = vmatprep.subr.mxu0 0.0
        %6957 = vmatpush1.msra.mxu0 0.0
        %6958 = vmatprep.subr.mxu0 0.0
        %6959 = vmatpush1.msra.mxu0 0.0
        %6960 = vmatprep.subr.mxu0 0.0
        %6961 = vmatpush1.msra.mxu0 0.0
        %6962 = vmatprep.subr.mxu0 0.0
        %6963 = vmatpush1.msra.mxu0 0.0
        %6964 = vmatprep.subr.mxu0 0.0
        %6965 = vmatpush1.msra.mxu0 0.0
        %6966 = vmatprep.subr.mxu0 0.0
        %6967 = vmatpush1.msra.mxu0 0.0
        %6968 = vmatprep.subr.mxu0 0.0
        %6969 = vmatpush1.msra.mxu0 0.0
        %6970 = vmatprep.subr.mxu0 0.0
        %6971 = vmatpush1.msra.mxu0 0.0
        %6972 = vmatprep.subr.mxu0 0.0
        %6973 = vmatpush1.msra.mxu0 0.0
        %6974 = vmatprep.subr.mxu0 0.0
        %6975 = vmatpush1.msra.mxu0 0.0
        %6976 = vmatprep.subr.mxu0 0.0
        %6977 = vmatpush1.msra.mxu0 0.0
        %6978 = vmatprep.subr.mxu0 0.0
        %6979 = vmatpush1.msra.mxu0 0.0
        %6980 = vmatprep.subr.mxu0 0.0
        %6981 = vmatpush1.msra.mxu0 0.0
        %6982 = vmatprep.subr.mxu0 0.0
        %6983 = vmatpush1.msra.mxu0 0.0
        %6984 = vmatprep.subr.mxu0 0.0
        %6985 = vmatpush1.msra.mxu0 0.0
        %6986 = vmatprep.subr.mxu0 0.0
        %6987 = vmatpush1.msra.mxu0 0.0
        %6988 = vmatprep.subr.mxu0 0.0
        %6989 = vmatpush1.msra.mxu0 0.0
        %6990 = vmatprep.subr.mxu0 0.0
        %6991 = vmatpush1.msra.mxu0 0.0
        %6992 = vmatprep.subr.mxu0 0.0
        %6993 = vmatpush1.msra.mxu0 0.0
        %6994 = vmatprep.subr.mxu0 0.0
        %6995 = vmatpush1.msra.mxu0 0.0
        %6996 = vmatprep.subr.mxu0 0.0
        %6997 = vmatpush1.msra.mxu0 0.0
        %6998 = vmatprep.subr.mxu0 0.0
        %6999 = vmatpush1.msra.mxu0 0.0
        %7000 = vmatprep.subr.mxu0 0.0
        %7001 = vmatpush1.msra.mxu0 0.0
        %7002 = vmatprep.subr.mxu0 0.0
        %7003 = vmatpush1.msra.mxu0 0.0
        %7004 = vmatprep.subr.mxu0 0.0
        %7005 = vmatpush1.msra.mxu0 0.0
        %7006 = vmatprep.subr.mxu0 0.0
        %7007 = vmatpush1.msra.mxu0 0.0
        %7008 = vmatprep.subr.mxu0 0.0
        %7009 = vmatpush1.msra.mxu0 0.0
        %7010 = vmatprep.mubr.f32.mxu0 0.0
        %v7011 = vand.u32 %v6569, 4294901760
        %7012 = vmatmul.mubr.f32.gmra.mrb[0].mxu0 %v7011
        %v7013 = vpop.f32.mrb[0].mxu0
        %v7014 = vadd.f32 %v6942, %v7013
        %v7015 = vpop.f32.mrb[0].mxu0
        %7016 = vdwg.mxu0
        %v7017 = vadd.f32 %v5650, %v7014
        %v7018 = vld [vmem:[%s833] sm:$0x1]
        %v7020 = vlaneseq
        %v7021 = vshrl.u32 %v7020, 7
        %v7022 = vsub.s32 0, %v7021
        %v7023 = vrot.slane %v7018, %v7022
        %v7025 = vadd.f32 %v7017, %v7023
        %v7026 = vadd.f32 %v1040, %v7025
        %v7027 = vld [vmem:[%s841] sm:$0x1]
        %v7028 = vld [vmem:[%s849] sm:$0x1]
        %v7029 = vsel %vm1053, %v7026, 0.0
        %7030 = vadd.xlane.f32.xlu0 %v7029
        %v7031 = vpop.xlane.xlu0 %7030
        %v7032 = vrcp.pop 32.0
        %v7033 = vmul.f32 %v7031, %v7032
        %v7034 = vsub.f32 %v7026, %v7033
        %v7035 = vmul.f32 %v7034, %v7034
        %v7036 = vsel %vm1053, %v7035, 0.0
        %7037 = vadd.xlane.f32.xlu0 %v7036
        %v7038 = vpop.xlane.xlu0 %7037
        %v7039 = vmul.f32 %v7038, %v7032
        %v7040 = vadd.f32 %v7039, 1e-12
        %v7041 = vrsqrt.pop %v7040
        %v7042 = vmul.f32 %v7034, %v7041
        %v7044 = vlaneseq
        %v7045 = vshrl.u32 %v7044, 7
        %v7046 = vsub.s32 0, %v7045
        %v7047 = vrot.slane %v7027, %v7046
        %v7049 = vmul.f32 %v7042, %v7047
        %v7051 = vlaneseq
        %v7052 = vshrl.u32 %v7051, 7
        %v7053 = vsub.s32 0, %v7052
        %v7054 = vrot.slane %v7028, %v7053
        %v7056 = vadd.f32 %v7049, %v7054
        %v7057 = vld [vmem:[%s858] sm:$0xff]
        %v7058 = vld [vmem:[%s858 + $0x8] sm:$0xff]
        %v7059 = vld [vmem:[%s858 + $0x10] sm:$0xff]
        %v7060 = vld [vmem:[%s858 + $0x18] sm:$0xff]
        %v7061 = vld [vmem:[%s866] sm:$0x1]
        %v7063 = vlaneseq
        %v7064 = vshrl.u32 %v7063, 7
        %v7065 = vsub.s32 0, %v7064
        %v7066 = vrot.slane %v7061, %v7065
        %v7069 = vsel %vm1053, %v7056, 0
        %7071 = vmatprep.subr.mxu0 0.0
        %v7072 = vand.u32 %v7057, 4294901760
        %7073 = vmatpush1.msra.mxu0 %v7072
        %7074 = vmatprep.subr.mxu0 0.0
        %v7075 = vand.u32 %v7058, 4294901760
        %7076 = vmatpush1.msra.mxu0 %v7075
        %7077 = vmatprep.subr.mxu0 0.0
        %v7078 = vand.u32 %v7059, 4294901760
        %7079 = vmatpush1.msra.mxu0 %v7078
        %7080 = vmatprep.subr.mxu0 0.0
        %v7081 = vand.u32 %v7060, 4294901760
        %7082 = vmatpush1.msra.mxu0 %v7081
        %7083 = vmatprep.subr.mxu0 0.0
        %7084 = vmatpush1.msra.mxu0 0.0
        %7085 = vmatprep.subr.mxu0 0.0
        %7086 = vmatpush1.msra.mxu0 0.0
        %7087 = vmatprep.subr.mxu0 0.0
        %7088 = vmatpush1.msra.mxu0 0.0
        %7089 = vmatprep.subr.mxu0 0.0
        %7090 = vmatpush1.msra.mxu0 0.0
        %7091 = vmatprep.subr.mxu0 0.0
        %7092 = vmatpush1.msra.mxu0 0.0
        %7093 = vmatprep.subr.mxu0 0.0
        %7094 = vmatpush1.msra.mxu0 0.0
        %7095 = vmatprep.subr.mxu0 0.0
        %7096 = vmatpush1.msra.mxu0 0.0
        %7097 = vmatprep.subr.mxu0 0.0
        %7098 = vmatpush1.msra.mxu0 0.0
        %7099 = vmatprep.subr.mxu0 0.0
        %7100 = vmatpush1.msra.mxu0 0.0
        %7101 = vmatprep.subr.mxu0 0.0
        %7102 = vmatpush1.msra.mxu0 0.0
        %7103 = vmatprep.subr.mxu0 0.0
        %7104 = vmatpush1.msra.mxu0 0.0
        %7105 = vmatprep.subr.mxu0 0.0
        %7106 = vmatpush1.msra.mxu0 0.0
        %7107 = vmatprep.subr.mxu0 0.0
        %7108 = vmatpush1.msra.mxu0 0.0
        %7109 = vmatprep.subr.mxu0 0.0
        %7110 = vmatpush1.msra.mxu0 0.0
        %7111 = vmatprep.subr.mxu0 0.0
        %7112 = vmatpush1.msra.mxu0 0.0
        %7113 = vmatprep.subr.mxu0 0.0
        %7114 = vmatpush1.msra.mxu0 0.0
        %7115 = vmatprep.subr.mxu0 0.0
        %7116 = vmatpush1.msra.mxu0 0.0
        %7117 = vmatprep.subr.mxu0 0.0
        %7118 = vmatpush1.msra.mxu0 0.0
        %7119 = vmatprep.subr.mxu0 0.0
        %7120 = vmatpush1.msra.mxu0 0.0
        %7121 = vmatprep.subr.mxu0 0.0
        %7122 = vmatpush1.msra.mxu0 0.0
        %7123 = vmatprep.subr.mxu0 0.0
        %7124 = vmatpush1.msra.mxu0 0.0
        %7125 = vmatprep.subr.mxu0 0.0
        %7126 = vmatpush1.msra.mxu0 0.0
        %7127 = vmatprep.subr.mxu0 0.0
        %7128 = vmatpush1.msra.mxu0 0.0
        %7129 = vmatprep.subr.mxu0 0.0
        %7130 = vmatpush1.msra.mxu0 0.0
        %7131 = vmatprep.subr.mxu0 0.0
        %7132 = vmatpush1.msra.mxu0 0.0
        %7133 = vmatprep.subr.mxu0 0.0
        %7134 = vmatpush1.msra.mxu0 0.0
        %7135 = vmatprep.subr.mxu0 0.0
        %7136 = vmatpush1.msra.mxu0 0.0
        %7137 = vmatprep.subr.mxu0 0.0
        %7138 = vmatpush1.msra.mxu0 0.0
        %7139 = vmatprep.mubr.f32.mxu0 0.0
        %v7140 = vand.u32 %v7069, 4294901760
        %v7141 = vsub.f32 %v7069, %v7140
        %v7142 = vand.u32 %v7141, 4294901760
        %v7143 = vsub.f32 %v7141, %v7142
        %v7144 = vand.u32 %v7143, 4294901760
        %7145 = vmatmul.mubr.f32.gmra.mrb[0].mxu0 %v7144
        %v7146 = vpop.f32.mrb[0].mxu0
        %v7147 = vadd.f32 %v7066, %v7146
        %v7148 = vpop.f32.mrb[0].mxu0
        %7149 = vdwg.mxu0
        %7150 = vmatprep.subr.mxu0 0.0
        %v7151 = vand.u32 %v7057, 4294901760
        %v7152 = vsub.f32 %v7057, %v7151
        %v7153 = vand.u32 %v7152, 4294901760
        %v7154 = vsub.f32 %v7152, %v7153
        %v7155 = vand.u32 %v7154, 4294901760
        %7156 = vmatpush1.msra.mxu0 %v7155
        %7157 = vmatprep.subr.mxu0 0.0
        %v7158 = vand.u32 %v7058, 4294901760
        %v7159 = vsub.f32 %v7058, %v7158
        %v7160 = vand.u32 %v7159, 4294901760
        %v7161 = vsub.f32 %v7159, %v7160
        %v7162 = vand.u32 %v7161, 4294901760
        %7163 = vmatpush1.msra.mxu0 %v7162
        %7164 = vmatprep.subr.mxu0 0.0
        %v7165 = vand.u32 %v7059, 4294901760
        %v7166 = vsub.f32 %v7059, %v7165
        %v7167 = vand.u32 %v7166, 4294901760
        %v7168 = vsub.f32 %v7166, %v7167
        %v7169 = vand.u32 %v7168, 4294901760
        %7170 = vmatpush1.msra.mxu0 %v7169
        %7171 = vmatprep.subr.mxu0 0.0
        %v7172 = vand.u32 %v7060, 4294901760
        %v7173 = vsub.f32 %v7060, %v7172
        %v7174 = vand.u32 %v7173, 4294901760
        %v7175 = vsub.f32 %v7173, %v7174
        %v7176 = vand.u32 %v7175, 4294901760
        %7177 = vmatpush1.msra.mxu0 %v7176
        %7178 = vmatprep.subr.mxu0 0.0
        %7179 = vmatpush1.msra.mxu0 0.0
        %7180 = vmatprep.subr.mxu0 0.0
        %7181 = vmatpush1.msra.mxu0 0.0
        %7182 = vmatprep.subr.mxu0 0.0
        %7183 = vmatpush1.msra.mxu0 0.0
        %7184 = vmatprep.subr.mxu0 0.0
        %7185 = vmatpush1.msra.mxu0 0.0
        %7186 = vmatprep.subr.mxu0 0.0
        %7187 = vmatpush1.msra.mxu0 0.0
        %7188 = vmatprep.subr.mxu0 0.0
        %7189 = vmatpush1.msra.mxu0 0.0
        %7190 = vmatprep.subr.mxu0 0.0
        %7191 = vmatpush1.msra.mxu0 0.0
        %7192 = vmatprep.subr.mxu0 0.0
        %7193 = vmatpush1.msra.mxu0 0.0
        %7194 = vmatprep.subr.mxu0 0.0
        %7195 = vmatpush1.msra.mxu0 0.0
        %7196 = vmatprep.subr.mxu0 0.0
        %7197 = vmatpush1.msra.mxu0 0.0
        %7198 = vmatprep.subr.mxu0 0.0
        %7199 = vmatpush1.msra.mxu0 0.0
        %7200 = vmatprep.subr.mxu0 0.0
        %7201 = vmatpush1.msra.mxu0 0.0
        %7202 = vmatprep.subr.mxu0 0.0
        %7203 = vmatpush1.msra.mxu0 0.0
        %7204 = vmatprep.subr.mxu0 0.0
        %7205 = vmatpush1.msra.mxu0 0.0
        %7206 = vmatprep.subr.mxu0 0.0
        %7207 = vmatpush1.msra.mxu0 0.0
        %7208 = vmatprep.subr.mxu0 0.0
        %7209 = vmatpush1.msra.mxu0 0.0
        %7210 = vmatprep.subr.mxu0 0.0
        %7211 = vmatpush1.msra.mxu0 0.0
        %7212 = vmatprep.subr.mxu0 0.0
        %7213 = vmatpush1.msra.mxu0 0.0
        %7214 = vmatprep.subr.mxu0 0.0
        %7215 = vmatpush1.msra.mxu0 0.0
        %7216 = vmatprep.subr.mxu0 0.0
        %7217 = vmatpush1.msra.mxu0 0.0
        %7218 = vmatprep.subr.mxu0 0.0
        %7219 = vmatpush1.msra.mxu0 0.0
        %7220 = vmatprep.subr.mxu0 0.0
        %7221 = vmatpush1.msra.mxu0 0.0
        %7222 = vmatprep.subr.mxu0 0.0
        %7223 = vmatpush1.msra.mxu0 0.0
        %7224 = vmatprep.subr.mxu0 0.0
        %7225 = vmatpush1.msra.mxu0 0.0
        %7226 = vmatprep.subr.mxu0 0.0
        %7227 = vmatpush1.msra.mxu0 0.0
        %7228 = vmatprep.subr.mxu0 0.0
        %7229 = vmatpush1.msra.mxu0 0.0
        %7230 = vmatprep.subr.mxu0 0.0
        %7231 = vmatpush1.msra.mxu0 0.0
        %7232 = vmatprep.subr.mxu0 0.0
        %7233 = vmatpush1.msra.mxu0 0.0
        %7234 = vmatprep.mubr.f32.mxu0 0.0
        %v7235 = vand.u32 %v7069, 4294901760
        %7236 = vmatmul.mubr.f32.gmra.mrb[0].mxu0 %v7235
        %v7237 = vpop.f32.mrb[0].mxu0
        %v7238 = vadd.f32 %v7147, %v7237
        %v7239 = vpop.f32.mrb[0].mxu0
        %7240 = vdwg.mxu0
        %7241 = vmatprep.subr.mxu0 0.0
        %v7242 = vand.u32 %v7057, 4294901760
        %v7243 = vsub.f32 %v7057, %v7242
        %7244 = vmatpush1.msra.mxu0 %v7243
        %7245 = vmatprep.subr.mxu0 0.0
        %v7246 = vand.u32 %v7058, 4294901760
        %v7247 = vsub.f32 %v7058, %v7246
        %7248 = vmatpush1.msra.mxu0 %v7247
        %7249 = vmatprep.subr.mxu0 0.0
        %v7250 = vand.u32 %v7059, 4294901760
        %v7251 = vsub.f32 %v7059, %v7250
        %7252 = vmatpush1.msra.mxu0 %v7251
        %7253 = vmatprep.subr.mxu0 0.0
        %v7254 = vand.u32 %v7060, 4294901760
        %v7255 = vsub.f32 %v7060, %v7254
        %7256 = vmatpush1.msra.mxu0 %v7255
        %7257 = vmatprep.subr.mxu0 0.0
        %7258 = vmatpush1.msra.mxu0 0.0
        %7259 = vmatprep.subr.mxu0 0.0
        %7260 = vmatpush1.msra.mxu0 0.0
        %7261 = vmatprep.subr.mxu0 0.0
        %7262 = vmatpush1.msra.mxu0 0.0
        %7263 = vmatprep.subr.mxu0 0.0
        %7264 = vmatpush1.msra.mxu0 0.0
        %7265 = vmatprep.subr.mxu0 0.0
        %7266 = vmatpush1.msra.mxu0 0.0
        %7267 = vmatprep.subr.mxu0 0.0
        %7268 = vmatpush1.msra.mxu0 0.0
        %7269 = vmatprep.subr.mxu0 0.0
        %7270 = vmatpush1.msra.mxu0 0.0
        %7271 = vmatprep.subr.mxu0 0.0
        %7272 = vmatpush1.msra.mxu0 0.0
        %7273 = vmatprep.subr.mxu0 0.0
        %7274 = vmatpush1.msra.mxu0 0.0
        %7275 = vmatprep.subr.mxu0 0.0
        %7276 = vmatpush1.msra.mxu0 0.0
        %7277 = vmatprep.subr.mxu0 0.0
        %7278 = vmatpush1.msra.mxu0 0.0
        %7279 = vmatprep.subr.mxu0 0.0
        %7280 = vmatpush1.msra.mxu0 0.0
        %7281 = vmatprep.subr.mxu0 0.0
        %7282 = vmatpush1.msra.mxu0 0.0
        %7283 = vmatprep.subr.mxu0 0.0
        %7284 = vmatpush1.msra.mxu0 0.0
        %7285 = vmatprep.subr.mxu0 0.0
        %7286 = vmatpush1.msra.mxu0 0.0
        %7287 = vmatprep.subr.mxu0 0.0
        %7288 = vmatpush1.msra.mxu0 0.0
        %7289 = vmatprep.subr.mxu0 0.0
        %7290 = vmatpush1.msra.mxu0 0.0
        %7291 = vmatprep.subr.mxu0 0.0
        %7292 = vmatpush1.msra.mxu0 0.0
        %7293 = vmatprep.subr.mxu0 0.0
        %7294 = vmatpush1.msra.mxu0 0.0
        %7295 = vmatprep.subr.mxu0 0.0
        %7296 = vmatpush1.msra.mxu0 0.0
        %7297 = vmatprep.subr.mxu0 0.0
        %7298 = vmatpush1.msra.mxu0 0.0
        %7299 = vmatprep.subr.mxu0 0.0
        %7300 = vmatpush1.msra.mxu0 0.0
        %7301 = vmatprep.subr.mxu0 0.0
        %7302 = vmatpush1.msra.mxu0 0.0
        %7303 = vmatprep.subr.mxu0 0.0
        %7304 = vmatpush1.msra.mxu0 0.0
        %7305 = vmatprep.subr.mxu0 0.0
        %7306 = vmatpush1.msra.mxu0 0.0
        %7307 = vmatprep.subr.mxu0 0.0
        %7308 = vmatpush1.msra.mxu0 0.0
        %7309 = vmatprep.subr.mxu0 0.0
        %7310 = vmatpush1.msra.mxu0 0.0
        %7311 = vmatprep.subr.mxu0 0.0
        %7312 = vmatpush1.msra.mxu0 0.0
        %7313 = vmatprep.mubr.f32.mxu0 0.0
        %v7314 = vand.u32 %v7069, 4294901760
        %v7315 = vsub.f32 %v7069, %v7314
        %7316 = vmatmul.mubr.f32.gmra.mrb[0].mxu0 %v7315
        %v7317 = vpop.f32.mrb[0].mxu0
        %v7318 = vadd.f32 %v7238, %v7317
        %v7319 = vpop.f32.mrb[0].mxu0
        %7320 = vdwg.mxu0
        %7321 = vmatprep.subr.mxu0 0.0
        %v7322 = vand.u32 %v7057, 4294901760
        %7323 = vmatpush1.msra.mxu0 %v7322
        %7324 = vmatprep.subr.mxu0 0.0
        %v7325 = vand.u32 %v7058, 4294901760
        %7326 = vmatpush1.msra.mxu0 %v7325
        %7327 = vmatprep.subr.mxu0 0.0
        %v7328 = vand.u32 %v7059, 4294901760
        %7329 = vmatpush1.msra.mxu0 %v7328
        %7330 = vmatprep.subr.mxu0 0.0
        %v7331 = vand.u32 %v7060, 4294901760
        %7332 = vmatpush1.msra.mxu0 %v7331
        %7333 = vmatprep.subr.mxu0 0.0
        %7334 = vmatpush1.msra.mxu0 0.0
        %7335 = vmatprep.subr.mxu0 0.0
        %7336 = vmatpush1.msra.mxu0 0.0
        %7337 = vmatprep.subr.mxu0 0.0
        %7338 = vmatpush1.msra.mxu0 0.0
        %7339 = vmatprep.subr.mxu0 0.0
        %7340 = vmatpush1.msra.mxu0 0.0
        %7341 = vmatprep.subr.mxu0 0.0
        %7342 = vmatpush1.msra.mxu0 0.0
        %7343 = vmatprep.subr.mxu0 0.0
        %7344 = vmatpush1.msra.mxu0 0.0
        %7345 = vmatprep.subr.mxu0 0.0
        %7346 = vmatpush1.msra.mxu0 0.0
        %7347 = vmatprep.subr.mxu0 0.0
        %7348 = vmatpush1.msra.mxu0 0.0
        %7349 = vmatprep.subr.mxu0 0.0
        %7350 = vmatpush1.msra.mxu0 0.0
        %7351 = vmatprep.subr.mxu0 0.0
        %7352 = vmatpush1.msra.mxu0 0.0
        %7353 = vmatprep.subr.mxu0 0.0
        %7354 = vmatpush1.msra.mxu0 0.0
        %7355 = vmatprep.subr.mxu0 0.0
        %7356 = vmatpush1.msra.mxu0 0.0
        %7357 = vmatprep.subr.mxu0 0.0
        %7358 = vmatpush1.msra.mxu0 0.0
        %7359 = vmatprep.subr.mxu0 0.0
        %7360 = vmatpush1.msra.mxu0 0.0
        %7361 = vmatprep.subr.mxu0 0.0
        %7362 = vmatpush1.msra.mxu0 0.0
        %7363 = vmatprep.subr.mxu0 0.0
        %7364 = vmatpush1.msra.mxu0 0.0
        %7365 = vmatprep.subr.mxu0 0.0
        %7366 = vmatpush1.msra.mxu0 0.0
        %7367 = vmatprep.subr.mxu0 0.0
        %7368 = vmatpush1.msra.mxu0 0.0
        %7369 = vmatprep.subr.mxu0 0.0
        %7370 = vmatpush1.msra.mxu0 0.0
        %7371 = vmatprep.subr.mxu0 0.0
        %7372 = vmatpush1.msra.mxu0 0.0
        %7373 = vmatprep.subr.mxu0 0.0
        %7374 = vmatpush1.msra.mxu0 0.0
        %7375 = vmatprep.subr.mxu0 0.0
        %7376 = vmatpush1.msra.mxu0 0.0
        %7377 = vmatprep.subr.mxu0 0.0
        %7378 = vmatpush1.msra.mxu0 0.0
        %7379 = vmatprep.subr.mxu0 0.0
        %7380 = vmatpush1.msra.mxu0 0.0
        %7381 = vmatprep.subr.mxu0 0.0
        %7382 = vmatpush1.msra.mxu0 0.0
        %7383 = vmatprep.subr.mxu0 0.0
        %7384 = vmatpush1.msra.mxu0 0.0
        %7385 = vmatprep.subr.mxu0 0.0
        %7386 = vmatpush1.msra.mxu0 0.0
        %7387 = vmatprep.subr.mxu0 0.0
        %7388 = vmatpush1.msra.mxu0 0.0
        %7389 = vmatprep.mubr.f32.mxu0 0.0
        %v7390 = vand.u32 %v7069, 4294901760
        %v7391 = vsub.f32 %v7069, %v7390
        %v7392 = vand.u32 %v7391, 4294901760
        %7393 = vmatmul.mubr.f32.gmra.mrb[0].mxu0 %v7392
        %v7394 = vpop.f32.mrb[0].mxu0
        %v7395 = vadd.f32 %v7318, %v7394
        %v7396 = vpop.f32.mrb[0].mxu0
        %7397 = vdwg.mxu0
        %7398 = vmatprep.subr.mxu0 0.0
        %v7399 = vand.u32 %v7057, 4294901760
        %v7400 = vsub.f32 %v7057, %v7399
        %v7401 = vand.u32 %v7400, 4294901760
        %7402 = vmatpush1.msra.mxu0 %v7401
        %7403 = vmatprep.subr.mxu0 0.0
        %v7404 = vand.u32 %v7058, 4294901760
        %v7405 = vsub.f32 %v7058, %v7404
        %v7406 = vand.u32 %v7405, 4294901760
        %7407 = vmatpush1.msra.mxu0 %v7406
        %7408 = vmatprep.subr.mxu0 0.0
        %v7409 = vand.u32 %v7059, 4294901760
        %v7410 = vsub.f32 %v7059, %v7409
        %v7411 = vand.u32 %v7410, 4294901760
        %7412 = vmatpush1.msra.mxu0 %v7411
        %7413 = vmatprep.subr.mxu0 0.0
        %v7414 = vand.u32 %v7060, 4294901760
        %v7415 = vsub.f32 %v7060, %v7414
        %v7416 = vand.u32 %v7415, 4294901760
        %7417 = vmatpush1.msra.mxu0 %v7416
        %7418 = vmatprep.subr.mxu0 0.0
        %7419 = vmatpush1.msra.mxu0 0.0
        %7420 = vmatprep.subr.mxu0 0.0
        %7421 = vmatpush1.msra.mxu0 0.0
        %7422 = vmatprep.subr.mxu0 0.0
        %7423 = vmatpush1.msra.mxu0 0.0
        %7424 = vmatprep.subr.mxu0 0.0
        %7425 = vmatpush1.msra.mxu0 0.0
        %7426 = vmatprep.subr.mxu0 0.0
        %7427 = vmatpush1.msra.mxu0 0.0
        %7428 = vmatprep.subr.mxu0 0.0
        %7429 = vmatpush1.msra.mxu0 0.0
        %7430 = vmatprep.subr.mxu0 0.0
        %7431 = vmatpush1.msra.mxu0 0.0
        %7432 = vmatprep.subr.mxu0 0.0
        %7433 = vmatpush1.msra.mxu0 0.0
        %7434 = vmatprep.subr.mxu0 0.0
        %7435 = vmatpush1.msra.mxu0 0.0
        %7436 = vmatprep.subr.mxu0 0.0
        %7437 = vmatpush1.msra.mxu0 0.0
        %7438 = vmatprep.subr.mxu0 0.0
        %7439 = vmatpush1.msra.mxu0 0.0
        %7440 = vmatprep.subr.mxu0 0.0
        %7441 = vmatpush1.msra.mxu0 0.0
        %7442 = vmatprep.subr.mxu0 0.0
        %7443 = vmatpush1.msra.mxu0 0.0
        %7444 = vmatprep.subr.mxu0 0.0
        %7445 = vmatpush1.msra.mxu0 0.0
        %7446 = vmatprep.subr.mxu0 0.0
        %7447 = vmatpush1.msra.mxu0 0.0
        %7448 = vmatprep.subr.mxu0 0.0
        %7449 = vmatpush1.msra.mxu0 0.0
        %7450 = vmatprep.subr.mxu0 0.0
        %7451 = vmatpush1.msra.mxu0 0.0
        %7452 = vmatprep.subr.mxu0 0.0
        %7453 = vmatpush1.msra.mxu0 0.0
        %7454 = vmatprep.subr.mxu0 0.0
        %7455 = vmatpush1.msra.mxu0 0.0
        %7456 = vmatprep.subr.mxu0 0.0
        %7457 = vmatpush1.msra.mxu0 0.0
        %7458 = vmatprep.subr.mxu0 0.0
        %7459 = vmatpush1.msra.mxu0 0.0
        %7460 = vmatprep.subr.mxu0 0.0
        %7461 = vmatpush1.msra.mxu0 0.0
        %7462 = vmatprep.subr.mxu0 0.0
        %7463 = vmatpush1.msra.mxu0 0.0
        %7464 = vmatprep.subr.mxu0 0.0
        %7465 = vmatpush1.msra.mxu0 0.0
        %7466 = vmatprep.subr.mxu0 0.0
        %7467 = vmatpush1.msra.mxu0 0.0
        %7468 = vmatprep.subr.mxu0 0.0
        %7469 = vmatpush1.msra.mxu0 0.0
        %7470 = vmatprep.subr.mxu0 0.0
        %7471 = vmatpush1.msra.mxu0 0.0
        %7472 = vmatprep.subr.mxu0 0.0
        %7473 = vmatpush1.msra.mxu0 0.0
        %7474 = vmatprep.mubr.f32.mxu0 0.0
        %v7475 = vand.u32 %v7069, 4294901760
        %7476 = vmatmul.mubr.f32.gmra.mrb[0].mxu0 %v7475
        %v7477 = vpop.f32.mrb[0].mxu0
        %v7478 = vadd.f32 %v7395, %v7477
        %v7479 = vpop.f32.mrb[0].mxu0
        %7480 = vdwg.mxu0
        %7481 = vmatprep.subr.mxu0 0.0
        %v7482 = vand.u32 %v7057, 4294901760
        %7483 = vmatpush1.msra.mxu0 %v7482
        %7484 = vmatprep.subr.mxu0 0.0
        %v7485 = vand.u32 %v7058, 4294901760
        %7486 = vmatpush1.msra.mxu0 %v7485
        %7487 = vmatprep.subr.mxu0 0.0
        %v7488 = vand.u32 %v7059, 4294901760
        %7489 = vmatpush1.msra.mxu0 %v7488
        %7490 = vmatprep.subr.mxu0 0.0
        %v7491 = vand.u32 %v7060, 4294901760
        %7492 = vmatpush1.msra.mxu0 %v7491
        %7493 = vmatprep.subr.mxu0 0.0
        %7494 = vmatpush1.msra.mxu0 0.0
        %7495 = vmatprep.subr.mxu0 0.0
        %7496 = vmatpush1.msra.mxu0 0.0
        %7497 = vmatprep.subr.mxu0 0.0
        %7498 = vmatpush1.msra.mxu0 0.0
        %7499 = vmatprep.subr.mxu0 0.0
        %7500 = vmatpush1.msra.mxu0 0.0
        %7501 = vmatprep.subr.mxu0 0.0
        %7502 = vmatpush1.msra.mxu0 0.0
        %7503 = vmatprep.subr.mxu0 0.0
        %7504 = vmatpush1.msra.mxu0 0.0
        %7505 = vmatprep.subr.mxu0 0.0
        %7506 = vmatpush1.msra.mxu0 0.0
        %7507 = vmatprep.subr.mxu0 0.0
        %7508 = vmatpush1.msra.mxu0 0.0
        %7509 = vmatprep.subr.mxu0 0.0
        %7510 = vmatpush1.msra.mxu0 0.0
        %7511 = vmatprep.subr.mxu0 0.0
        %7512 = vmatpush1.msra.mxu0 0.0
        %7513 = vmatprep.subr.mxu0 0.0
        %7514 = vmatpush1.msra.mxu0 0.0
        %7515 = vmatprep.subr.mxu0 0.0
        %7516 = vmatpush1.msra.mxu0 0.0
        %7517 = vmatprep.subr.mxu0 0.0
        %7518 = vmatpush1.msra.mxu0 0.0
        %7519 = vmatprep.subr.mxu0 0.0
        %7520 = vmatpush1.msra.mxu0 0.0
        %7521 = vmatprep.subr.mxu0 0.0
        %7522 = vmatpush1.msra.mxu0 0.0
        %7523 = vmatprep.subr.mxu0 0.0
        %7524 = vmatpush1.msra.mxu0 0.0
        %7525 = vmatprep.subr.mxu0 0.0
        %7526 = vmatpush1.msra.mxu0 0.0
        %7527 = vmatprep.subr.mxu0 0.0
        %7528 = vmatpush1.msra.mxu0 0.0
        %7529 = vmatprep.subr.mxu0 0.0
        %7530 = vmatpush1.msra.mxu0 0.0
        %7531 = vmatprep.subr.mxu0 0.0
        %7532 = vmatpush1.msra.mxu0 0.0
        %7533 = vmatprep.subr.mxu0 0.0
        %7534 = vmatpush1.msra.mxu0 0.0
        %7535 = vmatprep.subr.mxu0 0.0
        %7536 = vmatpush1.msra.mxu0 0.0
        %7537 = vmatprep.subr.mxu0 0.0
        %7538 = vmatpush1.msra.mxu0 0.0
        %7539 = vmatprep.subr.mxu0 0.0
        %7540 = vmatpush1.msra.mxu0 0.0
        %7541 = vmatprep.subr.mxu0 0.0
        %7542 = vmatpush1.msra.mxu0 0.0
        %7543 = vmatprep.subr.mxu0 0.0
        %7544 = vmatpush1.msra.mxu0 0.0
        %7545 = vmatprep.subr.mxu0 0.0
        %7546 = vmatpush1.msra.mxu0 0.0
        %7547 = vmatprep.subr.mxu0 0.0
        %7548 = vmatpush1.msra.mxu0 0.0
        %7549 = vmatprep.mubr.f32.mxu0 0.0
        %v7550 = vand.u32 %v7069, 4294901760
        %7551 = vmatmul.mubr.f32.gmra.mrb[0].mxu0 %v7550
        %v7552 = vpop.f32.mrb[0].mxu0
        %v7553 = vadd.f32 %v7478, %v7552
        %v7554 = vpop.f32.mrb[0].mxu0
        %7555 = vdwg.mxu0
        %v7556 = vmul.f32 %v7553, %v7553
        %v7557 = vmul.f32 %v7553, %v7556
        %v7558 = vmul.f32 %v7557, 0.044715
        %v7559 = vadd.f32 %v7553, %v7558
        %v7560 = vmul.f32 %v7559, 0.7978846
        %v7561 = vtanh.pop %v7560
        %v7562 = vadd.f32 %v7561, 1.0
        %v7563 = vmul.f32 %v7562, 0.5
        %v7564 = vmul.f32 %v7553, %v7563
        %v7565 = vld [vmem:[%s875] sm:$0xff]
        %v7566 = vld [vmem:[%s875 + $0x8] sm:$0xff]
        %v7567 = vld [vmem:[%s875 + $0x10] sm:$0xff]
        %v7568 = vld [vmem:[%s875 + $0x18] sm:$0xff]
        %v7569 = vld [vmem:[%s875 + $0x20] sm:$0xff]
        %v7570 = vld [vmem:[%s875 + $0x28] sm:$0xff]
        %v7571 = vld [vmem:[%s875 + $0x30] sm:$0xff]
        %v7572 = vld [vmem:[%s875 + $0x38] sm:$0xff]
        %v7573 = vld [vmem:[%s883] sm:$0x1]
        %v7575 = vlaneseq
        %v7576 = vshrl.u32 %v7575, 7
        %v7577 = vsub.s32 0, %v7576
        %v7578 = vrot.slane %v7573, %v7577
        %vm7580 = vcmask 523264
        %v7582 = vsel %vm7580, %v7564, 0
        %7584 = vmatprep.subr.mxu0 0.0
        %v7585 = vand.u32 %v7565, 4294901760
        %7586 = vmatpush1.msra.mxu0 %v7585
        %7587 = vmatprep.subr.mxu0 0.0
        %v7588 = vand.u32 %v7566, 4294901760
        %7589 = vmatpush1.msra.mxu0 %v7588
        %7590 = vmatprep.subr.mxu0 0.0
        %v7591 = vand.u32 %v7567, 4294901760
        %7592 = vmatpush1.msra.mxu0 %v7591
        %7593 = vmatprep.subr.mxu0 0.0
        %v7594 = vand.u32 %v7568, 4294901760
        %7595 = vmatpush1.msra.mxu0 %v7594
        %7596 = vmatprep.subr.mxu0 0.0
        %v7597 = vand.u32 %v7569, 4294901760
        %7598 = vmatpush1.msra.mxu0 %v7597
        %7599 = vmatprep.subr.mxu0 0.0
        %v7600 = vand.u32 %v7570, 4294901760
        %7601 = vmatpush1.msra.mxu0 %v7600
        %7602 = vmatprep.subr.mxu0 0.0
        %v7603 = vand.u32 %v7571, 4294901760
        %7604 = vmatpush1.msra.mxu0 %v7603
        %7605 = vmatprep.subr.mxu0 0.0
        %v7606 = vand.u32 %v7572, 4294901760
        %7607 = vmatpush1.msra.mxu0 %v7606
        %7608 = vmatprep.subr.mxu0 0.0
        %7609 = vmatpush1.msra.mxu0 0.0
        %7610 = vmatprep.subr.mxu0 0.0
        %7611 = vmatpush1.msra.mxu0 0.0
        %7612 = vmatprep.subr.mxu0 0.0
        %7613 = vmatpush1.msra.mxu0 0.0
        %7614 = vmatprep.subr.mxu0 0.0
        %7615 = vmatpush1.msra.mxu0 0.0
        %7616 = vmatprep.subr.mxu0 0.0
        %7617 = vmatpush1.msra.mxu0 0.0
        %7618 = vmatprep.subr.mxu0 0.0
        %7619 = vmatpush1.msra.mxu0 0.0
        %7620 = vmatprep.subr.mxu0 0.0
        %7621 = vmatpush1.msra.mxu0 0.0
        %7622 = vmatprep.subr.mxu0 0.0
        %7623 = vmatpush1.msra.mxu0 0.0
        %7624 = vmatprep.subr.mxu0 0.0
        %7625 = vmatpush1.msra.mxu0 0.0
        %7626 = vmatprep.subr.mxu0 0.0
        %7627 = vmatpush1.msra.mxu0 0.0
        %7628 = vmatprep.subr.mxu0 0.0
        %7629 = vmatpush1.msra.mxu0 0.0
        %7630 = vmatprep.subr.mxu0 0.0
        %7631 = vmatpush1.msra.mxu0 0.0
        %7632 = vmatprep.subr.mxu0 0.0
        %7633 = vmatpush1.msra.mxu0 0.0
        %7634 = vmatprep.subr.mxu0 0.0
        %7635 = vmatpush1.msra.mxu0 0.0
        %7636 = vmatprep.subr.mxu0 0.0
        %7637 = vmatpush1.msra.mxu0 0.0
        %7638 = vmatprep.subr.mxu0 0.0
        %7639 = vmatpush1.msra.mxu0 0.0
        %7640 = vmatprep.subr.mxu0 0.0
        %7641 = vmatpush1.msra.mxu0 0.0
        %7642 = vmatprep.subr.mxu0 0.0
        %7643 = vmatpush1.msra.mxu0 0.0
        %7644 = vmatprep.subr.mxu0 0.0
        %7645 = vmatpush1.msra.mxu0 0.0
        %7646 = vmatprep.subr.mxu0 0.0
        %7647 = vmatpush1.msra.mxu0 0.0
        %7648 = vmatprep.subr.mxu0 0.0
        %7649 = vmatpush1.msra.mxu0 0.0
        %7650 = vmatprep.subr.mxu0 0.0
        %7651 = vmatpush1.msra.mxu0 0.0
        %7652 = vmatprep.subr.mxu0 0.0
        %7653 = vmatpush1.msra.mxu0 0.0
        %7654 = vmatprep.subr.mxu0 0.0
        %7655 = vmatpush1.msra.mxu0 0.0
        %7656 = vmatprep.mubr.f32.mxu0 0.0
        %v7657 = vand.u32 %v7582, 4294901760
        %v7658 = vsub.f32 %v7582, %v7657
        %v7659 = vand.u32 %v7658, 4294901760
        %v7660 = vsub.f32 %v7658, %v7659
        %v7661 = vand.u32 %v7660, 4294901760
        %7662 = vmatmul.mubr.f32.gmra.mrb[0].mxu0 %v7661
        %v7663 = vpop.f32.mrb[0].mxu0
        %v7664 = vadd.f32 %v7578, %v7663
        %v7665 = vpop.f32.mrb[0].mxu0
        %7666 = vdwg.mxu0
        %7667 = vmatprep.subr.mxu0 0.0
        %v7668 = vand.u32 %v7565, 4294901760
        %v7669 = vsub.f32 %v7565, %v7668
        %v7670 = vand.u32 %v7669, 4294901760
        %v7671 = vsub.f32 %v7669, %v7670
        %v7672 = vand.u32 %v7671, 4294901760
        %7673 = vmatpush1.msra.mxu0 %v7672
        %7674 = vmatprep.subr.mxu0 0.0
        %v7675 = vand.u32 %v7566, 4294901760
        %v7676 = vsub.f32 %v7566, %v7675
        %v7677 = vand.u32 %v7676, 4294901760
        %v7678 = vsub.f32 %v7676, %v7677
        %v7679 = vand.u32 %v7678, 4294901760
        %7680 = vmatpush1.msra.mxu0 %v7679
        %7681 = vmatprep.subr.mxu0 0.0
        %v7682 = vand.u32 %v7567, 4294901760
        %v7683 = vsub.f32 %v7567, %v7682
        %v7684 = vand.u32 %v7683, 4294901760
        %v7685 = vsub.f32 %v7683, %v7684
        %v7686 = vand.u32 %v7685, 4294901760
        %7687 = vmatpush1.msra.mxu0 %v7686
        %7688 = vmatprep.subr.mxu0 0.0
        %v7689 = vand.u32 %v7568, 4294901760
        %v7690 = vsub.f32 %v7568, %v7689
        %v7691 = vand.u32 %v7690, 4294901760
        %v7692 = vsub.f32 %v7690, %v7691
        %v7693 = vand.u32 %v7692, 4294901760
        %7694 = vmatpush1.msra.mxu0 %v7693
        %7695 = vmatprep.subr.mxu0 0.0
        %v7696 = vand.u32 %v7569, 4294901760
        %v7697 = vsub.f32 %v7569, %v7696
        %v7698 = vand.u32 %v7697, 4294901760
        %v7699 = vsub.f32 %v7697, %v7698
        %v7700 = vand.u32 %v7699, 4294901760
        %7701 = vmatpush1.msra.mxu0 %v7700
        %7702 = vmatprep.subr.mxu0 0.0
        %v7703 = vand.u32 %v7570, 4294901760
        %v7704 = vsub.f32 %v7570, %v7703
        %v7705 = vand.u32 %v7704, 4294901760
        %v7706 = vsub.f32 %v7704, %v7705
        %v7707 = vand.u32 %v7706, 4294901760
        %7708 = vmatpush1.msra.mxu0 %v7707
        %7709 = vmatprep.subr.mxu0 0.0
        %v7710 = vand.u32 %v7571, 4294901760
        %v7711 = vsub.f32 %v7571, %v7710
        %v7712 = vand.u32 %v7711, 4294901760
        %v7713 = vsub.f32 %v7711, %v7712
        %v7714 = vand.u32 %v7713, 4294901760
        %7715 = vmatpush1.msra.mxu0 %v7714
        %7716 = vmatprep.subr.mxu0 0.0
        %v7717 = vand.u32 %v7572, 4294901760
        %v7718 = vsub.f32 %v7572, %v7717
        %v7719 = vand.u32 %v7718, 4294901760
        %v7720 = vsub.f32 %v7718, %v7719
        %v7721 = vand.u32 %v7720, 4294901760
        %7722 = vmatpush1.msra.mxu0 %v7721
        %7723 = vmatprep.subr.mxu0 0.0
        %7724 = vmatpush1.msra.mxu0 0.0
        %7725 = vmatprep.subr.mxu0 0.0
        %7726 = vmatpush1.msra.mxu0 0.0
        %7727 = vmatprep.subr.mxu0 0.0
        %7728 = vmatpush1.msra.mxu0 0.0
        %7729 = vmatprep.subr.mxu0 0.0
        %7730 = vmatpush1.msra.mxu0 0.0
        %7731 = vmatprep.subr.mxu0 0.0
        %7732 = vmatpush1.msra.mxu0 0.0
        %7733 = vmatprep.subr.mxu0 0.0
        %7734 = vmatpush1.msra.mxu0 0.0
        %7735 = vmatprep.subr.mxu0 0.0
        %7736 = vmatpush1.msra.mxu0 0.0
        %7737 = vmatprep.subr.mxu0 0.0
        %7738 = vmatpush1.msra.mxu0 0.0
        %7739 = vmatprep.subr.mxu0 0.0
        %7740 = vmatpush1.msra.mxu0 0.0
        %7741 = vmatprep.subr.mxu0 0.0
        %7742 = vmatpush1.msra.mxu0 0.0
        %7743 = vmatprep.subr.mxu0 0.0
        %7744 = vmatpush1.msra.mxu0 0.0
        %7745 = vmatprep.subr.mxu0 0.0
        %7746 = vmatpush1.msra.mxu0 0.0
        %7747 = vmatprep.subr.mxu0 0.0
        %7748 = vmatpush1.msra.mxu0 0.0
        %7749 = vmatprep.subr.mxu0 0.0
        %7750 = vmatpush1.msra.mxu0 0.0
        %7751 = vmatprep.subr.mxu0 0.0
        %7752 = vmatpush1.msra.mxu0 0.0
        %7753 = vmatprep.subr.mxu0 0.0
        %7754 = vmatpush1.msra.mxu0 0.0
        %7755 = vmatprep.subr.mxu0 0.0
        %7756 = vmatpush1.msra.mxu0 0.0
        %7757 = vmatprep.subr.mxu0 0.0
        %7758 = vmatpush1.msra.mxu0 0.0
        %7759 = vmatprep.subr.mxu0 0.0
        %7760 = vmatpush1.msra.mxu0 0.0
        %7761 = vmatprep.subr.mxu0 0.0
        %7762 = vmatpush1.msra.mxu0 0.0
        %7763 = vmatprep.subr.mxu0 0.0
        %7764 = vmatpush1.msra.mxu0 0.0
        %7765 = vmatprep.subr.mxu0 0.0
        %7766 = vmatpush1.msra.mxu0 0.0
        %7767 = vmatprep.subr.mxu0 0.0
        %7768 = vmatpush1.msra.mxu0 0.0
        %7769 = vmatprep.subr.mxu0 0.0
        %7770 = vmatpush1.msra.mxu0 0.0
        %7771 = vmatprep.mubr.f32.mxu0 0.0
        %v7772 = vand.u32 %v7582, 4294901760
        %7773 = vmatmul.mubr.f32.gmra.mrb[0].mxu0 %v7772
        %v7774 = vpop.f32.mrb[0].mxu0
        %v7775 = vadd.f32 %v7664, %v7774
        %v7776 = vpop.f32.mrb[0].mxu0
        %7777 = vdwg.mxu0
        %7778 = vmatprep.subr.mxu0 0.0
        %v7779 = vand.u32 %v7565, 4294901760
        %v7780 = vsub.f32 %v7565, %v7779
        %7781 = vmatpush1.msra.mxu0 %v7780
        %7782 = vmatprep.subr.mxu0 0.0
        %v7783 = vand.u32 %v7566, 4294901760
        %v7784 = vsub.f32 %v7566, %v7783
        %7785 = vmatpush1.msra.mxu0 %v7784
        %7786 = vmatprep.subr.mxu0 0.0
        %v7787 = vand.u32 %v7567, 4294901760
        %v7788 = vsub.f32 %v7567, %v7787
        %7789 = vmatpush1.msra.mxu0 %v7788
        %7790 = vmatprep.subr.mxu0 0.0
        %v7791 = vand.u32 %v7568, 4294901760
        %v7792 = vsub.f32 %v7568, %v7791
        %7793 = vmatpush1.msra.mxu0 %v7792
        %7794 = vmatprep.subr.mxu0 0.0
        %v7795 = vand.u32 %v7569, 4294901760
        %v7796 = vsub.f32 %v7569, %v7795
        %7797 = vmatpush1.msra.mxu0 %v7796
        %7798 = vmatprep.subr.mxu0 0.0
        %v7799 = vand.u32 %v7570, 4294901760
        %v7800 = vsub.f32 %v7570, %v7799
        %7801 = vmatpush1.msra.mxu0 %v7800
        %7802 = vmatprep.subr.mxu0 0.0
        %v7803 = vand.u32 %v7571, 4294901760
        %v7804 = vsub.f32 %v7571, %v7803
        %7805 = vmatpush1.msra.mxu0 %v7804
        %7806 = vmatprep.subr.mxu0 0.0
        %v7807 = vand.u32 %v7572, 4294901760
        %v7808 = vsub.f32 %v7572, %v7807
        %7809 = vmatpush1.msra.mxu0 %v7808
        %7810 = vmatprep.subr.mxu0 0.0
        %7811 = vmatpush1.msra.mxu0 0.0
        %7812 = vmatprep.subr.mxu0 0.0
        %7813 = vmatpush1.msra.mxu0 0.0
        %7814 = vmatprep.subr.mxu0 0.0
        %7815 = vmatpush1.msra.mxu0 0.0
        %7816 = vmatprep.subr.mxu0 0.0
        %7817 = vmatpush1.msra.mxu0 0.0
        %7818 = vmatprep.subr.mxu0 0.0
        %7819 = vmatpush1.msra.mxu0 0.0
        %7820 = vmatprep.subr.mxu0 0.0
        %7821 = vmatpush1.msra.mxu0 0.0
        %7822 = vmatprep.subr.mxu0 0.0
        %7823 = vmatpush1.msra.mxu0 0.0
        %7824 = vmatprep.subr.mxu0 0.0
        %7825 = vmatpush1.msra.mxu0 0.0
        %7826 = vmatprep.subr.mxu0 0.0
        %7827 = vmatpush1.msra.mxu0 0.0
        %7828 = vmatprep.subr.mxu0 0.0
        %7829 = vmatpush1.msra.mxu0 0.0
        %7830 = vmatprep.subr.mxu0 0.0
        %7831 = vmatpush1.msra.mxu0 0.0
        %7832 = vmatprep.subr.mxu0 0.0
        %7833 = vmatpush1.msra.mxu0 0.0
        %7834 = vmatprep.subr.mxu0 0.0
        %7835 = vmatpush1.msra.mxu0 0.0
        %7836 = vmatprep.subr.mxu0 0.0
        %7837 = vmatpush1.msra.mxu0 0.0
        %7838 = vmatprep.subr.mxu0 0.0
        %7839 = vmatpush1.msra.mxu0 0.0
        %7840 = vmatprep.subr.mxu0 0.0
        %7841 = vmatpush1.msra.mxu0 0.0
        %7842 = vmatprep.subr.mxu0 0.0
        %7843 = vmatpush1.msra.mxu0 0.0
        %7844 = vmatprep.subr.mxu0 0.0
        %7845 = vmatpush1.msra.mxu0 0.0
        %7846 = vmatprep.subr.mxu0 0.0
        %7847 = vmatpush1.msra.mxu0 0.0
        %7848 = vmatprep.subr.mxu0 0.0
        %7849 = vmatpush1.msra.mxu0 0.0
        %7850 = vmatprep.subr.mxu0 0.0
        %7851 = vmatpush1.msra.mxu0 0.0
        %7852 = vmatprep.subr.mxu0 0.0
        %7853 = vmatpush1.msra.mxu0 0.0
        %7854 = vmatprep.subr.mxu0 0.0
        %7855 = vmatpush1.msra.mxu0 0.0
        %7856 = vmatprep.subr.mxu0 0.0
        %7857 = vmatpush1.msra.mxu0 0.0
        %7858 = vmatprep.mubr.f32.mxu0 0.0
        %v7859 = vand.u32 %v7582, 4294901760
        %v7860 = vsub.f32 %v7582, %v7859
        %7861 = vmatmul.mubr.f32.gmra.mrb[0].mxu0 %v7860
        %v7862 = vpop.f32.mrb[0].mxu0
        %v7863 = vadd.f32 %v7775, %v7862
        %v7864 = vpop.f32.mrb[0].mxu0
        %7865 = vdwg.mxu0
        %7866 = vmatprep.subr.mxu0 0.0
        %v7867 = vand.u32 %v7565, 4294901760
        %7868 = vmatpush1.msra.mxu0 %v7867
        %7869 = vmatprep.subr.mxu0 0.0
        %v7870 = vand.u32 %v7566, 4294901760
        %7871 = vmatpush1.msra.mxu0 %v7870
        %7872 = vmatprep.subr.mxu0 0.0
        %v7873 = vand.u32 %v7567, 4294901760
        %7874 = vmatpush1.msra.mxu0 %v7873
        %7875 = vmatprep.subr.mxu0 0.0
        %v7876 = vand.u32 %v7568, 4294901760
        %7877 = vmatpush1.msra.mxu0 %v7876
        %7878 = vmatprep.subr.mxu0 0.0
        %v7879 = vand.u32 %v7569, 4294901760
        %7880 = vmatpush1.msra.mxu0 %v7879
        %7881 = vmatprep.subr.mxu0 0.0
        %v7882 = vand.u32 %v7570, 4294901760
        %7883 = vmatpush1.msra.mxu0 %v7882
        %7884 = vmatprep.subr.mxu0 0.0
        %v7885 = vand.u32 %v7571, 4294901760
        %7886 = vmatpush1.msra.mxu0 %v7885
        %7887 = vmatprep.subr.mxu0 0.0
        %v7888 = vand.u32 %v7572, 4294901760
        %7889 = vmatpush1.msra.mxu0 %v7888
        %7890 = vmatprep.subr.mxu0 0.0
        %7891 = vmatpush1.msra.mxu0 0.0
        %7892 = vmatprep.subr.mxu0 0.0
        %7893 = vmatpush1.msra.mxu0 0.0
        %7894 = vmatprep.subr.mxu0 0.0
        %7895 = vmatpush1.msra.mxu0 0.0
        %7896 = vmatprep.subr.mxu0 0.0
        %7897 = vmatpush1.msra.mxu0 0.0
        %7898 = vmatprep.subr.mxu0 0.0
        %7899 = vmatpush1.msra.mxu0 0.0
        %7900 = vmatprep.subr.mxu0 0.0
        %7901 = vmatpush1.msra.mxu0 0.0
        %7902 = vmatprep.subr.mxu0 0.0
        %7903 = vmatpush1.msra.mxu0 0.0
        %7904 = vmatprep.subr.mxu0 0.0
        %7905 = vmatpush1.msra.mxu0 0.0
        %7906 = vmatprep.subr.mxu0 0.0
        %7907 = vmatpush1.msra.mxu0 0.0
        %7908 = vmatprep.subr.mxu0 0.0
        %7909 = vmatpush1.msra.mxu0 0.0
        %7910 = vmatprep.subr.mxu0 0.0
        %7911 = vmatpush1.msra.mxu0 0.0
        %7912 = vmatprep.subr.mxu0 0.0
        %7913 = vmatpush1.msra.mxu0 0.0
        %7914 = vmatprep.subr.mxu0 0.0
        %7915 = vmatpush1.msra.mxu0 0.0
        %7916 = vmatprep.subr.mxu0 0.0
        %7917 = vmatpush1.msra.mxu0 0.0
        %7918 = vmatprep.subr.mxu0 0.0
        %7919 = vmatpush1.msra.mxu0 0.0
        %7920 = vmatprep.subr.mxu0 0.0
        %7921 = vmatpush1.msra.mxu0 0.0
        %7922 = vmatprep.subr.mxu0 0.0
        %7923 = vmatpush1.msra.mxu0 0.0
        %7924 = vmatprep.subr.mxu0 0.0
        %7925 = vmatpush1.msra.mxu0 0.0
        %7926 = vmatprep.subr.mxu0 0.0
        %7927 = vmatpush1.msra.mxu0 0.0
        %7928 = vmatprep.subr.mxu0 0.0
        %7929 = vmatpush1.msra.mxu0 0.0
        %7930 = vmatprep.subr.mxu0 0.0
        %7931 = vmatpush1.msra.mxu0 0.0
        %7932 = vmatprep.subr.mxu0 0.0
        %7933 = vmatpush1.msra.mxu0 0.0
        %7934 = vmatprep.subr.mxu0 0.0
        %7935 = vmatpush1.msra.mxu0 0.0
        %7936 = vmatprep.subr.mxu0 0.0
        %7937 = vmatpush1.msra.mxu0 0.0
        %7938 = vmatprep.mubr.f32.mxu0 0.0
        %v7939 = vand.u32 %v7582, 4294901760
        %v7940 = vsub.f32 %v7582, %v7939
        %v7941 = vand.u32 %v7940, 4294901760
        %7942 = vmatmul.mubr.f32.gmra.mrb[0].mxu0 %v7941
        %v7943 = vpop.f32.mrb[0].mxu0
        %v7944 = vadd.f32 %v7863, %v7943
        %v7945 = vpop.f32.mrb[0].mxu0
        %7946 = vdwg.mxu0
        %7947 = vmatprep.subr.mxu0 0.0
        %v7948 = vand.u32 %v7565, 4294901760
        %v7949 = vsub.f32 %v7565, %v7948
        %v7950 = vand.u32 %v7949, 4294901760
        %7951 = vmatpush1.msra.mxu0 %v7950
        %7952 = vmatprep.subr.mxu0 0.0
        %v7953 = vand.u32 %v7566, 4294901760
        %v7954 = vsub.f32 %v7566, %v7953
        %v7955 = vand.u32 %v7954, 4294901760
        %7956 = vmatpush1.msra.mxu0 %v7955
        %7957 = vmatprep.subr.mxu0 0.0
        %v7958 = vand.u32 %v7567, 4294901760
        %v7959 = vsub.f32 %v7567, %v7958
        %v7960 = vand.u32 %v7959, 4294901760
        %7961 = vmatpush1.msra.mxu0 %v7960
        %7962 = vmatprep.subr.mxu0 0.0
        %v7963 = vand.u32 %v7568, 4294901760
        %v7964 = vsub.f32 %v7568, %v7963
        %v7965 = vand.u32 %v7964, 4294901760
        %7966 = vmatpush1.msra.mxu0 %v7965
        %7967 = vmatprep.subr.mxu0 0.0
        %v7968 = vand.u32 %v7569, 4294901760
        %v7969 = vsub.f32 %v7569, %v7968
        %v7970 = vand.u32 %v7969, 4294901760
        %7971 = vmatpush1.msra.mxu0 %v7970
        %7972 = vmatprep.subr.mxu0 0.0
        %v7973 = vand.u32 %v7570, 4294901760
        %v7974 = vsub.f32 %v7570, %v7973
        %v7975 = vand.u32 %v7974, 4294901760
        %7976 = vmatpush1.msra.mxu0 %v7975
        %7977 = vmatprep.subr.mxu0 0.0
        %v7978 = vand.u32 %v7571, 4294901760
        %v7979 = vsub.f32 %v7571, %v7978
        %v7980 = vand.u32 %v7979, 4294901760
        %7981 = vmatpush1.msra.mxu0 %v7980
        %7982 = vmatprep.subr.mxu0 0.0
        %v7983 = vand.u32 %v7572, 4294901760
        %v7984 = vsub.f32 %v7572, %v7983
        %v7985 = vand.u32 %v7984, 4294901760
        %7986 = vmatpush1.msra.mxu0 %v7985
        %7987 = vmatprep.subr.mxu0 0.0
        %7988 = vmatpush1.msra.mxu0 0.0
        %7989 = vmatprep.subr.mxu0 0.0
        %7990 = vmatpush1.msra.mxu0 0.0
        %7991 = vmatprep.subr.mxu0 0.0
        %7992 = vmatpush1.msra.mxu0 0.0
        %7993 = vmatprep.subr.mxu0 0.0
        %7994 = vmatpush1.msra.mxu0 0.0
        %7995 = vmatprep.subr.mxu0 0.0
        %7996 = vmatpush1.msra.mxu0 0.0
        %7997 = vmatprep.subr.mxu0 0.0
        %7998 = vmatpush1.msra.mxu0 0.0
        %7999 = vmatprep.subr.mxu0 0.0
        %8000 = vmatpush1.msra.mxu0 0.0
        %8001 = vmatprep.subr.mxu0 0.0
        %8002 = vmatpush1.msra.mxu0 0.0
        %8003 = vmatprep.subr.mxu0 0.0
        %8004 = vmatpush1.msra.mxu0 0.0
        %8005 = vmatprep.subr.mxu0 0.0
        %8006 = vmatpush1.msra.mxu0 0.0
        %8007 = vmatprep.subr.mxu0 0.0
        %8008 = vmatpush1.msra.mxu0 0.0
        %8009 = vmatprep.subr.mxu0 0.0
        %8010 = vmatpush1.msra.mxu0 0.0
        %8011 = vmatprep.subr.mxu0 0.0
        %8012 = vmatpush1.msra.mxu0 0.0
        %8013 = vmatprep.subr.mxu0 0.0
        %8014 = vmatpush1.msra.mxu0 0.0
        %8015 = vmatprep.subr.mxu0 0.0
        %8016 = vmatpush1.msra.mxu0 0.0
        %8017 = vmatprep.subr.mxu0 0.0
        %8018 = vmatpush1.msra.mxu0 0.0
        %8019 = vmatprep.subr.mxu0 0.0
        %8020 = vmatpush1.msra.mxu0 0.0
        %8021 = vmatprep.subr.mxu0 0.0
        %8022 = vmatpush1.msra.mxu0 0.0
        %8023 = vmatprep.subr.mxu0 0.0
        %8024 = vmatpush1.msra.mxu0 0.0
        %8025 = vmatprep.subr.mxu0 0.0
        %8026 = vmatpush1.msra.mxu0 0.0
        %8027 = vmatprep.subr.mxu0 0.0
        %8028 = vmatpush1.msra.mxu0 0.0
        %8029 = vmatprep.subr.mxu0 0.0
        %8030 = vmatpush1.msra.mxu0 0.0
        %8031 = vmatprep.subr.mxu0 0.0
        %8032 = vmatpush1.msra.mxu0 0.0
        %8033 = vmatprep.subr.mxu0 0.0
        %8034 = vmatpush1.msra.mxu0 0.0
        %8035 = vmatprep.mubr.f32.mxu0 0.0
        %v8036 = vand.u32 %v7582, 4294901760
        %8037 = vmatmul.mubr.f32.gmra.mrb[0].mxu0 %v8036
        %v8038 = vpop.f32.mrb[0].mxu0
        %v8039 = vadd.f32 %v7944, %v8038
        %v8040 = vpop.f32.mrb[0].mxu0
        %8041 = vdwg.mxu0
        %8042 = vmatprep.subr.mxu0 0.0
        %v8043 = vand.u32 %v7565, 4294901760
        %8044 = vmatpush1.msra.mxu0 %v8043
        %8045 = vmatprep.subr.mxu0 0.0
        %v8046 = vand.u32 %v7566, 4294901760
        %8047 = vmatpush1.msra.mxu0 %v8046
        %8048 = vmatprep.subr.mxu0 0.0
        %v8049 = vand.u32 %v7567, 4294901760
        %8050 = vmatpush1.msra.mxu0 %v8049
        %8051 = vmatprep.subr.mxu0 0.0
        %v8052 = vand.u32 %v7568, 4294901760
        %8053 = vmatpush1.msra.mxu0 %v8052
        %8054 = vmatprep.subr.mxu0 0.0
        %v8055 = vand.u32 %v7569, 4294901760
        %8056 = vmatpush1.msra.mxu0 %v8055
        %8057 = vmatprep.subr.mxu0 0.0
        %v8058 = vand.u32 %v7570, 4294901760
        %8059 = vmatpush1.msra.mxu0 %v8058
        %8060 = vmatprep.subr.mxu0 0.0
        %v8061 = vand.u32 %v7571, 4294901760
        %8062 = vmatpush1.msra.mxu0 %v8061
        %8063 = vmatprep.subr.mxu0 0.0
        %v8064 = vand.u32 %v7572, 4294901760
        %8065 = vmatpush1.msra.mxu0 %v8064
        %8066 = vmatprep.subr.mxu0 0.0
        %8067 = vmatpush1.msra.mxu0 0.0
        %8068 = vmatprep.subr.mxu0 0.0
        %8069 = vmatpush1.msra.mxu0 0.0
        %8070 = vmatprep.subr.mxu0 0.0
        %8071 = vmatpush1.msra.mxu0 0.0
        %8072 = vmatprep.subr.mxu0 0.0
        %8073 = vmatpush1.msra.mxu0 0.0
        %8074 = vmatprep.subr.mxu0 0.0
        %8075 = vmatpush1.msra.mxu0 0.0
        %8076 = vmatprep.subr.mxu0 0.0
        %8077 = vmatpush1.msra.mxu0 0.0
        %8078 = vmatprep.subr.mxu0 0.0
        %8079 = vmatpush1.msra.mxu0 0.0
        %8080 = vmatprep.subr.mxu0 0.0
        %8081 = vmatpush1.msra.mxu0 0.0
        %8082 = vmatprep.subr.mxu0 0.0
        %8083 = vmatpush1.msra.mxu0 0.0
        %8084 = vmatprep.subr.mxu0 0.0
        %8085 = vmatpush1.msra.mxu0 0.0
        %8086 = vmatprep.subr.mxu0 0.0
        %8087 = vmatpush1.msra.mxu0 0.0
        %8088 = vmatprep.subr.mxu0 0.0
        %8089 = vmatpush1.msra.mxu0 0.0
        %8090 = vmatprep.subr.mxu0 0.0
        %8091 = vmatpush1.msra.mxu0 0.0
        %8092 = vmatprep.subr.mxu0 0.0
        %8093 = vmatpush1.msra.mxu0 0.0
        %8094 = vmatprep.subr.mxu0 0.0
        %8095 = vmatpush1.msra.mxu0 0.0
        %8096 = vmatprep.subr.mxu0 0.0
        %8097 = vmatpush1.msra.mxu0 0.0
        %8098 = vmatprep.subr.mxu0 0.0
        %8099 = vmatpush1.msra.mxu0 0.0
        %8100 = vmatprep.subr.mxu0 0.0
        %8101 = vmatpush1.msra.mxu0 0.0
        %8102 = vmatprep.subr.mxu0 0.0
        %8103 = vmatpush1.msra.mxu0 0.0
        %8104 = vmatprep.subr.mxu0 0.0
        %8105 = vmatpush1.msra.mxu0 0.0
        %8106 = vmatprep.subr.mxu0 0.0
        %8107 = vmatpush1.msra.mxu0 0.0
        %8108 = vmatprep.subr.mxu0 0.0
        %8109 = vmatpush1.msra.mxu0 0.0
        %8110 = vmatprep.subr.mxu0 0.0
        %8111 = vmatpush1.msra.mxu0 0.0
        %8112 = vmatprep.subr.mxu0 0.0
        %8113 = vmatpush1.msra.mxu0 0.0
        %8114 = vmatprep.mubr.f32.mxu0 0.0
        %v8115 = vand.u32 %v7582, 4294901760
        %8116 = vmatmul.mubr.f32.gmra.mrb[0].mxu0 %v8115
        %v8117 = vpop.f32.mrb[0].mxu0
        %v8118 = vadd.f32 %v8039, %v8117
        %v8119 = vpop.f32.mrb[0].mxu0
        %8120 = vdwg.mxu0
        %v8121 = vadd.f32 %v7056, %v8118
        %v8122 = vld [vmem:[%s891] sm:$0x1]
        %v8123 = vld [vmem:[%s899] sm:$0x1]
        %v8124 = vsel %vm1053, %v8121, 0.0
        %8125 = vadd.xlane.f32.xlu0 %v8124
        %v8126 = vpop.xlane.xlu0 %8125
        %v8127 = vmul.f32 %v8126, %v7032
        %v8128 = vsub.f32 %v8121, %v8127
        %v8129 = vmul.f32 %v8128, %v8128
        %v8130 = vsel %vm1053, %v8129, 0.0
        %8131 = vadd.xlane.f32.xlu0 %v8130
        %v8132 = vpop.xlane.xlu0 %8131
        %v8133 = vmul.f32 %v8132, %v7032
        %v8134 = vadd.f32 %v8133, 1e-12
        %v8135 = vrsqrt.pop %v8134
        %v8136 = vmul.f32 %v8128, %v8135
        %v8138 = vlaneseq
        %v8139 = vshrl.u32 %v8138, 7
        %v8140 = vsub.s32 0, %v8139
        %v8141 = vrot.slane %v8122, %v8140
        %v8143 = vmul.f32 %v8136, %v8141
        %v8145 = vlaneseq
        %v8146 = vshrl.u32 %v8145, 7
        %v8147 = vsub.s32 0, %v8146
        %v8148 = vrot.slane %v8123, %v8147
        %v8150 = vadd.f32 %v8143, %v8148
        %8151 = vst.msk [vmem:[#allocation2] sm:$0xff] %vm1053, %v8150
        %p8152 = scmp.eq.s32.totalorder %s42, 1
        // Predicated region
        $region153: #{tpu_custom_call.1} parent=83 // pred_check
          %p8153 = pneg %p8152
        $region154: #{tpu_custom_call.1} parent=83 // pred_check_branch
          %8155 = sbr.rel (%p8153) target = $region156
        $region155: #{tpu_custom_call.1} parent=83 // pred_region
          %vm8156 = vcmask 253952
          %8157 = vst.msk [vmem:[%s1002] sm:$0x1] %vm8156, %v8150
        $region156: #{tpu_custom_call.1} parent=83 // pred_fallthru
          _
        %s8158 = sand.u32 %s463, 1
        %s8159 = scalar_lea.sflag [#allocation5], %s8158
        %s8160 = sand.u32 %s463, 1
        %s8161 = scalar_lea.vmem [#allocation23], %s8160
        // Predicated region
        $region157: #{tpu_custom_call.1} parent=83 // pred_check
          %p8162 = pneg %p473
        $region158: #{tpu_custom_call.1} parent=83 // pred_check_branch
          %8164 = sbr.rel (%p8162) target = $region160
        $region159: #{tpu_custom_call.1} parent=83 // pred_region
          %s8166 = ssub.s32 16, 16
          %8167 = vsyncadd %s8159, %s8166
          %s8168 = smul.addr %s41, 16
          %s8169 = scalar_lea.hbm %s16, %s8168
          %s8171 = sshll.u32 %s8161, 4
          %s8172 = int_to_ptr.vmem [resolvable:$true] %s8171
          %8174 = dma.vmem_to_hbm [thread:$0]  %s8172, 16, %s8169, %s8159
        $region160: #{tpu_custom_call.1} parent=83 // pred_fallthru
          _
      $region84: #{tpu_custom_call.1} parent=5 // pred_fallthru
        _
      %p8175 = scmp.le.s32.totalorder 2, %s32
      // Predicated region
      $region161: #{tpu_custom_call.1} parent=5 // pred_check
        %p8176 = pneg %p8175
      $region162: #{tpu_custom_call.1} parent=5 // pred_check_branch
        %8178 = sbr.rel (%p8176) target = $region164
      $region163: #{tpu_custom_call.1} parent=5 // pred_region
        %s8179 = ssub.s32 %s32, 2
        // Predicated region
        $region165: #{tpu_custom_call.1} parent=163 // pred_check
          %p8180 = pneg %p479
        $region166: #{tpu_custom_call.1} parent=163 // pred_check_branch
          %8182 = sbr.rel (%p8180) target = $region168
        $region167: #{tpu_custom_call.1} parent=163 // pred_region
          %s8183 = sand.u32 %s464, 1
          %s8184 = scalar_lea.sflag [#allocation5], %s8183
          %s8185 = sand.u32 %s464, 1
          %s8186 = scalar_lea.vmem [#allocation23], %s8185
          %8187 = dma.done %s8184, 16
        $region168: #{tpu_custom_call.1} parent=163 // pred_fallthru
          _
      $region164: #{tpu_custom_call.1} parent=5 // pred_fallthru
        _
    $region6: #{tpu_custom_call.1} parent=1 // loop_footer
      %s36 = sadd.s32 1, %s32
    $region7: #{tpu_custom_call.1} parent=1 // loop_footer_branch
      %31 = sbr.rel target = $region3
    $region8: #{tpu_custom_call.1} parent=1 // loop_exit
      _
    %8188 = vsyncpa [#allocation4], 1
    %s8189 = scalar_lea.sflag [#allocation4], 1
    %8190 = vsyncpa %s8189, 1
    %8191 = vsyncpa [#allocation7], 1
    %s8192 = scalar_lea.sflag [#allocation7], 1
    %8193 = vsyncpa %s8192, 1
    %8194 = vsyncpa [#allocation10], 1
    %8195 = vsyncpa [#allocation5], 1
    %s8196 = scalar_lea.sflag [#allocation5], 1
    %8197 = vsyncpa %s8196, 1

</llo_original>
